<compile_context>
chip_gen: v7x
topology: tpu7x:2x2x1
jax: 0.10.0
libtpu: 0.0.40
codegen_flags: <defaults>
</compile_context>

<pallas_src>
import functools
import math

import numpy as np
import jax
import jax.numpy as jnp
from jax import lax
from jax.experimental import pallas as pl
from jax.experimental.pallas import tpu as pltpu


# ------------------------------ weight packing --------------------------------

_ROW_ALIGN = 8  # keep every tensor's row offset sublane-aligned


def _round_up(x, m):
    return ((x + m - 1) // m) * m


def pack_weights(entries, ncols):
    """entries: list of (key, 2-D array).  Returns (packed f32 buffer,
    layout: key -> (row_offset, (rows, cols)))."""
    layout = {}
    off = 0
    for key, arr in entries:
        r, c = arr.shape
        assert c <= ncols, (key, arr.shape, ncols)
        layout[key] = (off, (r, c))
        off += _round_up(r, _ROW_ALIGN)
    buf = np.zeros((_round_up(off, _ROW_ALIGN), ncols), np.float32)
    for key, arr in entries:
        o, (r, c) = layout[key]
        buf[o:o + r, :c] = np.asarray(arr, np.float32)
    return jnp.asarray(buf), layout


# ------------------------------ kernel helpers --------------------------------

def _layernorm(x, w, b, eps=1e-5):
    mu = jnp.mean(x, axis=-1, keepdims=True)
    var = jnp.mean((x - mu) ** 2, axis=-1, keepdims=True)
    return (x - mu) * lax.rsqrt(var + eps) * w + b


# -------------------------------- fused kernel --------------------------------

def hit_fused_kernel(code_ids_ref, path_ids_ref, pk_ref, o_ref, src_scr,
                     *, layout, cfg):
    b, s, p = cfg["b"], cfg["s"], cfg["p"]
    e1, e2 = cfg["e1"], cfg["e2"]
    v0, v1 = cfg["v0"], cfg["v1"]
    nhead = cfg["nhead"]
    path_nlayers, nlayers = cfg["path_nlayers"], cfg["nlayers"]
    E = e1 + e2

    def w(key):
        off, (r, c) = layout[key]
        return pk_ref[off:off + r, 0:c]          # static slice of packed buffer

    def mm(a, bm):
        # bf16 operands for the MXU (native on v5e/v6e/v7x), f32 accumulation.
        return jnp.dot(a.astype(jnp.bfloat16), bm.astype(jnp.bfloat16),
                       preferred_element_type=jnp.float32)

    # ---------- embeddings (one-hot MXU matmul) + positional encoding --------
    code_ids = code_ids_ref[...]                                   # (b*s, 1)
    path_ids = path_ids_ref[...]                                   # (b*s*p, 1)

    code_oh = (code_ids == lax.broadcasted_iota(jnp.int32, (b * s, v0), 1)
               ).astype(jnp.float32)
    code_x = mm(code_oh, w(("emb", "code"))) * math.sqrt(e1)       # (b*s, e1)
    code_x = (code_x.reshape(b, s, e1) + w(("pe", "code"))[None]
              ).reshape(b * s, e1)

    path_oh = (path_ids == lax.broadcasted_iota(jnp.int32, (b * s * p, v1), 1)
               ).astype(jnp.float32)
    path_x = mm(path_oh, w(("emb", "path"))) * math.sqrt(e2)       # (b*s*p, e2)
    path_x = (path_x.reshape(b * s, p, e2) + w(("pe", "path"))[None]
              ).reshape(b * s * p, e2)

    # --------------- one PyTorch post-norm / ReLU encoder layer --------------
    def encoder_layer(x2, N, S, pref):
        E_ = x2.shape[-1]
        D = E_ // nhead
        scale = 1.0 / math.sqrt(D)

        qkv = mm(x2, w(pref + ("wqkv",))) + w(pref + ("bqkv",))    # (N*S, 3E_)
        q = qkv[:, :E_].reshape(N, S, E_)
        k = qkv[:, E_:2 * E_].reshape(N, S, E_)
        v = qkv[:, 2 * E_:].reshape(N, S, E_)

        wo = w(pref + ("wo",))                                     # (E_, E_)
        attn = jnp.zeros((N * S, E_), jnp.float32)
        for h in range(nhead):                  # tiny static loop (nhead = 2)
            sl = slice(h * D, (h + 1) * D)
            qh = (q[:, :, sl] * scale).astype(jnp.bfloat16)
            kh = k[:, :, sl].astype(jnp.bfloat16)
            vh = v[:, :, sl].astype(jnp.bfloat16)
            sc = jnp.einsum('nqd,nkd->nqk', qh, kh,
                            preferred_element_type=jnp.float32)    # (N, S, S)
            sc = sc - jnp.max(sc, axis=-1, keepdims=True)
            pa = jnp.exp(sc)
            pa = pa * pl.reciprocal(jnp.sum(pa, axis=-1, keepdims=True),
                                    approx=True)
            ctx = jnp.einsum('nqk,nkd->nqd', pa.astype(jnp.bfloat16), vh,
                             preferred_element_type=jnp.float32)   # (N, S, D)
            # push this head through the matching rows of W_o and accumulate:
            # removes the per-head lane concat entirely.
            attn = attn + mm(ctx.reshape(N * S, D), wo[sl, :])
        attn = attn + w(pref + ("bo",))

        x1 = _layernorm(x2 + attn, w(pref + ("ln1w",)), w(pref + ("ln1b",)))
        h1 = jnp.maximum(mm(x1, w(pref + ("w1",))) + w(pref + ("b1",)), 0.0)
        h2 = mm(h1, w(pref + ("w2",))) + w(pref + ("b2",))
        return _layernorm(x1 + h2, w(pref + ("ln2w",)), w(pref + ("ln2b",)))

    # ------------------------------ path encoder ------------------------------
    xp = path_x
    for i in range(path_nlayers):
        xp = encoder_layer(xp, b * s, p, ("path", i))
    path_cls = xp.reshape(b * s, p, e2)[:, 0, :]       # == path_encoder(...)[0]

    # --------- concat(code_encode, path_encode) via two partial stores --------
    src_scr[:, 0:e1] = code_x
    src_scr[:, e1:E] = path_cls
    src = src_scr[...]                                             # (b*s, E)

    # ---------------------------- main transformer ----------------------------
    for i in range(nlayers):
        src = encoder_layer(src, b, s, ("main", i))
    cls = src.reshape(b, s, E)[:, 0, :]                # == src[0]  -> (b, E)

    # ---------------------- decoder + softmax(dim=1) --------------------------
    logits = mm(cls, w(("dec", "w"))) + w(("dec", "b"))
    m = jnp.max(logits, axis=-1, keepdims=True)
    ex = jnp.exp(logits - m)
    o_ref[...] = (ex / jnp.sum(ex, axis=-1, keepdims=True)).astype(o_ref.dtype)
    # TODO(synk): labels / CrossEntropyLoss branch intentionally not implemented.


def _full_spec(a):
    nd = a.ndim
    return pl.BlockSpec(a.shape, lambda nd=nd: (0,) * nd)


def hit_fused(code_ids, path_ids, packed, *, layout, cfg):
    kernel = functools.partial(hit_fused_kernel, layout=layout, cfg=cfg)
    b, ncls = cfg["b"], cfg["ncls"]
    E = cfg["e1"] + cfg["e2"]
    return pl.pallas_call(
        kernel,
        out_shape=jax.ShapeDtypeStruct((b, ncls), jnp.float32),
        in_specs=[_full_spec(code_ids), _full_spec(path_ids), _full_spec(packed)],
        out_specs=pl.BlockSpec((b, ncls), lambda: (0, 0)),
        scratch_shapes=[pltpu.VMEM((cfg["b"] * cfg["s"], E), jnp.float32)],
    )(code_ids, path_ids, packed)


# --------------------------- parameter construction ---------------------------

def _linear(key, in_dim, out_dim):
    w = jax.random.normal(key, (in_dim, out_dim), jnp.float32) * 0.02
    b = jnp.zeros((1, out_dim), jnp.float32)
    return w, b


def init_encoder_layer(key, E, nhead, nhid):
    k = jax.random.split(key, 4)
    wqkv, bqkv = _linear(k[0], E, 3 * E)
    wo, bo = _linear(k[1], E, E)
    w1, b1 = _linear(k[2], E, nhid)
    w2, b2 = _linear(k[3], nhid, E)
    ones = jnp.ones((1, E), jnp.float32)
    zeros = jnp.zeros((1, E), jnp.float32)
    return dict(wqkv=wqkv, bqkv=bqkv, wo=wo, bo=bo, ln1w=ones, ln1b=zeros,
                w1=w1, b1=b1, w2=w2, b2=b2, ln2w=ones, ln2b=zeros)


def sinusoidal_pe(length, e):
    pos = np.arange(length, dtype=np.float32)[:, None]
    div = np.exp(np.arange(0, e, 2, dtype=np.float32) * (-math.log(10000.0) / e))
    pe = np.zeros((length, e), np.float32)
    pe[:, 0::2] = np.sin(pos * div)
    pe[:, 1::2] = np.cos(pos * div)
    return jnp.asarray(pe)


def build_packed_model(key, ntokens, ncls, emsizes, nhead, nhid, nlayers,
                       path_nlayers, s, p):
    e1, e2 = emsizes
    E = e1 + e2
    keys = jax.random.split(key, 3 + nlayers + path_nlayers)
    emb_code = jax.random.normal(keys[0], (ntokens[0], e1), jnp.float32) * 0.02
    emb_path = jax.random.normal(keys[1], (ntokens[1], e2), jnp.float32) * 0.02
    pe_code = sinusoidal_pe(s, e1)
    pe_path = sinusoidal_pe(p, e2)
    path_layers = [init_encoder_layer(keys[2 + i], e2, nhead, nhid)
                   for i in range(path_nlayers)]
    main_layers = [init_encoder_layer(keys[2 + path_nlayers + i], E, nhead, nhid)
                   for i in range(nlayers)]
    dec_w, dec_b = _linear(keys[-1], E, ncls)

    entries = []
    for i, lp in enumerate(path_layers):
        for name, arr in lp.items():
            entries.append((("path", i, name), arr))
    for i, lp in enumerate(main_layers):
        for name, arr in lp.items():
            entries.append((("main", i, name), arr))
    entries += [(("dec", "w"), dec_w), (("dec", "b"), dec_b),
                (("emb", "code"), emb_code), (("pe", "code"), pe_code),
                (("emb", "path"), emb_path), (("pe", "path"), pe_path)]
    ncols = max(arr.shape[1] for _, arr in entries)
    packed, layout = pack_weights(entries, ncols)
    cfg = dict(s=s, p=p, e1=e1, e2=e2, v0=ntokens[0], v1=ntokens[1],
               nhead=nhead, ncls=ncls, path_nlayers=path_nlayers,
               nlayers=nlayers)
    return packed, layout, cfg


# ---------------------------------- forward -----------------------------------

def hit_simply_forward(packed, code_inp, path_inp, *, layout, cfg):
    b, s = code_inp.shape
    _, s2, p = path_inp.shape
    assert s2 == s == cfg["s"] and p == cfg["p"]
    # Only per-call host work: flatten token ids; everything else (embedding,
    # PE, both transformer stacks, decoder, softmax) runs in one pallas_call.
    code_ids = code_inp.reshape(b * s, 1).astype(jnp.int32)
    path_ids = path_inp.reshape(b * s * p, 1).astype(jnp.int32)
    full_cfg = dict(cfg, b=b)
    return hit_fused(code_ids, path_ids, packed, layout=layout, cfg=full_cfg)


# ------------------------------------ main -------------------------------------

if __name__ == "__main__":
    # Small config consistent with HiT_simply(__init__):
    ntokens = (50, 40)        # code vocab, path vocab
    emsizes = (16, 16)        # -> emsize = 32
    ncls = 4
    nhead = 2
    nhid = 32
    nlayers = 1
    path_nlayers = 2

    b, s, p_len = 2, 8, 8     # batch, #paths/statements, path token length

    key = jax.random.PRNGKey(0)
    kparam, kcode, kpath = jax.random.split(key, 3)
    packed, layout, cfg = build_packed_model(kparam, ntokens, ncls, emsizes,
                                             nhead, nhid, nlayers,
                                             path_nlayers, s, p_len)

    code_inp = jax.random.randint(kcode, (b, s), 0, ntokens[0], dtype=jnp.int32)
    path_inp = jax.random.randint(kpath, (b, s, p_len), 0, ntokens[1],
                                  dtype=jnp.int32)

    fwd = jax.jit(functools.partial(hit_simply_forward, layout=layout, cfg=cfg))
    prob = jax.block_until_ready(fwd(packed, code_inp, path_inp))

    assert prob.shape == (b, ncls)
    assert bool(jnp.all(jnp.abs(jnp.sum(prob, axis=1) - 1.0) < 1e-3))
    print("KERNEL_OK")
</pallas_src>

<mosaic_0001>
module attributes {stable_mosaic.version = 11 : i64} {
  func.func @hit_fused_kernel(%arg0: memref<16x1xi32, #tpu.memory_space<vmem>>, %arg1: memref<128x1xi32, #tpu.memory_space<vmem>>, %arg2: memref<632x96xf32, #tpu.memory_space<vmem>>, %arg3: memref<2x4xf32, #tpu.memory_space<vmem>>, %arg4: memref<16x32xf32, #tpu.memory_space<vmem>>) attributes {dimension_semantics = [], scalar_prefetch = 0 : i64, scratch_operands = 1 : i64, tpu.core_type = #tpu.core_type<tc>} {
    %c0 = arith.constant 0 : index
    %c0_0 = arith.constant 0 : index
    %0 = vector.load %arg0[%c0, %c0_0] : memref<16x1xi32, #tpu.memory_space<vmem>>, vector<16x1xi32>
    %c0_1 = arith.constant 0 : index
    %c0_2 = arith.constant 0 : index
    %1 = vector.load %arg1[%c0_1, %c0_2] : memref<128x1xi32, #tpu.memory_space<vmem>>, vector<128x1xi32>
    %2 = tpu.iota {dimensions = array<i32: 1>} : vector<16x50xi32>
    %3 = vector.broadcast %0 : vector<16x1xi32> to vector<16x50xi32>
    %4 = arith.cmpi eq, %3, %2 : vector<16x50xi32>
    %5 = arith.extui %4 : vector<16x50xi1> to vector<16x50xi32>
    %6 = arith.sitofp %5 : vector<16x50xi32> to vector<16x50xf32>
    %c520 = arith.constant 520 : index
    %c0_3 = arith.constant 0 : index
    %7 = vector.load %arg2[%c520, %c0_3] : memref<632x96xf32, #tpu.memory_space<vmem>>, vector<50x16xf32>
    %8 = arith.truncf %6 : vector<16x50xf32> to vector<16x50xbf16>
    %9 = arith.truncf %7 : vector<50x16xf32> to vector<50x16xbf16>
    %cst = arith.constant dense<0.000000e+00> : vector<16x16xf32>
    %10 = tpu.matmul %8, %9, %cst {dimension_numbers = #tpu.dot_dimension_numbers<[1], [0], [0], [1], [0, 0, 1, 1], [], []>} : vector<16x50xbf16>, vector<50x16xbf16>, vector<16x16xf32> -> vector<16x16xf32>
    %cst_4 = arith.constant 4.000000e+00 : f32
    %11 = vector.broadcast %cst_4 : f32 to vector<16x16xf32>
    %12 = arith.mulf %10, %11 : vector<16x16xf32>
    %13 = vector.shape_cast %12 : vector<16x16xf32> to vector<2x8x16xf32>
    %c576 = arith.constant 576 : index
    %c0_5 = arith.constant 0 : index
    %14 = vector.load %arg2[%c576, %c0_5] : memref<632x96xf32, #tpu.memory_space<vmem>>, vector<8x16xf32>
    %15 = vector.shape_cast %14 : vector<8x16xf32> to vector<1x8x16xf32>
    %16 = vector.broadcast %15 : vector<1x8x16xf32> to vector<2x8x16xf32>
    %17 = arith.addf %13, %16 : vector<2x8x16xf32>
    %18 = vector.shape_cast %17 : vector<2x8x16xf32> to vector<16x16xf32>
    %19 = tpu.iota {dimensions = array<i32: 1>} : vector<128x40xi32>
    %20 = vector.broadcast %1 : vector<128x1xi32> to vector<128x40xi32>
    %21 = arith.cmpi eq, %20, %19 : vector<128x40xi32>
    %22 = arith.extui %21 : vector<128x40xi1> to vector<128x40xi32>
    %23 = arith.sitofp %22 : vector<128x40xi32> to vector<128x40xf32>
    %c584 = arith.constant 584 : index
    %c0_6 = arith.constant 0 : index
    %24 = vector.load %arg2[%c584, %c0_6] : memref<632x96xf32, #tpu.memory_space<vmem>>, vector<40x16xf32>
    %25 = arith.truncf %23 : vector<128x40xf32> to vector<128x40xbf16>
    %26 = arith.truncf %24 : vector<40x16xf32> to vector<40x16xbf16>
    %cst_7 = arith.constant dense<0.000000e+00> : vector<128x16xf32>
    %27 = tpu.matmul %25, %26, %cst_7 {dimension_numbers = #tpu.dot_dimension_numbers<[1], [0], [0], [1], [0, 0, 1, 1], [], []>} : vector<128x40xbf16>, vector<40x16xbf16>, vector<128x16xf32> -> vector<128x16xf32>
    %cst_8 = arith.constant 4.000000e+00 : f32
    %28 = vector.broadcast %cst_8 : f32 to vector<128x16xf32>
    %29 = arith.mulf %27, %28 : vector<128x16xf32>
    %30 = vector.shape_cast %29 : vector<128x16xf32> to vector<16x8x16xf32>
    %c624 = arith.constant 624 : index
    %c0_9 = arith.constant 0 : index
    %31 = vector.load %arg2[%c624, %c0_9] : memref<632x96xf32, #tpu.memory_space<vmem>>, vector<8x16xf32>
    %32 = vector.shape_cast %31 : vector<8x16xf32> to vector<1x8x16xf32>
    %33 = vector.broadcast %32 : vector<1x8x16xf32> to vector<16x8x16xf32>
    %34 = arith.addf %30, %33 : vector<16x8x16xf32>
    %35 = vector.shape_cast %34 : vector<16x8x16xf32> to vector<128x16xf32>
    %c0_10 = arith.constant 0 : index
    %c0_11 = arith.constant 0 : index
    %36 = vector.load %arg2[%c0_10, %c0_11] : memref<632x96xf32, #tpu.memory_space<vmem>>, vector<16x48xf32>
    %37 = arith.truncf %35 : vector<128x16xf32> to vector<128x16xbf16>
    %38 = arith.truncf %36 : vector<16x48xf32> to vector<16x48xbf16>
    %cst_12 = arith.constant dense<0.000000e+00> : vector<128x48xf32>
    %39 = tpu.matmul %37, %38, %cst_12 {dimension_numbers = #tpu.dot_dimension_numbers<[1], [0], [0], [1], [0, 0, 1, 1], [], []>} : vector<128x16xbf16>, vector<16x48xbf16>, vector<128x48xf32> -> vector<128x48xf32>
    %c16 = arith.constant 16 : index
    %c0_13 = arith.constant 0 : index
    %40 = vector.load %arg2[%c16, %c0_13] : memref<632x96xf32, #tpu.memory_space<vmem>>, vector<1x48xf32>
    %41 = vector.broadcast %40 : vector<1x48xf32> to vector<128x48xf32>
    %42 = arith.addf %39, %41 : vector<128x48xf32>
    %43 = vector.extract_strided_slice %42 {offsets = [0, 0], sizes = [128, 16], strides = [1, 1]} : vector<128x48xf32> to vector<128x16xf32>
    %44 = vector.shape_cast %43 : vector<128x16xf32> to vector<16x8x16xf32>
    %45 = vector.extract_strided_slice %42 {offsets = [0, 16], sizes = [128, 16], strides = [1, 1]} : vector<128x48xf32> to vector<128x16xf32>
    %46 = vector.shape_cast %45 : vector<128x16xf32> to vector<16x8x16xf32>
    %47 = vector.extract_strided_slice %42 {offsets = [0, 32], sizes = [128, 16], strides = [1, 1]} : vector<128x48xf32> to vector<128x16xf32>
    %48 = vector.shape_cast %47 : vector<128x16xf32> to vector<16x8x16xf32>
    %c24 = arith.constant 24 : index
    %c0_14 = arith.constant 0 : index
    %49 = vector.load %arg2[%c24, %c0_14] : memref<632x96xf32, #tpu.memory_space<vmem>>, vector<16x16xf32>
    %cst_15 = arith.constant 0.000000e+00 : f32
    %50 = vector.broadcast %cst_15 : f32 to vector<128x16xf32>
    %51 = vector.extract_strided_slice %44 {offsets = [0, 0, 0], sizes = [16, 8, 8], strides = [1, 1, 1]} : vector<16x8x16xf32> to vector<16x8x8xf32>
    %cst_16 = arith.constant 0.353553385 : f32
    %52 = vector.broadcast %cst_16 : f32 to vector<16x8x8xf32>
    %53 = arith.mulf %51, %52 : vector<16x8x8xf32>
    %54 = arith.truncf %53 : vector<16x8x8xf32> to vector<16x8x8xbf16>
    %55 = vector.extract_strided_slice %46 {offsets = [0, 0, 0], sizes = [16, 8, 8], strides = [1, 1, 1]} : vector<16x8x16xf32> to vector<16x8x8xf32>
    %56 = arith.truncf %55 : vector<16x8x8xf32> to vector<16x8x8xbf16>
    %57 = vector.extract_strided_slice %48 {offsets = [0, 0, 0], sizes = [16, 8, 8], strides = [1, 1, 1]} : vector<16x8x16xf32> to vector<16x8x8xf32>
    %58 = arith.truncf %57 : vector<16x8x8xf32> to vector<16x8x8xbf16>
    "tpu.trace_start"() <{level = 10 : i32, message = "nqd,nkd->nqk"}> : () -> ()
    %cst_17 = arith.constant dense<0.000000e+00> : vector<16x8x8xf32>
    %59 = tpu.matmul %54, %56, %cst_17 {dimension_numbers = #tpu.dot_dimension_numbers<[2], [2], [1], [1], [0, 0, 0, 1, 1, 1], [0], [0]>} : vector<16x8x8xbf16>, vector<16x8x8xbf16>, vector<16x8x8xf32> -> vector<16x8x8xf32>
    "tpu.trace_stop"() : () -> ()
    %cst_18 = arith.constant dense<0xFF800000> : vector<16x8xf32>
    %60 = vector.multi_reduction <maximumf>, %59, %cst_18 [2] : vector<16x8x8xf32> to vector<16x8xf32>
    %61 = vector.shape_cast %60 : vector<16x8xf32> to vector<16x8x1xf32>
    %62 = vector.broadcast %61 : vector<16x8x1xf32> to vector<16x8x8xf32>
    %63 = arith.subf %59, %62 : vector<16x8x8xf32>
    %64 = math.exp %63 : vector<16x8x8xf32>
    %cst_19 = arith.constant dense<0.000000e+00> : vector<16x8xf32>
    %65 = vector.multi_reduction <add>, %64, %cst_19 [2] : vector<16x8x8xf32> to vector<16x8xf32>
    %66 = vector.shape_cast %65 : vector<16x8xf32> to vector<16x8x1xf32>
    %67 = tpu.reciprocal %66 {approx = true} : vector<16x8x1xf32> -> vector<16x8x1xf32>
    %68 = vector.broadcast %67 : vector<16x8x1xf32> to vector<16x8x8xf32>
    %69 = arith.mulf %64, %68 : vector<16x8x8xf32>
    %70 = arith.truncf %69 : vector<16x8x8xf32> to vector<16x8x8xbf16>
    "tpu.trace_start"() <{level = 10 : i32, message = "nqk,nkd->nqd"}> : () -> ()
    %cst_20 = arith.constant dense<0.000000e+00> : vector<16x8x8xf32>
    %71 = tpu.matmul %70, %58, %cst_20 {dimension_numbers = #tpu.dot_dimension_numbers<[2], [1], [1], [2], [0, 0, 0, 1, 1, 2], [0], [0]>} : vector<16x8x8xbf16>, vector<16x8x8xbf16>, vector<16x8x8xf32> -> vector<16x8x8xf32>
    "tpu.trace_stop"() : () -> ()
    %72 = vector.shape_cast %71 : vector<16x8x8xf32> to vector<128x8xf32>
    %73 = vector.extract_strided_slice %49 {offsets = [0, 0], sizes = [8, 16], strides = [1, 1]} : vector<16x16xf32> to vector<8x16xf32>
    %74 = arith.truncf %72 : vector<128x8xf32> to vector<128x8xbf16>
    %75 = arith.truncf %73 : vector<8x16xf32> to vector<8x16xbf16>
    %cst_21 = arith.constant dense<0.000000e+00> : vector<128x16xf32>
    %76 = tpu.matmul %74, %75, %cst_21 {dimension_numbers = #tpu.dot_dimension_numbers<[1], [0], [0], [1], [0, 0, 1, 1], [], []>} : vector<128x8xbf16>, vector<8x16xbf16>, vector<128x16xf32> -> vector<128x16xf32>
    %77 = arith.addf %50, %76 : vector<128x16xf32>
    %78 = vector.extract_strided_slice %44 {offsets = [0, 0, 8], sizes = [16, 8, 8], strides = [1, 1, 1]} : vector<16x8x16xf32> to vector<16x8x8xf32>
    %cst_22 = arith.constant 0.353553385 : f32
    %79 = vector.broadcast %cst_22 : f32 to vector<16x8x8xf32>
    %80 = arith.mulf %78, %79 : vector<16x8x8xf32>
    %81 = arith.truncf %80 : vector<16x8x8xf32> to vector<16x8x8xbf16>
    %82 = vector.extract_strided_slice %46 {offsets = [0, 0, 8], sizes = [16, 8, 8], strides = [1, 1, 1]} : vector<16x8x16xf32> to vector<16x8x8xf32>
    %83 = arith.truncf %82 : vector<16x8x8xf32> to vector<16x8x8xbf16>
    %84 = vector.extract_strided_slice %48 {offsets = [0, 0, 8], sizes = [16, 8, 8], strides = [1, 1, 1]} : vector<16x8x16xf32> to vector<16x8x8xf32>
    %85 = arith.truncf %84 : vector<16x8x8xf32> to vector<16x8x8xbf16>
    "tpu.trace_start"() <{level = 10 : i32, message = "nqd,nkd->nqk"}> : () -> ()
    %cst_23 = arith.constant dense<0.000000e+00> : vector<16x8x8xf32>
    %86 = tpu.matmul %81, %83, %cst_23 {dimension_numbers = #tpu.dot_dimension_numbers<[2], [2], [1], [1], [0, 0, 0, 1, 1, 1], [0], [0]>} : vector<16x8x8xbf16>, vector<16x8x8xbf16>, vector<16x8x8xf32> -> vector<16x8x8xf32>
    "tpu.trace_stop"() : () -> ()
    %cst_24 = arith.constant dense<0xFF800000> : vector<16x8xf32>
    %87 = vector.multi_reduction <maximumf>, %86, %cst_24 [2] : vector<16x8x8xf32> to vector<16x8xf32>
    %88 = vector.shape_cast %87 : vector<16x8xf32> to vector<16x8x1xf32>
    %89 = vector.broadcast %88 : vector<16x8x1xf32> to vector<16x8x8xf32>
    %90 = arith.subf %86, %89 : vector<16x8x8xf32>
    %91 = math.exp %90 : vector<16x8x8xf32>
    %cst_25 = arith.constant dense<0.000000e+00> : vector<16x8xf32>
    %92 = vector.multi_reduction <add>, %91, %cst_25 [2] : vector<16x8x8xf32> to vector<16x8xf32>
    %93 = vector.shape_cast %92 : vector<16x8xf32> to vector<16x8x1xf32>
    %94 = tpu.reciprocal %93 {approx = true} : vector<16x8x1xf32> -> vector<16x8x1xf32>
    %95 = vector.broadcast %94 : vector<16x8x1xf32> to vector<16x8x8xf32>
    %96 = arith.mulf %91, %95 : vector<16x8x8xf32>
    %97 = arith.truncf %96 : vector<16x8x8xf32> to vector<16x8x8xbf16>
    "tpu.trace_start"() <{level = 10 : i32, message = "nqk,nkd->nqd"}> : () -> ()
    %cst_26 = arith.constant dense<0.000000e+00> : vector<16x8x8xf32>
    %98 = tpu.matmul %97, %85, %cst_26 {dimension_numbers = #tpu.dot_dimension_numbers<[2], [1], [1], [2], [0, 0, 0, 1, 1, 2], [0], [0]>} : vector<16x8x8xbf16>, vector<16x8x8xbf16>, vector<16x8x8xf32> -> vector<16x8x8xf32>
    "tpu.trace_stop"() : () -> ()
    %99 = vector.shape_cast %98 : vector<16x8x8xf32> to vector<128x8xf32>
    %100 = vector.extract_strided_slice %49 {offsets = [8, 0], sizes = [8, 16], strides = [1, 1]} : vector<16x16xf32> to vector<8x16xf32>
    %101 = arith.truncf %99 : vector<128x8xf32> to vector<128x8xbf16>
    %102 = arith.truncf %100 : vector<8x16xf32> to vector<8x16xbf16>
    %cst_27 = arith.constant dense<0.000000e+00> : vector<128x16xf32>
    %103 = tpu.matmul %101, %102, %cst_27 {dimension_numbers = #tpu.dot_dimension_numbers<[1], [0], [0], [1], [0, 0, 1, 1], [], []>} : vector<128x8xbf16>, vector<8x16xbf16>, vector<128x16xf32> -> vector<128x16xf32>
    %104 = arith.addf %77, %103 : vector<128x16xf32>
    %c40 = arith.constant 40 : index
    %c0_28 = arith.constant 0 : index
    %105 = vector.load %arg2[%c40, %c0_28] : memref<632x96xf32, #tpu.memory_space<vmem>>, vector<1x16xf32>
    %106 = vector.broadcast %105 : vector<1x16xf32> to vector<128x16xf32>
    %107 = arith.addf %104, %106 : vector<128x16xf32>
    %108 = arith.addf %35, %107 : vector<128x16xf32>
    %c48 = arith.constant 48 : index
    %c0_29 = arith.constant 0 : index
    %109 = vector.load %arg2[%c48, %c0_29] : memref<632x96xf32, #tpu.memory_space<vmem>>, vector<1x16xf32>
    %c56 = arith.constant 56 : index
    %c0_30 = arith.constant 0 : index
    %110 = vector.load %arg2[%c56, %c0_30] : memref<632x96xf32, #tpu.memory_space<vmem>>, vector<1x16xf32>
    %cst_31 = arith.constant dense<0.000000e+00> : vector<128xf32>
    %111 = vector.multi_reduction <add>, %108, %cst_31 [1] : vector<128x16xf32> to vector<128xf32>
    %112 = vector.shape_cast %111 : vector<128xf32> to vector<128x1xf32>
    %cst_32 = arith.constant 1.600000e+01 : f32
    %113 = vector.broadcast %cst_32 : f32 to vector<128x1xf32>
    %114 = arith.divf %112, %113 : vector<128x1xf32>
    %115 = vector.broadcast %114 : vector<128x1xf32> to vector<128x16xf32>
    %116 = arith.subf %108, %115 : vector<128x16xf32>
    %117 = arith.mulf %116, %116 : vector<128x16xf32>
    %cst_33 = arith.constant dense<0.000000e+00> : vector<128xf32>
    %118 = vector.multi_reduction <add>, %117, %cst_33 [1] : vector<128x16xf32> to vector<128xf32>
    %119 = vector.shape_cast %118 : vector<128xf32> to vector<128x1xf32>
    %cst_34 = arith.constant 1.600000e+01 : f32
    %120 = vector.broadcast %cst_34 : f32 to vector<128x1xf32>
    %121 = arith.divf %119, %120 : vector<128x1xf32>
    %122 = vector.broadcast %114 : vector<128x1xf32> to vector<128x16xf32>
    %123 = arith.subf %108, %122 : vector<128x16xf32>
    %cst_35 = arith.constant 9.99999974E-6 : f32
    %124 = vector.broadcast %cst_35 : f32 to vector<128x1xf32>
    %125 = arith.addf %121, %124 : vector<128x1xf32>
    %126 = math.rsqrt %125 : vector<128x1xf32>
    %127 = vector.broadcast %126 : vector<128x1xf32> to vector<128x16xf32>
    %128 = arith.mulf %123, %127 : vector<128x16xf32>
    %129 = vector.broadcast %109 : vector<1x16xf32> to vector<128x16xf32>
    %130 = arith.mulf %128, %129 : vector<128x16xf32>
    %131 = vector.broadcast %110 : vector<1x16xf32> to vector<128x16xf32>
    %132 = arith.addf %130, %131 : vector<128x16xf32>
    %c64 = arith.constant 64 : index
    %c0_36 = arith.constant 0 : index
    %133 = vector.load %arg2[%c64, %c0_36] : memref<632x96xf32, #tpu.memory_space<vmem>>, vector<16x32xf32>
    %134 = arith.truncf %132 : vector<128x16xf32> to vector<128x16xbf16>
    %135 = arith.truncf %133 : vector<16x32xf32> to vector<16x32xbf16>
    %cst_37 = arith.constant dense<0.000000e+00> : vector<128x32xf32>
    %136 = tpu.matmul %134, %135, %cst_37 {dimension_numbers = #tpu.dot_dimension_numbers<[1], [0], [0], [1], [0, 0, 1, 1], [], []>} : vector<128x16xbf16>, vector<16x32xbf16>, vector<128x32xf32> -> vector<128x32xf32>
    %c80 = arith.constant 80 : index
    %c0_38 = arith.constant 0 : index
    %137 = vector.load %arg2[%c80, %c0_38] : memref<632x96xf32, #tpu.memory_space<vmem>>, vector<1x32xf32>
    %138 = vector.broadcast %137 : vector<1x32xf32> to vector<128x32xf32>
    %139 = arith.addf %136, %138 : vector<128x32xf32>
    %cst_39 = arith.constant 0.000000e+00 : f32
    %140 = vector.broadcast %cst_39 : f32 to vector<128x32xf32>
    %141 = arith.maximumf %139, %140 : vector<128x32xf32>
    %c88 = arith.constant 88 : index
    %c0_40 = arith.constant 0 : index
    %142 = vector.load %arg2[%c88, %c0_40] : memref<632x96xf32, #tpu.memory_space<vmem>>, vector<32x16xf32>
    %143 = arith.truncf %141 : vector<128x32xf32> to vector<128x32xbf16>
    %144 = arith.truncf %142 : vector<32x16xf32> to vector<32x16xbf16>
    %cst_41 = arith.constant dense<0.000000e+00> : vector<128x16xf32>
    %145 = tpu.matmul %143, %144, %cst_41 {dimension_numbers = #tpu.dot_dimension_numbers<[1], [0], [0], [1], [0, 0, 1, 1], [], []>} : vector<128x32xbf16>, vector<32x16xbf16>, vector<128x16xf32> -> vector<128x16xf32>
    %c120 = arith.constant 120 : index
    %c0_42 = arith.constant 0 : index
    %146 = vector.load %arg2[%c120, %c0_42] : memref<632x96xf32, #tpu.memory_space<vmem>>, vector<1x16xf32>
    %147 = vector.broadcast %146 : vector<1x16xf32> to vector<128x16xf32>
    %148 = arith.addf %145, %147 : vector<128x16xf32>
    %149 = arith.addf %132, %148 : vector<128x16xf32>
    %c128 = arith.constant 128 : index
    %c0_43 = arith.constant 0 : index
    %150 = vector.load %arg2[%c128, %c0_43] : memref<632x96xf32, #tpu.memory_space<vmem>>, vector<1x16xf32>
    %c136 = arith.constant 136 : index
    %c0_44 = arith.constant 0 : index
    %151 = vector.load %arg2[%c136, %c0_44] : memref<632x96xf32, #tpu.memory_space<vmem>>, vector<1x16xf32>
    %cst_45 = arith.constant dense<0.000000e+00> : vector<128xf32>
    %152 = vector.multi_reduction <add>, %149, %cst_45 [1] : vector<128x16xf32> to vector<128xf32>
    %153 = vector.shape_cast %152 : vector<128xf32> to vector<128x1xf32>
    %cst_46 = arith.constant 1.600000e+01 : f32
    %154 = vector.broadcast %cst_46 : f32 to vector<128x1xf32>
    %155 = arith.divf %153, %154 : vector<128x1xf32>
    %156 = vector.broadcast %155 : vector<128x1xf32> to vector<128x16xf32>
    %157 = arith.subf %149, %156 : vector<128x16xf32>
    %158 = arith.mulf %157, %157 : vector<128x16xf32>
    %cst_47 = arith.constant dense<0.000000e+00> : vector<128xf32>
    %159 = vector.multi_reduction <add>, %158, %cst_47 [1] : vector<128x16xf32> to vector<128xf32>
    %160 = vector.shape_cast %159 : vector<128xf32> to vector<128x1xf32>
    %cst_48 = arith.constant 1.600000e+01 : f32
    %161 = vector.broadcast %cst_48 : f32 to vector<128x1xf32>
    %162 = arith.divf %160, %161 : vector<128x1xf32>
    %163 = vector.broadcast %155 : vector<128x1xf32> to vector<128x16xf32>
    %164 = arith.subf %149, %163 : vector<128x16xf32>
    %cst_49 = arith.constant 9.99999974E-6 : f32
    %165 = vector.broadcast %cst_49 : f32 to vector<128x1xf32>
    %166 = arith.addf %162, %165 : vector<128x1xf32>
    %167 = math.rsqrt %166 : vector<128x1xf32>
    %168 = vector.broadcast %167 : vector<128x1xf32> to vector<128x16xf32>
    %169 = arith.mulf %164, %168 : vector<128x16xf32>
    %170 = vector.broadcast %150 : vector<1x16xf32> to vector<128x16xf32>
    %171 = arith.mulf %169, %170 : vector<128x16xf32>
    %172 = vector.broadcast %151 : vector<1x16xf32> to vector<128x16xf32>
    %173 = arith.addf %171, %172 : vector<128x16xf32>
    %c144 = arith.constant 144 : index
    %c0_50 = arith.constant 0 : index
    %174 = vector.load %arg2[%c144, %c0_50] : memref<632x96xf32, #tpu.memory_space<vmem>>, vector<16x48xf32>
    %175 = arith.truncf %173 : vector<128x16xf32> to vector<128x16xbf16>
    %176 = arith.truncf %174 : vector<16x48xf32> to vector<16x48xbf16>
    %cst_51 = arith.constant dense<0.000000e+00> : vector<128x48xf32>
    %177 = tpu.matmul %175, %176, %cst_51 {dimension_numbers = #tpu.dot_dimension_numbers<[1], [0], [0], [1], [0, 0, 1, 1], [], []>} : vector<128x16xbf16>, vector<16x48xbf16>, vector<128x48xf32> -> vector<128x48xf32>
    %c160 = arith.constant 160 : index
    %c0_52 = arith.constant 0 : index
    %178 = vector.load %arg2[%c160, %c0_52] : memref<632x96xf32, #tpu.memory_space<vmem>>, vector<1x48xf32>
    %179 = vector.broadcast %178 : vector<1x48xf32> to vector<128x48xf32>
    %180 = arith.addf %177, %179 : vector<128x48xf32>
    %181 = vector.extract_strided_slice %180 {offsets = [0, 0], sizes = [128, 16], strides = [1, 1]} : vector<128x48xf32> to vector<128x16xf32>
    %182 = vector.shape_cast %181 : vector<128x16xf32> to vector<16x8x16xf32>
    %183 = vector.extract_strided_slice %180 {offsets = [0, 16], sizes = [128, 16], strides = [1, 1]} : vector<128x48xf32> to vector<128x16xf32>
    %184 = vector.shape_cast %183 : vector<128x16xf32> to vector<16x8x16xf32>
    %185 = vector.extract_strided_slice %180 {offsets = [0, 32], sizes = [128, 16], strides = [1, 1]} : vector<128x48xf32> to vector<128x16xf32>
    %186 = vector.shape_cast %185 : vector<128x16xf32> to vector<16x8x16xf32>
    %c168 = arith.constant 168 : index
    %c0_53 = arith.constant 0 : index
    %187 = vector.load %arg2[%c168, %c0_53] : memref<632x96xf32, #tpu.memory_space<vmem>>, vector<16x16xf32>
    %cst_54 = arith.constant 0.000000e+00 : f32
    %188 = vector.broadcast %cst_54 : f32 to vector<128x16xf32>
    %189 = vector.extract_strided_slice %182 {offsets = [0, 0, 0], sizes = [16, 8, 8], strides = [1, 1, 1]} : vector<16x8x16xf32> to vector<16x8x8xf32>
    %cst_55 = arith.constant 0.353553385 : f32
    %190 = vector.broadcast %cst_55 : f32 to vector<16x8x8xf32>
    %191 = arith.mulf %189, %190 : vector<16x8x8xf32>
    %192 = arith.truncf %191 : vector<16x8x8xf32> to vector<16x8x8xbf16>
    %193 = vector.extract_strided_slice %184 {offsets = [0, 0, 0], sizes = [16, 8, 8], strides = [1, 1, 1]} : vector<16x8x16xf32> to vector<16x8x8xf32>
    %194 = arith.truncf %193 : vector<16x8x8xf32> to vector<16x8x8xbf16>
    %195 = vector.extract_strided_slice %186 {offsets = [0, 0, 0], sizes = [16, 8, 8], strides = [1, 1, 1]} : vector<16x8x16xf32> to vector<16x8x8xf32>
    %196 = arith.truncf %195 : vector<16x8x8xf32> to vector<16x8x8xbf16>
    "tpu.trace_start"() <{level = 10 : i32, message = "nqd,nkd->nqk"}> : () -> ()
    %cst_56 = arith.constant dense<0.000000e+00> : vector<16x8x8xf32>
    %197 = tpu.matmul %192, %194, %cst_56 {dimension_numbers = #tpu.dot_dimension_numbers<[2], [2], [1], [1], [0, 0, 0, 1, 1, 1], [0], [0]>} : vector<16x8x8xbf16>, vector<16x8x8xbf16>, vector<16x8x8xf32> -> vector<16x8x8xf32>
    "tpu.trace_stop"() : () -> ()
    %cst_57 = arith.constant dense<0xFF800000> : vector<16x8xf32>
    %198 = vector.multi_reduction <maximumf>, %197, %cst_57 [2] : vector<16x8x8xf32> to vector<16x8xf32>
    %199 = vector.shape_cast %198 : vector<16x8xf32> to vector<16x8x1xf32>
    %200 = vector.broadcast %199 : vector<16x8x1xf32> to vector<16x8x8xf32>
    %201 = arith.subf %197, %200 : vector<16x8x8xf32>
    %202 = math.exp %201 : vector<16x8x8xf32>
    %cst_58 = arith.constant dense<0.000000e+00> : vector<16x8xf32>
    %203 = vector.multi_reduction <add>, %202, %cst_58 [2] : vector<16x8x8xf32> to vector<16x8xf32>
    %204 = vector.shape_cast %203 : vector<16x8xf32> to vector<16x8x1xf32>
    %205 = tpu.reciprocal %204 {approx = true} : vector<16x8x1xf32> -> vector<16x8x1xf32>
    %206 = vector.broadcast %205 : vector<16x8x1xf32> to vector<16x8x8xf32>
    %207 = arith.mulf %202, %206 : vector<16x8x8xf32>
    %208 = arith.truncf %207 : vector<16x8x8xf32> to vector<16x8x8xbf16>
    "tpu.trace_start"() <{level = 10 : i32, message = "nqk,nkd->nqd"}> : () -> ()
    %cst_59 = arith.constant dense<0.000000e+00> : vector<16x8x8xf32>
    %209 = tpu.matmul %208, %196, %cst_59 {dimension_numbers = #tpu.dot_dimension_numbers<[2], [1], [1], [2], [0, 0, 0, 1, 1, 2], [0], [0]>} : vector<16x8x8xbf16>, vector<16x8x8xbf16>, vector<16x8x8xf32> -> vector<16x8x8xf32>
    "tpu.trace_stop"() : () -> ()
    %210 = vector.shape_cast %209 : vector<16x8x8xf32> to vector<128x8xf32>
    %211 = vector.extract_strided_slice %187 {offsets = [0, 0], sizes = [8, 16], strides = [1, 1]} : vector<16x16xf32> to vector<8x16xf32>
    %212 = arith.truncf %210 : vector<128x8xf32> to vector<128x8xbf16>
    %213 = arith.truncf %211 : vector<8x16xf32> to vector<8x16xbf16>
    %cst_60 = arith.constant dense<0.000000e+00> : vector<128x16xf32>
    %214 = tpu.matmul %212, %213, %cst_60 {dimension_numbers = #tpu.dot_dimension_numbers<[1], [0], [0], [1], [0, 0, 1, 1], [], []>} : vector<128x8xbf16>, vector<8x16xbf16>, vector<128x16xf32> -> vector<128x16xf32>
    %215 = arith.addf %188, %214 : vector<128x16xf32>
    %216 = vector.extract_strided_slice %182 {offsets = [0, 0, 8], sizes = [16, 8, 8], strides = [1, 1, 1]} : vector<16x8x16xf32> to vector<16x8x8xf32>
    %cst_61 = arith.constant 0.353553385 : f32
    %217 = vector.broadcast %cst_61 : f32 to vector<16x8x8xf32>
    %218 = arith.mulf %216, %217 : vector<16x8x8xf32>
    %219 = arith.truncf %218 : vector<16x8x8xf32> to vector<16x8x8xbf16>
    %220 = vector.extract_strided_slice %184 {offsets = [0, 0, 8], sizes = [16, 8, 8], strides = [1, 1, 1]} : vector<16x8x16xf32> to vector<16x8x8xf32>
    %221 = arith.truncf %220 : vector<16x8x8xf32> to vector<16x8x8xbf16>
    %222 = vector.extract_strided_slice %186 {offsets = [0, 0, 8], sizes = [16, 8, 8], strides = [1, 1, 1]} : vector<16x8x16xf32> to vector<16x8x8xf32>
    %223 = arith.truncf %222 : vector<16x8x8xf32> to vector<16x8x8xbf16>
    "tpu.trace_start"() <{level = 10 : i32, message = "nqd,nkd->nqk"}> : () -> ()
    %cst_62 = arith.constant dense<0.000000e+00> : vector<16x8x8xf32>
    %224 = tpu.matmul %219, %221, %cst_62 {dimension_numbers = #tpu.dot_dimension_numbers<[2], [2], [1], [1], [0, 0, 0, 1, 1, 1], [0], [0]>} : vector<16x8x8xbf16>, vector<16x8x8xbf16>, vector<16x8x8xf32> -> vector<16x8x8xf32>
    "tpu.trace_stop"() : () -> ()
    %cst_63 = arith.constant dense<0xFF800000> : vector<16x8xf32>
    %225 = vector.multi_reduction <maximumf>, %224, %cst_63 [2] : vector<16x8x8xf32> to vector<16x8xf32>
    %226 = vector.shape_cast %225 : vector<16x8xf32> to vector<16x8x1xf32>
    %227 = vector.broadcast %226 : vector<16x8x1xf32> to vector<16x8x8xf32>
    %228 = arith.subf %224, %227 : vector<16x8x8xf32>
    %229 = math.exp %228 : vector<16x8x8xf32>
    %cst_64 = arith.constant dense<0.000000e+00> : vector<16x8xf32>
    %230 = vector.multi_reduction <add>, %229, %cst_64 [2] : vector<16x8x8xf32> to vector<16x8xf32>
    %231 = vector.shape_cast %230 : vector<16x8xf32> to vector<16x8x1xf32>
    %232 = tpu.reciprocal %231 {approx = true} : vector<16x8x1xf32> -> vector<16x8x1xf32>
    %233 = vector.broadcast %232 : vector<16x8x1xf32> to vector<16x8x8xf32>
    %234 = arith.mulf %229, %233 : vector<16x8x8xf32>
    %235 = arith.truncf %234 : vector<16x8x8xf32> to vector<16x8x8xbf16>
    "tpu.trace_start"() <{level = 10 : i32, message = "nqk,nkd->nqd"}> : () -> ()
    %cst_65 = arith.constant dense<0.000000e+00> : vector<16x8x8xf32>
    %236 = tpu.matmul %235, %223, %cst_65 {dimension_numbers = #tpu.dot_dimension_numbers<[2], [1], [1], [2], [0, 0, 0, 1, 1, 2], [0], [0]>} : vector<16x8x8xbf16>, vector<16x8x8xbf16>, vector<16x8x8xf32> -> vector<16x8x8xf32>
    "tpu.trace_stop"() : () -> ()
    %237 = vector.shape_cast %236 : vector<16x8x8xf32> to vector<128x8xf32>
    %238 = vector.extract_strided_slice %187 {offsets = [8, 0], sizes = [8, 16], strides = [1, 1]} : vector<16x16xf32> to vector<8x16xf32>
    %239 = arith.truncf %237 : vector<128x8xf32> to vector<128x8xbf16>
    %240 = arith.truncf %238 : vector<8x16xf32> to vector<8x16xbf16>
    %cst_66 = arith.constant dense<0.000000e+00> : vector<128x16xf32>
    %241 = tpu.matmul %239, %240, %cst_66 {dimension_numbers = #tpu.dot_dimension_numbers<[1], [0], [0], [1], [0, 0, 1, 1], [], []>} : vector<128x8xbf16>, vector<8x16xbf16>, vector<128x16xf32> -> vector<128x16xf32>
    %242 = arith.addf %215, %241 : vector<128x16xf32>
    %c184 = arith.constant 184 : index
    %c0_67 = arith.constant 0 : index
    %243 = vector.load %arg2[%c184, %c0_67] : memref<632x96xf32, #tpu.memory_space<vmem>>, vector<1x16xf32>
    %244 = vector.broadcast %243 : vector<1x16xf32> to vector<128x16xf32>
    %245 = arith.addf %242, %244 : vector<128x16xf32>
    %246 = arith.addf %173, %245 : vector<128x16xf32>
    %c192 = arith.constant 192 : index
    %c0_68 = arith.constant 0 : index
    %247 = vector.load %arg2[%c192, %c0_68] : memref<632x96xf32, #tpu.memory_space<vmem>>, vector<1x16xf32>
    %c200 = arith.constant 200 : index
    %c0_69 = arith.constant 0 : index
    %248 = vector.load %arg2[%c200, %c0_69] : memref<632x96xf32, #tpu.memory_space<vmem>>, vector<1x16xf32>
    %cst_70 = arith.constant dense<0.000000e+00> : vector<128xf32>
    %249 = vector.multi_reduction <add>, %246, %cst_70 [1] : vector<128x16xf32> to vector<128xf32>
    %250 = vector.shape_cast %249 : vector<128xf32> to vector<128x1xf32>
    %cst_71 = arith.constant 1.600000e+01 : f32
    %251 = vector.broadcast %cst_71 : f32 to vector<128x1xf32>
    %252 = arith.divf %250, %251 : vector<128x1xf32>
    %253 = vector.broadcast %252 : vector<128x1xf32> to vector<128x16xf32>
    %254 = arith.subf %246, %253 : vector<128x16xf32>
    %255 = arith.mulf %254, %254 : vector<128x16xf32>
    %cst_72 = arith.constant dense<0.000000e+00> : vector<128xf32>
    %256 = vector.multi_reduction <add>, %255, %cst_72 [1] : vector<128x16xf32> to vector<128xf32>
    %257 = vector.shape_cast %256 : vector<128xf32> to vector<128x1xf32>
    %cst_73 = arith.constant 1.600000e+01 : f32
    %258 = vector.broadcast %cst_73 : f32 to vector<128x1xf32>
    %259 = arith.divf %257, %258 : vector<128x1xf32>
    %260 = vector.broadcast %252 : vector<128x1xf32> to vector<128x16xf32>
    %261 = arith.subf %246, %260 : vector<128x16xf32>
    %cst_74 = arith.constant 9.99999974E-6 : f32
    %262 = vector.broadcast %cst_74 : f32 to vector<128x1xf32>
    %263 = arith.addf %259, %262 : vector<128x1xf32>
    %264 = math.rsqrt %263 : vector<128x1xf32>
    %265 = vector.broadcast %264 : vector<128x1xf32> to vector<128x16xf32>
    %266 = arith.mulf %261, %265 : vector<128x16xf32>
    %267 = vector.broadcast %247 : vector<1x16xf32> to vector<128x16xf32>
    %268 = arith.mulf %266, %267 : vector<128x16xf32>
    %269 = vector.broadcast %248 : vector<1x16xf32> to vector<128x16xf32>
    %270 = arith.addf %268, %269 : vector<128x16xf32>
    %c208 = arith.constant 208 : index
    %c0_75 = arith.constant 0 : index
    %271 = vector.load %arg2[%c208, %c0_75] : memref<632x96xf32, #tpu.memory_space<vmem>>, vector<16x32xf32>
    %272 = arith.truncf %270 : vector<128x16xf32> to vector<128x16xbf16>
    %273 = arith.truncf %271 : vector<16x32xf32> to vector<16x32xbf16>
    %cst_76 = arith.constant dense<0.000000e+00> : vector<128x32xf32>
    %274 = tpu.matmul %272, %273, %cst_76 {dimension_numbers = #tpu.dot_dimension_numbers<[1], [0], [0], [1], [0, 0, 1, 1], [], []>} : vector<128x16xbf16>, vector<16x32xbf16>, vector<128x32xf32> -> vector<128x32xf32>
    %c224 = arith.constant 224 : index
    %c0_77 = arith.constant 0 : index
    %275 = vector.load %arg2[%c224, %c0_77] : memref<632x96xf32, #tpu.memory_space<vmem>>, vector<1x32xf32>
    %276 = vector.broadcast %275 : vector<1x32xf32> to vector<128x32xf32>
    %277 = arith.addf %274, %276 : vector<128x32xf32>
    %cst_78 = arith.constant 0.000000e+00 : f32
    %278 = vector.broadcast %cst_78 : f32 to vector<128x32xf32>
    %279 = arith.maximumf %277, %278 : vector<128x32xf32>
    %c232 = arith.constant 232 : index
    %c0_79 = arith.constant 0 : index
    %280 = vector.load %arg2[%c232, %c0_79] : memref<632x96xf32, #tpu.memory_space<vmem>>, vector<32x16xf32>
    %281 = arith.truncf %279 : vector<128x32xf32> to vector<128x32xbf16>
    %282 = arith.truncf %280 : vector<32x16xf32> to vector<32x16xbf16>
    %cst_80 = arith.constant dense<0.000000e+00> : vector<128x16xf32>
    %283 = tpu.matmul %281, %282, %cst_80 {dimension_numbers = #tpu.dot_dimension_numbers<[1], [0], [0], [1], [0, 0, 1, 1], [], []>} : vector<128x32xbf16>, vector<32x16xbf16>, vector<128x16xf32> -> vector<128x16xf32>
    %c264 = arith.constant 264 : index
    %c0_81 = arith.constant 0 : index
    %284 = vector.load %arg2[%c264, %c0_81] : memref<632x96xf32, #tpu.memory_space<vmem>>, vector<1x16xf32>
    %285 = vector.broadcast %284 : vector<1x16xf32> to vector<128x16xf32>
    %286 = arith.addf %283, %285 : vector<128x16xf32>
    %287 = arith.addf %270, %286 : vector<128x16xf32>
    %c272 = arith.constant 272 : index
    %c0_82 = arith.constant 0 : index
    %288 = vector.load %arg2[%c272, %c0_82] : memref<632x96xf32, #tpu.memory_space<vmem>>, vector<1x16xf32>
    %c280 = arith.constant 280 : index
    %c0_83 = arith.constant 0 : index
    %289 = vector.load %arg2[%c280, %c0_83] : memref<632x96xf32, #tpu.memory_space<vmem>>, vector<1x16xf32>
    %cst_84 = arith.constant dense<0.000000e+00> : vector<128xf32>
    %290 = vector.multi_reduction <add>, %287, %cst_84 [1] : vector<128x16xf32> to vector<128xf32>
    %291 = vector.shape_cast %290 : vector<128xf32> to vector<128x1xf32>
    %cst_85 = arith.constant 1.600000e+01 : f32
    %292 = vector.broadcast %cst_85 : f32 to vector<128x1xf32>
    %293 = arith.divf %291, %292 : vector<128x1xf32>
    %294 = vector.broadcast %293 : vector<128x1xf32> to vector<128x16xf32>
    %295 = arith.subf %287, %294 : vector<128x16xf32>
    %296 = arith.mulf %295, %295 : vector<128x16xf32>
    %cst_86 = arith.constant dense<0.000000e+00> : vector<128xf32>
    %297 = vector.multi_reduction <add>, %296, %cst_86 [1] : vector<128x16xf32> to vector<128xf32>
    %298 = vector.shape_cast %297 : vector<128xf32> to vector<128x1xf32>
    %cst_87 = arith.constant 1.600000e+01 : f32
    %299 = vector.broadcast %cst_87 : f32 to vector<128x1xf32>
    %300 = arith.divf %298, %299 : vector<128x1xf32>
    %301 = vector.broadcast %293 : vector<128x1xf32> to vector<128x16xf32>
    %302 = arith.subf %287, %301 : vector<128x16xf32>
    %cst_88 = arith.constant 9.99999974E-6 : f32
    %303 = vector.broadcast %cst_88 : f32 to vector<128x1xf32>
    %304 = arith.addf %300, %303 : vector<128x1xf32>
    %305 = math.rsqrt %304 : vector<128x1xf32>
    %306 = vector.broadcast %305 : vector<128x1xf32> to vector<128x16xf32>
    %307 = arith.mulf %302, %306 : vector<128x16xf32>
    %308 = vector.broadcast %288 : vector<1x16xf32> to vector<128x16xf32>
    %309 = arith.mulf %307, %308 : vector<128x16xf32>
    %310 = vector.broadcast %289 : vector<1x16xf32> to vector<128x16xf32>
    %311 = arith.addf %309, %310 : vector<128x16xf32>
    %312 = vector.shape_cast %311 : vector<128x16xf32> to vector<16x8x16xf32>
    %313 = vector.extract_strided_slice %312 {offsets = [0, 0, 0], sizes = [16, 1, 16], strides = [1, 1, 1]} : vector<16x8x16xf32> to vector<16x1x16xf32>
    %314 = vector.shape_cast %313 : vector<16x1x16xf32> to vector<16x16xf32>
    %c0_89 = arith.constant 0 : index
    %c0_90 = arith.constant 0 : index
    %315 = vector.load %arg4[%c0_89, %c0_90] : memref<16x32xf32, #tpu.memory_space<vmem>>, vector<16x16xf32>
    tpu.vector_store %arg4[%c0_89, %c0_90], %18 {strides = array<i32>} : memref<16x32xf32, #tpu.memory_space<vmem>>, vector<16x16xf32>,
    %c0_91 = arith.constant 0 : index
    %c16_92 = arith.constant 16 : index
    %316 = vector.load %arg4[%c0_91, %c16_92] : memref<16x32xf32, #tpu.memory_space<vmem>>, vector<16x16xf32>
    tpu.vector_store %arg4[%c0_91, %c16_92], %314 {strides = array<i32>} : memref<16x32xf32, #tpu.memory_space<vmem>>, vector<16x16xf32>,
    %c0_93 = arith.constant 0 : index
    %c0_94 = arith.constant 0 : index
    %317 = vector.load %arg4[%c0_93, %c0_94] : memref<16x32xf32, #tpu.memory_space<vmem>>, vector<16x32xf32>
    %c288 = arith.constant 288 : index
    %c0_95 = arith.constant 0 : index
    %318 = vector.load %arg2[%c288, %c0_95] : memref<632x96xf32, #tpu.memory_space<vmem>>, vector<32x96xf32>
    %319 = arith.truncf %317 : vector<16x32xf32> to vector<16x32xbf16>
    %320 = arith.truncf %318 : vector<32x96xf32> to vector<32x96xbf16>
    %cst_96 = arith.constant dense<0.000000e+00> : vector<16x96xf32>
    %321 = tpu.matmul %319, %320, %cst_96 {dimension_numbers = #tpu.dot_dimension_numbers<[1], [0], [0], [1], [0, 0, 1, 1], [], []>} : vector<16x32xbf16>, vector<32x96xbf16>, vector<16x96xf32> -> vector<16x96xf32>
    %c320 = arith.constant 320 : index
    %c0_97 = arith.constant 0 : index
    %322 = vector.load %arg2[%c320, %c0_97] : memref<632x96xf32, #tpu.memory_space<vmem>>, vector<1x96xf32>
    %323 = vector.broadcast %322 : vector<1x96xf32> to vector<16x96xf32>
    %324 = arith.addf %321, %323 : vector<16x96xf32>
    %325 = vector.extract_strided_slice %324 {offsets = [0, 0], sizes = [16, 32], strides = [1, 1]} : vector<16x96xf32> to vector<16x32xf32>
    %326 = vector.shape_cast %325 : vector<16x32xf32> to vector<2x8x32xf32>
    %327 = vector.extract_strided_slice %324 {offsets = [0, 32], sizes = [16, 32], strides = [1, 1]} : vector<16x96xf32> to vector<16x32xf32>
    %328 = vector.shape_cast %327 : vector<16x32xf32> to vector<2x8x32xf32>
    %329 = vector.extract_strided_slice %324 {offsets = [0, 64], sizes = [16, 32], strides = [1, 1]} : vector<16x96xf32> to vector<16x32xf32>
    %330 = vector.shape_cast %329 : vector<16x32xf32> to vector<2x8x32xf32>
    %c328 = arith.constant 328 : index
    %c0_98 = arith.constant 0 : index
    %331 = vector.load %arg2[%c328, %c0_98] : memref<632x96xf32, #tpu.memory_space<vmem>>, vector<32x32xf32>
    %cst_99 = arith.constant 0.000000e+00 : f32
    %332 = vector.broadcast %cst_99 : f32 to vector<16x32xf32>
    %333 = vector.extract_strided_slice %326 {offsets = [0, 0, 0], sizes = [2, 8, 16], strides = [1, 1, 1]} : vector<2x8x32xf32> to vector<2x8x16xf32>
    %cst_100 = arith.constant 2.500000e-01 : f32
    %334 = vector.broadcast %cst_100 : f32 to vector<2x8x16xf32>
    %335 = arith.mulf %333, %334 : vector<2x8x16xf32>
    %336 = arith.truncf %335 : vector<2x8x16xf32> to vector<2x8x16xbf16>
    %337 = vector.extract_strided_slice %328 {offsets = [0, 0, 0], sizes = [2, 8, 16], strides = [1, 1, 1]} : vector<2x8x32xf32> to vector<2x8x16xf32>
    %338 = arith.truncf %337 : vector<2x8x16xf32> to vector<2x8x16xbf16>
    %339 = vector.extract_strided_slice %330 {offsets = [0, 0, 0], sizes = [2, 8, 16], strides = [1, 1, 1]} : vector<2x8x32xf32> to vector<2x8x16xf32>
    %340 = arith.truncf %339 : vector<2x8x16xf32> to vector<2x8x16xbf16>
    "tpu.trace_start"() <{level = 10 : i32, message = "nqd,nkd->nqk"}> : () -> ()
    %cst_101 = arith.constant dense<0.000000e+00> : vector<2x8x8xf32>
    %341 = tpu.matmul %336, %338, %cst_101 {dimension_numbers = #tpu.dot_dimension_numbers<[2], [2], [1], [1], [0, 0, 0, 1, 1, 1], [0], [0]>} : vector<2x8x16xbf16>, vector<2x8x16xbf16>, vector<2x8x8xf32> -> vector<2x8x8xf32>
    "tpu.trace_stop"() : () -> ()
    %cst_102 = arith.constant dense<0xFF800000> : vector<2x8xf32>
    %342 = vector.multi_reduction <maximumf>, %341, %cst_102 [2] : vector<2x8x8xf32> to vector<2x8xf32>
    %343 = vector.shape_cast %342 : vector<2x8xf32> to vector<2x8x1xf32>
    %344 = vector.broadcast %343 : vector<2x8x1xf32> to vector<2x8x8xf32>
    %345 = arith.subf %341, %344 : vector<2x8x8xf32>
    %346 = math.exp %345 : vector<2x8x8xf32>
    %cst_103 = arith.constant dense<0.000000e+00> : vector<2x8xf32>
    %347 = vector.multi_reduction <add>, %346, %cst_103 [2] : vector<2x8x8xf32> to vector<2x8xf32>
    %348 = vector.shape_cast %347 : vector<2x8xf32> to vector<2x8x1xf32>
    %349 = tpu.reciprocal %348 {approx = true} : vector<2x8x1xf32> -> vector<2x8x1xf32>
    %350 = vector.broadcast %349 : vector<2x8x1xf32> to vector<2x8x8xf32>
    %351 = arith.mulf %346, %350 : vector<2x8x8xf32>
    %352 = arith.truncf %351 : vector<2x8x8xf32> to vector<2x8x8xbf16>
    "tpu.trace_start"() <{level = 10 : i32, message = "nqk,nkd->nqd"}> : () -> ()
    %cst_104 = arith.constant dense<0.000000e+00> : vector<2x8x16xf32>
    %353 = tpu.matmul %352, %340, %cst_104 {dimension_numbers = #tpu.dot_dimension_numbers<[2], [1], [1], [2], [0, 0, 0, 1, 1, 2], [0], [0]>} : vector<2x8x8xbf16>, vector<2x8x16xbf16>, vector<2x8x16xf32> -> vector<2x8x16xf32>
    "tpu.trace_stop"() : () -> ()
    %354 = vector.shape_cast %353 : vector<2x8x16xf32> to vector<16x16xf32>
    %355 = vector.extract_strided_slice %331 {offsets = [0, 0], sizes = [16, 32], strides = [1, 1]} : vector<32x32xf32> to vector<16x32xf32>
    %356 = arith.truncf %354 : vector<16x16xf32> to vector<16x16xbf16>
    %357 = arith.truncf %355 : vector<16x32xf32> to vector<16x32xbf16>
    %cst_105 = arith.constant dense<0.000000e+00> : vector<16x32xf32>
    %358 = tpu.matmul %356, %357, %cst_105 {dimension_numbers = #tpu.dot_dimension_numbers<[1], [0], [0], [1], [0, 0, 1, 1], [], []>} : vector<16x16xbf16>, vector<16x32xbf16>, vector<16x32xf32> -> vector<16x32xf32>
    %359 = arith.addf %332, %358 : vector<16x32xf32>
    %360 = vector.extract_strided_slice %326 {offsets = [0, 0, 16], sizes = [2, 8, 16], strides = [1, 1, 1]} : vector<2x8x32xf32> to vector<2x8x16xf32>
    %cst_106 = arith.constant 2.500000e-01 : f32
    %361 = vector.broadcast %cst_106 : f32 to vector<2x8x16xf32>
    %362 = arith.mulf %360, %361 : vector<2x8x16xf32>
    %363 = arith.truncf %362 : vector<2x8x16xf32> to vector<2x8x16xbf16>
    %364 = vector.extract_strided_slice %328 {offsets = [0, 0, 16], sizes = [2, 8, 16], strides = [1, 1, 1]} : vector<2x8x32xf32> to vector<2x8x16xf32>
    %365 = arith.truncf %364 : vector<2x8x16xf32> to vector<2x8x16xbf16>
    %366 = vector.extract_strided_slice %330 {offsets = [0, 0, 16], sizes = [2, 8, 16], strides = [1, 1, 1]} : vector<2x8x32xf32> to vector<2x8x16xf32>
    %367 = arith.truncf %366 : vector<2x8x16xf32> to vector<2x8x16xbf16>
    "tpu.trace_start"() <{level = 10 : i32, message = "nqd,nkd->nqk"}> : () -> ()
    %cst_107 = arith.constant dense<0.000000e+00> : vector<2x8x8xf32>
    %368 = tpu.matmul %363, %365, %cst_107 {dimension_numbers = #tpu.dot_dimension_numbers<[2], [2], [1], [1], [0, 0, 0, 1, 1, 1], [0], [0]>} : vector<2x8x16xbf16>, vector<2x8x16xbf16>, vector<2x8x8xf32> -> vector<2x8x8xf32>
    "tpu.trace_stop"() : () -> ()
    %cst_108 = arith.constant dense<0xFF800000> : vector<2x8xf32>
    %369 = vector.multi_reduction <maximumf>, %368, %cst_108 [2] : vector<2x8x8xf32> to vector<2x8xf32>
    %370 = vector.shape_cast %369 : vector<2x8xf32> to vector<2x8x1xf32>
    %371 = vector.broadcast %370 : vector<2x8x1xf32> to vector<2x8x8xf32>
    %372 = arith.subf %368, %371 : vector<2x8x8xf32>
    %373 = math.exp %372 : vector<2x8x8xf32>
    %cst_109 = arith.constant dense<0.000000e+00> : vector<2x8xf32>
    %374 = vector.multi_reduction <add>, %373, %cst_109 [2] : vector<2x8x8xf32> to vector<2x8xf32>
    %375 = vector.shape_cast %374 : vector<2x8xf32> to vector<2x8x1xf32>
    %376 = tpu.reciprocal %375 {approx = true} : vector<2x8x1xf32> -> vector<2x8x1xf32>
    %377 = vector.broadcast %376 : vector<2x8x1xf32> to vector<2x8x8xf32>
    %378 = arith.mulf %373, %377 : vector<2x8x8xf32>
    %379 = arith.truncf %378 : vector<2x8x8xf32> to vector<2x8x8xbf16>
    "tpu.trace_start"() <{level = 10 : i32, message = "nqk,nkd->nqd"}> : () -> ()
    %cst_110 = arith.constant dense<0.000000e+00> : vector<2x8x16xf32>
    %380 = tpu.matmul %379, %367, %cst_110 {dimension_numbers = #tpu.dot_dimension_numbers<[2], [1], [1], [2], [0, 0, 0, 1, 1, 2], [0], [0]>} : vector<2x8x8xbf16>, vector<2x8x16xbf16>, vector<2x8x16xf32> -> vector<2x8x16xf32>
    "tpu.trace_stop"() : () -> ()
    %381 = vector.shape_cast %380 : vector<2x8x16xf32> to vector<16x16xf32>
    %382 = vector.extract_strided_slice %331 {offsets = [16, 0], sizes = [16, 32], strides = [1, 1]} : vector<32x32xf32> to vector<16x32xf32>
    %383 = arith.truncf %381 : vector<16x16xf32> to vector<16x16xbf16>
    %384 = arith.truncf %382 : vector<16x32xf32> to vector<16x32xbf16>
    %cst_111 = arith.constant dense<0.000000e+00> : vector<16x32xf32>
    %385 = tpu.matmul %383, %384, %cst_111 {dimension_numbers = #tpu.dot_dimension_numbers<[1], [0], [0], [1], [0, 0, 1, 1], [], []>} : vector<16x16xbf16>, vector<16x32xbf16>, vector<16x32xf32> -> vector<16x32xf32>
    %386 = arith.addf %359, %385 : vector<16x32xf32>
    %c360 = arith.constant 360 : index
    %c0_112 = arith.constant 0 : index
    %387 = vector.load %arg2[%c360, %c0_112] : memref<632x96xf32, #tpu.memory_space<vmem>>, vector<1x32xf32>
    %388 = vector.broadcast %387 : vector<1x32xf32> to vector<16x32xf32>
    %389 = arith.addf %386, %388 : vector<16x32xf32>
    %390 = arith.addf %317, %389 : vector<16x32xf32>
    %c368 = arith.constant 368 : index
    %c0_113 = arith.constant 0 : index
    %391 = vector.load %arg2[%c368, %c0_113] : memref<632x96xf32, #tpu.memory_space<vmem>>, vector<1x32xf32>
    %c376 = arith.constant 376 : index
    %c0_114 = arith.constant 0 : index
    %392 = vector.load %arg2[%c376, %c0_114] : memref<632x96xf32, #tpu.memory_space<vmem>>, vector<1x32xf32>
    %cst_115 = arith.constant dense<0.000000e+00> : vector<16xf32>
    %393 = vector.multi_reduction <add>, %390, %cst_115 [1] : vector<16x32xf32> to vector<16xf32>
    %394 = vector.shape_cast %393 : vector<16xf32> to vector<16x1xf32>
    %cst_116 = arith.constant 3.200000e+01 : f32
    %395 = vector.broadcast %cst_116 : f32 to vector<16x1xf32>
    %396 = arith.divf %394, %395 : vector<16x1xf32>
    %397 = vector.broadcast %396 : vector<16x1xf32> to vector<16x32xf32>
    %398 = arith.subf %390, %397 : vector<16x32xf32>
    %399 = arith.mulf %398, %398 : vector<16x32xf32>
    %cst_117 = arith.constant dense<0.000000e+00> : vector<16xf32>
    %400 = vector.multi_reduction <add>, %399, %cst_117 [1] : vector<16x32xf32> to vector<16xf32>
    %401 = vector.shape_cast %400 : vector<16xf32> to vector<16x1xf32>
    %cst_118 = arith.constant 3.200000e+01 : f32
    %402 = vector.broadcast %cst_118 : f32 to vector<16x1xf32>
    %403 = arith.divf %401, %402 : vector<16x1xf32>
    %404 = vector.broadcast %396 : vector<16x1xf32> to vector<16x32xf32>
    %405 = arith.subf %390, %404 : vector<16x32xf32>
    %cst_119 = arith.constant 9.99999974E-6 : f32
    %406 = vector.broadcast %cst_119 : f32 to vector<16x1xf32>
    %407 = arith.addf %403, %406 : vector<16x1xf32>
    %408 = math.rsqrt %407 : vector<16x1xf32>
    %409 = vector.broadcast %408 : vector<16x1xf32> to vector<16x32xf32>
    %410 = arith.mulf %405, %409 : vector<16x32xf32>
    %411 = vector.broadcast %391 : vector<1x32xf32> to vector<16x32xf32>
    %412 = arith.mulf %410, %411 : vector<16x32xf32>
    %413 = vector.broadcast %392 : vector<1x32xf32> to vector<16x32xf32>
    %414 = arith.addf %412, %413 : vector<16x32xf32>
    %c384 = arith.constant 384 : index
    %c0_120 = arith.constant 0 : index
    %415 = vector.load %arg2[%c384, %c0_120] : memref<632x96xf32, #tpu.memory_space<vmem>>, vector<32x32xf32>
    %416 = arith.truncf %414 : vector<16x32xf32> to vector<16x32xbf16>
    %417 = arith.truncf %415 : vector<32x32xf32> to vector<32x32xbf16>
    %cst_121 = arith.constant dense<0.000000e+00> : vector<16x32xf32>
    %418 = tpu.matmul %416, %417, %cst_121 {dimension_numbers = #tpu.dot_dimension_numbers<[1], [0], [0], [1], [0, 0, 1, 1], [], []>} : vector<16x32xbf16>, vector<32x32xbf16>, vector<16x32xf32> -> vector<16x32xf32>
    %c416 = arith.constant 416 : index
    %c0_122 = arith.constant 0 : index
    %419 = vector.load %arg2[%c416, %c0_122] : memref<632x96xf32, #tpu.memory_space<vmem>>, vector<1x32xf32>
    %420 = vector.broadcast %419 : vector<1x32xf32> to vector<16x32xf32>
    %421 = arith.addf %418, %420 : vector<16x32xf32>
    %cst_123 = arith.constant 0.000000e+00 : f32
    %422 = vector.broadcast %cst_123 : f32 to vector<16x32xf32>
    %423 = arith.maximumf %421, %422 : vector<16x32xf32>
    %c424 = arith.constant 424 : index
    %c0_124 = arith.constant 0 : index
    %424 = vector.load %arg2[%c424, %c0_124] : memref<632x96xf32, #tpu.memory_space<vmem>>, vector<32x32xf32>
    %425 = arith.truncf %423 : vector<16x32xf32> to vector<16x32xbf16>
    %426 = arith.truncf %424 : vector<32x32xf32> to vector<32x32xbf16>
    %cst_125 = arith.constant dense<0.000000e+00> : vector<16x32xf32>
    %427 = tpu.matmul %425, %426, %cst_125 {dimension_numbers = #tpu.dot_dimension_numbers<[1], [0], [0], [1], [0, 0, 1, 1], [], []>} : vector<16x32xbf16>, vector<32x32xbf16>, vector<16x32xf32> -> vector<16x32xf32>
    %c456 = arith.constant 456 : index
    %c0_126 = arith.constant 0 : index
    %428 = vector.load %arg2[%c456, %c0_126] : memref<632x96xf32, #tpu.memory_space<vmem>>, vector<1x32xf32>
    %429 = vector.broadcast %428 : vector<1x32xf32> to vector<16x32xf32>
    %430 = arith.addf %427, %429 : vector<16x32xf32>
    %431 = arith.addf %414, %430 : vector<16x32xf32>
    %c464 = arith.constant 464 : index
    %c0_127 = arith.constant 0 : index
    %432 = vector.load %arg2[%c464, %c0_127] : memref<632x96xf32, #tpu.memory_space<vmem>>, vector<1x32xf32>
    %c472 = arith.constant 472 : index
    %c0_128 = arith.constant 0 : index
    %433 = vector.load %arg2[%c472, %c0_128] : memref<632x96xf32, #tpu.memory_space<vmem>>, vector<1x32xf32>
    %cst_129 = arith.constant dense<0.000000e+00> : vector<16xf32>
    %434 = vector.multi_reduction <add>, %431, %cst_129 [1] : vector<16x32xf32> to vector<16xf32>
    %435 = vector.shape_cast %434 : vector<16xf32> to vector<16x1xf32>
    %cst_130 = arith.constant 3.200000e+01 : f32
    %436 = vector.broadcast %cst_130 : f32 to vector<16x1xf32>
    %437 = arith.divf %435, %436 : vector<16x1xf32>
    %438 = vector.broadcast %437 : vector<16x1xf32> to vector<16x32xf32>
    %439 = arith.subf %431, %438 : vector<16x32xf32>
    %440 = arith.mulf %439, %439 : vector<16x32xf32>
    %cst_131 = arith.constant dense<0.000000e+00> : vector<16xf32>
    %441 = vector.multi_reduction <add>, %440, %cst_131 [1] : vector<16x32xf32> to vector<16xf32>
    %442 = vector.shape_cast %441 : vector<16xf32> to vector<16x1xf32>
    %cst_132 = arith.constant 3.200000e+01 : f32
    %443 = vector.broadcast %cst_132 : f32 to vector<16x1xf32>
    %444 = arith.divf %442, %443 : vector<16x1xf32>
    %445 = vector.broadcast %437 : vector<16x1xf32> to vector<16x32xf32>
    %446 = arith.subf %431, %445 : vector<16x32xf32>
    %cst_133 = arith.constant 9.99999974E-6 : f32
    %447 = vector.broadcast %cst_133 : f32 to vector<16x1xf32>
    %448 = arith.addf %444, %447 : vector<16x1xf32>
    %449 = math.rsqrt %448 : vector<16x1xf32>
    %450 = vector.broadcast %449 : vector<16x1xf32> to vector<16x32xf32>
    %451 = arith.mulf %446, %450 : vector<16x32xf32>
    %452 = vector.broadcast %432 : vector<1x32xf32> to vector<16x32xf32>
    %453 = arith.mulf %451, %452 : vector<16x32xf32>
    %454 = vector.broadcast %433 : vector<1x32xf32> to vector<16x32xf32>
    %455 = arith.addf %453, %454 : vector<16x32xf32>
    %456 = vector.shape_cast %455 : vector<16x32xf32> to vector<2x8x32xf32>
    %457 = vector.extract_strided_slice %456 {offsets = [0, 0, 0], sizes = [2, 1, 32], strides = [1, 1, 1]} : vector<2x8x32xf32> to vector<2x1x32xf32>
    %458 = vector.shape_cast %457 : vector<2x1x32xf32> to vector<2x32xf32>
    %c480 = arith.constant 480 : index
    %c0_134 = arith.constant 0 : index
    %459 = vector.load %arg2[%c480, %c0_134] : memref<632x96xf32, #tpu.memory_space<vmem>>, vector<32x4xf32>
    %460 = arith.truncf %458 : vector<2x32xf32> to vector<2x32xbf16>
    %461 = arith.truncf %459 : vector<32x4xf32> to vector<32x4xbf16>
    %cst_135 = arith.constant dense<0.000000e+00> : vector<2x4xf32>
    %462 = tpu.matmul %460, %461, %cst_135 {dimension_numbers = #tpu.dot_dimension_numbers<[1], [0], [0], [1], [0, 0, 1, 1], [], []>} : vector<2x32xbf16>, vector<32x4xbf16>, vector<2x4xf32> -> vector<2x4xf32>
    %c512 = arith.constant 512 : index
    %c0_136 = arith.constant 0 : index
    %463 = vector.load %arg2[%c512, %c0_136] : memref<632x96xf32, #tpu.memory_space<vmem>>, vector<1x4xf32>
    %464 = vector.broadcast %463 : vector<1x4xf32> to vector<2x4xf32>
    %465 = arith.addf %462, %464 : vector<2x4xf32>
    %cst_137 = arith.constant dense<0xFF800000> : vector<2xf32>
    %466 = vector.multi_reduction <maximumf>, %465, %cst_137 [1] : vector<2x4xf32> to vector<2xf32>
    %467 = vector.shape_cast %466 : vector<2xf32> to vector<2x1xf32>
    %468 = vector.broadcast %467 : vector<2x1xf32> to vector<2x4xf32>
    %469 = arith.subf %465, %468 : vector<2x4xf32>
    %470 = math.exp %469 : vector<2x4xf32>
    %cst_138 = arith.constant dense<0.000000e+00> : vector<2xf32>
    %471 = vector.multi_reduction <add>, %470, %cst_138 [1] : vector<2x4xf32> to vector<2xf32>
    %472 = vector.shape_cast %471 : vector<2xf32> to vector<2x1xf32>
    %473 = vector.broadcast %472 : vector<2x1xf32> to vector<2x4xf32>
    %474 = arith.divf %470, %473 : vector<2x4xf32>
    %c0_139 = arith.constant 0 : index
    %c0_140 = arith.constant 0 : index
    %475 = vector.load %arg3[%c0_139, %c0_140] : memref<2x4xf32, #tpu.memory_space<vmem>>, vector<2x4xf32>
    tpu.vector_store %arg3[%c0_139, %c0_140], %474 {strides = array<i32>} : memref<2x4xf32, #tpu.memory_space<vmem>>, vector<2x4xf32>,
    return
  }
}

</mosaic_0001>

<llo_original>
// kernel: hit_simply_forward.1
$region0: #{hit_simply_forward.1}
  #allocation0 [shape = 'u32[]', space=smem, size = 0x4, offset = 0x4, fixed_abs, tag = 'smem constant byte address 0x4 - core index']
  #allocation1 [shape = 'u32[144,128]{1,0:T(1,128)}', space=vmem, size = 0x12000, scoped, tag = 'internal scratch']
  #allocation2 [shape = 'f32[16,32]{1,0:T(8,128)}', space=vmem, size = 0x2000, scoped, tag = 'scratch operand']
  %s0 = inlined_call_operand.vmem [shape: s32[16,1], index: 0, kind: input, shape index: {}]
  %s1 = inlined_call_operand.vmem [shape: s32[128,1], index: 1, kind: input, shape index: {}]
  %s2 = inlined_call_operand.vmem [shape: f32[632,96], index: 2, kind: input, shape index: {}]
  %s3 = inlined_call_operand.hbm [shape: f32[2,4], index: 3, kind: output, shape index: {}]
  %s4 = sld [smem:[#allocation0]]
  $region22: #{hit_simply_forward.1} parent=0
    _
  %s6 = ssub.s32 1, %s4
  %s7 = scalar_select 0, %s6, %s4
  $region1: #{hit_simply_forward.1} parent=0
    #allocation3 [shape = 'u8[1024]{0}', space=vmem, size = 0x400, scoped, tag = 'output window, operand 0, single buffered']
    #allocation4 [shape = 's32[1]{0}', space=sflag, size = 0x4, scoped, tag = 'scoped memory for hit_simply_forward.1']
    %8 = vsyncpa [#allocation4], 0
    // Predicated region
    $region2: #{hit_simply_forward.1} parent=1 // pred_check
      _
    $region3: #{hit_simply_forward.1} parent=1 // pred_check_branch
      %10 = sbr.rel (0) target = $region5
    $region4: #{hit_simply_forward.1} parent=1 // pred_region
      _
    $region5: #{hit_simply_forward.1} parent=1 // pred_fallthru
      _
    // Predicated region
    $region6: #{hit_simply_forward.1} parent=1 // pred_check
      _
    $region7: #{hit_simply_forward.1} parent=1 // pred_check_branch
      %12 = sbr.rel (0) target = $region9
    $region8: #{hit_simply_forward.1} parent=1 // pred_region
      _
    $region9: #{hit_simply_forward.1} parent=1 // pred_fallthru
      _
    // Predicated region
    $region10: #{hit_simply_forward.1} parent=1 // pred_check
      _
    $region11: #{hit_simply_forward.1} parent=1 // pred_check_branch
      %14 = sbr.rel (0) target = $region13
    $region12: #{hit_simply_forward.1} parent=1 // pred_region
      _
    $region13: #{hit_simply_forward.1} parent=1 // pred_fallthru
      _
    %v16 = vld [vmem:[%s0] sm:$0xff]
    %v17 = vld [vmem:[%s0 + $0x8] sm:$0xff]
    %v18 = vld [vmem:[%s1] sm:$0xff]
    %v19 = vld [vmem:[%s1 + $0x8] sm:$0xff]
    %v20 = vld [vmem:[%s1 + $0x10] sm:$0xff]
    %v21 = vld [vmem:[%s1 + $0x18] sm:$0xff]
    %v22 = vld [vmem:[%s1 + $0x20] sm:$0xff]
    %v23 = vld [vmem:[%s1 + $0x28] sm:$0xff]
    %v24 = vld [vmem:[%s1 + $0x30] sm:$0xff]
    %v25 = vld [vmem:[%s1 + $0x38] sm:$0xff]
    %v26 = vld [vmem:[%s1 + $0x40] sm:$0xff]
    %v27 = vld [vmem:[%s1 + $0x48] sm:$0xff]
    %v28 = vld [vmem:[%s1 + $0x50] sm:$0xff]
    %v29 = vld [vmem:[%s1 + $0x58] sm:$0xff]
    %v30 = vld [vmem:[%s1 + $0x60] sm:$0xff]
    %v31 = vld [vmem:[%s1 + $0x68] sm:$0xff]
    %v32 = vld [vmem:[%s1 + $0x70] sm:$0xff]
    %v33 = vld [vmem:[%s1 + $0x78] sm:$0xff]
    %v34 = vlaneseq
    %v35 = vand.u32 %v34, 127
    %36 = vset.pattern.permute.xlu0 0
    %37 = vperm.xlu0 %36, %v16
    %v38 = vpop.permute.xlu0 %37
    %39 = vset.pattern.permute.xlu0 0
    %40 = vperm.xlu0 %39, %v17
    %v41 = vpop.permute.xlu0 %40
    %vm42 = vcmp.eq.s32.totalorder %v38, %v35
    %vm43 = vcmp.eq.s32.totalorder %v41, %v35
    %v44 = vld [vmem:[%s2 + $0x208] sm:$0xff]
    %v45 = vld [vmem:[%s2 + $0x210] sm:$0xff]
    %v46 = vld [vmem:[%s2 + $0x218] sm:$0xff]
    %v47 = vld [vmem:[%s2 + $0x220] sm:$0xff]
    %v48 = vld [vmem:[%s2 + $0x228] sm:$0xff]
    %v49 = vld [vmem:[%s2 + $0x230] sm:$0xff]
    %v50 = vld [vmem:[%s2 + $0x238] sm:$0x3]
    %v51 = vsel %vm42, 1, 0
    %v52 = vsel %vm43, 1, 0
    %v53 = vcvt.s32.f32 %v51
    %v54 = vcvt.s32.f32 %v52
    %v55 = vpack.c.bf16 %v54, %v53
    %v56 = vpack.c.bf16 %v45, %v44
    %v57 = vpack.c.bf16 %v47, %v46
    %v58 = vpack.c.bf16 %v49, %v48
    %v59 = vpack.c.bf16 %v50, %v50
    %vm60 = vcmask 408576
    %v62 = vsel %vm60, %v55, 0
    %vm64 = vcmask 1040384
    %v66 = vsel %vm64, %v59, 0
    %68 = vmatprep.subr.bf16.mxu0 0
    %69 = vmatpush1.bf16.msra.mxu0 %v56
    %70 = vmatprep.subr.bf16.mxu0 0
    %71 = vmatpush1.bf16.msra.mxu0 %v57
    %72 = vmatprep.subr.bf16.mxu0 0
    %73 = vmatpush1.bf16.msra.mxu0 %v58
    %74 = vmatprep.subr.bf16.mxu0 0
    %75 = vmatpush1.bf16.msra.mxu0 %v66
    %76 = vmatprep.subr.bf16.mxu0 0
    %77 = vmatpush1.bf16.msra.mxu0 0
    %78 = vmatprep.subr.bf16.mxu0 0
    %79 = vmatpush1.bf16.msra.mxu0 0
    %80 = vmatprep.subr.bf16.mxu0 0
    %81 = vmatpush1.bf16.msra.mxu0 0
    %82 = vmatprep.subr.bf16.mxu0 0
    %83 = vmatpush1.bf16.msra.mxu0 0
    %84 = vmatprep.subr.bf16.mxu0 0
    %85 = vmatpush1.bf16.msra.mxu0 0
    %86 = vmatprep.subr.bf16.mxu0 0
    %87 = vmatpush1.bf16.msra.mxu0 0
    %88 = vmatprep.subr.bf16.mxu0 0
    %89 = vmatpush1.bf16.msra.mxu0 0
    %90 = vmatprep.subr.bf16.mxu0 0
    %91 = vmatpush1.bf16.msra.mxu0 0
    %92 = vmatprep.subr.bf16.mxu0 0
    %93 = vmatpush1.bf16.msra.mxu0 0
    %94 = vmatprep.subr.bf16.mxu0 0
    %95 = vmatpush1.bf16.msra.mxu0 0
    %96 = vmatprep.subr.bf16.mxu0 0
    %97 = vmatpush1.bf16.msra.mxu0 0
    %98 = vmatprep.subr.bf16.mxu0 0
    %99 = vmatpush1.bf16.msra.mxu0 0
    %100 = vmatprep.mubr.bf16.mxu0 0
    %101 = vmatmul.mubr.bf16.gmra.mrb[0].mxu0 %v62
    %v102 = vpop.f32.mrb[0].mxu0
    %v103 = vadd.f32 0.0, %v102
    %v104 = vpop.f32.mrb[0].mxu0
    %v105 = vpop.f32.mrb[0].mxu0
    %v106 = vadd.f32 0.0, %v105
    %v107 = vpop.f32.mrb[0].mxu0
    %108 = vdwg.mxu0
    %v109 = vmul.f32 %v103, 4.0
    %v110 = vmul.f32 %v106, 4.0
    %v111 = vld [vmem:[%s2 + $0x240] sm:$0xff]
    %v112 = vadd.f32 %v109, %v111
    %v113 = vadd.f32 %v110, %v111
    %114 = vset.pattern.permute.xlu0 0
    %115 = vperm.xlu0 %114, %v18
    %v116 = vpop.permute.xlu0 %115
    %117 = vset.pattern.permute.xlu0 0
    %118 = vperm.xlu0 %117, %v19
    %v119 = vpop.permute.xlu0 %118
    %120 = vset.pattern.permute.xlu0 0
    %121 = vperm.xlu0 %120, %v20
    %v122 = vpop.permute.xlu0 %121
    %123 = vset.pattern.permute.xlu0 0
    %124 = vperm.xlu0 %123, %v21
    %v125 = vpop.permute.xlu0 %124
    %126 = vset.pattern.permute.xlu0 0
    %127 = vperm.xlu0 %126, %v22
    %v128 = vpop.permute.xlu0 %127
    %129 = vset.pattern.permute.xlu0 0
    %130 = vperm.xlu0 %129, %v23
    %v131 = vpop.permute.xlu0 %130
    %132 = vset.pattern.permute.xlu0 0
    %133 = vperm.xlu0 %132, %v24
    %v134 = vpop.permute.xlu0 %133
    %135 = vset.pattern.permute.xlu0 0
    %136 = vperm.xlu0 %135, %v25
    %v137 = vpop.permute.xlu0 %136
    %138 = vset.pattern.permute.xlu0 0
    %139 = vperm.xlu0 %138, %v26
    %v140 = vpop.permute.xlu0 %139
    %141 = vset.pattern.permute.xlu0 0
    %142 = vperm.xlu0 %141, %v27
    %v143 = vpop.permute.xlu0 %142
    %144 = vset.pattern.permute.xlu0 0
    %145 = vperm.xlu0 %144, %v28
    %v146 = vpop.permute.xlu0 %145
    %147 = vset.pattern.permute.xlu0 0
    %148 = vperm.xlu0 %147, %v29
    %v149 = vpop.permute.xlu0 %148
    %150 = vset.pattern.permute.xlu0 0
    %151 = vperm.xlu0 %150, %v30
    %v152 = vpop.permute.xlu0 %151
    %153 = vset.pattern.permute.xlu0 0
    %154 = vperm.xlu0 %153, %v31
    %v155 = vpop.permute.xlu0 %154
    %156 = vset.pattern.permute.xlu0 0
    %157 = vperm.xlu0 %156, %v32
    %v158 = vpop.permute.xlu0 %157
    %159 = vset.pattern.permute.xlu0 0
    %160 = vperm.xlu0 %159, %v33
    %v161 = vpop.permute.xlu0 %160
    %vm162 = vcmp.eq.s32.totalorder %v116, %v35
    %vm163 = vcmp.eq.s32.totalorder %v119, %v35
    %vm164 = vcmp.eq.s32.totalorder %v122, %v35
    %vm165 = vcmp.eq.s32.totalorder %v125, %v35
    %vm166 = vcmp.eq.s32.totalorder %v128, %v35
    %vm167 = vcmp.eq.s32.totalorder %v131, %v35
    %vm168 = vcmp.eq.s32.totalorder %v134, %v35
    %vm169 = vcmp.eq.s32.totalorder %v137, %v35
    %vm170 = vcmp.eq.s32.totalorder %v140, %v35
    %vm171 = vcmp.eq.s32.totalorder %v143, %v35
    %vm172 = vcmp.eq.s32.totalorder %v146, %v35
    %vm173 = vcmp.eq.s32.totalorder %v149, %v35
    %vm174 = vcmp.eq.s32.totalorder %v152, %v35
    %vm175 = vcmp.eq.s32.totalorder %v155, %v35
    %vm176 = vcmp.eq.s32.totalorder %v158, %v35
    %vm177 = vcmp.eq.s32.totalorder %v161, %v35
    %v178 = vld [vmem:[%s2 + $0x248] sm:$0xff]
    %v179 = vld [vmem:[%s2 + $0x250] sm:$0xff]
    %v180 = vld [vmem:[%s2 + $0x258] sm:$0xff]
    %v181 = vld [vmem:[%s2 + $0x260] sm:$0xff]
    %v182 = vld [vmem:[%s2 + $0x268] sm:$0xff]
    %v183 = vsel %vm162, 1, 0
    %v184 = vsel %vm163, 1, 0
    %v185 = vsel %vm164, 1, 0
    %v186 = vsel %vm165, 1, 0
    %v187 = vsel %vm166, 1, 0
    %v188 = vsel %vm167, 1, 0
    %v189 = vsel %vm168, 1, 0
    %v190 = vsel %vm169, 1, 0
    %v191 = vsel %vm170, 1, 0
    %v192 = vsel %vm171, 1, 0
    %v193 = vsel %vm172, 1, 0
    %v194 = vsel %vm173, 1, 0
    %v195 = vsel %vm174, 1, 0
    %v196 = vsel %vm175, 1, 0
    %v197 = vsel %vm176, 1, 0
    %v198 = vsel %vm177, 1, 0
    %v199 = vcvt.s32.f32 %v183
    %v200 = vcvt.s32.f32 %v184
    %v201 = vcvt.s32.f32 %v185
    %v202 = vcvt.s32.f32 %v186
    %v203 = vcvt.s32.f32 %v187
    %v204 = vcvt.s32.f32 %v188
    %v205 = vcvt.s32.f32 %v189
    %v206 = vcvt.s32.f32 %v190
    %v207 = vcvt.s32.f32 %v191
    %v208 = vcvt.s32.f32 %v192
    %v209 = vcvt.s32.f32 %v193
    %v210 = vcvt.s32.f32 %v194
    %v211 = vcvt.s32.f32 %v195
    %v212 = vcvt.s32.f32 %v196
    %v213 = vcvt.s32.f32 %v197
    %v214 = vcvt.s32.f32 %v198
    %v215 = vpack.c.bf16 %v200, %v199
    %v216 = vpack.c.bf16 %v202, %v201
    %v217 = vpack.c.bf16 %v204, %v203
    %v218 = vpack.c.bf16 %v206, %v205
    %v219 = vpack.c.bf16 %v208, %v207
    %v220 = vpack.c.bf16 %v210, %v209
    %v221 = vpack.c.bf16 %v212, %v211
    %v222 = vpack.c.bf16 %v214, %v213
    %v223 = vpack.c.bf16 %v179, %v178
    %v224 = vpack.c.bf16 %v181, %v180
    %v225 = vpack.c.bf16 %v182, %v182
    %vm226 = vcmask 326656
    %v228 = vsel %vm226, %v215, 0
    %v231 = vsel %vm226, %v216, 0
    %v234 = vsel %vm226, %v217, 0
    %v237 = vsel %vm226, %v218, 0
    %v240 = vsel %vm226, %v219, 0
    %v243 = vsel %vm226, %v220, 0
    %v246 = vsel %vm226, %v221, 0
    %v249 = vsel %vm226, %v222, 0
    %vm251 = vcmask 1043456
    %v253 = vsel %vm251, %v225, 0
    %255 = vmatprep.subr.bf16.mxu0 0
    %256 = vmatpush1.bf16.msra.mxu0 %v223
    %257 = vmatprep.subr.bf16.mxu0 0
    %258 = vmatpush1.bf16.msra.mxu0 %v224
    %259 = vmatprep.subr.bf16.mxu0 0
    %260 = vmatpush1.bf16.msra.mxu0 %v253
    %261 = vmatprep.subr.bf16.mxu0 0
    %262 = vmatpush1.bf16.msra.mxu0 0
    %263 = vmatprep.subr.bf16.mxu0 0
    %264 = vmatpush1.bf16.msra.mxu0 0
    %265 = vmatprep.subr.bf16.mxu0 0
    %266 = vmatpush1.bf16.msra.mxu0 0
    %267 = vmatprep.subr.bf16.mxu0 0
    %268 = vmatpush1.bf16.msra.mxu0 0
    %269 = vmatprep.subr.bf16.mxu0 0
    %270 = vmatpush1.bf16.msra.mxu0 0
    %271 = vmatprep.subr.bf16.mxu0 0
    %272 = vmatpush1.bf16.msra.mxu0 0
    %273 = vmatprep.subr.bf16.mxu0 0
    %274 = vmatpush1.bf16.msra.mxu0 0
    %275 = vmatprep.subr.bf16.mxu0 0
    %276 = vmatpush1.bf16.msra.mxu0 0
    %277 = vmatprep.subr.bf16.mxu0 0
    %278 = vmatpush1.bf16.msra.mxu0 0
    %279 = vmatprep.subr.bf16.mxu0 0
    %280 = vmatpush1.bf16.msra.mxu0 0
    %281 = vmatprep.subr.bf16.mxu0 0
    %282 = vmatpush1.bf16.msra.mxu0 0
    %283 = vmatprep.subr.bf16.mxu0 0
    %284 = vmatpush1.bf16.msra.mxu0 0
    %285 = vmatprep.subr.bf16.mxu0 0
    %286 = vmatpush1.bf16.msra.mxu0 0
    %287 = vmatprep.mubr.bf16.mxu0 0
    %288 = vmatmul.mubr.bf16.gmra.mrb[0].mxu0 %v228
    %v289 = vpop.f32.mrb[0].mxu0
    %v290 = vadd.f32 0.0, %v289
    %v291 = vpop.f32.mrb[0].mxu0
    %v292 = vpop.f32.mrb[0].mxu0
    %v293 = vadd.f32 0.0, %v292
    %v294 = vpop.f32.mrb[0].mxu0
    %295 = vmatprep.mubr.bf16.mxu0 0
    %296 = vmatmul.mubr.bf16.gmra.mrb[0].mxu0 %v231
    %v297 = vpop.f32.mrb[0].mxu0
    %v298 = vadd.f32 0.0, %v297
    %v299 = vpop.f32.mrb[0].mxu0
    %v300 = vpop.f32.mrb[0].mxu0
    %v301 = vadd.f32 0.0, %v300
    %v302 = vpop.f32.mrb[0].mxu0
    %303 = vmatprep.mubr.bf16.mxu0 0
    %304 = vmatmul.mubr.bf16.gmra.mrb[0].mxu0 %v234
    %v305 = vpop.f32.mrb[0].mxu0
    %v306 = vadd.f32 0.0, %v305
    %v307 = vpop.f32.mrb[0].mxu0
    %v308 = vpop.f32.mrb[0].mxu0
    %v309 = vadd.f32 0.0, %v308
    %v310 = vpop.f32.mrb[0].mxu0
    %311 = vmatprep.mubr.bf16.mxu0 0
    %312 = vmatmul.mubr.bf16.gmra.mrb[0].mxu0 %v237
    %v313 = vpop.f32.mrb[0].mxu0
    %v314 = vadd.f32 0.0, %v313
    %v315 = vpop.f32.mrb[0].mxu0
    %v316 = vpop.f32.mrb[0].mxu0
    %v317 = vadd.f32 0.0, %v316
    %v318 = vpop.f32.mrb[0].mxu0
    %319 = vmatprep.mubr.bf16.mxu0 0
    %320 = vmatmul.mubr.bf16.gmra.mrb[0].mxu0 %v240
    %v321 = vpop.f32.mrb[0].mxu0
    %v322 = vadd.f32 0.0, %v321
    %v323 = vpop.f32.mrb[0].mxu0
    %v324 = vpop.f32.mrb[0].mxu0
    %v325 = vadd.f32 0.0, %v324
    %v326 = vpop.f32.mrb[0].mxu0
    %327 = vmatprep.mubr.bf16.mxu0 0
    %328 = vmatmul.mubr.bf16.gmra.mrb[0].mxu0 %v243
    %v329 = vpop.f32.mrb[0].mxu0
    %v330 = vadd.f32 0.0, %v329
    %v331 = vpop.f32.mrb[0].mxu0
    %v332 = vpop.f32.mrb[0].mxu0
    %v333 = vadd.f32 0.0, %v332
    %v334 = vpop.f32.mrb[0].mxu0
    %335 = vmatprep.mubr.bf16.mxu0 0
    %336 = vmatmul.mubr.bf16.gmra.mrb[0].mxu0 %v246
    %v337 = vpop.f32.mrb[0].mxu0
    %v338 = vadd.f32 0.0, %v337
    %v339 = vpop.f32.mrb[0].mxu0
    %v340 = vpop.f32.mrb[0].mxu0
    %v341 = vadd.f32 0.0, %v340
    %v342 = vpop.f32.mrb[0].mxu0
    %343 = vmatprep.mubr.bf16.mxu0 0
    %344 = vmatmul.mubr.bf16.gmra.mrb[0].mxu0 %v249
    %v345 = vpop.f32.mrb[0].mxu0
    %v346 = vadd.f32 0.0, %v345
    %v347 = vpop.f32.mrb[0].mxu0
    %v348 = vpop.f32.mrb[0].mxu0
    %v349 = vadd.f32 0.0, %v348
    %v350 = vpop.f32.mrb[0].mxu0
    %351 = vdwg.mxu0
    %v352 = vmul.f32 %v290, 4.0
    %v353 = vmul.f32 %v293, 4.0
    %v354 = vmul.f32 %v298, 4.0
    %v355 = vmul.f32 %v301, 4.0
    %v356 = vmul.f32 %v306, 4.0
    %v357 = vmul.f32 %v309, 4.0
    %v358 = vmul.f32 %v314, 4.0
    %v359 = vmul.f32 %v317, 4.0
    %v360 = vmul.f32 %v322, 4.0
    %v361 = vmul.f32 %v325, 4.0
    %v362 = vmul.f32 %v330, 4.0
    %v363 = vmul.f32 %v333, 4.0
    %v364 = vmul.f32 %v338, 4.0
    %v365 = vmul.f32 %v341, 4.0
    %v366 = vmul.f32 %v346, 4.0
    %v367 = vmul.f32 %v349, 4.0
    %v368 = vld [vmem:[%s2 + $0x270] sm:$0xff]
    %v369 = vadd.f32 %v352, %v368
    %v370 = vadd.f32 %v353, %v368
    %v371 = vadd.f32 %v354, %v368
    %v372 = vadd.f32 %v355, %v368
    %v373 = vadd.f32 %v356, %v368
    %v374 = vadd.f32 %v357, %v368
    %v375 = vadd.f32 %v358, %v368
    %v376 = vadd.f32 %v359, %v368
    %v377 = vadd.f32 %v360, %v368
    %v378 = vadd.f32 %v361, %v368
    %v379 = vadd.f32 %v362, %v368
    %v380 = vadd.f32 %v363, %v368
    %v381 = vadd.f32 %v364, %v368
    %v382 = vadd.f32 %v365, %v368
    %v383 = vadd.f32 %v366, %v368
    %v384 = vadd.f32 %v367, %v368
    %v385 = vld [vmem:[%s2] sm:$0xff]
    %v386 = vld [vmem:[%s2 + $0x8] sm:$0xff]
    %v387 = vpack.c.bf16 %v370, %v369
    %v388 = vpack.c.bf16 %v372, %v371
    %v389 = vpack.c.bf16 %v374, %v373
    %v390 = vpack.c.bf16 %v376, %v375
    %v391 = vpack.c.bf16 %v378, %v377
    %v392 = vpack.c.bf16 %v380, %v379
    %v393 = vpack.c.bf16 %v382, %v381
    %v394 = vpack.c.bf16 %v384, %v383
    %v395 = vpack.c.bf16 %v386, %v385
    %v396 = vld [vmem:[%s2 + $0x10] sm:$0x1]
    %v397 = vlaneseq
    %v398 = vshrl.u32 %v397, 7
    %v399 = vsub.s32 0, %v398
    %v400 = vrot.slane %v396, %v399
    %vm401 = vcmask 130048
    %v403 = vsel %vm401, %v387, 0
    %v406 = vsel %vm401, %v388, 0
    %v409 = vsel %vm401, %v389, 0
    %v412 = vsel %vm401, %v390, 0
    %v415 = vsel %vm401, %v391, 0
    %v418 = vsel %vm401, %v392, 0
    %v421 = vsel %vm401, %v393, 0
    %v424 = vsel %vm401, %v394, 0
    %426 = vmatprep.subr.bf16.mxu0 0
    %427 = vmatpush1.bf16.msra.mxu0 %v395
    %428 = vmatprep.subr.bf16.mxu0 0
    %429 = vmatpush1.bf16.msra.mxu0 0
    %430 = vmatprep.subr.bf16.mxu0 0
    %431 = vmatpush1.bf16.msra.mxu0 0
    %432 = vmatprep.subr.bf16.mxu0 0
    %433 = vmatpush1.bf16.msra.mxu0 0
    %434 = vmatprep.subr.bf16.mxu0 0
    %435 = vmatpush1.bf16.msra.mxu0 0
    %436 = vmatprep.subr.bf16.mxu0 0
    %437 = vmatpush1.bf16.msra.mxu0 0
    %438 = vmatprep.subr.bf16.mxu0 0
    %439 = vmatpush1.bf16.msra.mxu0 0
    %440 = vmatprep.subr.bf16.mxu0 0
    %441 = vmatpush1.bf16.msra.mxu0 0
    %442 = vmatprep.subr.bf16.mxu0 0
    %443 = vmatpush1.bf16.msra.mxu0 0
    %444 = vmatprep.subr.bf16.mxu0 0
    %445 = vmatpush1.bf16.msra.mxu0 0
    %446 = vmatprep.subr.bf16.mxu0 0
    %447 = vmatpush1.bf16.msra.mxu0 0
    %448 = vmatprep.subr.bf16.mxu0 0
    %449 = vmatpush1.bf16.msra.mxu0 0
    %450 = vmatprep.subr.bf16.mxu0 0
    %451 = vmatpush1.bf16.msra.mxu0 0
    %452 = vmatprep.subr.bf16.mxu0 0
    %453 = vmatpush1.bf16.msra.mxu0 0
    %454 = vmatprep.subr.bf16.mxu0 0
    %455 = vmatpush1.bf16.msra.mxu0 0
    %456 = vmatprep.subr.bf16.mxu0 0
    %457 = vmatpush1.bf16.msra.mxu0 0
    %458 = vmatprep.mubr.bf16.mxu0 0
    %459 = vmatmul.mubr.bf16.gmra.mrb[0].mxu0 %v403
    %v460 = vpop.f32.mrb[0].mxu0
    %v461 = vadd.f32 %v400, %v460
    %v462 = vpop.f32.mrb[0].mxu0
    %v463 = vpop.f32.mrb[0].mxu0
    %v464 = vadd.f32 %v400, %v463
    %v465 = vpop.f32.mrb[0].mxu0
    %466 = vmatprep.mubr.bf16.mxu0 0
    %467 = vmatmul.mubr.bf16.gmra.mrb[0].mxu0 %v406
    %v468 = vpop.f32.mrb[0].mxu0
    %v469 = vadd.f32 %v400, %v468
    %v470 = vpop.f32.mrb[0].mxu0
    %v471 = vpop.f32.mrb[0].mxu0
    %v472 = vadd.f32 %v400, %v471
    %v473 = vpop.f32.mrb[0].mxu0
    %474 = vmatprep.mubr.bf16.mxu0 0
    %475 = vmatmul.mubr.bf16.gmra.mrb[0].mxu0 %v409
    %v476 = vpop.f32.mrb[0].mxu0
    %v477 = vadd.f32 %v400, %v476
    %v478 = vpop.f32.mrb[0].mxu0
    %v479 = vpop.f32.mrb[0].mxu0
    %v480 = vadd.f32 %v400, %v479
    %v481 = vpop.f32.mrb[0].mxu0
    %482 = vmatprep.mubr.bf16.mxu0 0
    %483 = vmatmul.mubr.bf16.gmra.mrb[0].mxu0 %v412
    %v484 = vpop.f32.mrb[0].mxu0
    %v485 = vadd.f32 %v400, %v484
    %v486 = vpop.f32.mrb[0].mxu0
    %v487 = vpop.f32.mrb[0].mxu0
    %v488 = vadd.f32 %v400, %v487
    %v489 = vpop.f32.mrb[0].mxu0
    %490 = vmatprep.mubr.bf16.mxu0 0
    %491 = vmatmul.mubr.bf16.gmra.mrb[0].mxu0 %v415
    %v492 = vpop.f32.mrb[0].mxu0
    %v493 = vadd.f32 %v400, %v492
    %v494 = vpop.f32.mrb[0].mxu0
    %v495 = vpop.f32.mrb[0].mxu0
    %v496 = vadd.f32 %v400, %v495
    %v497 = vpop.f32.mrb[0].mxu0
    %498 = vmatprep.mubr.bf16.mxu0 0
    %499 = vmatmul.mubr.bf16.gmra.mrb[0].mxu0 %v418
    %v500 = vpop.f32.mrb[0].mxu0
    %v501 = vadd.f32 %v400, %v500
    %v502 = vpop.f32.mrb[0].mxu0
    %v503 = vpop.f32.mrb[0].mxu0
    %v504 = vadd.f32 %v400, %v503
    %v505 = vpop.f32.mrb[0].mxu0
    %506 = vmatprep.mubr.bf16.mxu0 0
    %507 = vmatmul.mubr.bf16.gmra.mrb[0].mxu0 %v421
    %v508 = vpop.f32.mrb[0].mxu0
    %v509 = vadd.f32 %v400, %v508
    %v510 = vpop.f32.mrb[0].mxu0
    %v511 = vpop.f32.mrb[0].mxu0
    %v512 = vadd.f32 %v400, %v511
    %v513 = vpop.f32.mrb[0].mxu0
    %514 = vmatprep.mubr.bf16.mxu0 0
    %515 = vmatmul.mubr.bf16.gmra.mrb[0].mxu0 %v424
    %v516 = vpop.f32.mrb[0].mxu0
    %v517 = vadd.f32 %v400, %v516
    %v518 = vpop.f32.mrb[0].mxu0
    %v519 = vpop.f32.mrb[0].mxu0
    %v520 = vadd.f32 %v400, %v519
    %v521 = vpop.f32.mrb[0].mxu0
    %522 = vdwg.mxu0
    %v523 = vld [vmem:[%s2 + $0x18] sm:$0xff]
    %v524 = vld [vmem:[%s2 + $0x20] sm:$0xff]
    %v525 = vmul.f32 %v461, 0.35355338
    %v526 = vmul.f32 %v464, 0.35355338
    %v527 = vmul.f32 %v469, 0.35355338
    %v528 = vmul.f32 %v472, 0.35355338
    %v529 = vmul.f32 %v477, 0.35355338
    %v530 = vmul.f32 %v480, 0.35355338
    %v531 = vmul.f32 %v485, 0.35355338
    %v532 = vmul.f32 %v488, 0.35355338
    %v533 = vmul.f32 %v493, 0.35355338
    %v534 = vmul.f32 %v496, 0.35355338
    %v535 = vmul.f32 %v501, 0.35355338
    %v536 = vmul.f32 %v504, 0.35355338
    %v537 = vmul.f32 %v509, 0.35355338
    %v538 = vmul.f32 %v512, 0.35355338
    %v539 = vmul.f32 %v517, 0.35355338
    %v540 = vmul.f32 %v520, 0.35355338
    %v541 = vpack.c.bf16 %v525, %v525
    %v542 = vpack.c.bf16 %v526, %v526
    %v543 = vpack.c.bf16 %v527, %v527
    %v544 = vpack.c.bf16 %v528, %v528
    %v545 = vpack.c.bf16 %v529, %v529
    %v546 = vpack.c.bf16 %v530, %v530
    %v547 = vpack.c.bf16 %v531, %v531
    %v548 = vpack.c.bf16 %v532, %v532
    %v549 = vpack.c.bf16 %v533, %v533
    %v550 = vpack.c.bf16 %v534, %v534
    %v551 = vpack.c.bf16 %v535, %v535
    %v552 = vpack.c.bf16 %v536, %v536
    %v553 = vpack.c.bf16 %v537, %v537
    %v554 = vpack.c.bf16 %v538, %v538
    %v555 = vpack.c.bf16 %v539, %v539
    %v556 = vpack.c.bf16 %v540, %v540
    %v557 = vpack.c.bf16 %v461, %v461
    %v558 = vpack.c.bf16 %v464, %v464
    %v559 = vpack.c.bf16 %v469, %v469
    %v560 = vpack.c.bf16 %v472, %v472
    %v561 = vpack.c.bf16 %v477, %v477
    %v562 = vpack.c.bf16 %v480, %v480
    %v563 = vpack.c.bf16 %v485, %v485
    %v564 = vpack.c.bf16 %v488, %v488
    %v565 = vpack.c.bf16 %v493, %v493
    %v566 = vpack.c.bf16 %v496, %v496
    %v567 = vpack.c.bf16 %v501, %v501
    %v568 = vpack.c.bf16 %v504, %v504
    %v569 = vpack.c.bf16 %v509, %v509
    %v570 = vpack.c.bf16 %v512, %v512
    %v571 = vpack.c.bf16 %v517, %v517
    %v572 = vpack.c.bf16 %v520, %v520
    %574 = vrot.lane.b32.xlu0 %v557, 112
    %v575 = vpop.permute.xlu0 %574
    %vm576 = vcmask 64512
    %v578 = vsel %vm576, %v541, 0
    %v581 = vsel %vm576, %v575, 0
    %583 = vmatprep.subr.bf16.mxu0 0
    %584 = vmatpush1.bf16.xpose.msra.mxu0 %v581
    %585 = vmatprep.subr.bf16.mxu0 0
    %586 = vmatpush1.bf16.xpose.msra.mxu0 0
    %587 = vmatprep.subr.bf16.mxu0 0
    %588 = vmatpush1.bf16.xpose.msra.mxu0 0
    %589 = vmatprep.subr.bf16.mxu0 0
    %590 = vmatpush1.bf16.xpose.msra.mxu0 0
    %591 = vmatprep.subr.bf16.mxu0 0
    %592 = vmatpush1.bf16.xpose.msra.mxu0 0
    %593 = vmatprep.subr.bf16.mxu0 0
    %594 = vmatpush1.bf16.xpose.msra.mxu0 0
    %595 = vmatprep.subr.bf16.mxu0 0
    %596 = vmatpush1.bf16.xpose.msra.mxu0 0
    %597 = vmatprep.subr.bf16.mxu0 0
    %598 = vmatpush1.bf16.xpose.msra.mxu0 0
    %599 = vmatprep.subr.bf16.mxu0 0
    %600 = vmatpush1.bf16.xpose.msra.mxu0 0
    %601 = vmatprep.subr.bf16.mxu0 0
    %602 = vmatpush1.bf16.xpose.msra.mxu0 0
    %603 = vmatprep.subr.bf16.mxu0 0
    %604 = vmatpush1.bf16.xpose.msra.mxu0 0
    %605 = vmatprep.subr.bf16.mxu0 0
    %606 = vmatpush1.bf16.xpose.msra.mxu0 0
    %607 = vmatprep.subr.bf16.mxu0 0
    %608 = vmatpush1.bf16.xpose.msra.mxu0 0
    %609 = vmatprep.subr.bf16.mxu0 0
    %610 = vmatpush1.bf16.xpose.msra.mxu0 0
    %611 = vmatprep.subr.bf16.mxu0 0
    %612 = vmatpush1.bf16.xpose.msra.mxu0 0
    %613 = vmatprep.subr.bf16.mxu0 0
    %614 = vmatpush1.bf16.xpose.msra.mxu0 0
    %615 = vmatprep.mubr.bf16.mxu0 0
    %616 = vmatmul.mubr.bf16.gmra.mrb[0].mxu0 %v578
    %v617 = vpop.f32.mrb[0].mxu0
    %v618 = vadd.f32 0.0, %v617
    %v619 = vpop.f32.mrb[0].mxu0
    %v620 = vpop.f32.mrb[0].mxu0
    %v621 = vpop.f32.mrb[0].mxu0
    %622 = vdwg.mxu0
    %624 = vrot.lane.b32.xlu0 %v558, 112
    %v625 = vpop.permute.xlu0 %624
    %v627 = vsel %vm576, %v542, 0
    %v630 = vsel %vm576, %v625, 0
    %632 = vmatprep.subr.bf16.mxu0 0
    %633 = vmatpush1.bf16.xpose.msra.mxu0 %v630
    %634 = vmatprep.subr.bf16.mxu0 0
    %635 = vmatpush1.bf16.xpose.msra.mxu0 0
    %636 = vmatprep.subr.bf16.mxu0 0
    %637 = vmatpush1.bf16.xpose.msra.mxu0 0
    %638 = vmatprep.subr.bf16.mxu0 0
    %639 = vmatpush1.bf16.xpose.msra.mxu0 0
    %640 = vmatprep.subr.bf16.mxu0 0
    %641 = vmatpush1.bf16.xpose.msra.mxu0 0
    %642 = vmatprep.subr.bf16.mxu0 0
    %643 = vmatpush1.bf16.xpose.msra.mxu0 0
    %644 = vmatprep.subr.bf16.mxu0 0
    %645 = vmatpush1.bf16.xpose.msra.mxu0 0
    %646 = vmatprep.subr.bf16.mxu0 0
    %647 = vmatpush1.bf16.xpose.msra.mxu0 0
    %648 = vmatprep.subr.bf16.mxu0 0
    %649 = vmatpush1.bf16.xpose.msra.mxu0 0
    %650 = vmatprep.subr.bf16.mxu0 0
    %651 = vmatpush1.bf16.xpose.msra.mxu0 0
    %652 = vmatprep.subr.bf16.mxu0 0
    %653 = vmatpush1.bf16.xpose.msra.mxu0 0
    %654 = vmatprep.subr.bf16.mxu0 0
    %655 = vmatpush1.bf16.xpose.msra.mxu0 0
    %656 = vmatprep.subr.bf16.mxu0 0
    %657 = vmatpush1.bf16.xpose.msra.mxu0 0
    %658 = vmatprep.subr.bf16.mxu0 0
    %659 = vmatpush1.bf16.xpose.msra.mxu0 0
    %660 = vmatprep.subr.bf16.mxu0 0
    %661 = vmatpush1.bf16.xpose.msra.mxu0 0
    %662 = vmatprep.subr.bf16.mxu0 0
    %663 = vmatpush1.bf16.xpose.msra.mxu0 0
    %664 = vmatprep.mubr.bf16.mxu0 0
    %665 = vmatmul.mubr.bf16.gmra.mrb[0].mxu0 %v627
    %v666 = vpop.f32.mrb[0].mxu0
    %v667 = vadd.f32 0.0, %v666
    %v668 = vpop.f32.mrb[0].mxu0
    %v669 = vpop.f32.mrb[0].mxu0
    %v670 = vpop.f32.mrb[0].mxu0
    %671 = vdwg.mxu0
    %673 = vrot.lane.b32.xlu0 %v559, 112
    %v674 = vpop.permute.xlu0 %673
    %v676 = vsel %vm576, %v543, 0
    %v679 = vsel %vm576, %v674, 0
    %681 = vmatprep.subr.bf16.mxu0 0
    %682 = vmatpush1.bf16.xpose.msra.mxu0 %v679
    %683 = vmatprep.subr.bf16.mxu0 0
    %684 = vmatpush1.bf16.xpose.msra.mxu0 0
    %685 = vmatprep.subr.bf16.mxu0 0
    %686 = vmatpush1.bf16.xpose.msra.mxu0 0
    %687 = vmatprep.subr.bf16.mxu0 0
    %688 = vmatpush1.bf16.xpose.msra.mxu0 0
    %689 = vmatprep.subr.bf16.mxu0 0
    %690 = vmatpush1.bf16.xpose.msra.mxu0 0
    %691 = vmatprep.subr.bf16.mxu0 0
    %692 = vmatpush1.bf16.xpose.msra.mxu0 0
    %693 = vmatprep.subr.bf16.mxu0 0
    %694 = vmatpush1.bf16.xpose.msra.mxu0 0
    %695 = vmatprep.subr.bf16.mxu0 0
    %696 = vmatpush1.bf16.xpose.msra.mxu0 0
    %697 = vmatprep.subr.bf16.mxu0 0
    %698 = vmatpush1.bf16.xpose.msra.mxu0 0
    %699 = vmatprep.subr.bf16.mxu0 0
    %700 = vmatpush1.bf16.xpose.msra.mxu0 0
    %701 = vmatprep.subr.bf16.mxu0 0
    %702 = vmatpush1.bf16.xpose.msra.mxu0 0
    %703 = vmatprep.subr.bf16.mxu0 0
    %704 = vmatpush1.bf16.xpose.msra.mxu0 0
    %705 = vmatprep.subr.bf16.mxu0 0
    %706 = vmatpush1.bf16.xpose.msra.mxu0 0
    %707 = vmatprep.subr.bf16.mxu0 0
    %708 = vmatpush1.bf16.xpose.msra.mxu0 0
    %709 = vmatprep.subr.bf16.mxu0 0
    %710 = vmatpush1.bf16.xpose.msra.mxu0 0
    %711 = vmatprep.subr.bf16.mxu0 0
    %712 = vmatpush1.bf16.xpose.msra.mxu0 0
    %713 = vmatprep.mubr.bf16.mxu0 0
    %714 = vmatmul.mubr.bf16.gmra.mrb[0].mxu0 %v676
    %v715 = vpop.f32.mrb[0].mxu0
    %v716 = vadd.f32 0.0, %v715
    %v717 = vpop.f32.mrb[0].mxu0
    %v718 = vpop.f32.mrb[0].mxu0
    %v719 = vpop.f32.mrb[0].mxu0
    %720 = vdwg.mxu0
    %722 = vrot.lane.b32.xlu0 %v560, 112
    %v723 = vpop.permute.xlu0 %722
    %v725 = vsel %vm576, %v544, 0
    %v728 = vsel %vm576, %v723, 0
    %730 = vmatprep.subr.bf16.mxu0 0
    %731 = vmatpush1.bf16.xpose.msra.mxu0 %v728
    %732 = vmatprep.subr.bf16.mxu0 0
    %733 = vmatpush1.bf16.xpose.msra.mxu0 0
    %734 = vmatprep.subr.bf16.mxu0 0
    %735 = vmatpush1.bf16.xpose.msra.mxu0 0
    %736 = vmatprep.subr.bf16.mxu0 0
    %737 = vmatpush1.bf16.xpose.msra.mxu0 0
    %738 = vmatprep.subr.bf16.mxu0 0
    %739 = vmatpush1.bf16.xpose.msra.mxu0 0
    %740 = vmatprep.subr.bf16.mxu0 0
    %741 = vmatpush1.bf16.xpose.msra.mxu0 0
    %742 = vmatprep.subr.bf16.mxu0 0
    %743 = vmatpush1.bf16.xpose.msra.mxu0 0
    %744 = vmatprep.subr.bf16.mxu0 0
    %745 = vmatpush1.bf16.xpose.msra.mxu0 0
    %746 = vmatprep.subr.bf16.mxu0 0
    %747 = vmatpush1.bf16.xpose.msra.mxu0 0
    %748 = vmatprep.subr.bf16.mxu0 0
    %749 = vmatpush1.bf16.xpose.msra.mxu0 0
    %750 = vmatprep.subr.bf16.mxu0 0
    %751 = vmatpush1.bf16.xpose.msra.mxu0 0
    %752 = vmatprep.subr.bf16.mxu0 0
    %753 = vmatpush1.bf16.xpose.msra.mxu0 0
    %754 = vmatprep.subr.bf16.mxu0 0
    %755 = vmatpush1.bf16.xpose.msra.mxu0 0
    %756 = vmatprep.subr.bf16.mxu0 0
    %757 = vmatpush1.bf16.xpose.msra.mxu0 0
    %758 = vmatprep.subr.bf16.mxu0 0
    %759 = vmatpush1.bf16.xpose.msra.mxu0 0
    %760 = vmatprep.subr.bf16.mxu0 0
    %761 = vmatpush1.bf16.xpose.msra.mxu0 0
    %762 = vmatprep.mubr.bf16.mxu0 0
    %763 = vmatmul.mubr.bf16.gmra.mrb[0].mxu0 %v725
    %v764 = vpop.f32.mrb[0].mxu0
    %v765 = vadd.f32 0.0, %v764
    %v766 = vpop.f32.mrb[0].mxu0
    %v767 = vpop.f32.mrb[0].mxu0
    %v768 = vpop.f32.mrb[0].mxu0
    %769 = vdwg.mxu0
    %771 = vrot.lane.b32.xlu0 %v561, 112
    %v772 = vpop.permute.xlu0 %771
    %v774 = vsel %vm576, %v545, 0
    %v777 = vsel %vm576, %v772, 0
    %779 = vmatprep.subr.bf16.mxu0 0
    %780 = vmatpush1.bf16.xpose.msra.mxu0 %v777
    %781 = vmatprep.subr.bf16.mxu0 0
    %782 = vmatpush1.bf16.xpose.msra.mxu0 0
    %783 = vmatprep.subr.bf16.mxu0 0
    %784 = vmatpush1.bf16.xpose.msra.mxu0 0
    %785 = vmatprep.subr.bf16.mxu0 0
    %786 = vmatpush1.bf16.xpose.msra.mxu0 0
    %787 = vmatprep.subr.bf16.mxu0 0
    %788 = vmatpush1.bf16.xpose.msra.mxu0 0
    %789 = vmatprep.subr.bf16.mxu0 0
    %790 = vmatpush1.bf16.xpose.msra.mxu0 0
    %791 = vmatprep.subr.bf16.mxu0 0
    %792 = vmatpush1.bf16.xpose.msra.mxu0 0
    %793 = vmatprep.subr.bf16.mxu0 0
    %794 = vmatpush1.bf16.xpose.msra.mxu0 0
    %795 = vmatprep.subr.bf16.mxu0 0
    %796 = vmatpush1.bf16.xpose.msra.mxu0 0
    %797 = vmatprep.subr.bf16.mxu0 0
    %798 = vmatpush1.bf16.xpose.msra.mxu0 0
    %799 = vmatprep.subr.bf16.mxu0 0
    %800 = vmatpush1.bf16.xpose.msra.mxu0 0
    %801 = vmatprep.subr.bf16.mxu0 0
    %802 = vmatpush1.bf16.xpose.msra.mxu0 0
    %803 = vmatprep.subr.bf16.mxu0 0
    %804 = vmatpush1.bf16.xpose.msra.mxu0 0
    %805 = vmatprep.subr.bf16.mxu0 0
    %806 = vmatpush1.bf16.xpose.msra.mxu0 0
    %807 = vmatprep.subr.bf16.mxu0 0
    %808 = vmatpush1.bf16.xpose.msra.mxu0 0
    %809 = vmatprep.subr.bf16.mxu0 0
    %810 = vmatpush1.bf16.xpose.msra.mxu0 0
    %811 = vmatprep.mubr.bf16.mxu0 0
    %812 = vmatmul.mubr.bf16.gmra.mrb[0].mxu0 %v774
    %v813 = vpop.f32.mrb[0].mxu0
    %v814 = vadd.f32 0.0, %v813
    %v815 = vpop.f32.mrb[0].mxu0
    %v816 = vpop.f32.mrb[0].mxu0
    %v817 = vpop.f32.mrb[0].mxu0
    %818 = vdwg.mxu0
    %820 = vrot.lane.b32.xlu0 %v562, 112
    %v821 = vpop.permute.xlu0 %820
    %v823 = vsel %vm576, %v546, 0
    %v826 = vsel %vm576, %v821, 0
    %828 = vmatprep.subr.bf16.mxu0 0
    %829 = vmatpush1.bf16.xpose.msra.mxu0 %v826
    %830 = vmatprep.subr.bf16.mxu0 0
    %831 = vmatpush1.bf16.xpose.msra.mxu0 0
    %832 = vmatprep.subr.bf16.mxu0 0
    %833 = vmatpush1.bf16.xpose.msra.mxu0 0
    %834 = vmatprep.subr.bf16.mxu0 0
    %835 = vmatpush1.bf16.xpose.msra.mxu0 0
    %836 = vmatprep.subr.bf16.mxu0 0
    %837 = vmatpush1.bf16.xpose.msra.mxu0 0
    %838 = vmatprep.subr.bf16.mxu0 0
    %839 = vmatpush1.bf16.xpose.msra.mxu0 0
    %840 = vmatprep.subr.bf16.mxu0 0
    %841 = vmatpush1.bf16.xpose.msra.mxu0 0
    %842 = vmatprep.subr.bf16.mxu0 0
    %843 = vmatpush1.bf16.xpose.msra.mxu0 0
    %844 = vmatprep.subr.bf16.mxu0 0
    %845 = vmatpush1.bf16.xpose.msra.mxu0 0
    %846 = vmatprep.subr.bf16.mxu0 0
    %847 = vmatpush1.bf16.xpose.msra.mxu0 0
    %848 = vmatprep.subr.bf16.mxu0 0
    %849 = vmatpush1.bf16.xpose.msra.mxu0 0
    %850 = vmatprep.subr.bf16.mxu0 0
    %851 = vmatpush1.bf16.xpose.msra.mxu0 0
    %852 = vmatprep.subr.bf16.mxu0 0
    %853 = vmatpush1.bf16.xpose.msra.mxu0 0
    %854 = vmatprep.subr.bf16.mxu0 0
    %855 = vmatpush1.bf16.xpose.msra.mxu0 0
    %856 = vmatprep.subr.bf16.mxu0 0
    %857 = vmatpush1.bf16.xpose.msra.mxu0 0
    %858 = vmatprep.subr.bf16.mxu0 0
    %859 = vmatpush1.bf16.xpose.msra.mxu0 0
    %860 = vmatprep.mubr.bf16.mxu0 0
    %861 = vmatmul.mubr.bf16.gmra.mrb[0].mxu0 %v823
    %v862 = vpop.f32.mrb[0].mxu0
    %v863 = vadd.f32 0.0, %v862
    %v864 = vpop.f32.mrb[0].mxu0
    %v865 = vpop.f32.mrb[0].mxu0
    %v866 = vpop.f32.mrb[0].mxu0
    %867 = vdwg.mxu0
    %869 = vrot.lane.b32.xlu0 %v563, 112
    %v870 = vpop.permute.xlu0 %869
    %v872 = vsel %vm576, %v547, 0
    %v875 = vsel %vm576, %v870, 0
    %877 = vmatprep.subr.bf16.mxu0 0
    %878 = vmatpush1.bf16.xpose.msra.mxu0 %v875
    %879 = vmatprep.subr.bf16.mxu0 0
    %880 = vmatpush1.bf16.xpose.msra.mxu0 0
    %881 = vmatprep.subr.bf16.mxu0 0
    %882 = vmatpush1.bf16.xpose.msra.mxu0 0
    %883 = vmatprep.subr.bf16.mxu0 0
    %884 = vmatpush1.bf16.xpose.msra.mxu0 0
    %885 = vmatprep.subr.bf16.mxu0 0
    %886 = vmatpush1.bf16.xpose.msra.mxu0 0
    %887 = vmatprep.subr.bf16.mxu0 0
    %888 = vmatpush1.bf16.xpose.msra.mxu0 0
    %889 = vmatprep.subr.bf16.mxu0 0
    %890 = vmatpush1.bf16.xpose.msra.mxu0 0
    %891 = vmatprep.subr.bf16.mxu0 0
    %892 = vmatpush1.bf16.xpose.msra.mxu0 0
    %893 = vmatprep.subr.bf16.mxu0 0
    %894 = vmatpush1.bf16.xpose.msra.mxu0 0
    %895 = vmatprep.subr.bf16.mxu0 0
    %896 = vmatpush1.bf16.xpose.msra.mxu0 0
    %897 = vmatprep.subr.bf16.mxu0 0
    %898 = vmatpush1.bf16.xpose.msra.mxu0 0
    %899 = vmatprep.subr.bf16.mxu0 0
    %900 = vmatpush1.bf16.xpose.msra.mxu0 0
    %901 = vmatprep.subr.bf16.mxu0 0
    %902 = vmatpush1.bf16.xpose.msra.mxu0 0
    %903 = vmatprep.subr.bf16.mxu0 0
    %904 = vmatpush1.bf16.xpose.msra.mxu0 0
    %905 = vmatprep.subr.bf16.mxu0 0
    %906 = vmatpush1.bf16.xpose.msra.mxu0 0
    %907 = vmatprep.subr.bf16.mxu0 0
    %908 = vmatpush1.bf16.xpose.msra.mxu0 0
    %909 = vmatprep.mubr.bf16.mxu0 0
    %910 = vmatmul.mubr.bf16.gmra.mrb[0].mxu0 %v872
    %v911 = vpop.f32.mrb[0].mxu0
    %v912 = vadd.f32 0.0, %v911
    %v913 = vpop.f32.mrb[0].mxu0
    %v914 = vpop.f32.mrb[0].mxu0
    %v915 = vpop.f32.mrb[0].mxu0
    %916 = vdwg.mxu0
    %918 = vrot.lane.b32.xlu0 %v564, 112
    %v919 = vpop.permute.xlu0 %918
    %v921 = vsel %vm576, %v548, 0
    %v924 = vsel %vm576, %v919, 0
    %926 = vmatprep.subr.bf16.mxu0 0
    %927 = vmatpush1.bf16.xpose.msra.mxu0 %v924
    %928 = vmatprep.subr.bf16.mxu0 0
    %929 = vmatpush1.bf16.xpose.msra.mxu0 0
    %930 = vmatprep.subr.bf16.mxu0 0
    %931 = vmatpush1.bf16.xpose.msra.mxu0 0
    %932 = vmatprep.subr.bf16.mxu0 0
    %933 = vmatpush1.bf16.xpose.msra.mxu0 0
    %934 = vmatprep.subr.bf16.mxu0 0
    %935 = vmatpush1.bf16.xpose.msra.mxu0 0
    %936 = vmatprep.subr.bf16.mxu0 0
    %937 = vmatpush1.bf16.xpose.msra.mxu0 0
    %938 = vmatprep.subr.bf16.mxu0 0
    %939 = vmatpush1.bf16.xpose.msra.mxu0 0
    %940 = vmatprep.subr.bf16.mxu0 0
    %941 = vmatpush1.bf16.xpose.msra.mxu0 0
    %942 = vmatprep.subr.bf16.mxu0 0
    %943 = vmatpush1.bf16.xpose.msra.mxu0 0
    %944 = vmatprep.subr.bf16.mxu0 0
    %945 = vmatpush1.bf16.xpose.msra.mxu0 0
    %946 = vmatprep.subr.bf16.mxu0 0
    %947 = vmatpush1.bf16.xpose.msra.mxu0 0
    %948 = vmatprep.subr.bf16.mxu0 0
    %949 = vmatpush1.bf16.xpose.msra.mxu0 0
    %950 = vmatprep.subr.bf16.mxu0 0
    %951 = vmatpush1.bf16.xpose.msra.mxu0 0
    %952 = vmatprep.subr.bf16.mxu0 0
    %953 = vmatpush1.bf16.xpose.msra.mxu0 0
    %954 = vmatprep.subr.bf16.mxu0 0
    %955 = vmatpush1.bf16.xpose.msra.mxu0 0
    %956 = vmatprep.subr.bf16.mxu0 0
    %957 = vmatpush1.bf16.xpose.msra.mxu0 0
    %958 = vmatprep.mubr.bf16.mxu0 0
    %959 = vmatmul.mubr.bf16.gmra.mrb[0].mxu0 %v921
    %v960 = vpop.f32.mrb[0].mxu0
    %v961 = vadd.f32 0.0, %v960
    %v962 = vpop.f32.mrb[0].mxu0
    %v963 = vpop.f32.mrb[0].mxu0
    %v964 = vpop.f32.mrb[0].mxu0
    %965 = vdwg.mxu0
    %967 = vrot.lane.b32.xlu0 %v565, 112
    %v968 = vpop.permute.xlu0 %967
    %v970 = vsel %vm576, %v549, 0
    %v973 = vsel %vm576, %v968, 0
    %975 = vmatprep.subr.bf16.mxu0 0
    %976 = vmatpush1.bf16.xpose.msra.mxu0 %v973
    %977 = vmatprep.subr.bf16.mxu0 0
    %978 = vmatpush1.bf16.xpose.msra.mxu0 0
    %979 = vmatprep.subr.bf16.mxu0 0
    %980 = vmatpush1.bf16.xpose.msra.mxu0 0
    %981 = vmatprep.subr.bf16.mxu0 0
    %982 = vmatpush1.bf16.xpose.msra.mxu0 0
    %983 = vmatprep.subr.bf16.mxu0 0
    %984 = vmatpush1.bf16.xpose.msra.mxu0 0
    %985 = vmatprep.subr.bf16.mxu0 0
    %986 = vmatpush1.bf16.xpose.msra.mxu0 0
    %987 = vmatprep.subr.bf16.mxu0 0
    %988 = vmatpush1.bf16.xpose.msra.mxu0 0
    %989 = vmatprep.subr.bf16.mxu0 0
    %990 = vmatpush1.bf16.xpose.msra.mxu0 0
    %991 = vmatprep.subr.bf16.mxu0 0
    %992 = vmatpush1.bf16.xpose.msra.mxu0 0
    %993 = vmatprep.subr.bf16.mxu0 0
    %994 = vmatpush1.bf16.xpose.msra.mxu0 0
    %995 = vmatprep.subr.bf16.mxu0 0
    %996 = vmatpush1.bf16.xpose.msra.mxu0 0
    %997 = vmatprep.subr.bf16.mxu0 0
    %998 = vmatpush1.bf16.xpose.msra.mxu0 0
    %999 = vmatprep.subr.bf16.mxu0 0
    %1000 = vmatpush1.bf16.xpose.msra.mxu0 0
    %1001 = vmatprep.subr.bf16.mxu0 0
    %1002 = vmatpush1.bf16.xpose.msra.mxu0 0
    %1003 = vmatprep.subr.bf16.mxu0 0
    %1004 = vmatpush1.bf16.xpose.msra.mxu0 0
    %1005 = vmatprep.subr.bf16.mxu0 0
    %1006 = vmatpush1.bf16.xpose.msra.mxu0 0
    %1007 = vmatprep.mubr.bf16.mxu0 0
    %1008 = vmatmul.mubr.bf16.gmra.mrb[0].mxu0 %v970
    %v1009 = vpop.f32.mrb[0].mxu0
    %v1010 = vadd.f32 0.0, %v1009
    %v1011 = vpop.f32.mrb[0].mxu0
    %v1012 = vpop.f32.mrb[0].mxu0
    %v1013 = vpop.f32.mrb[0].mxu0
    %1014 = vdwg.mxu0
    %1016 = vrot.lane.b32.xlu0 %v566, 112
    %v1017 = vpop.permute.xlu0 %1016
    %v1019 = vsel %vm576, %v550, 0
    %v1022 = vsel %vm576, %v1017, 0
    %1024 = vmatprep.subr.bf16.mxu0 0
    %1025 = vmatpush1.bf16.xpose.msra.mxu0 %v1022
    %1026 = vmatprep.subr.bf16.mxu0 0
    %1027 = vmatpush1.bf16.xpose.msra.mxu0 0
    %1028 = vmatprep.subr.bf16.mxu0 0
    %1029 = vmatpush1.bf16.xpose.msra.mxu0 0
    %1030 = vmatprep.subr.bf16.mxu0 0
    %1031 = vmatpush1.bf16.xpose.msra.mxu0 0
    %1032 = vmatprep.subr.bf16.mxu0 0
    %1033 = vmatpush1.bf16.xpose.msra.mxu0 0
    %1034 = vmatprep.subr.bf16.mxu0 0
    %1035 = vmatpush1.bf16.xpose.msra.mxu0 0
    %1036 = vmatprep.subr.bf16.mxu0 0
    %1037 = vmatpush1.bf16.xpose.msra.mxu0 0
    %1038 = vmatprep.subr.bf16.mxu0 0
    %1039 = vmatpush1.bf16.xpose.msra.mxu0 0
    %1040 = vmatprep.subr.bf16.mxu0 0
    %1041 = vmatpush1.bf16.xpose.msra.mxu0 0
    %1042 = vmatprep.subr.bf16.mxu0 0
    %1043 = vmatpush1.bf16.xpose.msra.mxu0 0
    %1044 = vmatprep.subr.bf16.mxu0 0
    %1045 = vmatpush1.bf16.xpose.msra.mxu0 0
    %1046 = vmatprep.subr.bf16.mxu0 0
    %1047 = vmatpush1.bf16.xpose.msra.mxu0 0
    %1048 = vmatprep.subr.bf16.mxu0 0
    %1049 = vmatpush1.bf16.xpose.msra.mxu0 0
    %1050 = vmatprep.subr.bf16.mxu0 0
    %1051 = vmatpush1.bf16.xpose.msra.mxu0 0
    %1052 = vmatprep.subr.bf16.mxu0 0
    %1053 = vmatpush1.bf16.xpose.msra.mxu0 0
    %1054 = vmatprep.subr.bf16.mxu0 0
    %1055 = vmatpush1.bf16.xpose.msra.mxu0 0
    %1056 = vmatprep.mubr.bf16.mxu0 0
    %1057 = vmatmul.mubr.bf16.gmra.mrb[0].mxu0 %v1019
    %v1058 = vpop.f32.mrb[0].mxu0
    %v1059 = vadd.f32 0.0, %v1058
    %v1060 = vpop.f32.mrb[0].mxu0
    %v1061 = vpop.f32.mrb[0].mxu0
    %v1062 = vpop.f32.mrb[0].mxu0
    %1063 = vdwg.mxu0
    %1065 = vrot.lane.b32.xlu0 %v567, 112
    %v1066 = vpop.permute.xlu0 %1065
    %v1068 = vsel %vm576, %v551, 0
    %v1071 = vsel %vm576, %v1066, 0
    %1073 = vmatprep.subr.bf16.mxu0 0
    %1074 = vmatpush1.bf16.xpose.msra.mxu0 %v1071
    %1075 = vmatprep.subr.bf16.mxu0 0
    %1076 = vmatpush1.bf16.xpose.msra.mxu0 0
    %1077 = vmatprep.subr.bf16.mxu0 0
    %1078 = vmatpush1.bf16.xpose.msra.mxu0 0
    %1079 = vmatprep.subr.bf16.mxu0 0
    %1080 = vmatpush1.bf16.xpose.msra.mxu0 0
    %1081 = vmatprep.subr.bf16.mxu0 0
    %1082 = vmatpush1.bf16.xpose.msra.mxu0 0
    %1083 = vmatprep.subr.bf16.mxu0 0
    %1084 = vmatpush1.bf16.xpose.msra.mxu0 0
    %1085 = vmatprep.subr.bf16.mxu0 0
    %1086 = vmatpush1.bf16.xpose.msra.mxu0 0
    %1087 = vmatprep.subr.bf16.mxu0 0
    %1088 = vmatpush1.bf16.xpose.msra.mxu0 0
    %1089 = vmatprep.subr.bf16.mxu0 0
    %1090 = vmatpush1.bf16.xpose.msra.mxu0 0
    %1091 = vmatprep.subr.bf16.mxu0 0
    %1092 = vmatpush1.bf16.xpose.msra.mxu0 0
    %1093 = vmatprep.subr.bf16.mxu0 0
    %1094 = vmatpush1.bf16.xpose.msra.mxu0 0
    %1095 = vmatprep.subr.bf16.mxu0 0
    %1096 = vmatpush1.bf16.xpose.msra.mxu0 0
    %1097 = vmatprep.subr.bf16.mxu0 0
    %1098 = vmatpush1.bf16.xpose.msra.mxu0 0
    %1099 = vmatprep.subr.bf16.mxu0 0
    %1100 = vmatpush1.bf16.xpose.msra.mxu0 0
    %1101 = vmatprep.subr.bf16.mxu0 0
    %1102 = vmatpush1.bf16.xpose.msra.mxu0 0
    %1103 = vmatprep.subr.bf16.mxu0 0
    %1104 = vmatpush1.bf16.xpose.msra.mxu0 0
    %1105 = vmatprep.mubr.bf16.mxu0 0
    %1106 = vmatmul.mubr.bf16.gmra.mrb[0].mxu0 %v1068
    %v1107 = vpop.f32.mrb[0].mxu0
    %v1108 = vadd.f32 0.0, %v1107
    %v1109 = vpop.f32.mrb[0].mxu0
    %v1110 = vpop.f32.mrb[0].mxu0
    %v1111 = vpop.f32.mrb[0].mxu0
    %1112 = vdwg.mxu0
    %1114 = vrot.lane.b32.xlu0 %v568, 112
    %v1115 = vpop.permute.xlu0 %1114
    %v1117 = vsel %vm576, %v552, 0
    %v1120 = vsel %vm576, %v1115, 0
    %1122 = vmatprep.subr.bf16.mxu0 0
    %1123 = vmatpush1.bf16.xpose.msra.mxu0 %v1120
    %1124 = vmatprep.subr.bf16.mxu0 0
    %1125 = vmatpush1.bf16.xpose.msra.mxu0 0
    %1126 = vmatprep.subr.bf16.mxu0 0
    %1127 = vmatpush1.bf16.xpose.msra.mxu0 0
    %1128 = vmatprep.subr.bf16.mxu0 0
    %1129 = vmatpush1.bf16.xpose.msra.mxu0 0
    %1130 = vmatprep.subr.bf16.mxu0 0
    %1131 = vmatpush1.bf16.xpose.msra.mxu0 0
    %1132 = vmatprep.subr.bf16.mxu0 0
    %1133 = vmatpush1.bf16.xpose.msra.mxu0 0
    %1134 = vmatprep.subr.bf16.mxu0 0
    %1135 = vmatpush1.bf16.xpose.msra.mxu0 0
    %1136 = vmatprep.subr.bf16.mxu0 0
    %1137 = vmatpush1.bf16.xpose.msra.mxu0 0
    %1138 = vmatprep.subr.bf16.mxu0 0
    %1139 = vmatpush1.bf16.xpose.msra.mxu0 0
    %1140 = vmatprep.subr.bf16.mxu0 0
    %1141 = vmatpush1.bf16.xpose.msra.mxu0 0
    %1142 = vmatprep.subr.bf16.mxu0 0
    %1143 = vmatpush1.bf16.xpose.msra.mxu0 0
    %1144 = vmatprep.subr.bf16.mxu0 0
    %1145 = vmatpush1.bf16.xpose.msra.mxu0 0
    %1146 = vmatprep.subr.bf16.mxu0 0
    %1147 = vmatpush1.bf16.xpose.msra.mxu0 0
    %1148 = vmatprep.subr.bf16.mxu0 0
    %1149 = vmatpush1.bf16.xpose.msra.mxu0 0
    %1150 = vmatprep.subr.bf16.mxu0 0
    %1151 = vmatpush1.bf16.xpose.msra.mxu0 0
    %1152 = vmatprep.subr.bf16.mxu0 0
    %1153 = vmatpush1.bf16.xpose.msra.mxu0 0
    %1154 = vmatprep.mubr.bf16.mxu0 0
    %1155 = vmatmul.mubr.bf16.gmra.mrb[0].mxu0 %v1117
    %v1156 = vpop.f32.mrb[0].mxu0
    %v1157 = vadd.f32 0.0, %v1156
    %v1158 = vpop.f32.mrb[0].mxu0
    %v1159 = vpop.f32.mrb[0].mxu0
    %v1160 = vpop.f32.mrb[0].mxu0
    %1161 = vdwg.mxu0
    %1163 = vrot.lane.b32.xlu0 %v569, 112
    %v1164 = vpop.permute.xlu0 %1163
    %v1166 = vsel %vm576, %v553, 0
    %v1169 = vsel %vm576, %v1164, 0
    %1171 = vmatprep.subr.bf16.mxu0 0
    %1172 = vmatpush1.bf16.xpose.msra.mxu0 %v1169
    %1173 = vmatprep.subr.bf16.mxu0 0
    %1174 = vmatpush1.bf16.xpose.msra.mxu0 0
    %1175 = vmatprep.subr.bf16.mxu0 0
    %1176 = vmatpush1.bf16.xpose.msra.mxu0 0
    %1177 = vmatprep.subr.bf16.mxu0 0
    %1178 = vmatpush1.bf16.xpose.msra.mxu0 0
    %1179 = vmatprep.subr.bf16.mxu0 0
    %1180 = vmatpush1.bf16.xpose.msra.mxu0 0
    %1181 = vmatprep.subr.bf16.mxu0 0
    %1182 = vmatpush1.bf16.xpose.msra.mxu0 0
    %1183 = vmatprep.subr.bf16.mxu0 0
    %1184 = vmatpush1.bf16.xpose.msra.mxu0 0
    %1185 = vmatprep.subr.bf16.mxu0 0
    %1186 = vmatpush1.bf16.xpose.msra.mxu0 0
    %1187 = vmatprep.subr.bf16.mxu0 0
    %1188 = vmatpush1.bf16.xpose.msra.mxu0 0
    %1189 = vmatprep.subr.bf16.mxu0 0
    %1190 = vmatpush1.bf16.xpose.msra.mxu0 0
    %1191 = vmatprep.subr.bf16.mxu0 0
    %1192 = vmatpush1.bf16.xpose.msra.mxu0 0
    %1193 = vmatprep.subr.bf16.mxu0 0
    %1194 = vmatpush1.bf16.xpose.msra.mxu0 0
    %1195 = vmatprep.subr.bf16.mxu0 0
    %1196 = vmatpush1.bf16.xpose.msra.mxu0 0
    %1197 = vmatprep.subr.bf16.mxu0 0
    %1198 = vmatpush1.bf16.xpose.msra.mxu0 0
    %1199 = vmatprep.subr.bf16.mxu0 0
    %1200 = vmatpush1.bf16.xpose.msra.mxu0 0
    %1201 = vmatprep.subr.bf16.mxu0 0
    %1202 = vmatpush1.bf16.xpose.msra.mxu0 0
    %1203 = vmatprep.mubr.bf16.mxu0 0
    %1204 = vmatmul.mubr.bf16.gmra.mrb[0].mxu0 %v1166
    %v1205 = vpop.f32.mrb[0].mxu0
    %v1206 = vadd.f32 0.0, %v1205
    %v1207 = vpop.f32.mrb[0].mxu0
    %v1208 = vpop.f32.mrb[0].mxu0
    %v1209 = vpop.f32.mrb[0].mxu0
    %1210 = vdwg.mxu0
    %1212 = vrot.lane.b32.xlu0 %v570, 112
    %v1213 = vpop.permute.xlu0 %1212
    %v1215 = vsel %vm576, %v554, 0
    %v1218 = vsel %vm576, %v1213, 0
    %1220 = vmatprep.subr.bf16.mxu0 0
    %1221 = vmatpush1.bf16.xpose.msra.mxu0 %v1218
    %1222 = vmatprep.subr.bf16.mxu0 0
    %1223 = vmatpush1.bf16.xpose.msra.mxu0 0
    %1224 = vmatprep.subr.bf16.mxu0 0
    %1225 = vmatpush1.bf16.xpose.msra.mxu0 0
    %1226 = vmatprep.subr.bf16.mxu0 0
    %1227 = vmatpush1.bf16.xpose.msra.mxu0 0
    %1228 = vmatprep.subr.bf16.mxu0 0
    %1229 = vmatpush1.bf16.xpose.msra.mxu0 0
    %1230 = vmatprep.subr.bf16.mxu0 0
    %1231 = vmatpush1.bf16.xpose.msra.mxu0 0
    %1232 = vmatprep.subr.bf16.mxu0 0
    %1233 = vmatpush1.bf16.xpose.msra.mxu0 0
    %1234 = vmatprep.subr.bf16.mxu0 0
    %1235 = vmatpush1.bf16.xpose.msra.mxu0 0
    %1236 = vmatprep.subr.bf16.mxu0 0
    %1237 = vmatpush1.bf16.xpose.msra.mxu0 0
    %1238 = vmatprep.subr.bf16.mxu0 0
    %1239 = vmatpush1.bf16.xpose.msra.mxu0 0
    %1240 = vmatprep.subr.bf16.mxu0 0
    %1241 = vmatpush1.bf16.xpose.msra.mxu0 0
    %1242 = vmatprep.subr.bf16.mxu0 0
    %1243 = vmatpush1.bf16.xpose.msra.mxu0 0
    %1244 = vmatprep.subr.bf16.mxu0 0
    %1245 = vmatpush1.bf16.xpose.msra.mxu0 0
    %1246 = vmatprep.subr.bf16.mxu0 0
    %1247 = vmatpush1.bf16.xpose.msra.mxu0 0
    %1248 = vmatprep.subr.bf16.mxu0 0
    %1249 = vmatpush1.bf16.xpose.msra.mxu0 0
    %1250 = vmatprep.subr.bf16.mxu0 0
    %1251 = vmatpush1.bf16.xpose.msra.mxu0 0
    %1252 = vmatprep.mubr.bf16.mxu0 0
    %1253 = vmatmul.mubr.bf16.gmra.mrb[0].mxu0 %v1215
    %v1254 = vpop.f32.mrb[0].mxu0
    %v1255 = vadd.f32 0.0, %v1254
    %v1256 = vpop.f32.mrb[0].mxu0
    %v1257 = vpop.f32.mrb[0].mxu0
    %v1258 = vpop.f32.mrb[0].mxu0
    %1259 = vdwg.mxu0
    %1261 = vrot.lane.b32.xlu0 %v571, 112
    %v1262 = vpop.permute.xlu0 %1261
    %v1264 = vsel %vm576, %v555, 0
    %v1267 = vsel %vm576, %v1262, 0
    %1269 = vmatprep.subr.bf16.mxu0 0
    %1270 = vmatpush1.bf16.xpose.msra.mxu0 %v1267
    %1271 = vmatprep.subr.bf16.mxu0 0
    %1272 = vmatpush1.bf16.xpose.msra.mxu0 0
    %1273 = vmatprep.subr.bf16.mxu0 0
    %1274 = vmatpush1.bf16.xpose.msra.mxu0 0
    %1275 = vmatprep.subr.bf16.mxu0 0
    %1276 = vmatpush1.bf16.xpose.msra.mxu0 0
    %1277 = vmatprep.subr.bf16.mxu0 0
    %1278 = vmatpush1.bf16.xpose.msra.mxu0 0
    %1279 = vmatprep.subr.bf16.mxu0 0
    %1280 = vmatpush1.bf16.xpose.msra.mxu0 0
    %1281 = vmatprep.subr.bf16.mxu0 0
    %1282 = vmatpush1.bf16.xpose.msra.mxu0 0
    %1283 = vmatprep.subr.bf16.mxu0 0
    %1284 = vmatpush1.bf16.xpose.msra.mxu0 0
    %1285 = vmatprep.subr.bf16.mxu0 0
    %1286 = vmatpush1.bf16.xpose.msra.mxu0 0
    %1287 = vmatprep.subr.bf16.mxu0 0
    %1288 = vmatpush1.bf16.xpose.msra.mxu0 0
    %1289 = vmatprep.subr.bf16.mxu0 0
    %1290 = vmatpush1.bf16.xpose.msra.mxu0 0
    %1291 = vmatprep.subr.bf16.mxu0 0
    %1292 = vmatpush1.bf16.xpose.msra.mxu0 0
    %1293 = vmatprep.subr.bf16.mxu0 0
    %1294 = vmatpush1.bf16.xpose.msra.mxu0 0
    %1295 = vmatprep.subr.bf16.mxu0 0
    %1296 = vmatpush1.bf16.xpose.msra.mxu0 0
    %1297 = vmatprep.subr.bf16.mxu0 0
    %1298 = vmatpush1.bf16.xpose.msra.mxu0 0
    %1299 = vmatprep.subr.bf16.mxu0 0
    %1300 = vmatpush1.bf16.xpose.msra.mxu0 0
    %1301 = vmatprep.mubr.bf16.mxu0 0
    %1302 = vmatmul.mubr.bf16.gmra.mrb[0].mxu0 %v1264
    %v1303 = vpop.f32.mrb[0].mxu0
    %v1304 = vadd.f32 0.0, %v1303
    %v1305 = vpop.f32.mrb[0].mxu0
    %v1306 = vpop.f32.mrb[0].mxu0
    %v1307 = vpop.f32.mrb[0].mxu0
    %1308 = vdwg.mxu0
    %1310 = vrot.lane.b32.xlu0 %v572, 112
    %v1311 = vpop.permute.xlu0 %1310
    %v1313 = vsel %vm576, %v556, 0
    %v1316 = vsel %vm576, %v1311, 0
    %1318 = vmatprep.subr.bf16.mxu0 0
    %1319 = vmatpush1.bf16.xpose.msra.mxu0 %v1316
    %1320 = vmatprep.subr.bf16.mxu0 0
    %1321 = vmatpush1.bf16.xpose.msra.mxu0 0
    %1322 = vmatprep.subr.bf16.mxu0 0
    %1323 = vmatpush1.bf16.xpose.msra.mxu0 0
    %1324 = vmatprep.subr.bf16.mxu0 0
    %1325 = vmatpush1.bf16.xpose.msra.mxu0 0
    %1326 = vmatprep.subr.bf16.mxu0 0
    %1327 = vmatpush1.bf16.xpose.msra.mxu0 0
    %1328 = vmatprep.subr.bf16.mxu0 0
    %1329 = vmatpush1.bf16.xpose.msra.mxu0 0
    %1330 = vmatprep.subr.bf16.mxu0 0
    %1331 = vmatpush1.bf16.xpose.msra.mxu0 0
    %1332 = vmatprep.subr.bf16.mxu0 0
    %1333 = vmatpush1.bf16.xpose.msra.mxu0 0
    %1334 = vmatprep.subr.bf16.mxu0 0
    %1335 = vmatpush1.bf16.xpose.msra.mxu0 0
    %1336 = vmatprep.subr.bf16.mxu0 0
    %1337 = vmatpush1.bf16.xpose.msra.mxu0 0
    %1338 = vmatprep.subr.bf16.mxu0 0
    %1339 = vmatpush1.bf16.xpose.msra.mxu0 0
    %1340 = vmatprep.subr.bf16.mxu0 0
    %1341 = vmatpush1.bf16.xpose.msra.mxu0 0
    %1342 = vmatprep.subr.bf16.mxu0 0
    %1343 = vmatpush1.bf16.xpose.msra.mxu0 0
    %1344 = vmatprep.subr.bf16.mxu0 0
    %1345 = vmatpush1.bf16.xpose.msra.mxu0 0
    %1346 = vmatprep.subr.bf16.mxu0 0
    %1347 = vmatpush1.bf16.xpose.msra.mxu0 0
    %1348 = vmatprep.subr.bf16.mxu0 0
    %1349 = vmatpush1.bf16.xpose.msra.mxu0 0
    %1350 = vmatprep.mubr.bf16.mxu0 0
    %1351 = vmatmul.mubr.bf16.gmra.mrb[0].mxu0 %v1313
    %v1352 = vpop.f32.mrb[0].mxu0
    %v1353 = vadd.f32 0.0, %v1352
    %v1354 = vpop.f32.mrb[0].mxu0
    %v1355 = vpop.f32.mrb[0].mxu0
    %v1356 = vpop.f32.mrb[0].mxu0
    %1357 = vdwg.mxu0
    %v1358 = vsel %vm576, %v618, -inf
    %1359 = vmax.xlane.f32.xlu0 %v1358
    %v1360 = vpop.xlane.xlu0 %1359
    %v1361 = vsel %vm576, %v667, -inf
    %1362 = vmax.xlane.f32.xlu0 %v1361
    %v1363 = vpop.xlane.xlu0 %1362
    %v1364 = vsel %vm576, %v716, -inf
    %1365 = vmax.xlane.f32.xlu0 %v1364
    %v1366 = vpop.xlane.xlu0 %1365
    %v1367 = vsel %vm576, %v765, -inf
    %1368 = vmax.xlane.f32.xlu0 %v1367
    %v1369 = vpop.xlane.xlu0 %1368
    %v1370 = vsel %vm576, %v814, -inf
    %1371 = vmax.xlane.f32.xlu0 %v1370
    %v1372 = vpop.xlane.xlu0 %1371
    %v1373 = vsel %vm576, %v863, -inf
    %1374 = vmax.xlane.f32.xlu0 %v1373
    %v1375 = vpop.xlane.xlu0 %1374
    %v1376 = vsel %vm576, %v912, -inf
    %1377 = vmax.xlane.f32.xlu0 %v1376
    %v1378 = vpop.xlane.xlu0 %1377
    %v1379 = vsel %vm576, %v961, -inf
    %1380 = vmax.xlane.f32.xlu0 %v1379
    %v1381 = vpop.xlane.xlu0 %1380
    %v1382 = vsel %vm576, %v1010, -inf
    %1383 = vmax.xlane.f32.xlu0 %v1382
    %v1384 = vpop.xlane.xlu0 %1383
    %v1385 = vsel %vm576, %v1059, -inf
    %1386 = vmax.xlane.f32.xlu0 %v1385
    %v1387 = vpop.xlane.xlu0 %1386
    %v1388 = vsel %vm576, %v1108, -inf
    %1389 = vmax.xlane.f32.xlu0 %v1388
    %v1390 = vpop.xlane.xlu0 %1389
    %v1391 = vsel %vm576, %v1157, -inf
    %1392 = vmax.xlane.f32.xlu0 %v1391
    %v1393 = vpop.xlane.xlu0 %1392
    %v1394 = vsel %vm576, %v1206, -inf
    %1395 = vmax.xlane.f32.xlu0 %v1394
    %v1396 = vpop.xlane.xlu0 %1395
    %v1397 = vsel %vm576, %v1255, -inf
    %1398 = vmax.xlane.f32.xlu0 %v1397
    %v1399 = vpop.xlane.xlu0 %1398
    %v1400 = vsel %vm576, %v1304, -inf
    %1401 = vmax.xlane.f32.xlu0 %v1400
    %v1402 = vpop.xlane.xlu0 %1401
    %v1403 = vsel %vm576, %v1353, -inf
    %1404 = vmax.xlane.f32.xlu0 %v1403
    %v1405 = vpop.xlane.xlu0 %1404
    %v1406 = vsub.f32 %v618, %v1360
    %v1407 = vsub.f32 %v667, %v1363
    %v1408 = vsub.f32 %v716, %v1366
    %v1409 = vsub.f32 %v765, %v1369
    %v1410 = vsub.f32 %v814, %v1372
    %v1411 = vsub.f32 %v863, %v1375
    %v1412 = vsub.f32 %v912, %v1378
    %v1413 = vsub.f32 %v961, %v1381
    %v1414 = vsub.f32 %v1010, %v1384
    %v1415 = vsub.f32 %v1059, %v1387
    %v1416 = vsub.f32 %v1108, %v1390
    %v1417 = vsub.f32 %v1157, %v1393
    %v1418 = vsub.f32 %v1206, %v1396
    %v1419 = vsub.f32 %v1255, %v1399
    %v1420 = vsub.f32 %v1304, %v1402
    %v1421 = vsub.f32 %v1353, %v1405
    %v1422 = vmul.f32 %v1406, 1.442695
    %v1423 = vpow.pop %v1422
    %v1424 = vmul.f32 %v1407, 1.442695
    %v1425 = vpow.pop %v1424
    %v1426 = vmul.f32 %v1408, 1.442695
    %v1427 = vpow.pop %v1426
    %v1428 = vmul.f32 %v1409, 1.442695
    %v1429 = vpow.pop %v1428
    %v1430 = vmul.f32 %v1410, 1.442695
    %v1431 = vpow.pop %v1430
    %v1432 = vmul.f32 %v1411, 1.442695
    %v1433 = vpow.pop %v1432
    %v1434 = vmul.f32 %v1412, 1.442695
    %v1435 = vpow.pop %v1434
    %v1436 = vmul.f32 %v1413, 1.442695
    %v1437 = vpow.pop %v1436
    %v1438 = vmul.f32 %v1414, 1.442695
    %v1439 = vpow.pop %v1438
    %v1440 = vmul.f32 %v1415, 1.442695
    %v1441 = vpow.pop %v1440
    %v1442 = vmul.f32 %v1416, 1.442695
    %v1443 = vpow.pop %v1442
    %v1444 = vmul.f32 %v1417, 1.442695
    %v1445 = vpow.pop %v1444
    %v1446 = vmul.f32 %v1418, 1.442695
    %v1447 = vpow.pop %v1446
    %v1448 = vmul.f32 %v1419, 1.442695
    %v1449 = vpow.pop %v1448
    %v1450 = vmul.f32 %v1420, 1.442695
    %v1451 = vpow.pop %v1450
    %v1452 = vmul.f32 %v1421, 1.442695
    %v1453 = vpow.pop %v1452
    %v1454 = vsel %vm576, %v1423, 0.0
    %1455 = vadd.xlane.f32.xlu0 %v1454
    %v1456 = vpop.xlane.xlu0 %1455
    %v1457 = vsel %vm576, %v1425, 0.0
    %1458 = vadd.xlane.f32.xlu0 %v1457
    %v1459 = vpop.xlane.xlu0 %1458
    %v1460 = vsel %vm576, %v1427, 0.0
    %1461 = vadd.xlane.f32.xlu0 %v1460
    %v1462 = vpop.xlane.xlu0 %1461
    %v1463 = vsel %vm576, %v1429, 0.0
    %1464 = vadd.xlane.f32.xlu0 %v1463
    %v1465 = vpop.xlane.xlu0 %1464
    %v1466 = vsel %vm576, %v1431, 0.0
    %1467 = vadd.xlane.f32.xlu0 %v1466
    %v1468 = vpop.xlane.xlu0 %1467
    %v1469 = vsel %vm576, %v1433, 0.0
    %1470 = vadd.xlane.f32.xlu0 %v1469
    %v1471 = vpop.xlane.xlu0 %1470
    %v1472 = vsel %vm576, %v1435, 0.0
    %1473 = vadd.xlane.f32.xlu0 %v1472
    %v1474 = vpop.xlane.xlu0 %1473
    %v1475 = vsel %vm576, %v1437, 0.0
    %1476 = vadd.xlane.f32.xlu0 %v1475
    %v1477 = vpop.xlane.xlu0 %1476
    %v1478 = vsel %vm576, %v1439, 0.0
    %1479 = vadd.xlane.f32.xlu0 %v1478
    %v1480 = vpop.xlane.xlu0 %1479
    %v1481 = vsel %vm576, %v1441, 0.0
    %1482 = vadd.xlane.f32.xlu0 %v1481
    %v1483 = vpop.xlane.xlu0 %1482
    %v1484 = vsel %vm576, %v1443, 0.0
    %1485 = vadd.xlane.f32.xlu0 %v1484
    %v1486 = vpop.xlane.xlu0 %1485
    %v1487 = vsel %vm576, %v1445, 0.0
    %1488 = vadd.xlane.f32.xlu0 %v1487
    %v1489 = vpop.xlane.xlu0 %1488
    %v1490 = vsel %vm576, %v1447, 0.0
    %1491 = vadd.xlane.f32.xlu0 %v1490
    %v1492 = vpop.xlane.xlu0 %1491
    %v1493 = vsel %vm576, %v1449, 0.0
    %1494 = vadd.xlane.f32.xlu0 %v1493
    %v1495 = vpop.xlane.xlu0 %1494
    %v1496 = vsel %vm576, %v1451, 0.0
    %1497 = vadd.xlane.f32.xlu0 %v1496
    %v1498 = vpop.xlane.xlu0 %1497
    %v1499 = vsel %vm576, %v1453, 0.0
    %1500 = vadd.xlane.f32.xlu0 %v1499
    %v1501 = vpop.xlane.xlu0 %1500
    %v1502 = vrcp.pop %v1456
    %v1503 = vrcp.pop %v1459
    %v1504 = vrcp.pop %v1462
    %v1505 = vrcp.pop %v1465
    %v1506 = vrcp.pop %v1468
    %v1507 = vrcp.pop %v1471
    %v1508 = vrcp.pop %v1474
    %v1509 = vrcp.pop %v1477
    %v1510 = vrcp.pop %v1480
    %v1511 = vrcp.pop %v1483
    %v1512 = vrcp.pop %v1486
    %v1513 = vrcp.pop %v1489
    %v1514 = vrcp.pop %v1492
    %v1515 = vrcp.pop %v1495
    %v1516 = vrcp.pop %v1498
    %v1517 = vrcp.pop %v1501
    %v1518 = vmul.f32 %v1423, %v1502
    %v1519 = vmul.f32 %v1425, %v1503
    %v1520 = vmul.f32 %v1427, %v1504
    %v1521 = vmul.f32 %v1429, %v1505
    %v1522 = vmul.f32 %v1431, %v1506
    %v1523 = vmul.f32 %v1433, %v1507
    %v1524 = vmul.f32 %v1435, %v1508
    %v1525 = vmul.f32 %v1437, %v1509
    %v1526 = vmul.f32 %v1439, %v1510
    %v1527 = vmul.f32 %v1441, %v1511
    %v1528 = vmul.f32 %v1443, %v1512
    %v1529 = vmul.f32 %v1445, %v1513
    %v1530 = vmul.f32 %v1447, %v1514
    %v1531 = vmul.f32 %v1449, %v1515
    %v1532 = vmul.f32 %v1451, %v1516
    %v1533 = vmul.f32 %v1453, %v1517
    %v1534 = vpack.c.bf16 %v1518, %v1518
    %v1535 = vpack.c.bf16 %v1519, %v1519
    %v1536 = vpack.c.bf16 %v1520, %v1520
    %v1537 = vpack.c.bf16 %v1521, %v1521
    %v1538 = vpack.c.bf16 %v1522, %v1522
    %v1539 = vpack.c.bf16 %v1523, %v1523
    %v1540 = vpack.c.bf16 %v1524, %v1524
    %v1541 = vpack.c.bf16 %v1525, %v1525
    %v1542 = vpack.c.bf16 %v1526, %v1526
    %v1543 = vpack.c.bf16 %v1527, %v1527
    %v1544 = vpack.c.bf16 %v1528, %v1528
    %v1545 = vpack.c.bf16 %v1529, %v1529
    %v1546 = vpack.c.bf16 %v1530, %v1530
    %v1547 = vpack.c.bf16 %v1531, %v1531
    %v1548 = vpack.c.bf16 %v1532, %v1532
    %v1549 = vpack.c.bf16 %v1533, %v1533
    %1550 = vrot.lane.b32.xlu0 %v557, 96
    %v1551 = vpop.permute.xlu0 %1550
    %v1553 = vsel %vm576, %v1534, 0
    %v1556 = vsel %vm251, %v1551, 0
    %1558 = vmatprep.subr.bf16.mxu0 0
    %1559 = vmatpush1.bf16.msra.mxu0 %v1556
    %1560 = vmatprep.subr.bf16.mxu0 0
    %1561 = vmatpush1.bf16.msra.mxu0 0
    %1562 = vmatprep.subr.bf16.mxu0 0
    %1563 = vmatpush1.bf16.msra.mxu0 0
    %1564 = vmatprep.subr.bf16.mxu0 0
    %1565 = vmatpush1.bf16.msra.mxu0 0
    %1566 = vmatprep.subr.bf16.mxu0 0
    %1567 = vmatpush1.bf16.msra.mxu0 0
    %1568 = vmatprep.subr.bf16.mxu0 0
    %1569 = vmatpush1.bf16.msra.mxu0 0
    %1570 = vmatprep.subr.bf16.mxu0 0
    %1571 = vmatpush1.bf16.msra.mxu0 0
    %1572 = vmatprep.subr.bf16.mxu0 0
    %1573 = vmatpush1.bf16.msra.mxu0 0
    %1574 = vmatprep.subr.bf16.mxu0 0
    %1575 = vmatpush1.bf16.msra.mxu0 0
    %1576 = vmatprep.subr.bf16.mxu0 0
    %1577 = vmatpush1.bf16.msra.mxu0 0
    %1578 = vmatprep.subr.bf16.mxu0 0
    %1579 = vmatpush1.bf16.msra.mxu0 0
    %1580 = vmatprep.subr.bf16.mxu0 0
    %1581 = vmatpush1.bf16.msra.mxu0 0
    %1582 = vmatprep.subr.bf16.mxu0 0
    %1583 = vmatpush1.bf16.msra.mxu0 0
    %1584 = vmatprep.subr.bf16.mxu0 0
    %1585 = vmatpush1.bf16.msra.mxu0 0
    %1586 = vmatprep.subr.bf16.mxu0 0
    %1587 = vmatpush1.bf16.msra.mxu0 0
    %1588 = vmatprep.subr.bf16.mxu0 0
    %1589 = vmatpush1.bf16.msra.mxu0 0
    %1590 = vmatprep.mubr.bf16.mxu0 0
    %1591 = vmatmul.mubr.bf16.gmra.mrb[0].mxu0 %v1553
    %v1592 = vpop.f32.mrb[0].mxu0
    %v1593 = vadd.f32 0.0, %v1592
    %v1594 = vpop.f32.mrb[0].mxu0
    %v1595 = vpop.f32.mrb[0].mxu0
    %v1596 = vpop.f32.mrb[0].mxu0
    %1597 = vdwg.mxu0
    %1598 = vrot.lane.b32.xlu0 %v558, 96
    %v1599 = vpop.permute.xlu0 %1598
    %v1601 = vsel %vm576, %v1535, 0
    %v1604 = vsel %vm251, %v1599, 0
    %1606 = vmatprep.subr.bf16.mxu0 0
    %1607 = vmatpush1.bf16.msra.mxu0 %v1604
    %1608 = vmatprep.subr.bf16.mxu0 0
    %1609 = vmatpush1.bf16.msra.mxu0 0
    %1610 = vmatprep.subr.bf16.mxu0 0
    %1611 = vmatpush1.bf16.msra.mxu0 0
    %1612 = vmatprep.subr.bf16.mxu0 0
    %1613 = vmatpush1.bf16.msra.mxu0 0
    %1614 = vmatprep.subr.bf16.mxu0 0
    %1615 = vmatpush1.bf16.msra.mxu0 0
    %1616 = vmatprep.subr.bf16.mxu0 0
    %1617 = vmatpush1.bf16.msra.mxu0 0
    %1618 = vmatprep.subr.bf16.mxu0 0
    %1619 = vmatpush1.bf16.msra.mxu0 0
    %1620 = vmatprep.subr.bf16.mxu0 0
    %1621 = vmatpush1.bf16.msra.mxu0 0
    %1622 = vmatprep.subr.bf16.mxu0 0
    %1623 = vmatpush1.bf16.msra.mxu0 0
    %1624 = vmatprep.subr.bf16.mxu0 0
    %1625 = vmatpush1.bf16.msra.mxu0 0
    %1626 = vmatprep.subr.bf16.mxu0 0
    %1627 = vmatpush1.bf16.msra.mxu0 0
    %1628 = vmatprep.subr.bf16.mxu0 0
    %1629 = vmatpush1.bf16.msra.mxu0 0
    %1630 = vmatprep.subr.bf16.mxu0 0
    %1631 = vmatpush1.bf16.msra.mxu0 0
    %1632 = vmatprep.subr.bf16.mxu0 0
    %1633 = vmatpush1.bf16.msra.mxu0 0
    %1634 = vmatprep.subr.bf16.mxu0 0
    %1635 = vmatpush1.bf16.msra.mxu0 0
    %1636 = vmatprep.subr.bf16.mxu0 0
    %1637 = vmatpush1.bf16.msra.mxu0 0
    %1638 = vmatprep.mubr.bf16.mxu0 0
    %1639 = vmatmul.mubr.bf16.gmra.mrb[0].mxu0 %v1601
    %v1640 = vpop.f32.mrb[0].mxu0
    %v1641 = vadd.f32 0.0, %v1640
    %v1642 = vpop.f32.mrb[0].mxu0
    %v1643 = vpop.f32.mrb[0].mxu0
    %v1644 = vpop.f32.mrb[0].mxu0
    %1645 = vdwg.mxu0
    %1646 = vrot.lane.b32.xlu0 %v559, 96
    %v1647 = vpop.permute.xlu0 %1646
    %v1649 = vsel %vm576, %v1536, 0
    %v1652 = vsel %vm251, %v1647, 0
    %1654 = vmatprep.subr.bf16.mxu0 0
    %1655 = vmatpush1.bf16.msra.mxu0 %v1652
    %1656 = vmatprep.subr.bf16.mxu0 0
    %1657 = vmatpush1.bf16.msra.mxu0 0
    %1658 = vmatprep.subr.bf16.mxu0 0
    %1659 = vmatpush1.bf16.msra.mxu0 0
    %1660 = vmatprep.subr.bf16.mxu0 0
    %1661 = vmatpush1.bf16.msra.mxu0 0
    %1662 = vmatprep.subr.bf16.mxu0 0
    %1663 = vmatpush1.bf16.msra.mxu0 0
    %1664 = vmatprep.subr.bf16.mxu0 0
    %1665 = vmatpush1.bf16.msra.mxu0 0
    %1666 = vmatprep.subr.bf16.mxu0 0
    %1667 = vmatpush1.bf16.msra.mxu0 0
    %1668 = vmatprep.subr.bf16.mxu0 0
    %1669 = vmatpush1.bf16.msra.mxu0 0
    %1670 = vmatprep.subr.bf16.mxu0 0
    %1671 = vmatpush1.bf16.msra.mxu0 0
    %1672 = vmatprep.subr.bf16.mxu0 0
    %1673 = vmatpush1.bf16.msra.mxu0 0
    %1674 = vmatprep.subr.bf16.mxu0 0
    %1675 = vmatpush1.bf16.msra.mxu0 0
    %1676 = vmatprep.subr.bf16.mxu0 0
    %1677 = vmatpush1.bf16.msra.mxu0 0
    %1678 = vmatprep.subr.bf16.mxu0 0
    %1679 = vmatpush1.bf16.msra.mxu0 0
    %1680 = vmatprep.subr.bf16.mxu0 0
    %1681 = vmatpush1.bf16.msra.mxu0 0
    %1682 = vmatprep.subr.bf16.mxu0 0
    %1683 = vmatpush1.bf16.msra.mxu0 0
    %1684 = vmatprep.subr.bf16.mxu0 0
    %1685 = vmatpush1.bf16.msra.mxu0 0
    %1686 = vmatprep.mubr.bf16.mxu0 0
    %1687 = vmatmul.mubr.bf16.gmra.mrb[0].mxu0 %v1649
    %v1688 = vpop.f32.mrb[0].mxu0
    %v1689 = vadd.f32 0.0, %v1688
    %v1690 = vpop.f32.mrb[0].mxu0
    %v1691 = vpop.f32.mrb[0].mxu0
    %v1692 = vpop.f32.mrb[0].mxu0
    %1693 = vdwg.mxu0
    %1694 = vrot.lane.b32.xlu0 %v560, 96
    %v1695 = vpop.permute.xlu0 %1694
    %v1697 = vsel %vm576, %v1537, 0
    %v1700 = vsel %vm251, %v1695, 0
    %1702 = vmatprep.subr.bf16.mxu0 0
    %1703 = vmatpush1.bf16.msra.mxu0 %v1700
    %1704 = vmatprep.subr.bf16.mxu0 0
    %1705 = vmatpush1.bf16.msra.mxu0 0
    %1706 = vmatprep.subr.bf16.mxu0 0
    %1707 = vmatpush1.bf16.msra.mxu0 0
    %1708 = vmatprep.subr.bf16.mxu0 0
    %1709 = vmatpush1.bf16.msra.mxu0 0
    %1710 = vmatprep.subr.bf16.mxu0 0
    %1711 = vmatpush1.bf16.msra.mxu0 0
    %1712 = vmatprep.subr.bf16.mxu0 0
    %1713 = vmatpush1.bf16.msra.mxu0 0
    %1714 = vmatprep.subr.bf16.mxu0 0
    %1715 = vmatpush1.bf16.msra.mxu0 0
    %1716 = vmatprep.subr.bf16.mxu0 0
    %1717 = vmatpush1.bf16.msra.mxu0 0
    %1718 = vmatprep.subr.bf16.mxu0 0
    %1719 = vmatpush1.bf16.msra.mxu0 0
    %1720 = vmatprep.subr.bf16.mxu0 0
    %1721 = vmatpush1.bf16.msra.mxu0 0
    %1722 = vmatprep.subr.bf16.mxu0 0
    %1723 = vmatpush1.bf16.msra.mxu0 0
    %1724 = vmatprep.subr.bf16.mxu0 0
    %1725 = vmatpush1.bf16.msra.mxu0 0
    %1726 = vmatprep.subr.bf16.mxu0 0
    %1727 = vmatpush1.bf16.msra.mxu0 0
    %1728 = vmatprep.subr.bf16.mxu0 0
    %1729 = vmatpush1.bf16.msra.mxu0 0
    %1730 = vmatprep.subr.bf16.mxu0 0
    %1731 = vmatpush1.bf16.msra.mxu0 0
    %1732 = vmatprep.subr.bf16.mxu0 0
    %1733 = vmatpush1.bf16.msra.mxu0 0
    %1734 = vmatprep.mubr.bf16.mxu0 0
    %1735 = vmatmul.mubr.bf16.gmra.mrb[0].mxu0 %v1697
    %v1736 = vpop.f32.mrb[0].mxu0
    %v1737 = vadd.f32 0.0, %v1736
    %v1738 = vpop.f32.mrb[0].mxu0
    %v1739 = vpop.f32.mrb[0].mxu0
    %v1740 = vpop.f32.mrb[0].mxu0
    %1741 = vdwg.mxu0
    %1742 = vrot.lane.b32.xlu0 %v561, 96
    %v1743 = vpop.permute.xlu0 %1742
    %v1745 = vsel %vm576, %v1538, 0
    %v1748 = vsel %vm251, %v1743, 0
    %1750 = vmatprep.subr.bf16.mxu0 0
    %1751 = vmatpush1.bf16.msra.mxu0 %v1748
    %1752 = vmatprep.subr.bf16.mxu0 0
    %1753 = vmatpush1.bf16.msra.mxu0 0
    %1754 = vmatprep.subr.bf16.mxu0 0
    %1755 = vmatpush1.bf16.msra.mxu0 0
    %1756 = vmatprep.subr.bf16.mxu0 0
    %1757 = vmatpush1.bf16.msra.mxu0 0
    %1758 = vmatprep.subr.bf16.mxu0 0
    %1759 = vmatpush1.bf16.msra.mxu0 0
    %1760 = vmatprep.subr.bf16.mxu0 0
    %1761 = vmatpush1.bf16.msra.mxu0 0
    %1762 = vmatprep.subr.bf16.mxu0 0
    %1763 = vmatpush1.bf16.msra.mxu0 0
    %1764 = vmatprep.subr.bf16.mxu0 0
    %1765 = vmatpush1.bf16.msra.mxu0 0
    %1766 = vmatprep.subr.bf16.mxu0 0
    %1767 = vmatpush1.bf16.msra.mxu0 0
    %1768 = vmatprep.subr.bf16.mxu0 0
    %1769 = vmatpush1.bf16.msra.mxu0 0
    %1770 = vmatprep.subr.bf16.mxu0 0
    %1771 = vmatpush1.bf16.msra.mxu0 0
    %1772 = vmatprep.subr.bf16.mxu0 0
    %1773 = vmatpush1.bf16.msra.mxu0 0
    %1774 = vmatprep.subr.bf16.mxu0 0
    %1775 = vmatpush1.bf16.msra.mxu0 0
    %1776 = vmatprep.subr.bf16.mxu0 0
    %1777 = vmatpush1.bf16.msra.mxu0 0
    %1778 = vmatprep.subr.bf16.mxu0 0
    %1779 = vmatpush1.bf16.msra.mxu0 0
    %1780 = vmatprep.subr.bf16.mxu0 0
    %1781 = vmatpush1.bf16.msra.mxu0 0
    %1782 = vmatprep.mubr.bf16.mxu0 0
    %1783 = vmatmul.mubr.bf16.gmra.mrb[0].mxu0 %v1745
    %v1784 = vpop.f32.mrb[0].mxu0
    %v1785 = vadd.f32 0.0, %v1784
    %v1786 = vpop.f32.mrb[0].mxu0
    %v1787 = vpop.f32.mrb[0].mxu0
    %v1788 = vpop.f32.mrb[0].mxu0
    %1789 = vdwg.mxu0
    %1790 = vrot.lane.b32.xlu0 %v562, 96
    %v1791 = vpop.permute.xlu0 %1790
    %v1793 = vsel %vm576, %v1539, 0
    %v1796 = vsel %vm251, %v1791, 0
    %1798 = vmatprep.subr.bf16.mxu0 0
    %1799 = vmatpush1.bf16.msra.mxu0 %v1796
    %1800 = vmatprep.subr.bf16.mxu0 0
    %1801 = vmatpush1.bf16.msra.mxu0 0
    %1802 = vmatprep.subr.bf16.mxu0 0
    %1803 = vmatpush1.bf16.msra.mxu0 0
    %1804 = vmatprep.subr.bf16.mxu0 0
    %1805 = vmatpush1.bf16.msra.mxu0 0
    %1806 = vmatprep.subr.bf16.mxu0 0
    %1807 = vmatpush1.bf16.msra.mxu0 0
    %1808 = vmatprep.subr.bf16.mxu0 0
    %1809 = vmatpush1.bf16.msra.mxu0 0
    %1810 = vmatprep.subr.bf16.mxu0 0
    %1811 = vmatpush1.bf16.msra.mxu0 0
    %1812 = vmatprep.subr.bf16.mxu0 0
    %1813 = vmatpush1.bf16.msra.mxu0 0
    %1814 = vmatprep.subr.bf16.mxu0 0
    %1815 = vmatpush1.bf16.msra.mxu0 0
    %1816 = vmatprep.subr.bf16.mxu0 0
    %1817 = vmatpush1.bf16.msra.mxu0 0
    %1818 = vmatprep.subr.bf16.mxu0 0
    %1819 = vmatpush1.bf16.msra.mxu0 0
    %1820 = vmatprep.subr.bf16.mxu0 0
    %1821 = vmatpush1.bf16.msra.mxu0 0
    %1822 = vmatprep.subr.bf16.mxu0 0
    %1823 = vmatpush1.bf16.msra.mxu0 0
    %1824 = vmatprep.subr.bf16.mxu0 0
    %1825 = vmatpush1.bf16.msra.mxu0 0
    %1826 = vmatprep.subr.bf16.mxu0 0
    %1827 = vmatpush1.bf16.msra.mxu0 0
    %1828 = vmatprep.subr.bf16.mxu0 0
    %1829 = vmatpush1.bf16.msra.mxu0 0
    %1830 = vmatprep.mubr.bf16.mxu0 0
    %1831 = vmatmul.mubr.bf16.gmra.mrb[0].mxu0 %v1793
    %v1832 = vpop.f32.mrb[0].mxu0
    %v1833 = vadd.f32 0.0, %v1832
    %v1834 = vpop.f32.mrb[0].mxu0
    %v1835 = vpop.f32.mrb[0].mxu0
    %v1836 = vpop.f32.mrb[0].mxu0
    %1837 = vdwg.mxu0
    %1838 = vrot.lane.b32.xlu0 %v563, 96
    %v1839 = vpop.permute.xlu0 %1838
    %v1841 = vsel %vm576, %v1540, 0
    %v1844 = vsel %vm251, %v1839, 0
    %1846 = vmatprep.subr.bf16.mxu0 0
    %1847 = vmatpush1.bf16.msra.mxu0 %v1844
    %1848 = vmatprep.subr.bf16.mxu0 0
    %1849 = vmatpush1.bf16.msra.mxu0 0
    %1850 = vmatprep.subr.bf16.mxu0 0
    %1851 = vmatpush1.bf16.msra.mxu0 0
    %1852 = vmatprep.subr.bf16.mxu0 0
    %1853 = vmatpush1.bf16.msra.mxu0 0
    %1854 = vmatprep.subr.bf16.mxu0 0
    %1855 = vmatpush1.bf16.msra.mxu0 0
    %1856 = vmatprep.subr.bf16.mxu0 0
    %1857 = vmatpush1.bf16.msra.mxu0 0
    %1858 = vmatprep.subr.bf16.mxu0 0
    %1859 = vmatpush1.bf16.msra.mxu0 0
    %1860 = vmatprep.subr.bf16.mxu0 0
    %1861 = vmatpush1.bf16.msra.mxu0 0
    %1862 = vmatprep.subr.bf16.mxu0 0
    %1863 = vmatpush1.bf16.msra.mxu0 0
    %1864 = vmatprep.subr.bf16.mxu0 0
    %1865 = vmatpush1.bf16.msra.mxu0 0
    %1866 = vmatprep.subr.bf16.mxu0 0
    %1867 = vmatpush1.bf16.msra.mxu0 0
    %1868 = vmatprep.subr.bf16.mxu0 0
    %1869 = vmatpush1.bf16.msra.mxu0 0
    %1870 = vmatprep.subr.bf16.mxu0 0
    %1871 = vmatpush1.bf16.msra.mxu0 0
    %1872 = vmatprep.subr.bf16.mxu0 0
    %1873 = vmatpush1.bf16.msra.mxu0 0
    %1874 = vmatprep.subr.bf16.mxu0 0
    %1875 = vmatpush1.bf16.msra.mxu0 0
    %1876 = vmatprep.subr.bf16.mxu0 0
    %1877 = vmatpush1.bf16.msra.mxu0 0
    %1878 = vmatprep.mubr.bf16.mxu0 0
    %1879 = vmatmul.mubr.bf16.gmra.mrb[0].mxu0 %v1841
    %v1880 = vpop.f32.mrb[0].mxu0
    %v1881 = vadd.f32 0.0, %v1880
    %v1882 = vpop.f32.mrb[0].mxu0
    %v1883 = vpop.f32.mrb[0].mxu0
    %v1884 = vpop.f32.mrb[0].mxu0
    %1885 = vdwg.mxu0
    %1886 = vrot.lane.b32.xlu0 %v564, 96
    %v1887 = vpop.permute.xlu0 %1886
    %v1889 = vsel %vm576, %v1541, 0
    %v1892 = vsel %vm251, %v1887, 0
    %1894 = vmatprep.subr.bf16.mxu0 0
    %1895 = vmatpush1.bf16.msra.mxu0 %v1892
    %1896 = vmatprep.subr.bf16.mxu0 0
    %1897 = vmatpush1.bf16.msra.mxu0 0
    %1898 = vmatprep.subr.bf16.mxu0 0
    %1899 = vmatpush1.bf16.msra.mxu0 0
    %1900 = vmatprep.subr.bf16.mxu0 0
    %1901 = vmatpush1.bf16.msra.mxu0 0
    %1902 = vmatprep.subr.bf16.mxu0 0
    %1903 = vmatpush1.bf16.msra.mxu0 0
    %1904 = vmatprep.subr.bf16.mxu0 0
    %1905 = vmatpush1.bf16.msra.mxu0 0
    %1906 = vmatprep.subr.bf16.mxu0 0
    %1907 = vmatpush1.bf16.msra.mxu0 0
    %1908 = vmatprep.subr.bf16.mxu0 0
    %1909 = vmatpush1.bf16.msra.mxu0 0
    %1910 = vmatprep.subr.bf16.mxu0 0
    %1911 = vmatpush1.bf16.msra.mxu0 0
    %1912 = vmatprep.subr.bf16.mxu0 0
    %1913 = vmatpush1.bf16.msra.mxu0 0
    %1914 = vmatprep.subr.bf16.mxu0 0
    %1915 = vmatpush1.bf16.msra.mxu0 0
    %1916 = vmatprep.subr.bf16.mxu0 0
    %1917 = vmatpush1.bf16.msra.mxu0 0
    %1918 = vmatprep.subr.bf16.mxu0 0
    %1919 = vmatpush1.bf16.msra.mxu0 0
    %1920 = vmatprep.subr.bf16.mxu0 0
    %1921 = vmatpush1.bf16.msra.mxu0 0
    %1922 = vmatprep.subr.bf16.mxu0 0
    %1923 = vmatpush1.bf16.msra.mxu0 0
    %1924 = vmatprep.subr.bf16.mxu0 0
    %1925 = vmatpush1.bf16.msra.mxu0 0
    %1926 = vmatprep.mubr.bf16.mxu0 0
    %1927 = vmatmul.mubr.bf16.gmra.mrb[0].mxu0 %v1889
    %v1928 = vpop.f32.mrb[0].mxu0
    %v1929 = vadd.f32 0.0, %v1928
    %v1930 = vpop.f32.mrb[0].mxu0
    %v1931 = vpop.f32.mrb[0].mxu0
    %v1932 = vpop.f32.mrb[0].mxu0
    %1933 = vdwg.mxu0
    %1934 = vrot.lane.b32.xlu0 %v565, 96
    %v1935 = vpop.permute.xlu0 %1934
    %v1937 = vsel %vm576, %v1542, 0
    %v1940 = vsel %vm251, %v1935, 0
    %1942 = vmatprep.subr.bf16.mxu0 0
    %1943 = vmatpush1.bf16.msra.mxu0 %v1940
    %1944 = vmatprep.subr.bf16.mxu0 0
    %1945 = vmatpush1.bf16.msra.mxu0 0
    %1946 = vmatprep.subr.bf16.mxu0 0
    %1947 = vmatpush1.bf16.msra.mxu0 0
    %1948 = vmatprep.subr.bf16.mxu0 0
    %1949 = vmatpush1.bf16.msra.mxu0 0
    %1950 = vmatprep.subr.bf16.mxu0 0
    %1951 = vmatpush1.bf16.msra.mxu0 0
    %1952 = vmatprep.subr.bf16.mxu0 0
    %1953 = vmatpush1.bf16.msra.mxu0 0
    %1954 = vmatprep.subr.bf16.mxu0 0
    %1955 = vmatpush1.bf16.msra.mxu0 0
    %1956 = vmatprep.subr.bf16.mxu0 0
    %1957 = vmatpush1.bf16.msra.mxu0 0
    %1958 = vmatprep.subr.bf16.mxu0 0
    %1959 = vmatpush1.bf16.msra.mxu0 0
    %1960 = vmatprep.subr.bf16.mxu0 0
    %1961 = vmatpush1.bf16.msra.mxu0 0
    %1962 = vmatprep.subr.bf16.mxu0 0
    %1963 = vmatpush1.bf16.msra.mxu0 0
    %1964 = vmatprep.subr.bf16.mxu0 0
    %1965 = vmatpush1.bf16.msra.mxu0 0
    %1966 = vmatprep.subr.bf16.mxu0 0
    %1967 = vmatpush1.bf16.msra.mxu0 0
    %1968 = vmatprep.subr.bf16.mxu0 0
    %1969 = vmatpush1.bf16.msra.mxu0 0
    %1970 = vmatprep.subr.bf16.mxu0 0
    %1971 = vmatpush1.bf16.msra.mxu0 0
    %1972 = vmatprep.subr.bf16.mxu0 0
    %1973 = vmatpush1.bf16.msra.mxu0 0
    %1974 = vmatprep.mubr.bf16.mxu0 0
    %1975 = vmatmul.mubr.bf16.gmra.mrb[0].mxu0 %v1937
    %v1976 = vpop.f32.mrb[0].mxu0
    %v1977 = vadd.f32 0.0, %v1976
    %v1978 = vpop.f32.mrb[0].mxu0
    %v1979 = vpop.f32.mrb[0].mxu0
    %v1980 = vpop.f32.mrb[0].mxu0
    %1981 = vdwg.mxu0
    %1982 = vrot.lane.b32.xlu0 %v566, 96
    %v1983 = vpop.permute.xlu0 %1982
    %v1985 = vsel %vm576, %v1543, 0
    %v1988 = vsel %vm251, %v1983, 0
    %1990 = vmatprep.subr.bf16.mxu0 0
    %1991 = vmatpush1.bf16.msra.mxu0 %v1988
    %1992 = vmatprep.subr.bf16.mxu0 0
    %1993 = vmatpush1.bf16.msra.mxu0 0
    %1994 = vmatprep.subr.bf16.mxu0 0
    %1995 = vmatpush1.bf16.msra.mxu0 0
    %1996 = vmatprep.subr.bf16.mxu0 0
    %1997 = vmatpush1.bf16.msra.mxu0 0
    %1998 = vmatprep.subr.bf16.mxu0 0
    %1999 = vmatpush1.bf16.msra.mxu0 0
    %2000 = vmatprep.subr.bf16.mxu0 0
    %2001 = vmatpush1.bf16.msra.mxu0 0
    %2002 = vmatprep.subr.bf16.mxu0 0
    %2003 = vmatpush1.bf16.msra.mxu0 0
    %2004 = vmatprep.subr.bf16.mxu0 0
    %2005 = vmatpush1.bf16.msra.mxu0 0
    %2006 = vmatprep.subr.bf16.mxu0 0
    %2007 = vmatpush1.bf16.msra.mxu0 0
    %2008 = vmatprep.subr.bf16.mxu0 0
    %2009 = vmatpush1.bf16.msra.mxu0 0
    %2010 = vmatprep.subr.bf16.mxu0 0
    %2011 = vmatpush1.bf16.msra.mxu0 0
    %2012 = vmatprep.subr.bf16.mxu0 0
    %2013 = vmatpush1.bf16.msra.mxu0 0
    %2014 = vmatprep.subr.bf16.mxu0 0
    %2015 = vmatpush1.bf16.msra.mxu0 0
    %2016 = vmatprep.subr.bf16.mxu0 0
    %2017 = vmatpush1.bf16.msra.mxu0 0
    %2018 = vmatprep.subr.bf16.mxu0 0
    %2019 = vmatpush1.bf16.msra.mxu0 0
    %2020 = vmatprep.subr.bf16.mxu0 0
    %2021 = vmatpush1.bf16.msra.mxu0 0
    %2022 = vmatprep.mubr.bf16.mxu0 0
    %2023 = vmatmul.mubr.bf16.gmra.mrb[0].mxu0 %v1985
    %v2024 = vpop.f32.mrb[0].mxu0
    %v2025 = vadd.f32 0.0, %v2024
    %v2026 = vpop.f32.mrb[0].mxu0
    %v2027 = vpop.f32.mrb[0].mxu0
    %v2028 = vpop.f32.mrb[0].mxu0
    %2029 = vdwg.mxu0
    %2030 = vrot.lane.b32.xlu0 %v567, 96
    %v2031 = vpop.permute.xlu0 %2030
    %v2033 = vsel %vm576, %v1544, 0
    %v2036 = vsel %vm251, %v2031, 0
    %2038 = vmatprep.subr.bf16.mxu0 0
    %2039 = vmatpush1.bf16.msra.mxu0 %v2036
    %2040 = vmatprep.subr.bf16.mxu0 0
    %2041 = vmatpush1.bf16.msra.mxu0 0
    %2042 = vmatprep.subr.bf16.mxu0 0
    %2043 = vmatpush1.bf16.msra.mxu0 0
    %2044 = vmatprep.subr.bf16.mxu0 0
    %2045 = vmatpush1.bf16.msra.mxu0 0
    %2046 = vmatprep.subr.bf16.mxu0 0
    %2047 = vmatpush1.bf16.msra.mxu0 0
    %2048 = vmatprep.subr.bf16.mxu0 0
    %2049 = vmatpush1.bf16.msra.mxu0 0
    %2050 = vmatprep.subr.bf16.mxu0 0
    %2051 = vmatpush1.bf16.msra.mxu0 0
    %2052 = vmatprep.subr.bf16.mxu0 0
    %2053 = vmatpush1.bf16.msra.mxu0 0
    %2054 = vmatprep.subr.bf16.mxu0 0
    %2055 = vmatpush1.bf16.msra.mxu0 0
    %2056 = vmatprep.subr.bf16.mxu0 0
    %2057 = vmatpush1.bf16.msra.mxu0 0
    %2058 = vmatprep.subr.bf16.mxu0 0
    %2059 = vmatpush1.bf16.msra.mxu0 0
    %2060 = vmatprep.subr.bf16.mxu0 0
    %2061 = vmatpush1.bf16.msra.mxu0 0
    %2062 = vmatprep.subr.bf16.mxu0 0
    %2063 = vmatpush1.bf16.msra.mxu0 0
    %2064 = vmatprep.subr.bf16.mxu0 0
    %2065 = vmatpush1.bf16.msra.mxu0 0
    %2066 = vmatprep.subr.bf16.mxu0 0
    %2067 = vmatpush1.bf16.msra.mxu0 0
    %2068 = vmatprep.subr.bf16.mxu0 0
    %2069 = vmatpush1.bf16.msra.mxu0 0
    %2070 = vmatprep.mubr.bf16.mxu0 0
    %2071 = vmatmul.mubr.bf16.gmra.mrb[0].mxu0 %v2033
    %v2072 = vpop.f32.mrb[0].mxu0
    %v2073 = vadd.f32 0.0, %v2072
    %v2074 = vpop.f32.mrb[0].mxu0
    %v2075 = vpop.f32.mrb[0].mxu0
    %v2076 = vpop.f32.mrb[0].mxu0
    %2077 = vdwg.mxu0
    %2078 = vrot.lane.b32.xlu0 %v568, 96
    %v2079 = vpop.permute.xlu0 %2078
    %v2081 = vsel %vm576, %v1545, 0
    %v2084 = vsel %vm251, %v2079, 0
    %2086 = vmatprep.subr.bf16.mxu0 0
    %2087 = vmatpush1.bf16.msra.mxu0 %v2084
    %2088 = vmatprep.subr.bf16.mxu0 0
    %2089 = vmatpush1.bf16.msra.mxu0 0
    %2090 = vmatprep.subr.bf16.mxu0 0
    %2091 = vmatpush1.bf16.msra.mxu0 0
    %2092 = vmatprep.subr.bf16.mxu0 0
    %2093 = vmatpush1.bf16.msra.mxu0 0
    %2094 = vmatprep.subr.bf16.mxu0 0
    %2095 = vmatpush1.bf16.msra.mxu0 0
    %2096 = vmatprep.subr.bf16.mxu0 0
    %2097 = vmatpush1.bf16.msra.mxu0 0
    %2098 = vmatprep.subr.bf16.mxu0 0
    %2099 = vmatpush1.bf16.msra.mxu0 0
    %2100 = vmatprep.subr.bf16.mxu0 0
    %2101 = vmatpush1.bf16.msra.mxu0 0
    %2102 = vmatprep.subr.bf16.mxu0 0
    %2103 = vmatpush1.bf16.msra.mxu0 0
    %2104 = vmatprep.subr.bf16.mxu0 0
    %2105 = vmatpush1.bf16.msra.mxu0 0
    %2106 = vmatprep.subr.bf16.mxu0 0
    %2107 = vmatpush1.bf16.msra.mxu0 0
    %2108 = vmatprep.subr.bf16.mxu0 0
    %2109 = vmatpush1.bf16.msra.mxu0 0
    %2110 = vmatprep.subr.bf16.mxu0 0
    %2111 = vmatpush1.bf16.msra.mxu0 0
    %2112 = vmatprep.subr.bf16.mxu0 0
    %2113 = vmatpush1.bf16.msra.mxu0 0
    %2114 = vmatprep.subr.bf16.mxu0 0
    %2115 = vmatpush1.bf16.msra.mxu0 0
    %2116 = vmatprep.subr.bf16.mxu0 0
    %2117 = vmatpush1.bf16.msra.mxu0 0
    %2118 = vmatprep.mubr.bf16.mxu0 0
    %2119 = vmatmul.mubr.bf16.gmra.mrb[0].mxu0 %v2081
    %v2120 = vpop.f32.mrb[0].mxu0
    %v2121 = vadd.f32 0.0, %v2120
    %v2122 = vpop.f32.mrb[0].mxu0
    %v2123 = vpop.f32.mrb[0].mxu0
    %v2124 = vpop.f32.mrb[0].mxu0
    %2125 = vdwg.mxu0
    %2126 = vrot.lane.b32.xlu0 %v569, 96
    %v2127 = vpop.permute.xlu0 %2126
    %v2129 = vsel %vm576, %v1546, 0
    %v2132 = vsel %vm251, %v2127, 0
    %2134 = vmatprep.subr.bf16.mxu0 0
    %2135 = vmatpush1.bf16.msra.mxu0 %v2132
    %2136 = vmatprep.subr.bf16.mxu0 0
    %2137 = vmatpush1.bf16.msra.mxu0 0
    %2138 = vmatprep.subr.bf16.mxu0 0
    %2139 = vmatpush1.bf16.msra.mxu0 0
    %2140 = vmatprep.subr.bf16.mxu0 0
    %2141 = vmatpush1.bf16.msra.mxu0 0
    %2142 = vmatprep.subr.bf16.mxu0 0
    %2143 = vmatpush1.bf16.msra.mxu0 0
    %2144 = vmatprep.subr.bf16.mxu0 0
    %2145 = vmatpush1.bf16.msra.mxu0 0
    %2146 = vmatprep.subr.bf16.mxu0 0
    %2147 = vmatpush1.bf16.msra.mxu0 0
    %2148 = vmatprep.subr.bf16.mxu0 0
    %2149 = vmatpush1.bf16.msra.mxu0 0
    %2150 = vmatprep.subr.bf16.mxu0 0
    %2151 = vmatpush1.bf16.msra.mxu0 0
    %2152 = vmatprep.subr.bf16.mxu0 0
    %2153 = vmatpush1.bf16.msra.mxu0 0
    %2154 = vmatprep.subr.bf16.mxu0 0
    %2155 = vmatpush1.bf16.msra.mxu0 0
    %2156 = vmatprep.subr.bf16.mxu0 0
    %2157 = vmatpush1.bf16.msra.mxu0 0
    %2158 = vmatprep.subr.bf16.mxu0 0
    %2159 = vmatpush1.bf16.msra.mxu0 0
    %2160 = vmatprep.subr.bf16.mxu0 0
    %2161 = vmatpush1.bf16.msra.mxu0 0
    %2162 = vmatprep.subr.bf16.mxu0 0
    %2163 = vmatpush1.bf16.msra.mxu0 0
    %2164 = vmatprep.subr.bf16.mxu0 0
    %2165 = vmatpush1.bf16.msra.mxu0 0
    %2166 = vmatprep.mubr.bf16.mxu0 0
    %2167 = vmatmul.mubr.bf16.gmra.mrb[0].mxu0 %v2129
    %v2168 = vpop.f32.mrb[0].mxu0
    %v2169 = vadd.f32 0.0, %v2168
    %v2170 = vpop.f32.mrb[0].mxu0
    %v2171 = vpop.f32.mrb[0].mxu0
    %v2172 = vpop.f32.mrb[0].mxu0
    %2173 = vdwg.mxu0
    %2174 = vrot.lane.b32.xlu0 %v570, 96
    %v2175 = vpop.permute.xlu0 %2174
    %v2177 = vsel %vm576, %v1547, 0
    %v2180 = vsel %vm251, %v2175, 0
    %2182 = vmatprep.subr.bf16.mxu0 0
    %2183 = vmatpush1.bf16.msra.mxu0 %v2180
    %2184 = vmatprep.subr.bf16.mxu0 0
    %2185 = vmatpush1.bf16.msra.mxu0 0
    %2186 = vmatprep.subr.bf16.mxu0 0
    %2187 = vmatpush1.bf16.msra.mxu0 0
    %2188 = vmatprep.subr.bf16.mxu0 0
    %2189 = vmatpush1.bf16.msra.mxu0 0
    %2190 = vmatprep.subr.bf16.mxu0 0
    %2191 = vmatpush1.bf16.msra.mxu0 0
    %2192 = vmatprep.subr.bf16.mxu0 0
    %2193 = vmatpush1.bf16.msra.mxu0 0
    %2194 = vmatprep.subr.bf16.mxu0 0
    %2195 = vmatpush1.bf16.msra.mxu0 0
    %2196 = vmatprep.subr.bf16.mxu0 0
    %2197 = vmatpush1.bf16.msra.mxu0 0
    %2198 = vmatprep.subr.bf16.mxu0 0
    %2199 = vmatpush1.bf16.msra.mxu0 0
    %2200 = vmatprep.subr.bf16.mxu0 0
    %2201 = vmatpush1.bf16.msra.mxu0 0
    %2202 = vmatprep.subr.bf16.mxu0 0
    %2203 = vmatpush1.bf16.msra.mxu0 0
    %2204 = vmatprep.subr.bf16.mxu0 0
    %2205 = vmatpush1.bf16.msra.mxu0 0
    %2206 = vmatprep.subr.bf16.mxu0 0
    %2207 = vmatpush1.bf16.msra.mxu0 0
    %2208 = vmatprep.subr.bf16.mxu0 0
    %2209 = vmatpush1.bf16.msra.mxu0 0
    %2210 = vmatprep.subr.bf16.mxu0 0
    %2211 = vmatpush1.bf16.msra.mxu0 0
    %2212 = vmatprep.subr.bf16.mxu0 0
    %2213 = vmatpush1.bf16.msra.mxu0 0
    %2214 = vmatprep.mubr.bf16.mxu0 0
    %2215 = vmatmul.mubr.bf16.gmra.mrb[0].mxu0 %v2177
    %v2216 = vpop.f32.mrb[0].mxu0
    %v2217 = vadd.f32 0.0, %v2216
    %v2218 = vpop.f32.mrb[0].mxu0
    %v2219 = vpop.f32.mrb[0].mxu0
    %v2220 = vpop.f32.mrb[0].mxu0
    %2221 = vdwg.mxu0
    %2222 = vrot.lane.b32.xlu0 %v571, 96
    %v2223 = vpop.permute.xlu0 %2222
    %v2225 = vsel %vm576, %v1548, 0
    %v2228 = vsel %vm251, %v2223, 0
    %2230 = vmatprep.subr.bf16.mxu0 0
    %2231 = vmatpush1.bf16.msra.mxu0 %v2228
    %2232 = vmatprep.subr.bf16.mxu0 0
    %2233 = vmatpush1.bf16.msra.mxu0 0
    %2234 = vmatprep.subr.bf16.mxu0 0
    %2235 = vmatpush1.bf16.msra.mxu0 0
    %2236 = vmatprep.subr.bf16.mxu0 0
    %2237 = vmatpush1.bf16.msra.mxu0 0
    %2238 = vmatprep.subr.bf16.mxu0 0
    %2239 = vmatpush1.bf16.msra.mxu0 0
    %2240 = vmatprep.subr.bf16.mxu0 0
    %2241 = vmatpush1.bf16.msra.mxu0 0
    %2242 = vmatprep.subr.bf16.mxu0 0
    %2243 = vmatpush1.bf16.msra.mxu0 0
    %2244 = vmatprep.subr.bf16.mxu0 0
    %2245 = vmatpush1.bf16.msra.mxu0 0
    %2246 = vmatprep.subr.bf16.mxu0 0
    %2247 = vmatpush1.bf16.msra.mxu0 0
    %2248 = vmatprep.subr.bf16.mxu0 0
    %2249 = vmatpush1.bf16.msra.mxu0 0
    %2250 = vmatprep.subr.bf16.mxu0 0
    %2251 = vmatpush1.bf16.msra.mxu0 0
    %2252 = vmatprep.subr.bf16.mxu0 0
    %2253 = vmatpush1.bf16.msra.mxu0 0
    %2254 = vmatprep.subr.bf16.mxu0 0
    %2255 = vmatpush1.bf16.msra.mxu0 0
    %2256 = vmatprep.subr.bf16.mxu0 0
    %2257 = vmatpush1.bf16.msra.mxu0 0
    %2258 = vmatprep.subr.bf16.mxu0 0
    %2259 = vmatpush1.bf16.msra.mxu0 0
    %2260 = vmatprep.subr.bf16.mxu0 0
    %2261 = vmatpush1.bf16.msra.mxu0 0
    %2262 = vmatprep.mubr.bf16.mxu0 0
    %2263 = vmatmul.mubr.bf16.gmra.mrb[0].mxu0 %v2225
    %v2264 = vpop.f32.mrb[0].mxu0
    %v2265 = vadd.f32 0.0, %v2264
    %v2266 = vpop.f32.mrb[0].mxu0
    %v2267 = vpop.f32.mrb[0].mxu0
    %v2268 = vpop.f32.mrb[0].mxu0
    %2269 = vdwg.mxu0
    %2270 = vrot.lane.b32.xlu0 %v572, 96
    %v2271 = vpop.permute.xlu0 %2270
    %v2273 = vsel %vm576, %v1549, 0
    %v2276 = vsel %vm251, %v2271, 0
    %2278 = vmatprep.subr.bf16.mxu0 0
    %2279 = vmatpush1.bf16.msra.mxu0 %v2276
    %2280 = vmatprep.subr.bf16.mxu0 0
    %2281 = vmatpush1.bf16.msra.mxu0 0
    %2282 = vmatprep.subr.bf16.mxu0 0
    %2283 = vmatpush1.bf16.msra.mxu0 0
    %2284 = vmatprep.subr.bf16.mxu0 0
    %2285 = vmatpush1.bf16.msra.mxu0 0
    %2286 = vmatprep.subr.bf16.mxu0 0
    %2287 = vmatpush1.bf16.msra.mxu0 0
    %2288 = vmatprep.subr.bf16.mxu0 0
    %2289 = vmatpush1.bf16.msra.mxu0 0
    %2290 = vmatprep.subr.bf16.mxu0 0
    %2291 = vmatpush1.bf16.msra.mxu0 0
    %2292 = vmatprep.subr.bf16.mxu0 0
    %2293 = vmatpush1.bf16.msra.mxu0 0
    %2294 = vmatprep.subr.bf16.mxu0 0
    %2295 = vmatpush1.bf16.msra.mxu0 0
    %2296 = vmatprep.subr.bf16.mxu0 0
    %2297 = vmatpush1.bf16.msra.mxu0 0
    %2298 = vmatprep.subr.bf16.mxu0 0
    %2299 = vmatpush1.bf16.msra.mxu0 0
    %2300 = vmatprep.subr.bf16.mxu0 0
    %2301 = vmatpush1.bf16.msra.mxu0 0
    %2302 = vmatprep.subr.bf16.mxu0 0
    %2303 = vmatpush1.bf16.msra.mxu0 0
    %2304 = vmatprep.subr.bf16.mxu0 0
    %2305 = vmatpush1.bf16.msra.mxu0 0
    %2306 = vmatprep.subr.bf16.mxu0 0
    %2307 = vmatpush1.bf16.msra.mxu0 0
    %2308 = vmatprep.subr.bf16.mxu0 0
    %2309 = vmatpush1.bf16.msra.mxu0 0
    %2310 = vmatprep.mubr.bf16.mxu0 0
    %2311 = vmatmul.mubr.bf16.gmra.mrb[0].mxu0 %v2273
    %v2312 = vpop.f32.mrb[0].mxu0
    %v2313 = vadd.f32 0.0, %v2312
    %v2314 = vpop.f32.mrb[0].mxu0
    %v2315 = vpop.f32.mrb[0].mxu0
    %v2316 = vpop.f32.mrb[0].mxu0
    %2317 = vdwg.mxu0
    %v2318 = vpack.c.bf16 %v1641, %v1593
    %v2319 = vpack.c.bf16 %v1737, %v1689
    %v2320 = vpack.c.bf16 %v1833, %v1785
    %v2321 = vpack.c.bf16 %v1929, %v1881
    %v2322 = vpack.c.bf16 %v2025, %v1977
    %v2323 = vpack.c.bf16 %v2121, %v2073
    %v2324 = vpack.c.bf16 %v2217, %v2169
    %v2325 = vpack.c.bf16 %v2313, %v2265
    %v2326 = vpack.c.bf16 %v523, %v523
    %2328 = vrot.lane.b32.xlu0 %v541, 120
    %v2329 = vpop.permute.xlu0 %2328
    %2330 = vrot.lane.b32.xlu0 %v557, 104
    %v2331 = vpop.permute.xlu0 %2330
    %v2333 = vsel %vm576, %v2329, 0
    %v2336 = vsel %vm576, %v2331, 0
    %2338 = vmatprep.subr.bf16.mxu0 0
    %2339 = vmatpush1.bf16.xpose.msra.mxu0 %v2336
    %2340 = vmatprep.subr.bf16.mxu0 0
    %2341 = vmatpush1.bf16.xpose.msra.mxu0 0
    %2342 = vmatprep.subr.bf16.mxu0 0
    %2343 = vmatpush1.bf16.xpose.msra.mxu0 0
    %2344 = vmatprep.subr.bf16.mxu0 0
    %2345 = vmatpush1.bf16.xpose.msra.mxu0 0
    %2346 = vmatprep.subr.bf16.mxu0 0
    %2347 = vmatpush1.bf16.xpose.msra.mxu0 0
    %2348 = vmatprep.subr.bf16.mxu0 0
    %2349 = vmatpush1.bf16.xpose.msra.mxu0 0
    %2350 = vmatprep.subr.bf16.mxu0 0
    %2351 = vmatpush1.bf16.xpose.msra.mxu0 0
    %2352 = vmatprep.subr.bf16.mxu0 0
    %2353 = vmatpush1.bf16.xpose.msra.mxu0 0
    %2354 = vmatprep.subr.bf16.mxu0 0
    %2355 = vmatpush1.bf16.xpose.msra.mxu0 0
    %2356 = vmatprep.subr.bf16.mxu0 0
    %2357 = vmatpush1.bf16.xpose.msra.mxu0 0
    %2358 = vmatprep.subr.bf16.mxu0 0
    %2359 = vmatpush1.bf16.xpose.msra.mxu0 0
    %2360 = vmatprep.subr.bf16.mxu0 0
    %2361 = vmatpush1.bf16.xpose.msra.mxu0 0
    %2362 = vmatprep.subr.bf16.mxu0 0
    %2363 = vmatpush1.bf16.xpose.msra.mxu0 0
    %2364 = vmatprep.subr.bf16.mxu0 0
    %2365 = vmatpush1.bf16.xpose.msra.mxu0 0
    %2366 = vmatprep.subr.bf16.mxu0 0
    %2367 = vmatpush1.bf16.xpose.msra.mxu0 0
    %2368 = vmatprep.subr.bf16.mxu0 0
    %2369 = vmatpush1.bf16.xpose.msra.mxu0 0
    %2370 = vmatprep.mubr.bf16.mxu0 0
    %2371 = vmatmul.mubr.bf16.gmra.mrb[0].mxu0 %v2333
    %v2372 = vpop.f32.mrb[0].mxu0
    %v2373 = vadd.f32 0.0, %v2372
    %v2374 = vpop.f32.mrb[0].mxu0
    %v2375 = vpop.f32.mrb[0].mxu0
    %v2376 = vpop.f32.mrb[0].mxu0
    %2377 = vdwg.mxu0
    %2379 = vrot.lane.b32.xlu0 %v542, 120
    %v2380 = vpop.permute.xlu0 %2379
    %2381 = vrot.lane.b32.xlu0 %v558, 104
    %v2382 = vpop.permute.xlu0 %2381
    %v2384 = vsel %vm576, %v2380, 0
    %v2387 = vsel %vm576, %v2382, 0
    %2389 = vmatprep.subr.bf16.mxu0 0
    %2390 = vmatpush1.bf16.xpose.msra.mxu0 %v2387
    %2391 = vmatprep.subr.bf16.mxu0 0
    %2392 = vmatpush1.bf16.xpose.msra.mxu0 0
    %2393 = vmatprep.subr.bf16.mxu0 0
    %2394 = vmatpush1.bf16.xpose.msra.mxu0 0
    %2395 = vmatprep.subr.bf16.mxu0 0
    %2396 = vmatpush1.bf16.xpose.msra.mxu0 0
    %2397 = vmatprep.subr.bf16.mxu0 0
    %2398 = vmatpush1.bf16.xpose.msra.mxu0 0
    %2399 = vmatprep.subr.bf16.mxu0 0
    %2400 = vmatpush1.bf16.xpose.msra.mxu0 0
    %2401 = vmatprep.subr.bf16.mxu0 0
    %2402 = vmatpush1.bf16.xpose.msra.mxu0 0
    %2403 = vmatprep.subr.bf16.mxu0 0
    %2404 = vmatpush1.bf16.xpose.msra.mxu0 0
    %2405 = vmatprep.subr.bf16.mxu0 0
    %2406 = vmatpush1.bf16.xpose.msra.mxu0 0
    %2407 = vmatprep.subr.bf16.mxu0 0
    %2408 = vmatpush1.bf16.xpose.msra.mxu0 0
    %2409 = vmatprep.subr.bf16.mxu0 0
    %2410 = vmatpush1.bf16.xpose.msra.mxu0 0
    %2411 = vmatprep.subr.bf16.mxu0 0
    %2412 = vmatpush1.bf16.xpose.msra.mxu0 0
    %2413 = vmatprep.subr.bf16.mxu0 0
    %2414 = vmatpush1.bf16.xpose.msra.mxu0 0
    %2415 = vmatprep.subr.bf16.mxu0 0
    %2416 = vmatpush1.bf16.xpose.msra.mxu0 0
    %2417 = vmatprep.subr.bf16.mxu0 0
    %2418 = vmatpush1.bf16.xpose.msra.mxu0 0
    %2419 = vmatprep.subr.bf16.mxu0 0
    %2420 = vmatpush1.bf16.xpose.msra.mxu0 0
    %2421 = vmatprep.mubr.bf16.mxu0 0
    %2422 = vmatmul.mubr.bf16.gmra.mrb[0].mxu0 %v2384
    %v2423 = vpop.f32.mrb[0].mxu0
    %v2424 = vadd.f32 0.0, %v2423
    %v2425 = vpop.f32.mrb[0].mxu0
    %v2426 = vpop.f32.mrb[0].mxu0
    %v2427 = vpop.f32.mrb[0].mxu0
    %2428 = vdwg.mxu0
    %2430 = vrot.lane.b32.xlu0 %v543, 120
    %v2431 = vpop.permute.xlu0 %2430
    %2432 = vrot.lane.b32.xlu0 %v559, 104
    %v2433 = vpop.permute.xlu0 %2432
    %v2435 = vsel %vm576, %v2431, 0
    %v2438 = vsel %vm576, %v2433, 0
    %2440 = vmatprep.subr.bf16.mxu0 0
    %2441 = vmatpush1.bf16.xpose.msra.mxu0 %v2438
    %2442 = vmatprep.subr.bf16.mxu0 0
    %2443 = vmatpush1.bf16.xpose.msra.mxu0 0
    %2444 = vmatprep.subr.bf16.mxu0 0
    %2445 = vmatpush1.bf16.xpose.msra.mxu0 0
    %2446 = vmatprep.subr.bf16.mxu0 0
    %2447 = vmatpush1.bf16.xpose.msra.mxu0 0
    %2448 = vmatprep.subr.bf16.mxu0 0
    %2449 = vmatpush1.bf16.xpose.msra.mxu0 0
    %2450 = vmatprep.subr.bf16.mxu0 0
    %2451 = vmatpush1.bf16.xpose.msra.mxu0 0
    %2452 = vmatprep.subr.bf16.mxu0 0
    %2453 = vmatpush1.bf16.xpose.msra.mxu0 0
    %2454 = vmatprep.subr.bf16.mxu0 0
    %2455 = vmatpush1.bf16.xpose.msra.mxu0 0
    %2456 = vmatprep.subr.bf16.mxu0 0
    %2457 = vmatpush1.bf16.xpose.msra.mxu0 0
    %2458 = vmatprep.subr.bf16.mxu0 0
    %2459 = vmatpush1.bf16.xpose.msra.mxu0 0
    %2460 = vmatprep.subr.bf16.mxu0 0
    %2461 = vmatpush1.bf16.xpose.msra.mxu0 0
    %2462 = vmatprep.subr.bf16.mxu0 0
    %2463 = vmatpush1.bf16.xpose.msra.mxu0 0
    %2464 = vmatprep.subr.bf16.mxu0 0
    %2465 = vmatpush1.bf16.xpose.msra.mxu0 0
    %2466 = vmatprep.subr.bf16.mxu0 0
    %2467 = vmatpush1.bf16.xpose.msra.mxu0 0
    %2468 = vmatprep.subr.bf16.mxu0 0
    %2469 = vmatpush1.bf16.xpose.msra.mxu0 0
    %2470 = vmatprep.subr.bf16.mxu0 0
    %2471 = vmatpush1.bf16.xpose.msra.mxu0 0
    %2472 = vmatprep.mubr.bf16.mxu0 0
    %2473 = vmatmul.mubr.bf16.gmra.mrb[0].mxu0 %v2435
    %v2474 = vpop.f32.mrb[0].mxu0
    %v2475 = vadd.f32 0.0, %v2474
    %v2476 = vpop.f32.mrb[0].mxu0
    %v2477 = vpop.f32.mrb[0].mxu0
    %v2478 = vpop.f32.mrb[0].mxu0
    %2479 = vdwg.mxu0
    %2481 = vrot.lane.b32.xlu0 %v544, 120
    %v2482 = vpop.permute.xlu0 %2481
    %2483 = vrot.lane.b32.xlu0 %v560, 104
    %v2484 = vpop.permute.xlu0 %2483
    %v2486 = vsel %vm576, %v2482, 0
    %v2489 = vsel %vm576, %v2484, 0
    %2491 = vmatprep.subr.bf16.mxu0 0
    %2492 = vmatpush1.bf16.xpose.msra.mxu0 %v2489
    %2493 = vmatprep.subr.bf16.mxu0 0
    %2494 = vmatpush1.bf16.xpose.msra.mxu0 0
    %2495 = vmatprep.subr.bf16.mxu0 0
    %2496 = vmatpush1.bf16.xpose.msra.mxu0 0
    %2497 = vmatprep.subr.bf16.mxu0 0
    %2498 = vmatpush1.bf16.xpose.msra.mxu0 0
    %2499 = vmatprep.subr.bf16.mxu0 0
    %2500 = vmatpush1.bf16.xpose.msra.mxu0 0
    %2501 = vmatprep.subr.bf16.mxu0 0
    %2502 = vmatpush1.bf16.xpose.msra.mxu0 0
    %2503 = vmatprep.subr.bf16.mxu0 0
    %2504 = vmatpush1.bf16.xpose.msra.mxu0 0
    %2505 = vmatprep.subr.bf16.mxu0 0
    %2506 = vmatpush1.bf16.xpose.msra.mxu0 0
    %2507 = vmatprep.subr.bf16.mxu0 0
    %2508 = vmatpush1.bf16.xpose.msra.mxu0 0
    %2509 = vmatprep.subr.bf16.mxu0 0
    %2510 = vmatpush1.bf16.xpose.msra.mxu0 0
    %2511 = vmatprep.subr.bf16.mxu0 0
    %2512 = vmatpush1.bf16.xpose.msra.mxu0 0
    %2513 = vmatprep.subr.bf16.mxu0 0
    %2514 = vmatpush1.bf16.xpose.msra.mxu0 0
    %2515 = vmatprep.subr.bf16.mxu0 0
    %2516 = vmatpush1.bf16.xpose.msra.mxu0 0
    %2517 = vmatprep.subr.bf16.mxu0 0
    %2518 = vmatpush1.bf16.xpose.msra.mxu0 0
    %2519 = vmatprep.subr.bf16.mxu0 0
    %2520 = vmatpush1.bf16.xpose.msra.mxu0 0
    %2521 = vmatprep.subr.bf16.mxu0 0
    %2522 = vmatpush1.bf16.xpose.msra.mxu0 0
    %2523 = vmatprep.mubr.bf16.mxu0 0
    %2524 = vmatmul.mubr.bf16.gmra.mrb[0].mxu0 %v2486
    %v2525 = vpop.f32.mrb[0].mxu0
    %v2526 = vadd.f32 0.0, %v2525
    %v2527 = vpop.f32.mrb[0].mxu0
    %v2528 = vpop.f32.mrb[0].mxu0
    %v2529 = vpop.f32.mrb[0].mxu0
    %2530 = vdwg.mxu0
    %2532 = vrot.lane.b32.xlu0 %v545, 120
    %v2533 = vpop.permute.xlu0 %2532
    %2534 = vrot.lane.b32.xlu0 %v561, 104
    %v2535 = vpop.permute.xlu0 %2534
    %v2537 = vsel %vm576, %v2533, 0
    %v2540 = vsel %vm576, %v2535, 0
    %2542 = vmatprep.subr.bf16.mxu0 0
    %2543 = vmatpush1.bf16.xpose.msra.mxu0 %v2540
    %2544 = vmatprep.subr.bf16.mxu0 0
    %2545 = vmatpush1.bf16.xpose.msra.mxu0 0
    %2546 = vmatprep.subr.bf16.mxu0 0
    %2547 = vmatpush1.bf16.xpose.msra.mxu0 0
    %2548 = vmatprep.subr.bf16.mxu0 0
    %2549 = vmatpush1.bf16.xpose.msra.mxu0 0
    %2550 = vmatprep.subr.bf16.mxu0 0
    %2551 = vmatpush1.bf16.xpose.msra.mxu0 0
    %2552 = vmatprep.subr.bf16.mxu0 0
    %2553 = vmatpush1.bf16.xpose.msra.mxu0 0
    %2554 = vmatprep.subr.bf16.mxu0 0
    %2555 = vmatpush1.bf16.xpose.msra.mxu0 0
    %2556 = vmatprep.subr.bf16.mxu0 0
    %2557 = vmatpush1.bf16.xpose.msra.mxu0 0
    %2558 = vmatprep.subr.bf16.mxu0 0
    %2559 = vmatpush1.bf16.xpose.msra.mxu0 0
    %2560 = vmatprep.subr.bf16.mxu0 0
    %2561 = vmatpush1.bf16.xpose.msra.mxu0 0
    %2562 = vmatprep.subr.bf16.mxu0 0
    %2563 = vmatpush1.bf16.xpose.msra.mxu0 0
    %2564 = vmatprep.subr.bf16.mxu0 0
    %2565 = vmatpush1.bf16.xpose.msra.mxu0 0
    %2566 = vmatprep.subr.bf16.mxu0 0
    %2567 = vmatpush1.bf16.xpose.msra.mxu0 0
    %2568 = vmatprep.subr.bf16.mxu0 0
    %2569 = vmatpush1.bf16.xpose.msra.mxu0 0
    %2570 = vmatprep.subr.bf16.mxu0 0
    %2571 = vmatpush1.bf16.xpose.msra.mxu0 0
    %2572 = vmatprep.subr.bf16.mxu0 0
    %2573 = vmatpush1.bf16.xpose.msra.mxu0 0
    %2574 = vmatprep.mubr.bf16.mxu0 0
    %2575 = vmatmul.mubr.bf16.gmra.mrb[0].mxu0 %v2537
    %v2576 = vpop.f32.mrb[0].mxu0
    %v2577 = vadd.f32 0.0, %v2576
    %v2578 = vpop.f32.mrb[0].mxu0
    %v2579 = vpop.f32.mrb[0].mxu0
    %v2580 = vpop.f32.mrb[0].mxu0
    %2581 = vdwg.mxu0
    %2583 = vrot.lane.b32.xlu0 %v546, 120
    %v2584 = vpop.permute.xlu0 %2583
    %2585 = vrot.lane.b32.xlu0 %v562, 104
    %v2586 = vpop.permute.xlu0 %2585
    %v2588 = vsel %vm576, %v2584, 0
    %v2591 = vsel %vm576, %v2586, 0
    %2593 = vmatprep.subr.bf16.mxu0 0
    %2594 = vmatpush1.bf16.xpose.msra.mxu0 %v2591
    %2595 = vmatprep.subr.bf16.mxu0 0
    %2596 = vmatpush1.bf16.xpose.msra.mxu0 0
    %2597 = vmatprep.subr.bf16.mxu0 0
    %2598 = vmatpush1.bf16.xpose.msra.mxu0 0
    %2599 = vmatprep.subr.bf16.mxu0 0
    %2600 = vmatpush1.bf16.xpose.msra.mxu0 0
    %2601 = vmatprep.subr.bf16.mxu0 0
    %2602 = vmatpush1.bf16.xpose.msra.mxu0 0
    %2603 = vmatprep.subr.bf16.mxu0 0
    %2604 = vmatpush1.bf16.xpose.msra.mxu0 0
    %2605 = vmatprep.subr.bf16.mxu0 0
    %2606 = vmatpush1.bf16.xpose.msra.mxu0 0
    %2607 = vmatprep.subr.bf16.mxu0 0
    %2608 = vmatpush1.bf16.xpose.msra.mxu0 0
    %2609 = vmatprep.subr.bf16.mxu0 0
    %2610 = vmatpush1.bf16.xpose.msra.mxu0 0
    %2611 = vmatprep.subr.bf16.mxu0 0
    %2612 = vmatpush1.bf16.xpose.msra.mxu0 0
    %2613 = vmatprep.subr.bf16.mxu0 0
    %2614 = vmatpush1.bf16.xpose.msra.mxu0 0
    %2615 = vmatprep.subr.bf16.mxu0 0
    %2616 = vmatpush1.bf16.xpose.msra.mxu0 0
    %2617 = vmatprep.subr.bf16.mxu0 0
    %2618 = vmatpush1.bf16.xpose.msra.mxu0 0
    %2619 = vmatprep.subr.bf16.mxu0 0
    %2620 = vmatpush1.bf16.xpose.msra.mxu0 0
    %2621 = vmatprep.subr.bf16.mxu0 0
    %2622 = vmatpush1.bf16.xpose.msra.mxu0 0
    %2623 = vmatprep.subr.bf16.mxu0 0
    %2624 = vmatpush1.bf16.xpose.msra.mxu0 0
    %2625 = vmatprep.mubr.bf16.mxu0 0
    %2626 = vmatmul.mubr.bf16.gmra.mrb[0].mxu0 %v2588
    %v2627 = vpop.f32.mrb[0].mxu0
    %v2628 = vadd.f32 0.0, %v2627
    %v2629 = vpop.f32.mrb[0].mxu0
    %v2630 = vpop.f32.mrb[0].mxu0
    %v2631 = vpop.f32.mrb[0].mxu0
    %2632 = vdwg.mxu0
    %2634 = vrot.lane.b32.xlu0 %v547, 120
    %v2635 = vpop.permute.xlu0 %2634
    %2636 = vrot.lane.b32.xlu0 %v563, 104
    %v2637 = vpop.permute.xlu0 %2636
    %v2639 = vsel %vm576, %v2635, 0
    %v2642 = vsel %vm576, %v2637, 0
    %2644 = vmatprep.subr.bf16.mxu0 0
    %2645 = vmatpush1.bf16.xpose.msra.mxu0 %v2642
    %2646 = vmatprep.subr.bf16.mxu0 0
    %2647 = vmatpush1.bf16.xpose.msra.mxu0 0
    %2648 = vmatprep.subr.bf16.mxu0 0
    %2649 = vmatpush1.bf16.xpose.msra.mxu0 0
    %2650 = vmatprep.subr.bf16.mxu0 0
    %2651 = vmatpush1.bf16.xpose.msra.mxu0 0
    %2652 = vmatprep.subr.bf16.mxu0 0
    %2653 = vmatpush1.bf16.xpose.msra.mxu0 0
    %2654 = vmatprep.subr.bf16.mxu0 0
    %2655 = vmatpush1.bf16.xpose.msra.mxu0 0
    %2656 = vmatprep.subr.bf16.mxu0 0
    %2657 = vmatpush1.bf16.xpose.msra.mxu0 0
    %2658 = vmatprep.subr.bf16.mxu0 0
    %2659 = vmatpush1.bf16.xpose.msra.mxu0 0
    %2660 = vmatprep.subr.bf16.mxu0 0
    %2661 = vmatpush1.bf16.xpose.msra.mxu0 0
    %2662 = vmatprep.subr.bf16.mxu0 0
    %2663 = vmatpush1.bf16.xpose.msra.mxu0 0
    %2664 = vmatprep.subr.bf16.mxu0 0
    %2665 = vmatpush1.bf16.xpose.msra.mxu0 0
    %2666 = vmatprep.subr.bf16.mxu0 0
    %2667 = vmatpush1.bf16.xpose.msra.mxu0 0
    %2668 = vmatprep.subr.bf16.mxu0 0
    %2669 = vmatpush1.bf16.xpose.msra.mxu0 0
    %2670 = vmatprep.subr.bf16.mxu0 0
    %2671 = vmatpush1.bf16.xpose.msra.mxu0 0
    %2672 = vmatprep.subr.bf16.mxu0 0
    %2673 = vmatpush1.bf16.xpose.msra.mxu0 0
    %2674 = vmatprep.subr.bf16.mxu0 0
    %2675 = vmatpush1.bf16.xpose.msra.mxu0 0
    %2676 = vmatprep.mubr.bf16.mxu0 0
    %2677 = vmatmul.mubr.bf16.gmra.mrb[0].mxu0 %v2639
    %v2678 = vpop.f32.mrb[0].mxu0
    %v2679 = vadd.f32 0.0, %v2678
    %v2680 = vpop.f32.mrb[0].mxu0
    %v2681 = vpop.f32.mrb[0].mxu0
    %v2682 = vpop.f32.mrb[0].mxu0
    %2683 = vdwg.mxu0
    %2685 = vrot.lane.b32.xlu0 %v548, 120
    %v2686 = vpop.permute.xlu0 %2685
    %2687 = vrot.lane.b32.xlu0 %v564, 104
    %v2688 = vpop.permute.xlu0 %2687
    %v2690 = vsel %vm576, %v2686, 0
    %v2693 = vsel %vm576, %v2688, 0
    %2695 = vmatprep.subr.bf16.mxu0 0
    %2696 = vmatpush1.bf16.xpose.msra.mxu0 %v2693
    %2697 = vmatprep.subr.bf16.mxu0 0
    %2698 = vmatpush1.bf16.xpose.msra.mxu0 0
    %2699 = vmatprep.subr.bf16.mxu0 0
    %2700 = vmatpush1.bf16.xpose.msra.mxu0 0
    %2701 = vmatprep.subr.bf16.mxu0 0
    %2702 = vmatpush1.bf16.xpose.msra.mxu0 0
    %2703 = vmatprep.subr.bf16.mxu0 0
    %2704 = vmatpush1.bf16.xpose.msra.mxu0 0
    %2705 = vmatprep.subr.bf16.mxu0 0
    %2706 = vmatpush1.bf16.xpose.msra.mxu0 0
    %2707 = vmatprep.subr.bf16.mxu0 0
    %2708 = vmatpush1.bf16.xpose.msra.mxu0 0
    %2709 = vmatprep.subr.bf16.mxu0 0
    %2710 = vmatpush1.bf16.xpose.msra.mxu0 0
    %2711 = vmatprep.subr.bf16.mxu0 0
    %2712 = vmatpush1.bf16.xpose.msra.mxu0 0
    %2713 = vmatprep.subr.bf16.mxu0 0
    %2714 = vmatpush1.bf16.xpose.msra.mxu0 0
    %2715 = vmatprep.subr.bf16.mxu0 0
    %2716 = vmatpush1.bf16.xpose.msra.mxu0 0
    %2717 = vmatprep.subr.bf16.mxu0 0
    %2718 = vmatpush1.bf16.xpose.msra.mxu0 0
    %2719 = vmatprep.subr.bf16.mxu0 0
    %2720 = vmatpush1.bf16.xpose.msra.mxu0 0
    %2721 = vmatprep.subr.bf16.mxu0 0
    %2722 = vmatpush1.bf16.xpose.msra.mxu0 0
    %2723 = vmatprep.subr.bf16.mxu0 0
    %2724 = vmatpush1.bf16.xpose.msra.mxu0 0
    %2725 = vmatprep.subr.bf16.mxu0 0
    %2726 = vmatpush1.bf16.xpose.msra.mxu0 0
    %2727 = vmatprep.mubr.bf16.mxu0 0
    %2728 = vmatmul.mubr.bf16.gmra.mrb[0].mxu0 %v2690
    %v2729 = vpop.f32.mrb[0].mxu0
    %v2730 = vadd.f32 0.0, %v2729
    %v2731 = vpop.f32.mrb[0].mxu0
    %v2732 = vpop.f32.mrb[0].mxu0
    %v2733 = vpop.f32.mrb[0].mxu0
    %2734 = vdwg.mxu0
    %2736 = vrot.lane.b32.xlu0 %v549, 120
    %v2737 = vpop.permute.xlu0 %2736
    %2738 = vrot.lane.b32.xlu0 %v565, 104
    %v2739 = vpop.permute.xlu0 %2738
    %v2741 = vsel %vm576, %v2737, 0
    %v2744 = vsel %vm576, %v2739, 0
    %2746 = vmatprep.subr.bf16.mxu0 0
    %2747 = vmatpush1.bf16.xpose.msra.mxu0 %v2744
    %2748 = vmatprep.subr.bf16.mxu0 0
    %2749 = vmatpush1.bf16.xpose.msra.mxu0 0
    %2750 = vmatprep.subr.bf16.mxu0 0
    %2751 = vmatpush1.bf16.xpose.msra.mxu0 0
    %2752 = vmatprep.subr.bf16.mxu0 0
    %2753 = vmatpush1.bf16.xpose.msra.mxu0 0
    %2754 = vmatprep.subr.bf16.mxu0 0
    %2755 = vmatpush1.bf16.xpose.msra.mxu0 0
    %2756 = vmatprep.subr.bf16.mxu0 0
    %2757 = vmatpush1.bf16.xpose.msra.mxu0 0
    %2758 = vmatprep.subr.bf16.mxu0 0
    %2759 = vmatpush1.bf16.xpose.msra.mxu0 0
    %2760 = vmatprep.subr.bf16.mxu0 0
    %2761 = vmatpush1.bf16.xpose.msra.mxu0 0
    %2762 = vmatprep.subr.bf16.mxu0 0
    %2763 = vmatpush1.bf16.xpose.msra.mxu0 0
    %2764 = vmatprep.subr.bf16.mxu0 0
    %2765 = vmatpush1.bf16.xpose.msra.mxu0 0
    %2766 = vmatprep.subr.bf16.mxu0 0
    %2767 = vmatpush1.bf16.xpose.msra.mxu0 0
    %2768 = vmatprep.subr.bf16.mxu0 0
    %2769 = vmatpush1.bf16.xpose.msra.mxu0 0
    %2770 = vmatprep.subr.bf16.mxu0 0
    %2771 = vmatpush1.bf16.xpose.msra.mxu0 0
    %2772 = vmatprep.subr.bf16.mxu0 0
    %2773 = vmatpush1.bf16.xpose.msra.mxu0 0
    %2774 = vmatprep.subr.bf16.mxu0 0
    %2775 = vmatpush1.bf16.xpose.msra.mxu0 0
    %2776 = vmatprep.subr.bf16.mxu0 0
    %2777 = vmatpush1.bf16.xpose.msra.mxu0 0
    %2778 = vmatprep.mubr.bf16.mxu0 0
    %2779 = vmatmul.mubr.bf16.gmra.mrb[0].mxu0 %v2741
    %v2780 = vpop.f32.mrb[0].mxu0
    %v2781 = vadd.f32 0.0, %v2780
    %v2782 = vpop.f32.mrb[0].mxu0
    %v2783 = vpop.f32.mrb[0].mxu0
    %v2784 = vpop.f32.mrb[0].mxu0
    %2785 = vdwg.mxu0
    %2787 = vrot.lane.b32.xlu0 %v550, 120
    %v2788 = vpop.permute.xlu0 %2787
    %2789 = vrot.lane.b32.xlu0 %v566, 104
    %v2790 = vpop.permute.xlu0 %2789
    %v2792 = vsel %vm576, %v2788, 0
    %v2795 = vsel %vm576, %v2790, 0
    %2797 = vmatprep.subr.bf16.mxu0 0
    %2798 = vmatpush1.bf16.xpose.msra.mxu0 %v2795
    %2799 = vmatprep.subr.bf16.mxu0 0
    %2800 = vmatpush1.bf16.xpose.msra.mxu0 0
    %2801 = vmatprep.subr.bf16.mxu0 0
    %2802 = vmatpush1.bf16.xpose.msra.mxu0 0
    %2803 = vmatprep.subr.bf16.mxu0 0
    %2804 = vmatpush1.bf16.xpose.msra.mxu0 0
    %2805 = vmatprep.subr.bf16.mxu0 0
    %2806 = vmatpush1.bf16.xpose.msra.mxu0 0
    %2807 = vmatprep.subr.bf16.mxu0 0
    %2808 = vmatpush1.bf16.xpose.msra.mxu0 0
    %2809 = vmatprep.subr.bf16.mxu0 0
    %2810 = vmatpush1.bf16.xpose.msra.mxu0 0
    %2811 = vmatprep.subr.bf16.mxu0 0
    %2812 = vmatpush1.bf16.xpose.msra.mxu0 0
    %2813 = vmatprep.subr.bf16.mxu0 0
    %2814 = vmatpush1.bf16.xpose.msra.mxu0 0
    %2815 = vmatprep.subr.bf16.mxu0 0
    %2816 = vmatpush1.bf16.xpose.msra.mxu0 0
    %2817 = vmatprep.subr.bf16.mxu0 0
    %2818 = vmatpush1.bf16.xpose.msra.mxu0 0
    %2819 = vmatprep.subr.bf16.mxu0 0
    %2820 = vmatpush1.bf16.xpose.msra.mxu0 0
    %2821 = vmatprep.subr.bf16.mxu0 0
    %2822 = vmatpush1.bf16.xpose.msra.mxu0 0
    %2823 = vmatprep.subr.bf16.mxu0 0
    %2824 = vmatpush1.bf16.xpose.msra.mxu0 0
    %2825 = vmatprep.subr.bf16.mxu0 0
    %2826 = vmatpush1.bf16.xpose.msra.mxu0 0
    %2827 = vmatprep.subr.bf16.mxu0 0
    %2828 = vmatpush1.bf16.xpose.msra.mxu0 0
    %2829 = vmatprep.mubr.bf16.mxu0 0
    %2830 = vmatmul.mubr.bf16.gmra.mrb[0].mxu0 %v2792
    %v2831 = vpop.f32.mrb[0].mxu0
    %v2832 = vadd.f32 0.0, %v2831
    %v2833 = vpop.f32.mrb[0].mxu0
    %v2834 = vpop.f32.mrb[0].mxu0
    %v2835 = vpop.f32.mrb[0].mxu0
    %2836 = vdwg.mxu0
    %2838 = vrot.lane.b32.xlu0 %v551, 120
    %v2839 = vpop.permute.xlu0 %2838
    %2840 = vrot.lane.b32.xlu0 %v567, 104
    %v2841 = vpop.permute.xlu0 %2840
    %v2843 = vsel %vm576, %v2839, 0
    %v2846 = vsel %vm576, %v2841, 0
    %2848 = vmatprep.subr.bf16.mxu0 0
    %2849 = vmatpush1.bf16.xpose.msra.mxu0 %v2846
    %2850 = vmatprep.subr.bf16.mxu0 0
    %2851 = vmatpush1.bf16.xpose.msra.mxu0 0
    %2852 = vmatprep.subr.bf16.mxu0 0
    %2853 = vmatpush1.bf16.xpose.msra.mxu0 0
    %2854 = vmatprep.subr.bf16.mxu0 0
    %2855 = vmatpush1.bf16.xpose.msra.mxu0 0
    %2856 = vmatprep.subr.bf16.mxu0 0
    %2857 = vmatpush1.bf16.xpose.msra.mxu0 0
    %2858 = vmatprep.subr.bf16.mxu0 0
    %2859 = vmatpush1.bf16.xpose.msra.mxu0 0
    %2860 = vmatprep.subr.bf16.mxu0 0
    %2861 = vmatpush1.bf16.xpose.msra.mxu0 0
    %2862 = vmatprep.subr.bf16.mxu0 0
    %2863 = vmatpush1.bf16.xpose.msra.mxu0 0
    %2864 = vmatprep.subr.bf16.mxu0 0
    %2865 = vmatpush1.bf16.xpose.msra.mxu0 0
    %2866 = vmatprep.subr.bf16.mxu0 0
    %2867 = vmatpush1.bf16.xpose.msra.mxu0 0
    %2868 = vmatprep.subr.bf16.mxu0 0
    %2869 = vmatpush1.bf16.xpose.msra.mxu0 0
    %2870 = vmatprep.subr.bf16.mxu0 0
    %2871 = vmatpush1.bf16.xpose.msra.mxu0 0
    %2872 = vmatprep.subr.bf16.mxu0 0
    %2873 = vmatpush1.bf16.xpose.msra.mxu0 0
    %2874 = vmatprep.subr.bf16.mxu0 0
    %2875 = vmatpush1.bf16.xpose.msra.mxu0 0
    %2876 = vmatprep.subr.bf16.mxu0 0
    %2877 = vmatpush1.bf16.xpose.msra.mxu0 0
    %2878 = vmatprep.subr.bf16.mxu0 0
    %2879 = vmatpush1.bf16.xpose.msra.mxu0 0
    %2880 = vmatprep.mubr.bf16.mxu0 0
    %2881 = vmatmul.mubr.bf16.gmra.mrb[0].mxu0 %v2843
    %v2882 = vpop.f32.mrb[0].mxu0
    %v2883 = vadd.f32 0.0, %v2882
    %v2884 = vpop.f32.mrb[0].mxu0
    %v2885 = vpop.f32.mrb[0].mxu0
    %v2886 = vpop.f32.mrb[0].mxu0
    %2887 = vdwg.mxu0
    %2889 = vrot.lane.b32.xlu0 %v552, 120
    %v2890 = vpop.permute.xlu0 %2889
    %2891 = vrot.lane.b32.xlu0 %v568, 104
    %v2892 = vpop.permute.xlu0 %2891
    %v2894 = vsel %vm576, %v2890, 0
    %v2897 = vsel %vm576, %v2892, 0
    %2899 = vmatprep.subr.bf16.mxu0 0
    %2900 = vmatpush1.bf16.xpose.msra.mxu0 %v2897
    %2901 = vmatprep.subr.bf16.mxu0 0
    %2902 = vmatpush1.bf16.xpose.msra.mxu0 0
    %2903 = vmatprep.subr.bf16.mxu0 0
    %2904 = vmatpush1.bf16.xpose.msra.mxu0 0
    %2905 = vmatprep.subr.bf16.mxu0 0
    %2906 = vmatpush1.bf16.xpose.msra.mxu0 0
    %2907 = vmatprep.subr.bf16.mxu0 0
    %2908 = vmatpush1.bf16.xpose.msra.mxu0 0
    %2909 = vmatprep.subr.bf16.mxu0 0
    %2910 = vmatpush1.bf16.xpose.msra.mxu0 0
    %2911 = vmatprep.subr.bf16.mxu0 0
    %2912 = vmatpush1.bf16.xpose.msra.mxu0 0
    %2913 = vmatprep.subr.bf16.mxu0 0
    %2914 = vmatpush1.bf16.xpose.msra.mxu0 0
    %2915 = vmatprep.subr.bf16.mxu0 0
    %2916 = vmatpush1.bf16.xpose.msra.mxu0 0
    %2917 = vmatprep.subr.bf16.mxu0 0
    %2918 = vmatpush1.bf16.xpose.msra.mxu0 0
    %2919 = vmatprep.subr.bf16.mxu0 0
    %2920 = vmatpush1.bf16.xpose.msra.mxu0 0
    %2921 = vmatprep.subr.bf16.mxu0 0
    %2922 = vmatpush1.bf16.xpose.msra.mxu0 0
    %2923 = vmatprep.subr.bf16.mxu0 0
    %2924 = vmatpush1.bf16.xpose.msra.mxu0 0
    %2925 = vmatprep.subr.bf16.mxu0 0
    %2926 = vmatpush1.bf16.xpose.msra.mxu0 0
    %2927 = vmatprep.subr.bf16.mxu0 0
    %2928 = vmatpush1.bf16.xpose.msra.mxu0 0
    %2929 = vmatprep.subr.bf16.mxu0 0
    %2930 = vmatpush1.bf16.xpose.msra.mxu0 0
    %2931 = vmatprep.mubr.bf16.mxu0 0
    %2932 = vmatmul.mubr.bf16.gmra.mrb[0].mxu0 %v2894
    %v2933 = vpop.f32.mrb[0].mxu0
    %v2934 = vadd.f32 0.0, %v2933
    %v2935 = vpop.f32.mrb[0].mxu0
    %v2936 = vpop.f32.mrb[0].mxu0
    %v2937 = vpop.f32.mrb[0].mxu0
    %2938 = vdwg.mxu0
    %2940 = vrot.lane.b32.xlu0 %v553, 120
    %v2941 = vpop.permute.xlu0 %2940
    %2942 = vrot.lane.b32.xlu0 %v569, 104
    %v2943 = vpop.permute.xlu0 %2942
    %v2945 = vsel %vm576, %v2941, 0
    %v2948 = vsel %vm576, %v2943, 0
    %2950 = vmatprep.subr.bf16.mxu0 0
    %2951 = vmatpush1.bf16.xpose.msra.mxu0 %v2948
    %2952 = vmatprep.subr.bf16.mxu0 0
    %2953 = vmatpush1.bf16.xpose.msra.mxu0 0
    %2954 = vmatprep.subr.bf16.mxu0 0
    %2955 = vmatpush1.bf16.xpose.msra.mxu0 0
    %2956 = vmatprep.subr.bf16.mxu0 0
    %2957 = vmatpush1.bf16.xpose.msra.mxu0 0
    %2958 = vmatprep.subr.bf16.mxu0 0
    %2959 = vmatpush1.bf16.xpose.msra.mxu0 0
    %2960 = vmatprep.subr.bf16.mxu0 0
    %2961 = vmatpush1.bf16.xpose.msra.mxu0 0
    %2962 = vmatprep.subr.bf16.mxu0 0
    %2963 = vmatpush1.bf16.xpose.msra.mxu0 0
    %2964 = vmatprep.subr.bf16.mxu0 0
    %2965 = vmatpush1.bf16.xpose.msra.mxu0 0
    %2966 = vmatprep.subr.bf16.mxu0 0
    %2967 = vmatpush1.bf16.xpose.msra.mxu0 0
    %2968 = vmatprep.subr.bf16.mxu0 0
    %2969 = vmatpush1.bf16.xpose.msra.mxu0 0
    %2970 = vmatprep.subr.bf16.mxu0 0
    %2971 = vmatpush1.bf16.xpose.msra.mxu0 0
    %2972 = vmatprep.subr.bf16.mxu0 0
    %2973 = vmatpush1.bf16.xpose.msra.mxu0 0
    %2974 = vmatprep.subr.bf16.mxu0 0
    %2975 = vmatpush1.bf16.xpose.msra.mxu0 0
    %2976 = vmatprep.subr.bf16.mxu0 0
    %2977 = vmatpush1.bf16.xpose.msra.mxu0 0
    %2978 = vmatprep.subr.bf16.mxu0 0
    %2979 = vmatpush1.bf16.xpose.msra.mxu0 0
    %2980 = vmatprep.subr.bf16.mxu0 0
    %2981 = vmatpush1.bf16.xpose.msra.mxu0 0
    %2982 = vmatprep.mubr.bf16.mxu0 0
    %2983 = vmatmul.mubr.bf16.gmra.mrb[0].mxu0 %v2945
    %v2984 = vpop.f32.mrb[0].mxu0
    %v2985 = vadd.f32 0.0, %v2984
    %v2986 = vpop.f32.mrb[0].mxu0
    %v2987 = vpop.f32.mrb[0].mxu0
    %v2988 = vpop.f32.mrb[0].mxu0
    %2989 = vdwg.mxu0
    %2991 = vrot.lane.b32.xlu0 %v554, 120
    %v2992 = vpop.permute.xlu0 %2991
    %2993 = vrot.lane.b32.xlu0 %v570, 104
    %v2994 = vpop.permute.xlu0 %2993
    %v2996 = vsel %vm576, %v2992, 0
    %v2999 = vsel %vm576, %v2994, 0
    %3001 = vmatprep.subr.bf16.mxu0 0
    %3002 = vmatpush1.bf16.xpose.msra.mxu0 %v2999
    %3003 = vmatprep.subr.bf16.mxu0 0
    %3004 = vmatpush1.bf16.xpose.msra.mxu0 0
    %3005 = vmatprep.subr.bf16.mxu0 0
    %3006 = vmatpush1.bf16.xpose.msra.mxu0 0
    %3007 = vmatprep.subr.bf16.mxu0 0
    %3008 = vmatpush1.bf16.xpose.msra.mxu0 0
    %3009 = vmatprep.subr.bf16.mxu0 0
    %3010 = vmatpush1.bf16.xpose.msra.mxu0 0
    %3011 = vmatprep.subr.bf16.mxu0 0
    %3012 = vmatpush1.bf16.xpose.msra.mxu0 0
    %3013 = vmatprep.subr.bf16.mxu0 0
    %3014 = vmatpush1.bf16.xpose.msra.mxu0 0
    %3015 = vmatprep.subr.bf16.mxu0 0
    %3016 = vmatpush1.bf16.xpose.msra.mxu0 0
    %3017 = vmatprep.subr.bf16.mxu0 0
    %3018 = vmatpush1.bf16.xpose.msra.mxu0 0
    %3019 = vmatprep.subr.bf16.mxu0 0
    %3020 = vmatpush1.bf16.xpose.msra.mxu0 0
    %3021 = vmatprep.subr.bf16.mxu0 0
    %3022 = vmatpush1.bf16.xpose.msra.mxu0 0
    %3023 = vmatprep.subr.bf16.mxu0 0
    %3024 = vmatpush1.bf16.xpose.msra.mxu0 0
    %3025 = vmatprep.subr.bf16.mxu0 0
    %3026 = vmatpush1.bf16.xpose.msra.mxu0 0
    %3027 = vmatprep.subr.bf16.mxu0 0
    %3028 = vmatpush1.bf16.xpose.msra.mxu0 0
    %3029 = vmatprep.subr.bf16.mxu0 0
    %3030 = vmatpush1.bf16.xpose.msra.mxu0 0
    %3031 = vmatprep.subr.bf16.mxu0 0
    %3032 = vmatpush1.bf16.xpose.msra.mxu0 0
    %3033 = vmatprep.mubr.bf16.mxu0 0
    %3034 = vmatmul.mubr.bf16.gmra.mrb[0].mxu0 %v2996
    %v3035 = vpop.f32.mrb[0].mxu0
    %v3036 = vadd.f32 0.0, %v3035
    %v3037 = vpop.f32.mrb[0].mxu0
    %v3038 = vpop.f32.mrb[0].mxu0
    %v3039 = vpop.f32.mrb[0].mxu0
    %3040 = vdwg.mxu0
    %3042 = vrot.lane.b32.xlu0 %v555, 120
    %v3043 = vpop.permute.xlu0 %3042
    %3044 = vrot.lane.b32.xlu0 %v571, 104
    %v3045 = vpop.permute.xlu0 %3044
    %v3047 = vsel %vm576, %v3043, 0
    %v3050 = vsel %vm576, %v3045, 0
    %3052 = vmatprep.subr.bf16.mxu0 0
    %3053 = vmatpush1.bf16.xpose.msra.mxu0 %v3050
    %3054 = vmatprep.subr.bf16.mxu0 0
    %3055 = vmatpush1.bf16.xpose.msra.mxu0 0
    %3056 = vmatprep.subr.bf16.mxu0 0
    %3057 = vmatpush1.bf16.xpose.msra.mxu0 0
    %3058 = vmatprep.subr.bf16.mxu0 0
    %3059 = vmatpush1.bf16.xpose.msra.mxu0 0
    %3060 = vmatprep.subr.bf16.mxu0 0
    %3061 = vmatpush1.bf16.xpose.msra.mxu0 0
    %3062 = vmatprep.subr.bf16.mxu0 0
    %3063 = vmatpush1.bf16.xpose.msra.mxu0 0
    %3064 = vmatprep.subr.bf16.mxu0 0
    %3065 = vmatpush1.bf16.xpose.msra.mxu0 0
    %3066 = vmatprep.subr.bf16.mxu0 0
    %3067 = vmatpush1.bf16.xpose.msra.mxu0 0
    %3068 = vmatprep.subr.bf16.mxu0 0
    %3069 = vmatpush1.bf16.xpose.msra.mxu0 0
    %3070 = vmatprep.subr.bf16.mxu0 0
    %3071 = vmatpush1.bf16.xpose.msra.mxu0 0
    %3072 = vmatprep.subr.bf16.mxu0 0
    %3073 = vmatpush1.bf16.xpose.msra.mxu0 0
    %3074 = vmatprep.subr.bf16.mxu0 0
    %3075 = vmatpush1.bf16.xpose.msra.mxu0 0
    %3076 = vmatprep.subr.bf16.mxu0 0
    %3077 = vmatpush1.bf16.xpose.msra.mxu0 0
    %3078 = vmatprep.subr.bf16.mxu0 0
    %3079 = vmatpush1.bf16.xpose.msra.mxu0 0
    %3080 = vmatprep.subr.bf16.mxu0 0
    %3081 = vmatpush1.bf16.xpose.msra.mxu0 0
    %3082 = vmatprep.subr.bf16.mxu0 0
    %3083 = vmatpush1.bf16.xpose.msra.mxu0 0
    %3084 = vmatprep.mubr.bf16.mxu0 0
    %3085 = vmatmul.mubr.bf16.gmra.mrb[0].mxu0 %v3047
    %v3086 = vpop.f32.mrb[0].mxu0
    %v3087 = vadd.f32 0.0, %v3086
    %v3088 = vpop.f32.mrb[0].mxu0
    %v3089 = vpop.f32.mrb[0].mxu0
    %v3090 = vpop.f32.mrb[0].mxu0
    %3091 = vdwg.mxu0
    %3093 = vrot.lane.b32.xlu0 %v556, 120
    %v3094 = vpop.permute.xlu0 %3093
    %3095 = vrot.lane.b32.xlu0 %v572, 104
    %v3096 = vpop.permute.xlu0 %3095
    %v3098 = vsel %vm576, %v3094, 0
    %v3101 = vsel %vm576, %v3096, 0
    %3103 = vmatprep.subr.bf16.mxu0 0
    %3104 = vmatpush1.bf16.xpose.msra.mxu0 %v3101
    %3105 = vmatprep.subr.bf16.mxu0 0
    %3106 = vmatpush1.bf16.xpose.msra.mxu0 0
    %3107 = vmatprep.subr.bf16.mxu0 0
    %3108 = vmatpush1.bf16.xpose.msra.mxu0 0
    %3109 = vmatprep.subr.bf16.mxu0 0
    %3110 = vmatpush1.bf16.xpose.msra.mxu0 0
    %3111 = vmatprep.subr.bf16.mxu0 0
    %3112 = vmatpush1.bf16.xpose.msra.mxu0 0
    %3113 = vmatprep.subr.bf16.mxu0 0
    %3114 = vmatpush1.bf16.xpose.msra.mxu0 0
    %3115 = vmatprep.subr.bf16.mxu0 0
    %3116 = vmatpush1.bf16.xpose.msra.mxu0 0
    %3117 = vmatprep.subr.bf16.mxu0 0
    %3118 = vmatpush1.bf16.xpose.msra.mxu0 0
    %3119 = vmatprep.subr.bf16.mxu0 0
    %3120 = vmatpush1.bf16.xpose.msra.mxu0 0
    %3121 = vmatprep.subr.bf16.mxu0 0
    %3122 = vmatpush1.bf16.xpose.msra.mxu0 0
    %3123 = vmatprep.subr.bf16.mxu0 0
    %3124 = vmatpush1.bf16.xpose.msra.mxu0 0
    %3125 = vmatprep.subr.bf16.mxu0 0
    %3126 = vmatpush1.bf16.xpose.msra.mxu0 0
    %3127 = vmatprep.subr.bf16.mxu0 0
    %3128 = vmatpush1.bf16.xpose.msra.mxu0 0
    %3129 = vmatprep.subr.bf16.mxu0 0
    %3130 = vmatpush1.bf16.xpose.msra.mxu0 0
    %3131 = vmatprep.subr.bf16.mxu0 0
    %3132 = vmatpush1.bf16.xpose.msra.mxu0 0
    %3133 = vmatprep.subr.bf16.mxu0 0
    %3134 = vmatpush1.bf16.xpose.msra.mxu0 0
    %3135 = vmatprep.mubr.bf16.mxu0 0
    %3136 = vmatmul.mubr.bf16.gmra.mrb[0].mxu0 %v3098
    %v3137 = vpop.f32.mrb[0].mxu0
    %v3138 = vadd.f32 0.0, %v3137
    %v3139 = vpop.f32.mrb[0].mxu0
    %v3140 = vpop.f32.mrb[0].mxu0
    %v3141 = vpop.f32.mrb[0].mxu0
    %3142 = vdwg.mxu0
    %v3143 = vsel %vm576, %v2373, -inf
    %3144 = vmax.xlane.f32.xlu0 %v3143
    %v3145 = vpop.xlane.xlu0 %3144
    %v3146 = vsel %vm576, %v2424, -inf
    %3147 = vmax.xlane.f32.xlu0 %v3146
    %v3148 = vpop.xlane.xlu0 %3147
    %v3149 = vsel %vm576, %v2475, -inf
    %3150 = vmax.xlane.f32.xlu0 %v3149
    %v3151 = vpop.xlane.xlu0 %3150
    %v3152 = vsel %vm576, %v2526, -inf
    %3153 = vmax.xlane.f32.xlu0 %v3152
    %v3154 = vpop.xlane.xlu0 %3153
    %v3155 = vsel %vm576, %v2577, -inf
    %3156 = vmax.xlane.f32.xlu0 %v3155
    %v3157 = vpop.xlane.xlu0 %3156
    %v3158 = vsel %vm576, %v2628, -inf
    %3159 = vmax.xlane.f32.xlu0 %v3158
    %v3160 = vpop.xlane.xlu0 %3159
    %v3161 = vsel %vm576, %v2679, -inf
    %3162 = vmax.xlane.f32.xlu0 %v3161
    %v3163 = vpop.xlane.xlu0 %3162
    %v3164 = vsel %vm576, %v2730, -inf
    %3165 = vmax.xlane.f32.xlu0 %v3164
    %v3166 = vpop.xlane.xlu0 %3165
    %v3167 = vsel %vm576, %v2781, -inf
    %3168 = vmax.xlane.f32.xlu0 %v3167
    %v3169 = vpop.xlane.xlu0 %3168
    %v3170 = vsel %vm576, %v2832, -inf
    %3171 = vmax.xlane.f32.xlu0 %v3170
    %v3172 = vpop.xlane.xlu0 %3171
    %v3173 = vsel %vm576, %v2883, -inf
    %3174 = vmax.xlane.f32.xlu0 %v3173
    %v3175 = vpop.xlane.xlu0 %3174
    %v3176 = vsel %vm576, %v2934, -inf
    %3177 = vmax.xlane.f32.xlu0 %v3176
    %v3178 = vpop.xlane.xlu0 %3177
    %v3179 = vsel %vm576, %v2985, -inf
    %3180 = vmax.xlane.f32.xlu0 %v3179
    %v3181 = vpop.xlane.xlu0 %3180
    %v3182 = vsel %vm576, %v3036, -inf
    %3183 = vmax.xlane.f32.xlu0 %v3182
    %v3184 = vpop.xlane.xlu0 %3183
    %v3185 = vsel %vm576, %v3087, -inf
    %3186 = vmax.xlane.f32.xlu0 %v3185
    %v3187 = vpop.xlane.xlu0 %3186
    %v3188 = vsel %vm576, %v3138, -inf
    %3189 = vmax.xlane.f32.xlu0 %v3188
    %v3190 = vpop.xlane.xlu0 %3189
    %v3191 = vsub.f32 %v2373, %v3145
    %v3192 = vsub.f32 %v2424, %v3148
    %v3193 = vsub.f32 %v2475, %v3151
    %v3194 = vsub.f32 %v2526, %v3154
    %v3195 = vsub.f32 %v2577, %v3157
    %v3196 = vsub.f32 %v2628, %v3160
    %v3197 = vsub.f32 %v2679, %v3163
    %v3198 = vsub.f32 %v2730, %v3166
    %v3199 = vsub.f32 %v2781, %v3169
    %v3200 = vsub.f32 %v2832, %v3172
    %v3201 = vsub.f32 %v2883, %v3175
    %v3202 = vsub.f32 %v2934, %v3178
    %v3203 = vsub.f32 %v2985, %v3181
    %v3204 = vsub.f32 %v3036, %v3184
    %v3205 = vsub.f32 %v3087, %v3187
    %v3206 = vsub.f32 %v3138, %v3190
    %v3207 = vmul.f32 %v3191, 1.442695
    %v3208 = vpow.pop %v3207
    %v3209 = vmul.f32 %v3192, 1.442695
    %v3210 = vpow.pop %v3209
    %v3211 = vmul.f32 %v3193, 1.442695
    %v3212 = vpow.pop %v3211
    %v3213 = vmul.f32 %v3194, 1.442695
    %v3214 = vpow.pop %v3213
    %v3215 = vmul.f32 %v3195, 1.442695
    %v3216 = vpow.pop %v3215
    %v3217 = vmul.f32 %v3196, 1.442695
    %v3218 = vpow.pop %v3217
    %v3219 = vmul.f32 %v3197, 1.442695
    %v3220 = vpow.pop %v3219
    %v3221 = vmul.f32 %v3198, 1.442695
    %v3222 = vpow.pop %v3221
    %v3223 = vmul.f32 %v3199, 1.442695
    %v3224 = vpow.pop %v3223
    %v3225 = vmul.f32 %v3200, 1.442695
    %v3226 = vpow.pop %v3225
    %v3227 = vmul.f32 %v3201, 1.442695
    %v3228 = vpow.pop %v3227
    %v3229 = vmul.f32 %v3202, 1.442695
    %v3230 = vpow.pop %v3229
    %v3231 = vmul.f32 %v3203, 1.442695
    %v3232 = vpow.pop %v3231
    %v3233 = vmul.f32 %v3204, 1.442695
    %v3234 = vpow.pop %v3233
    %v3235 = vmul.f32 %v3205, 1.442695
    %v3236 = vpow.pop %v3235
    %v3237 = vmul.f32 %v3206, 1.442695
    %v3238 = vpow.pop %v3237
    %v3239 = vsel %vm576, %v3208, 0.0
    %3240 = vadd.xlane.f32.xlu0 %v3239
    %v3241 = vpop.xlane.xlu0 %3240
    %v3242 = vsel %vm576, %v3210, 0.0
    %3243 = vadd.xlane.f32.xlu0 %v3242
    %v3244 = vpop.xlane.xlu0 %3243
    %v3245 = vsel %vm576, %v3212, 0.0
    %3246 = vadd.xlane.f32.xlu0 %v3245
    %v3247 = vpop.xlane.xlu0 %3246
    %v3248 = vsel %vm576, %v3214, 0.0
    %3249 = vadd.xlane.f32.xlu0 %v3248
    %v3250 = vpop.xlane.xlu0 %3249
    %v3251 = vsel %vm576, %v3216, 0.0
    %3252 = vadd.xlane.f32.xlu0 %v3251
    %v3253 = vpop.xlane.xlu0 %3252
    %v3254 = vsel %vm576, %v3218, 0.0
    %3255 = vadd.xlane.f32.xlu0 %v3254
    %v3256 = vpop.xlane.xlu0 %3255
    %v3257 = vsel %vm576, %v3220, 0.0
    %3258 = vadd.xlane.f32.xlu0 %v3257
    %v3259 = vpop.xlane.xlu0 %3258
    %v3260 = vsel %vm576, %v3222, 0.0
    %3261 = vadd.xlane.f32.xlu0 %v3260
    %v3262 = vpop.xlane.xlu0 %3261
    %v3263 = vsel %vm576, %v3224, 0.0
    %3264 = vadd.xlane.f32.xlu0 %v3263
    %v3265 = vpop.xlane.xlu0 %3264
    %v3266 = vsel %vm576, %v3226, 0.0
    %3267 = vadd.xlane.f32.xlu0 %v3266
    %v3268 = vpop.xlane.xlu0 %3267
    %v3269 = vsel %vm576, %v3228, 0.0
    %3270 = vadd.xlane.f32.xlu0 %v3269
    %v3271 = vpop.xlane.xlu0 %3270
    %v3272 = vsel %vm576, %v3230, 0.0
    %3273 = vadd.xlane.f32.xlu0 %v3272
    %v3274 = vpop.xlane.xlu0 %3273
    %v3275 = vsel %vm576, %v3232, 0.0
    %3276 = vadd.xlane.f32.xlu0 %v3275
    %v3277 = vpop.xlane.xlu0 %3276
    %v3278 = vsel %vm576, %v3234, 0.0
    %3279 = vadd.xlane.f32.xlu0 %v3278
    %v3280 = vpop.xlane.xlu0 %3279
    %v3281 = vsel %vm576, %v3236, 0.0
    %3282 = vadd.xlane.f32.xlu0 %v3281
    %v3283 = vpop.xlane.xlu0 %3282
    %v3284 = vsel %vm576, %v3238, 0.0
    %3285 = vadd.xlane.f32.xlu0 %v3284
    %v3286 = vpop.xlane.xlu0 %3285
    %v3287 = vrcp.pop %v3241
    %v3288 = vrcp.pop %v3244
    %v3289 = vrcp.pop %v3247
    %v3290 = vrcp.pop %v3250
    %v3291 = vrcp.pop %v3253
    %v3292 = vrcp.pop %v3256
    %v3293 = vrcp.pop %v3259
    %v3294 = vrcp.pop %v3262
    %v3295 = vrcp.pop %v3265
    %v3296 = vrcp.pop %v3268
    %v3297 = vrcp.pop %v3271
    %v3298 = vrcp.pop %v3274
    %v3299 = vrcp.pop %v3277
    %v3300 = vrcp.pop %v3280
    %v3301 = vrcp.pop %v3283
    %v3302 = vrcp.pop %v3286
    %v3303 = vmul.f32 %v3208, %v3287
    %v3304 = vmul.f32 %v3210, %v3288
    %v3305 = vmul.f32 %v3212, %v3289
    %v3306 = vmul.f32 %v3214, %v3290
    %v3307 = vmul.f32 %v3216, %v3291
    %v3308 = vmul.f32 %v3218, %v3292
    %v3309 = vmul.f32 %v3220, %v3293
    %v3310 = vmul.f32 %v3222, %v3294
    %v3311 = vmul.f32 %v3224, %v3295
    %v3312 = vmul.f32 %v3226, %v3296
    %v3313 = vmul.f32 %v3228, %v3297
    %v3314 = vmul.f32 %v3230, %v3298
    %v3315 = vmul.f32 %v3232, %v3299
    %v3316 = vmul.f32 %v3234, %v3300
    %v3317 = vmul.f32 %v3236, %v3301
    %v3318 = vmul.f32 %v3238, %v3302
    %v3319 = vpack.c.bf16 %v3303, %v3303
    %v3320 = vpack.c.bf16 %v3304, %v3304
    %v3321 = vpack.c.bf16 %v3305, %v3305
    %v3322 = vpack.c.bf16 %v3306, %v3306
    %v3323 = vpack.c.bf16 %v3307, %v3307
    %v3324 = vpack.c.bf16 %v3308, %v3308
    %v3325 = vpack.c.bf16 %v3309, %v3309
    %v3326 = vpack.c.bf16 %v3310, %v3310
    %v3327 = vpack.c.bf16 %v3311, %v3311
    %v3328 = vpack.c.bf16 %v3312, %v3312
    %v3329 = vpack.c.bf16 %v3313, %v3313
    %v3330 = vpack.c.bf16 %v3314, %v3314
    %v3331 = vpack.c.bf16 %v3315, %v3315
    %v3332 = vpack.c.bf16 %v3316, %v3316
    %v3333 = vpack.c.bf16 %v3317, %v3317
    %v3334 = vpack.c.bf16 %v3318, %v3318
    %3335 = vrot.lane.b32.xlu0 %v557, 88
    %v3336 = vpop.permute.xlu0 %3335
    %v3338 = vsel %vm576, %v3319, 0
    %v3341 = vsel %vm251, %v3336, 0
    %3343 = vmatprep.subr.bf16.mxu0 0
    %3344 = vmatpush1.bf16.msra.mxu0 %v3341
    %3345 = vmatprep.subr.bf16.mxu0 0
    %3346 = vmatpush1.bf16.msra.mxu0 0
    %3347 = vmatprep.subr.bf16.mxu0 0
    %3348 = vmatpush1.bf16.msra.mxu0 0
    %3349 = vmatprep.subr.bf16.mxu0 0
    %3350 = vmatpush1.bf16.msra.mxu0 0
    %3351 = vmatprep.subr.bf16.mxu0 0
    %3352 = vmatpush1.bf16.msra.mxu0 0
    %3353 = vmatprep.subr.bf16.mxu0 0
    %3354 = vmatpush1.bf16.msra.mxu0 0
    %3355 = vmatprep.subr.bf16.mxu0 0
    %3356 = vmatpush1.bf16.msra.mxu0 0
    %3357 = vmatprep.subr.bf16.mxu0 0
    %3358 = vmatpush1.bf16.msra.mxu0 0
    %3359 = vmatprep.subr.bf16.mxu0 0
    %3360 = vmatpush1.bf16.msra.mxu0 0
    %3361 = vmatprep.subr.bf16.mxu0 0
    %3362 = vmatpush1.bf16.msra.mxu0 0
    %3363 = vmatprep.subr.bf16.mxu0 0
    %3364 = vmatpush1.bf16.msra.mxu0 0
    %3365 = vmatprep.subr.bf16.mxu0 0
    %3366 = vmatpush1.bf16.msra.mxu0 0
    %3367 = vmatprep.subr.bf16.mxu0 0
    %3368 = vmatpush1.bf16.msra.mxu0 0
    %3369 = vmatprep.subr.bf16.mxu0 0
    %3370 = vmatpush1.bf16.msra.mxu0 0
    %3371 = vmatprep.subr.bf16.mxu0 0
    %3372 = vmatpush1.bf16.msra.mxu0 0
    %3373 = vmatprep.subr.bf16.mxu0 0
    %3374 = vmatpush1.bf16.msra.mxu0 0
    %3375 = vmatprep.mubr.bf16.mxu0 0
    %3376 = vmatmul.mubr.bf16.gmra.mrb[0].mxu0 %v3338
    %v3377 = vpop.f32.mrb[0].mxu0
    %v3378 = vadd.f32 0.0, %v3377
    %v3379 = vpop.f32.mrb[0].mxu0
    %v3380 = vpop.f32.mrb[0].mxu0
    %v3381 = vpop.f32.mrb[0].mxu0
    %3382 = vdwg.mxu0
    %3383 = vrot.lane.b32.xlu0 %v558, 88
    %v3384 = vpop.permute.xlu0 %3383
    %v3386 = vsel %vm576, %v3320, 0
    %v3389 = vsel %vm251, %v3384, 0
    %3391 = vmatprep.subr.bf16.mxu0 0
    %3392 = vmatpush1.bf16.msra.mxu0 %v3389
    %3393 = vmatprep.subr.bf16.mxu0 0
    %3394 = vmatpush1.bf16.msra.mxu0 0
    %3395 = vmatprep.subr.bf16.mxu0 0
    %3396 = vmatpush1.bf16.msra.mxu0 0
    %3397 = vmatprep.subr.bf16.mxu0 0
    %3398 = vmatpush1.bf16.msra.mxu0 0
    %3399 = vmatprep.subr.bf16.mxu0 0
    %3400 = vmatpush1.bf16.msra.mxu0 0
    %3401 = vmatprep.subr.bf16.mxu0 0
    %3402 = vmatpush1.bf16.msra.mxu0 0
    %3403 = vmatprep.subr.bf16.mxu0 0
    %3404 = vmatpush1.bf16.msra.mxu0 0
    %3405 = vmatprep.subr.bf16.mxu0 0
    %3406 = vmatpush1.bf16.msra.mxu0 0
    %3407 = vmatprep.subr.bf16.mxu0 0
    %3408 = vmatpush1.bf16.msra.mxu0 0
    %3409 = vmatprep.subr.bf16.mxu0 0
    %3410 = vmatpush1.bf16.msra.mxu0 0
    %3411 = vmatprep.subr.bf16.mxu0 0
    %3412 = vmatpush1.bf16.msra.mxu0 0
    %3413 = vmatprep.subr.bf16.mxu0 0
    %3414 = vmatpush1.bf16.msra.mxu0 0
    %3415 = vmatprep.subr.bf16.mxu0 0
    %3416 = vmatpush1.bf16.msra.mxu0 0
    %3417 = vmatprep.subr.bf16.mxu0 0
    %3418 = vmatpush1.bf16.msra.mxu0 0
    %3419 = vmatprep.subr.bf16.mxu0 0
    %3420 = vmatpush1.bf16.msra.mxu0 0
    %3421 = vmatprep.subr.bf16.mxu0 0
    %3422 = vmatpush1.bf16.msra.mxu0 0
    %3423 = vmatprep.mubr.bf16.mxu0 0
    %3424 = vmatmul.mubr.bf16.gmra.mrb[0].mxu0 %v3386
    %v3425 = vpop.f32.mrb[0].mxu0
    %v3426 = vadd.f32 0.0, %v3425
    %v3427 = vpop.f32.mrb[0].mxu0
    %v3428 = vpop.f32.mrb[0].mxu0
    %v3429 = vpop.f32.mrb[0].mxu0
    %3430 = vdwg.mxu0
    %3431 = vrot.lane.b32.xlu0 %v559, 88
    %v3432 = vpop.permute.xlu0 %3431
    %v3434 = vsel %vm576, %v3321, 0
    %v3437 = vsel %vm251, %v3432, 0
    %3439 = vmatprep.subr.bf16.mxu0 0
    %3440 = vmatpush1.bf16.msra.mxu0 %v3437
    %3441 = vmatprep.subr.bf16.mxu0 0
    %3442 = vmatpush1.bf16.msra.mxu0 0
    %3443 = vmatprep.subr.bf16.mxu0 0
    %3444 = vmatpush1.bf16.msra.mxu0 0
    %3445 = vmatprep.subr.bf16.mxu0 0
    %3446 = vmatpush1.bf16.msra.mxu0 0
    %3447 = vmatprep.subr.bf16.mxu0 0
    %3448 = vmatpush1.bf16.msra.mxu0 0
    %3449 = vmatprep.subr.bf16.mxu0 0
    %3450 = vmatpush1.bf16.msra.mxu0 0
    %3451 = vmatprep.subr.bf16.mxu0 0
    %3452 = vmatpush1.bf16.msra.mxu0 0
    %3453 = vmatprep.subr.bf16.mxu0 0
    %3454 = vmatpush1.bf16.msra.mxu0 0
    %3455 = vmatprep.subr.bf16.mxu0 0
    %3456 = vmatpush1.bf16.msra.mxu0 0
    %3457 = vmatprep.subr.bf16.mxu0 0
    %3458 = vmatpush1.bf16.msra.mxu0 0
    %3459 = vmatprep.subr.bf16.mxu0 0
    %3460 = vmatpush1.bf16.msra.mxu0 0
    %3461 = vmatprep.subr.bf16.mxu0 0
    %3462 = vmatpush1.bf16.msra.mxu0 0
    %3463 = vmatprep.subr.bf16.mxu0 0
    %3464 = vmatpush1.bf16.msra.mxu0 0
    %3465 = vmatprep.subr.bf16.mxu0 0
    %3466 = vmatpush1.bf16.msra.mxu0 0
    %3467 = vmatprep.subr.bf16.mxu0 0
    %3468 = vmatpush1.bf16.msra.mxu0 0
    %3469 = vmatprep.subr.bf16.mxu0 0
    %3470 = vmatpush1.bf16.msra.mxu0 0
    %3471 = vmatprep.mubr.bf16.mxu0 0
    %3472 = vmatmul.mubr.bf16.gmra.mrb[0].mxu0 %v3434
    %v3473 = vpop.f32.mrb[0].mxu0
    %v3474 = vadd.f32 0.0, %v3473
    %v3475 = vpop.f32.mrb[0].mxu0
    %v3476 = vpop.f32.mrb[0].mxu0
    %v3477 = vpop.f32.mrb[0].mxu0
    %3478 = vdwg.mxu0
    %3479 = vrot.lane.b32.xlu0 %v560, 88
    %v3480 = vpop.permute.xlu0 %3479
    %v3482 = vsel %vm576, %v3322, 0
    %v3485 = vsel %vm251, %v3480, 0
    %3487 = vmatprep.subr.bf16.mxu0 0
    %3488 = vmatpush1.bf16.msra.mxu0 %v3485
    %3489 = vmatprep.subr.bf16.mxu0 0
    %3490 = vmatpush1.bf16.msra.mxu0 0
    %3491 = vmatprep.subr.bf16.mxu0 0
    %3492 = vmatpush1.bf16.msra.mxu0 0
    %3493 = vmatprep.subr.bf16.mxu0 0
    %3494 = vmatpush1.bf16.msra.mxu0 0
    %3495 = vmatprep.subr.bf16.mxu0 0
    %3496 = vmatpush1.bf16.msra.mxu0 0
    %3497 = vmatprep.subr.bf16.mxu0 0
    %3498 = vmatpush1.bf16.msra.mxu0 0
    %3499 = vmatprep.subr.bf16.mxu0 0
    %3500 = vmatpush1.bf16.msra.mxu0 0
    %3501 = vmatprep.subr.bf16.mxu0 0
    %3502 = vmatpush1.bf16.msra.mxu0 0
    %3503 = vmatprep.subr.bf16.mxu0 0
    %3504 = vmatpush1.bf16.msra.mxu0 0
    %3505 = vmatprep.subr.bf16.mxu0 0
    %3506 = vmatpush1.bf16.msra.mxu0 0
    %3507 = vmatprep.subr.bf16.mxu0 0
    %3508 = vmatpush1.bf16.msra.mxu0 0
    %3509 = vmatprep.subr.bf16.mxu0 0
    %3510 = vmatpush1.bf16.msra.mxu0 0
    %3511 = vmatprep.subr.bf16.mxu0 0
    %3512 = vmatpush1.bf16.msra.mxu0 0
    %3513 = vmatprep.subr.bf16.mxu0 0
    %3514 = vmatpush1.bf16.msra.mxu0 0
    %3515 = vmatprep.subr.bf16.mxu0 0
    %3516 = vmatpush1.bf16.msra.mxu0 0
    %3517 = vmatprep.subr.bf16.mxu0 0
    %3518 = vmatpush1.bf16.msra.mxu0 0
    %3519 = vmatprep.mubr.bf16.mxu0 0
    %3520 = vmatmul.mubr.bf16.gmra.mrb[0].mxu0 %v3482
    %v3521 = vpop.f32.mrb[0].mxu0
    %v3522 = vadd.f32 0.0, %v3521
    %v3523 = vpop.f32.mrb[0].mxu0
    %v3524 = vpop.f32.mrb[0].mxu0
    %v3525 = vpop.f32.mrb[0].mxu0
    %3526 = vdwg.mxu0
    %3527 = vrot.lane.b32.xlu0 %v561, 88
    %v3528 = vpop.permute.xlu0 %3527
    %v3530 = vsel %vm576, %v3323, 0
    %v3533 = vsel %vm251, %v3528, 0
    %3535 = vmatprep.subr.bf16.mxu0 0
    %3536 = vmatpush1.bf16.msra.mxu0 %v3533
    %3537 = vmatprep.subr.bf16.mxu0 0
    %3538 = vmatpush1.bf16.msra.mxu0 0
    %3539 = vmatprep.subr.bf16.mxu0 0
    %3540 = vmatpush1.bf16.msra.mxu0 0
    %3541 = vmatprep.subr.bf16.mxu0 0
    %3542 = vmatpush1.bf16.msra.mxu0 0
    %3543 = vmatprep.subr.bf16.mxu0 0
    %3544 = vmatpush1.bf16.msra.mxu0 0
    %3545 = vmatprep.subr.bf16.mxu0 0
    %3546 = vmatpush1.bf16.msra.mxu0 0
    %3547 = vmatprep.subr.bf16.mxu0 0
    %3548 = vmatpush1.bf16.msra.mxu0 0
    %3549 = vmatprep.subr.bf16.mxu0 0
    %3550 = vmatpush1.bf16.msra.mxu0 0
    %3551 = vmatprep.subr.bf16.mxu0 0
    %3552 = vmatpush1.bf16.msra.mxu0 0
    %3553 = vmatprep.subr.bf16.mxu0 0
    %3554 = vmatpush1.bf16.msra.mxu0 0
    %3555 = vmatprep.subr.bf16.mxu0 0
    %3556 = vmatpush1.bf16.msra.mxu0 0
    %3557 = vmatprep.subr.bf16.mxu0 0
    %3558 = vmatpush1.bf16.msra.mxu0 0
    %3559 = vmatprep.subr.bf16.mxu0 0
    %3560 = vmatpush1.bf16.msra.mxu0 0
    %3561 = vmatprep.subr.bf16.mxu0 0
    %3562 = vmatpush1.bf16.msra.mxu0 0
    %3563 = vmatprep.subr.bf16.mxu0 0
    %3564 = vmatpush1.bf16.msra.mxu0 0
    %3565 = vmatprep.subr.bf16.mxu0 0
    %3566 = vmatpush1.bf16.msra.mxu0 0
    %3567 = vmatprep.mubr.bf16.mxu0 0
    %3568 = vmatmul.mubr.bf16.gmra.mrb[0].mxu0 %v3530
    %v3569 = vpop.f32.mrb[0].mxu0
    %v3570 = vadd.f32 0.0, %v3569
    %v3571 = vpop.f32.mrb[0].mxu0
    %v3572 = vpop.f32.mrb[0].mxu0
    %v3573 = vpop.f32.mrb[0].mxu0
    %3574 = vdwg.mxu0
    %3575 = vrot.lane.b32.xlu0 %v562, 88
    %v3576 = vpop.permute.xlu0 %3575
    %v3578 = vsel %vm576, %v3324, 0
    %v3581 = vsel %vm251, %v3576, 0
    %3583 = vmatprep.subr.bf16.mxu0 0
    %3584 = vmatpush1.bf16.msra.mxu0 %v3581
    %3585 = vmatprep.subr.bf16.mxu0 0
    %3586 = vmatpush1.bf16.msra.mxu0 0
    %3587 = vmatprep.subr.bf16.mxu0 0
    %3588 = vmatpush1.bf16.msra.mxu0 0
    %3589 = vmatprep.subr.bf16.mxu0 0
    %3590 = vmatpush1.bf16.msra.mxu0 0
    %3591 = vmatprep.subr.bf16.mxu0 0
    %3592 = vmatpush1.bf16.msra.mxu0 0
    %3593 = vmatprep.subr.bf16.mxu0 0
    %3594 = vmatpush1.bf16.msra.mxu0 0
    %3595 = vmatprep.subr.bf16.mxu0 0
    %3596 = vmatpush1.bf16.msra.mxu0 0
    %3597 = vmatprep.subr.bf16.mxu0 0
    %3598 = vmatpush1.bf16.msra.mxu0 0
    %3599 = vmatprep.subr.bf16.mxu0 0
    %3600 = vmatpush1.bf16.msra.mxu0 0
    %3601 = vmatprep.subr.bf16.mxu0 0
    %3602 = vmatpush1.bf16.msra.mxu0 0
    %3603 = vmatprep.subr.bf16.mxu0 0
    %3604 = vmatpush1.bf16.msra.mxu0 0
    %3605 = vmatprep.subr.bf16.mxu0 0
    %3606 = vmatpush1.bf16.msra.mxu0 0
    %3607 = vmatprep.subr.bf16.mxu0 0
    %3608 = vmatpush1.bf16.msra.mxu0 0
    %3609 = vmatprep.subr.bf16.mxu0 0
    %3610 = vmatpush1.bf16.msra.mxu0 0
    %3611 = vmatprep.subr.bf16.mxu0 0
    %3612 = vmatpush1.bf16.msra.mxu0 0
    %3613 = vmatprep.subr.bf16.mxu0 0
    %3614 = vmatpush1.bf16.msra.mxu0 0
    %3615 = vmatprep.mubr.bf16.mxu0 0
    %3616 = vmatmul.mubr.bf16.gmra.mrb[0].mxu0 %v3578
    %v3617 = vpop.f32.mrb[0].mxu0
    %v3618 = vadd.f32 0.0, %v3617
    %v3619 = vpop.f32.mrb[0].mxu0
    %v3620 = vpop.f32.mrb[0].mxu0
    %v3621 = vpop.f32.mrb[0].mxu0
    %3622 = vdwg.mxu0
    %3623 = vrot.lane.b32.xlu0 %v563, 88
    %v3624 = vpop.permute.xlu0 %3623
    %v3626 = vsel %vm576, %v3325, 0
    %v3629 = vsel %vm251, %v3624, 0
    %3631 = vmatprep.subr.bf16.mxu0 0
    %3632 = vmatpush1.bf16.msra.mxu0 %v3629
    %3633 = vmatprep.subr.bf16.mxu0 0
    %3634 = vmatpush1.bf16.msra.mxu0 0
    %3635 = vmatprep.subr.bf16.mxu0 0
    %3636 = vmatpush1.bf16.msra.mxu0 0
    %3637 = vmatprep.subr.bf16.mxu0 0
    %3638 = vmatpush1.bf16.msra.mxu0 0
    %3639 = vmatprep.subr.bf16.mxu0 0
    %3640 = vmatpush1.bf16.msra.mxu0 0
    %3641 = vmatprep.subr.bf16.mxu0 0
    %3642 = vmatpush1.bf16.msra.mxu0 0
    %3643 = vmatprep.subr.bf16.mxu0 0
    %3644 = vmatpush1.bf16.msra.mxu0 0
    %3645 = vmatprep.subr.bf16.mxu0 0
    %3646 = vmatpush1.bf16.msra.mxu0 0
    %3647 = vmatprep.subr.bf16.mxu0 0
    %3648 = vmatpush1.bf16.msra.mxu0 0
    %3649 = vmatprep.subr.bf16.mxu0 0
    %3650 = vmatpush1.bf16.msra.mxu0 0
    %3651 = vmatprep.subr.bf16.mxu0 0
    %3652 = vmatpush1.bf16.msra.mxu0 0
    %3653 = vmatprep.subr.bf16.mxu0 0
    %3654 = vmatpush1.bf16.msra.mxu0 0
    %3655 = vmatprep.subr.bf16.mxu0 0
    %3656 = vmatpush1.bf16.msra.mxu0 0
    %3657 = vmatprep.subr.bf16.mxu0 0
    %3658 = vmatpush1.bf16.msra.mxu0 0
    %3659 = vmatprep.subr.bf16.mxu0 0
    %3660 = vmatpush1.bf16.msra.mxu0 0
    %3661 = vmatprep.subr.bf16.mxu0 0
    %3662 = vmatpush1.bf16.msra.mxu0 0
    %3663 = vmatprep.mubr.bf16.mxu0 0
    %3664 = vmatmul.mubr.bf16.gmra.mrb[0].mxu0 %v3626
    %v3665 = vpop.f32.mrb[0].mxu0
    %v3666 = vadd.f32 0.0, %v3665
    %v3667 = vpop.f32.mrb[0].mxu0
    %v3668 = vpop.f32.mrb[0].mxu0
    %v3669 = vpop.f32.mrb[0].mxu0
    %3670 = vdwg.mxu0
    %3671 = vrot.lane.b32.xlu0 %v564, 88
    %v3672 = vpop.permute.xlu0 %3671
    %v3674 = vsel %vm576, %v3326, 0
    %v3677 = vsel %vm251, %v3672, 0
    %3679 = vmatprep.subr.bf16.mxu0 0
    %3680 = vmatpush1.bf16.msra.mxu0 %v3677
    %3681 = vmatprep.subr.bf16.mxu0 0
    %3682 = vmatpush1.bf16.msra.mxu0 0
    %3683 = vmatprep.subr.bf16.mxu0 0
    %3684 = vmatpush1.bf16.msra.mxu0 0
    %3685 = vmatprep.subr.bf16.mxu0 0
    %3686 = vmatpush1.bf16.msra.mxu0 0
    %3687 = vmatprep.subr.bf16.mxu0 0
    %3688 = vmatpush1.bf16.msra.mxu0 0
    %3689 = vmatprep.subr.bf16.mxu0 0
    %3690 = vmatpush1.bf16.msra.mxu0 0
    %3691 = vmatprep.subr.bf16.mxu0 0
    %3692 = vmatpush1.bf16.msra.mxu0 0
    %3693 = vmatprep.subr.bf16.mxu0 0
    %3694 = vmatpush1.bf16.msra.mxu0 0
    %3695 = vmatprep.subr.bf16.mxu0 0
    %3696 = vmatpush1.bf16.msra.mxu0 0
    %3697 = vmatprep.subr.bf16.mxu0 0
    %3698 = vmatpush1.bf16.msra.mxu0 0
    %3699 = vmatprep.subr.bf16.mxu0 0
    %3700 = vmatpush1.bf16.msra.mxu0 0
    %3701 = vmatprep.subr.bf16.mxu0 0
    %3702 = vmatpush1.bf16.msra.mxu0 0
    %3703 = vmatprep.subr.bf16.mxu0 0
    %3704 = vmatpush1.bf16.msra.mxu0 0
    %3705 = vmatprep.subr.bf16.mxu0 0
    %3706 = vmatpush1.bf16.msra.mxu0 0
    %3707 = vmatprep.subr.bf16.mxu0 0
    %3708 = vmatpush1.bf16.msra.mxu0 0
    %3709 = vmatprep.subr.bf16.mxu0 0
    %3710 = vmatpush1.bf16.msra.mxu0 0
    %3711 = vmatprep.mubr.bf16.mxu0 0
    %3712 = vmatmul.mubr.bf16.gmra.mrb[0].mxu0 %v3674
    %v3713 = vpop.f32.mrb[0].mxu0
    %v3714 = vadd.f32 0.0, %v3713
    %v3715 = vpop.f32.mrb[0].mxu0
    %v3716 = vpop.f32.mrb[0].mxu0
    %v3717 = vpop.f32.mrb[0].mxu0
    %3718 = vdwg.mxu0
    %3719 = vrot.lane.b32.xlu0 %v565, 88
    %v3720 = vpop.permute.xlu0 %3719
    %v3722 = vsel %vm576, %v3327, 0
    %v3725 = vsel %vm251, %v3720, 0
    %3727 = vmatprep.subr.bf16.mxu0 0
    %3728 = vmatpush1.bf16.msra.mxu0 %v3725
    %3729 = vmatprep.subr.bf16.mxu0 0
    %3730 = vmatpush1.bf16.msra.mxu0 0
    %3731 = vmatprep.subr.bf16.mxu0 0
    %3732 = vmatpush1.bf16.msra.mxu0 0
    %3733 = vmatprep.subr.bf16.mxu0 0
    %3734 = vmatpush1.bf16.msra.mxu0 0
    %3735 = vmatprep.subr.bf16.mxu0 0
    %3736 = vmatpush1.bf16.msra.mxu0 0
    %3737 = vmatprep.subr.bf16.mxu0 0
    %3738 = vmatpush1.bf16.msra.mxu0 0
    %3739 = vmatprep.subr.bf16.mxu0 0
    %3740 = vmatpush1.bf16.msra.mxu0 0
    %3741 = vmatprep.subr.bf16.mxu0 0
    %3742 = vmatpush1.bf16.msra.mxu0 0
    %3743 = vmatprep.subr.bf16.mxu0 0
    %3744 = vmatpush1.bf16.msra.mxu0 0
    %3745 = vmatprep.subr.bf16.mxu0 0
    %3746 = vmatpush1.bf16.msra.mxu0 0
    %3747 = vmatprep.subr.bf16.mxu0 0
    %3748 = vmatpush1.bf16.msra.mxu0 0
    %3749 = vmatprep.subr.bf16.mxu0 0
    %3750 = vmatpush1.bf16.msra.mxu0 0
    %3751 = vmatprep.subr.bf16.mxu0 0
    %3752 = vmatpush1.bf16.msra.mxu0 0
    %3753 = vmatprep.subr.bf16.mxu0 0
    %3754 = vmatpush1.bf16.msra.mxu0 0
    %3755 = vmatprep.subr.bf16.mxu0 0
    %3756 = vmatpush1.bf16.msra.mxu0 0
    %3757 = vmatprep.subr.bf16.mxu0 0
    %3758 = vmatpush1.bf16.msra.mxu0 0
    %3759 = vmatprep.mubr.bf16.mxu0 0
    %3760 = vmatmul.mubr.bf16.gmra.mrb[0].mxu0 %v3722
    %v3761 = vpop.f32.mrb[0].mxu0
    %v3762 = vadd.f32 0.0, %v3761
    %v3763 = vpop.f32.mrb[0].mxu0
    %v3764 = vpop.f32.mrb[0].mxu0
    %v3765 = vpop.f32.mrb[0].mxu0
    %3766 = vdwg.mxu0
    %3767 = vrot.lane.b32.xlu0 %v566, 88
    %v3768 = vpop.permute.xlu0 %3767
    %v3770 = vsel %vm576, %v3328, 0
    %v3773 = vsel %vm251, %v3768, 0
    %3775 = vmatprep.subr.bf16.mxu0 0
    %3776 = vmatpush1.bf16.msra.mxu0 %v3773
    %3777 = vmatprep.subr.bf16.mxu0 0
    %3778 = vmatpush1.bf16.msra.mxu0 0
    %3779 = vmatprep.subr.bf16.mxu0 0
    %3780 = vmatpush1.bf16.msra.mxu0 0
    %3781 = vmatprep.subr.bf16.mxu0 0
    %3782 = vmatpush1.bf16.msra.mxu0 0
    %3783 = vmatprep.subr.bf16.mxu0 0
    %3784 = vmatpush1.bf16.msra.mxu0 0
    %3785 = vmatprep.subr.bf16.mxu0 0
    %3786 = vmatpush1.bf16.msra.mxu0 0
    %3787 = vmatprep.subr.bf16.mxu0 0
    %3788 = vmatpush1.bf16.msra.mxu0 0
    %3789 = vmatprep.subr.bf16.mxu0 0
    %3790 = vmatpush1.bf16.msra.mxu0 0
    %3791 = vmatprep.subr.bf16.mxu0 0
    %3792 = vmatpush1.bf16.msra.mxu0 0
    %3793 = vmatprep.subr.bf16.mxu0 0
    %3794 = vmatpush1.bf16.msra.mxu0 0
    %3795 = vmatprep.subr.bf16.mxu0 0
    %3796 = vmatpush1.bf16.msra.mxu0 0
    %3797 = vmatprep.subr.bf16.mxu0 0
    %3798 = vmatpush1.bf16.msra.mxu0 0
    %3799 = vmatprep.subr.bf16.mxu0 0
    %3800 = vmatpush1.bf16.msra.mxu0 0
    %3801 = vmatprep.subr.bf16.mxu0 0
    %3802 = vmatpush1.bf16.msra.mxu0 0
    %3803 = vmatprep.subr.bf16.mxu0 0
    %3804 = vmatpush1.bf16.msra.mxu0 0
    %3805 = vmatprep.subr.bf16.mxu0 0
    %3806 = vmatpush1.bf16.msra.mxu0 0
    %3807 = vmatprep.mubr.bf16.mxu0 0
    %3808 = vmatmul.mubr.bf16.gmra.mrb[0].mxu0 %v3770
    %v3809 = vpop.f32.mrb[0].mxu0
    %v3810 = vadd.f32 0.0, %v3809
    %v3811 = vpop.f32.mrb[0].mxu0
    %v3812 = vpop.f32.mrb[0].mxu0
    %v3813 = vpop.f32.mrb[0].mxu0
    %3814 = vdwg.mxu0
    %3815 = vrot.lane.b32.xlu0 %v567, 88
    %v3816 = vpop.permute.xlu0 %3815
    %v3818 = vsel %vm576, %v3329, 0
    %v3821 = vsel %vm251, %v3816, 0
    %3823 = vmatprep.subr.bf16.mxu0 0
    %3824 = vmatpush1.bf16.msra.mxu0 %v3821
    %3825 = vmatprep.subr.bf16.mxu0 0
    %3826 = vmatpush1.bf16.msra.mxu0 0
    %3827 = vmatprep.subr.bf16.mxu0 0
    %3828 = vmatpush1.bf16.msra.mxu0 0
    %3829 = vmatprep.subr.bf16.mxu0 0
    %3830 = vmatpush1.bf16.msra.mxu0 0
    %3831 = vmatprep.subr.bf16.mxu0 0
    %3832 = vmatpush1.bf16.msra.mxu0 0
    %3833 = vmatprep.subr.bf16.mxu0 0
    %3834 = vmatpush1.bf16.msra.mxu0 0
    %3835 = vmatprep.subr.bf16.mxu0 0
    %3836 = vmatpush1.bf16.msra.mxu0 0
    %3837 = vmatprep.subr.bf16.mxu0 0
    %3838 = vmatpush1.bf16.msra.mxu0 0
    %3839 = vmatprep.subr.bf16.mxu0 0
    %3840 = vmatpush1.bf16.msra.mxu0 0
    %3841 = vmatprep.subr.bf16.mxu0 0
    %3842 = vmatpush1.bf16.msra.mxu0 0
    %3843 = vmatprep.subr.bf16.mxu0 0
    %3844 = vmatpush1.bf16.msra.mxu0 0
    %3845 = vmatprep.subr.bf16.mxu0 0
    %3846 = vmatpush1.bf16.msra.mxu0 0
    %3847 = vmatprep.subr.bf16.mxu0 0
    %3848 = vmatpush1.bf16.msra.mxu0 0
    %3849 = vmatprep.subr.bf16.mxu0 0
    %3850 = vmatpush1.bf16.msra.mxu0 0
    %3851 = vmatprep.subr.bf16.mxu0 0
    %3852 = vmatpush1.bf16.msra.mxu0 0
    %3853 = vmatprep.subr.bf16.mxu0 0
    %3854 = vmatpush1.bf16.msra.mxu0 0
    %3855 = vmatprep.mubr.bf16.mxu0 0
    %3856 = vmatmul.mubr.bf16.gmra.mrb[0].mxu0 %v3818
    %v3857 = vpop.f32.mrb[0].mxu0
    %v3858 = vadd.f32 0.0, %v3857
    %v3859 = vpop.f32.mrb[0].mxu0
    %v3860 = vpop.f32.mrb[0].mxu0
    %v3861 = vpop.f32.mrb[0].mxu0
    %3862 = vdwg.mxu0
    %3863 = vrot.lane.b32.xlu0 %v568, 88
    %v3864 = vpop.permute.xlu0 %3863
    %v3866 = vsel %vm576, %v3330, 0
    %v3869 = vsel %vm251, %v3864, 0
    %3871 = vmatprep.subr.bf16.mxu0 0
    %3872 = vmatpush1.bf16.msra.mxu0 %v3869
    %3873 = vmatprep.subr.bf16.mxu0 0
    %3874 = vmatpush1.bf16.msra.mxu0 0
    %3875 = vmatprep.subr.bf16.mxu0 0
    %3876 = vmatpush1.bf16.msra.mxu0 0
    %3877 = vmatprep.subr.bf16.mxu0 0
    %3878 = vmatpush1.bf16.msra.mxu0 0
    %3879 = vmatprep.subr.bf16.mxu0 0
    %3880 = vmatpush1.bf16.msra.mxu0 0
    %3881 = vmatprep.subr.bf16.mxu0 0
    %3882 = vmatpush1.bf16.msra.mxu0 0
    %3883 = vmatprep.subr.bf16.mxu0 0
    %3884 = vmatpush1.bf16.msra.mxu0 0
    %3885 = vmatprep.subr.bf16.mxu0 0
    %3886 = vmatpush1.bf16.msra.mxu0 0
    %3887 = vmatprep.subr.bf16.mxu0 0
    %3888 = vmatpush1.bf16.msra.mxu0 0
    %3889 = vmatprep.subr.bf16.mxu0 0
    %3890 = vmatpush1.bf16.msra.mxu0 0
    %3891 = vmatprep.subr.bf16.mxu0 0
    %3892 = vmatpush1.bf16.msra.mxu0 0
    %3893 = vmatprep.subr.bf16.mxu0 0
    %3894 = vmatpush1.bf16.msra.mxu0 0
    %3895 = vmatprep.subr.bf16.mxu0 0
    %3896 = vmatpush1.bf16.msra.mxu0 0
    %3897 = vmatprep.subr.bf16.mxu0 0
    %3898 = vmatpush1.bf16.msra.mxu0 0
    %3899 = vmatprep.subr.bf16.mxu0 0
    %3900 = vmatpush1.bf16.msra.mxu0 0
    %3901 = vmatprep.subr.bf16.mxu0 0
    %3902 = vmatpush1.bf16.msra.mxu0 0
    %3903 = vmatprep.mubr.bf16.mxu0 0
    %3904 = vmatmul.mubr.bf16.gmra.mrb[0].mxu0 %v3866
    %v3905 = vpop.f32.mrb[0].mxu0
    %v3906 = vadd.f32 0.0, %v3905
    %v3907 = vpop.f32.mrb[0].mxu0
    %v3908 = vpop.f32.mrb[0].mxu0
    %v3909 = vpop.f32.mrb[0].mxu0
    %3910 = vdwg.mxu0
    %3911 = vrot.lane.b32.xlu0 %v569, 88
    %v3912 = vpop.permute.xlu0 %3911
    %v3914 = vsel %vm576, %v3331, 0
    %v3917 = vsel %vm251, %v3912, 0
    %3919 = vmatprep.subr.bf16.mxu0 0
    %3920 = vmatpush1.bf16.msra.mxu0 %v3917
    %3921 = vmatprep.subr.bf16.mxu0 0
    %3922 = vmatpush1.bf16.msra.mxu0 0
    %3923 = vmatprep.subr.bf16.mxu0 0
    %3924 = vmatpush1.bf16.msra.mxu0 0
    %3925 = vmatprep.subr.bf16.mxu0 0
    %3926 = vmatpush1.bf16.msra.mxu0 0
    %3927 = vmatprep.subr.bf16.mxu0 0
    %3928 = vmatpush1.bf16.msra.mxu0 0
    %3929 = vmatprep.subr.bf16.mxu0 0
    %3930 = vmatpush1.bf16.msra.mxu0 0
    %3931 = vmatprep.subr.bf16.mxu0 0
    %3932 = vmatpush1.bf16.msra.mxu0 0
    %3933 = vmatprep.subr.bf16.mxu0 0
    %3934 = vmatpush1.bf16.msra.mxu0 0
    %3935 = vmatprep.subr.bf16.mxu0 0
    %3936 = vmatpush1.bf16.msra.mxu0 0
    %3937 = vmatprep.subr.bf16.mxu0 0
    %3938 = vmatpush1.bf16.msra.mxu0 0
    %3939 = vmatprep.subr.bf16.mxu0 0
    %3940 = vmatpush1.bf16.msra.mxu0 0
    %3941 = vmatprep.subr.bf16.mxu0 0
    %3942 = vmatpush1.bf16.msra.mxu0 0
    %3943 = vmatprep.subr.bf16.mxu0 0
    %3944 = vmatpush1.bf16.msra.mxu0 0
    %3945 = vmatprep.subr.bf16.mxu0 0
    %3946 = vmatpush1.bf16.msra.mxu0 0
    %3947 = vmatprep.subr.bf16.mxu0 0
    %3948 = vmatpush1.bf16.msra.mxu0 0
    %3949 = vmatprep.subr.bf16.mxu0 0
    %3950 = vmatpush1.bf16.msra.mxu0 0
    %3951 = vmatprep.mubr.bf16.mxu0 0
    %3952 = vmatmul.mubr.bf16.gmra.mrb[0].mxu0 %v3914
    %v3953 = vpop.f32.mrb[0].mxu0
    %v3954 = vadd.f32 0.0, %v3953
    %v3955 = vpop.f32.mrb[0].mxu0
    %v3956 = vpop.f32.mrb[0].mxu0
    %v3957 = vpop.f32.mrb[0].mxu0
    %3958 = vdwg.mxu0
    %3959 = vrot.lane.b32.xlu0 %v570, 88
    %v3960 = vpop.permute.xlu0 %3959
    %v3962 = vsel %vm576, %v3332, 0
    %v3965 = vsel %vm251, %v3960, 0
    %3967 = vmatprep.subr.bf16.mxu0 0
    %3968 = vmatpush1.bf16.msra.mxu0 %v3965
    %3969 = vmatprep.subr.bf16.mxu0 0
    %3970 = vmatpush1.bf16.msra.mxu0 0
    %3971 = vmatprep.subr.bf16.mxu0 0
    %3972 = vmatpush1.bf16.msra.mxu0 0
    %3973 = vmatprep.subr.bf16.mxu0 0
    %3974 = vmatpush1.bf16.msra.mxu0 0
    %3975 = vmatprep.subr.bf16.mxu0 0
    %3976 = vmatpush1.bf16.msra.mxu0 0
    %3977 = vmatprep.subr.bf16.mxu0 0
    %3978 = vmatpush1.bf16.msra.mxu0 0
    %3979 = vmatprep.subr.bf16.mxu0 0
    %3980 = vmatpush1.bf16.msra.mxu0 0
    %3981 = vmatprep.subr.bf16.mxu0 0
    %3982 = vmatpush1.bf16.msra.mxu0 0
    %3983 = vmatprep.subr.bf16.mxu0 0
    %3984 = vmatpush1.bf16.msra.mxu0 0
    %3985 = vmatprep.subr.bf16.mxu0 0
    %3986 = vmatpush1.bf16.msra.mxu0 0
    %3987 = vmatprep.subr.bf16.mxu0 0
    %3988 = vmatpush1.bf16.msra.mxu0 0
    %3989 = vmatprep.subr.bf16.mxu0 0
    %3990 = vmatpush1.bf16.msra.mxu0 0
    %3991 = vmatprep.subr.bf16.mxu0 0
    %3992 = vmatpush1.bf16.msra.mxu0 0
    %3993 = vmatprep.subr.bf16.mxu0 0
    %3994 = vmatpush1.bf16.msra.mxu0 0
    %3995 = vmatprep.subr.bf16.mxu0 0
    %3996 = vmatpush1.bf16.msra.mxu0 0
    %3997 = vmatprep.subr.bf16.mxu0 0
    %3998 = vmatpush1.bf16.msra.mxu0 0
    %3999 = vmatprep.mubr.bf16.mxu0 0
    %4000 = vmatmul.mubr.bf16.gmra.mrb[0].mxu0 %v3962
    %v4001 = vpop.f32.mrb[0].mxu0
    %v4002 = vadd.f32 0.0, %v4001
    %v4003 = vpop.f32.mrb[0].mxu0
    %v4004 = vpop.f32.mrb[0].mxu0
    %v4005 = vpop.f32.mrb[0].mxu0
    %4006 = vdwg.mxu0
    %4007 = vrot.lane.b32.xlu0 %v571, 88
    %v4008 = vpop.permute.xlu0 %4007
    %v4010 = vsel %vm576, %v3333, 0
    %v4013 = vsel %vm251, %v4008, 0
    %4015 = vmatprep.subr.bf16.mxu0 0
    %4016 = vmatpush1.bf16.msra.mxu0 %v4013
    %4017 = vmatprep.subr.bf16.mxu0 0
    %4018 = vmatpush1.bf16.msra.mxu0 0
    %4019 = vmatprep.subr.bf16.mxu0 0
    %4020 = vmatpush1.bf16.msra.mxu0 0
    %4021 = vmatprep.subr.bf16.mxu0 0
    %4022 = vmatpush1.bf16.msra.mxu0 0
    %4023 = vmatprep.subr.bf16.mxu0 0
    %4024 = vmatpush1.bf16.msra.mxu0 0
    %4025 = vmatprep.subr.bf16.mxu0 0
    %4026 = vmatpush1.bf16.msra.mxu0 0
    %4027 = vmatprep.subr.bf16.mxu0 0
    %4028 = vmatpush1.bf16.msra.mxu0 0
    %4029 = vmatprep.subr.bf16.mxu0 0
    %4030 = vmatpush1.bf16.msra.mxu0 0
    %4031 = vmatprep.subr.bf16.mxu0 0
    %4032 = vmatpush1.bf16.msra.mxu0 0
    %4033 = vmatprep.subr.bf16.mxu0 0
    %4034 = vmatpush1.bf16.msra.mxu0 0
    %4035 = vmatprep.subr.bf16.mxu0 0
    %4036 = vmatpush1.bf16.msra.mxu0 0
    %4037 = vmatprep.subr.bf16.mxu0 0
    %4038 = vmatpush1.bf16.msra.mxu0 0
    %4039 = vmatprep.subr.bf16.mxu0 0
    %4040 = vmatpush1.bf16.msra.mxu0 0
    %4041 = vmatprep.subr.bf16.mxu0 0
    %4042 = vmatpush1.bf16.msra.mxu0 0
    %4043 = vmatprep.subr.bf16.mxu0 0
    %4044 = vmatpush1.bf16.msra.mxu0 0
    %4045 = vmatprep.subr.bf16.mxu0 0
    %4046 = vmatpush1.bf16.msra.mxu0 0
    %4047 = vmatprep.mubr.bf16.mxu0 0
    %4048 = vmatmul.mubr.bf16.gmra.mrb[0].mxu0 %v4010
    %v4049 = vpop.f32.mrb[0].mxu0
    %v4050 = vadd.f32 0.0, %v4049
    %v4051 = vpop.f32.mrb[0].mxu0
    %v4052 = vpop.f32.mrb[0].mxu0
    %v4053 = vpop.f32.mrb[0].mxu0
    %4054 = vdwg.mxu0
    %4055 = vrot.lane.b32.xlu0 %v572, 88
    %v4056 = vpop.permute.xlu0 %4055
    %v4058 = vsel %vm576, %v3334, 0
    %v4061 = vsel %vm251, %v4056, 0
    %4063 = vmatprep.subr.bf16.mxu0 0
    %4064 = vmatpush1.bf16.msra.mxu0 %v4061
    %4065 = vmatprep.subr.bf16.mxu0 0
    %4066 = vmatpush1.bf16.msra.mxu0 0
    %4067 = vmatprep.subr.bf16.mxu0 0
    %4068 = vmatpush1.bf16.msra.mxu0 0
    %4069 = vmatprep.subr.bf16.mxu0 0
    %4070 = vmatpush1.bf16.msra.mxu0 0
    %4071 = vmatprep.subr.bf16.mxu0 0
    %4072 = vmatpush1.bf16.msra.mxu0 0
    %4073 = vmatprep.subr.bf16.mxu0 0
    %4074 = vmatpush1.bf16.msra.mxu0 0
    %4075 = vmatprep.subr.bf16.mxu0 0
    %4076 = vmatpush1.bf16.msra.mxu0 0
    %4077 = vmatprep.subr.bf16.mxu0 0
    %4078 = vmatpush1.bf16.msra.mxu0 0
    %4079 = vmatprep.subr.bf16.mxu0 0
    %4080 = vmatpush1.bf16.msra.mxu0 0
    %4081 = vmatprep.subr.bf16.mxu0 0
    %4082 = vmatpush1.bf16.msra.mxu0 0
    %4083 = vmatprep.subr.bf16.mxu0 0
    %4084 = vmatpush1.bf16.msra.mxu0 0
    %4085 = vmatprep.subr.bf16.mxu0 0
    %4086 = vmatpush1.bf16.msra.mxu0 0
    %4087 = vmatprep.subr.bf16.mxu0 0
    %4088 = vmatpush1.bf16.msra.mxu0 0
    %4089 = vmatprep.subr.bf16.mxu0 0
    %4090 = vmatpush1.bf16.msra.mxu0 0
    %4091 = vmatprep.subr.bf16.mxu0 0
    %4092 = vmatpush1.bf16.msra.mxu0 0
    %4093 = vmatprep.subr.bf16.mxu0 0
    %4094 = vmatpush1.bf16.msra.mxu0 0
    %4095 = vmatprep.mubr.bf16.mxu0 0
    %4096 = vmatmul.mubr.bf16.gmra.mrb[0].mxu0 %v4058
    %v4097 = vpop.f32.mrb[0].mxu0
    %v4098 = vadd.f32 0.0, %v4097
    %v4099 = vpop.f32.mrb[0].mxu0
    %v4100 = vpop.f32.mrb[0].mxu0
    %v4101 = vpop.f32.mrb[0].mxu0
    %4102 = vdwg.mxu0
    %v4103 = vpack.c.bf16 %v3426, %v3378
    %v4104 = vpack.c.bf16 %v3522, %v3474
    %v4105 = vpack.c.bf16 %v3618, %v3570
    %v4106 = vpack.c.bf16 %v3714, %v3666
    %v4107 = vpack.c.bf16 %v3810, %v3762
    %v4108 = vpack.c.bf16 %v3906, %v3858
    %v4109 = vpack.c.bf16 %v4002, %v3954
    %v4110 = vpack.c.bf16 %v4098, %v4050
    %v4111 = vpack.c.bf16 %v524, %v524
    %v4113 = vsel %vm576, %v4103, 0
    %v4116 = vsel %vm576, %v4104, 0
    %v4119 = vsel %vm576, %v4105, 0
    %v4122 = vsel %vm576, %v4106, 0
    %v4125 = vsel %vm576, %v4107, 0
    %v4128 = vsel %vm576, %v4108, 0
    %v4131 = vsel %vm576, %v4109, 0
    %v4134 = vsel %vm576, %v4110, 0
    %v4137 = vsel %vm251, %v4111, 0
    %4139 = vmatprep.subr.bf16.mxu0 0
    %4140 = vmatpush1.bf16.msra.mxu0 %v4137
    %4141 = vmatprep.subr.bf16.mxu0 0
    %4142 = vmatpush1.bf16.msra.mxu0 0
    %4143 = vmatprep.subr.bf16.mxu0 0
    %4144 = vmatpush1.bf16.msra.mxu0 0
    %4145 = vmatprep.subr.bf16.mxu0 0
    %4146 = vmatpush1.bf16.msra.mxu0 0
    %4147 = vmatprep.subr.bf16.mxu0 0
    %4148 = vmatpush1.bf16.msra.mxu0 0
    %4149 = vmatprep.subr.bf16.mxu0 0
    %4150 = vmatpush1.bf16.msra.mxu0 0
    %4151 = vmatprep.subr.bf16.mxu0 0
    %4152 = vmatpush1.bf16.msra.mxu0 0
    %4153 = vmatprep.subr.bf16.mxu0 0
    %4154 = vmatpush1.bf16.msra.mxu0 0
    %4155 = vmatprep.subr.bf16.mxu0 0
    %4156 = vmatpush1.bf16.msra.mxu0 0
    %4157 = vmatprep.subr.bf16.mxu0 0
    %4158 = vmatpush1.bf16.msra.mxu0 0
    %4159 = vmatprep.subr.bf16.mxu0 0
    %4160 = vmatpush1.bf16.msra.mxu0 0
    %4161 = vmatprep.subr.bf16.mxu0 0
    %4162 = vmatpush1.bf16.msra.mxu0 0
    %4163 = vmatprep.subr.bf16.mxu0 0
    %4164 = vmatpush1.bf16.msra.mxu0 0
    %4165 = vmatprep.subr.bf16.mxu0 0
    %4166 = vmatpush1.bf16.msra.mxu0 0
    %4167 = vmatprep.subr.bf16.mxu0 0
    %4168 = vmatpush1.bf16.msra.mxu0 0
    %4169 = vmatprep.subr.bf16.mxu0 0
    %4170 = vmatpush1.bf16.msra.mxu0 0
    %4171 = vmatprep.mubr.bf16.mxu0 0
    %4172 = vmatmul.mubr.bf16.gmra.mrb[0].mxu0 %v4113
    %v4173 = vpop.f32.mrb[0].mxu0
    %v4174 = vadd.f32 0.0, %v4173
    %v4175 = vpop.f32.mrb[0].mxu0
    %v4176 = vpop.f32.mrb[0].mxu0
    %v4177 = vadd.f32 0.0, %v4176
    %v4178 = vpop.f32.mrb[0].mxu0
    %4179 = vmatprep.mubr.bf16.mxu0 0
    %4180 = vmatmul.mubr.bf16.gmra.mrb[0].mxu0 %v4116
    %v4181 = vpop.f32.mrb[0].mxu0
    %v4182 = vadd.f32 0.0, %v4181
    %v4183 = vpop.f32.mrb[0].mxu0
    %v4184 = vpop.f32.mrb[0].mxu0
    %v4185 = vadd.f32 0.0, %v4184
    %v4186 = vpop.f32.mrb[0].mxu0
    %4187 = vmatprep.mubr.bf16.mxu0 0
    %4188 = vmatmul.mubr.bf16.gmra.mrb[0].mxu0 %v4119
    %v4189 = vpop.f32.mrb[0].mxu0
    %v4190 = vadd.f32 0.0, %v4189
    %v4191 = vpop.f32.mrb[0].mxu0
    %v4192 = vpop.f32.mrb[0].mxu0
    %v4193 = vadd.f32 0.0, %v4192
    %v4194 = vpop.f32.mrb[0].mxu0
    %4195 = vmatprep.mubr.bf16.mxu0 0
    %4196 = vmatmul.mubr.bf16.gmra.mrb[0].mxu0 %v4122
    %v4197 = vpop.f32.mrb[0].mxu0
    %v4198 = vadd.f32 0.0, %v4197
    %v4199 = vpop.f32.mrb[0].mxu0
    %v4200 = vpop.f32.mrb[0].mxu0
    %v4201 = vadd.f32 0.0, %v4200
    %v4202 = vpop.f32.mrb[0].mxu0
    %4203 = vmatprep.mubr.bf16.mxu0 0
    %4204 = vmatmul.mubr.bf16.gmra.mrb[0].mxu0 %v4125
    %v4205 = vpop.f32.mrb[0].mxu0
    %v4206 = vadd.f32 0.0, %v4205
    %v4207 = vpop.f32.mrb[0].mxu0
    %v4208 = vpop.f32.mrb[0].mxu0
    %v4209 = vadd.f32 0.0, %v4208
    %v4210 = vpop.f32.mrb[0].mxu0
    %4211 = vmatprep.mubr.bf16.mxu0 0
    %4212 = vmatmul.mubr.bf16.gmra.mrb[0].mxu0 %v4128
    %v4213 = vpop.f32.mrb[0].mxu0
    %v4214 = vadd.f32 0.0, %v4213
    %v4215 = vpop.f32.mrb[0].mxu0
    %v4216 = vpop.f32.mrb[0].mxu0
    %v4217 = vadd.f32 0.0, %v4216
    %v4218 = vpop.f32.mrb[0].mxu0
    %4219 = vmatprep.mubr.bf16.mxu0 0
    %4220 = vmatmul.mubr.bf16.gmra.mrb[0].mxu0 %v4131
    %v4221 = vpop.f32.mrb[0].mxu0
    %v4222 = vadd.f32 0.0, %v4221
    %v4223 = vpop.f32.mrb[0].mxu0
    %v4224 = vpop.f32.mrb[0].mxu0
    %v4225 = vadd.f32 0.0, %v4224
    %v4226 = vpop.f32.mrb[0].mxu0
    %4227 = vmatprep.mubr.bf16.mxu0 0
    %4228 = vmatmul.mubr.bf16.gmra.mrb[0].mxu0 %v4134
    %v4229 = vpop.f32.mrb[0].mxu0
    %v4230 = vadd.f32 0.0, %v4229
    %v4231 = vpop.f32.mrb[0].mxu0
    %v4232 = vpop.f32.mrb[0].mxu0
    %v4233 = vadd.f32 0.0, %v4232
    %v4234 = vpop.f32.mrb[0].mxu0
    %4235 = vdwg.mxu0
    %v4237 = vsel %vm576, %v2318, 0
    %v4240 = vsel %vm576, %v2319, 0
    %v4243 = vsel %vm576, %v2320, 0
    %v4246 = vsel %vm576, %v2321, 0
    %v4249 = vsel %vm576, %v2322, 0
    %v4252 = vsel %vm576, %v2323, 0
    %v4255 = vsel %vm576, %v2324, 0
    %v4258 = vsel %vm576, %v2325, 0
    %v4261 = vsel %vm251, %v2326, 0
    %4263 = vmatprep.subr.bf16.mxu0 0
    %4264 = vmatpush1.bf16.msra.mxu0 %v4261
    %4265 = vmatprep.subr.bf16.mxu0 0
    %4266 = vmatpush1.bf16.msra.mxu0 0
    %4267 = vmatprep.subr.bf16.mxu0 0
    %4268 = vmatpush1.bf16.msra.mxu0 0
    %4269 = vmatprep.subr.bf16.mxu0 0
    %4270 = vmatpush1.bf16.msra.mxu0 0
    %4271 = vmatprep.subr.bf16.mxu0 0
    %4272 = vmatpush1.bf16.msra.mxu0 0
    %4273 = vmatprep.subr.bf16.mxu0 0
    %4274 = vmatpush1.bf16.msra.mxu0 0
    %4275 = vmatprep.subr.bf16.mxu0 0
    %4276 = vmatpush1.bf16.msra.mxu0 0
    %4277 = vmatprep.subr.bf16.mxu0 0
    %4278 = vmatpush1.bf16.msra.mxu0 0
    %4279 = vmatprep.subr.bf16.mxu0 0
    %4280 = vmatpush1.bf16.msra.mxu0 0
    %4281 = vmatprep.subr.bf16.mxu0 0
    %4282 = vmatpush1.bf16.msra.mxu0 0
    %4283 = vmatprep.subr.bf16.mxu0 0
    %4284 = vmatpush1.bf16.msra.mxu0 0
    %4285 = vmatprep.subr.bf16.mxu0 0
    %4286 = vmatpush1.bf16.msra.mxu0 0
    %4287 = vmatprep.subr.bf16.mxu0 0
    %4288 = vmatpush1.bf16.msra.mxu0 0
    %4289 = vmatprep.subr.bf16.mxu0 0
    %4290 = vmatpush1.bf16.msra.mxu0 0
    %4291 = vmatprep.subr.bf16.mxu0 0
    %4292 = vmatpush1.bf16.msra.mxu0 0
    %4293 = vmatprep.subr.bf16.mxu0 0
    %4294 = vmatpush1.bf16.msra.mxu0 0
    %4295 = vmatprep.mubr.bf16.mxu0 0
    %4296 = vmatmul.mubr.bf16.gmra.mrb[0].mxu0 %v4237
    %v4297 = vpop.f32.mrb[0].mxu0
    %v4298 = vadd.f32 %v4174, %v4297
    %v4299 = vpop.f32.mrb[0].mxu0
    %v4300 = vpop.f32.mrb[0].mxu0
    %v4301 = vadd.f32 %v4177, %v4300
    %v4302 = vpop.f32.mrb[0].mxu0
    %4303 = vmatprep.mubr.bf16.mxu0 0
    %4304 = vmatmul.mubr.bf16.gmra.mrb[0].mxu0 %v4240
    %v4305 = vpop.f32.mrb[0].mxu0
    %v4306 = vadd.f32 %v4182, %v4305
    %v4307 = vpop.f32.mrb[0].mxu0
    %v4308 = vpop.f32.mrb[0].mxu0
    %v4309 = vadd.f32 %v4185, %v4308
    %v4310 = vpop.f32.mrb[0].mxu0
    %4311 = vmatprep.mubr.bf16.mxu0 0
    %4312 = vmatmul.mubr.bf16.gmra.mrb[0].mxu0 %v4243
    %v4313 = vpop.f32.mrb[0].mxu0
    %v4314 = vadd.f32 %v4190, %v4313
    %v4315 = vpop.f32.mrb[0].mxu0
    %v4316 = vpop.f32.mrb[0].mxu0
    %v4317 = vadd.f32 %v4193, %v4316
    %v4318 = vpop.f32.mrb[0].mxu0
    %4319 = vmatprep.mubr.bf16.mxu0 0
    %4320 = vmatmul.mubr.bf16.gmra.mrb[0].mxu0 %v4246
    %v4321 = vpop.f32.mrb[0].mxu0
    %v4322 = vadd.f32 %v4198, %v4321
    %v4323 = vpop.f32.mrb[0].mxu0
    %v4324 = vpop.f32.mrb[0].mxu0
    %v4325 = vadd.f32 %v4201, %v4324
    %v4326 = vpop.f32.mrb[0].mxu0
    %4327 = vmatprep.mubr.bf16.mxu0 0
    %4328 = vmatmul.mubr.bf16.gmra.mrb[0].mxu0 %v4249
    %v4329 = vpop.f32.mrb[0].mxu0
    %v4330 = vadd.f32 %v4206, %v4329
    %v4331 = vpop.f32.mrb[0].mxu0
    %v4332 = vpop.f32.mrb[0].mxu0
    %v4333 = vadd.f32 %v4209, %v4332
    %v4334 = vpop.f32.mrb[0].mxu0
    %4335 = vmatprep.mubr.bf16.mxu0 0
    %4336 = vmatmul.mubr.bf16.gmra.mrb[0].mxu0 %v4252
    %v4337 = vpop.f32.mrb[0].mxu0
    %v4338 = vadd.f32 %v4214, %v4337
    %v4339 = vpop.f32.mrb[0].mxu0
    %v4340 = vpop.f32.mrb[0].mxu0
    %v4341 = vadd.f32 %v4217, %v4340
    %v4342 = vpop.f32.mrb[0].mxu0
    %4343 = vmatprep.mubr.bf16.mxu0 0
    %4344 = vmatmul.mubr.bf16.gmra.mrb[0].mxu0 %v4255
    %v4345 = vpop.f32.mrb[0].mxu0
    %v4346 = vadd.f32 %v4222, %v4345
    %v4347 = vpop.f32.mrb[0].mxu0
    %v4348 = vpop.f32.mrb[0].mxu0
    %v4349 = vadd.f32 %v4225, %v4348
    %v4350 = vpop.f32.mrb[0].mxu0
    %4351 = vmatprep.mubr.bf16.mxu0 0
    %4352 = vmatmul.mubr.bf16.gmra.mrb[0].mxu0 %v4258
    %v4353 = vpop.f32.mrb[0].mxu0
    %v4354 = vadd.f32 %v4230, %v4353
    %v4355 = vpop.f32.mrb[0].mxu0
    %v4356 = vpop.f32.mrb[0].mxu0
    %v4357 = vadd.f32 %v4233, %v4356
    %v4358 = vpop.f32.mrb[0].mxu0
    %4359 = vdwg.mxu0
    %v4360 = vld [vmem:[%s2 + $0x28] sm:$0x1]
    %v4361 = vlaneseq
    %v4362 = vshrl.u32 %v4361, 7
    %v4363 = vsub.s32 0, %v4362
    %v4364 = vrot.slane %v4360, %v4363
    %v4365 = vadd.f32 %v4298, %v4364
    %v4366 = vadd.f32 %v4301, %v4364
    %v4367 = vadd.f32 %v4306, %v4364
    %v4368 = vadd.f32 %v4309, %v4364
    %v4369 = vadd.f32 %v4314, %v4364
    %v4370 = vadd.f32 %v4317, %v4364
    %v4371 = vadd.f32 %v4322, %v4364
    %v4372 = vadd.f32 %v4325, %v4364
    %v4373 = vadd.f32 %v4330, %v4364
    %v4374 = vadd.f32 %v4333, %v4364
    %v4375 = vadd.f32 %v4338, %v4364
    %v4376 = vadd.f32 %v4341, %v4364
    %v4377 = vadd.f32 %v4346, %v4364
    %v4378 = vadd.f32 %v4349, %v4364
    %v4379 = vadd.f32 %v4354, %v4364
    %v4380 = vadd.f32 %v4357, %v4364
    %v4381 = vadd.f32 %v369, %v4365
    %v4382 = vadd.f32 %v370, %v4366
    %v4383 = vadd.f32 %v371, %v4367
    %v4384 = vadd.f32 %v372, %v4368
    %v4385 = vadd.f32 %v373, %v4369
    %v4386 = vadd.f32 %v374, %v4370
    %v4387 = vadd.f32 %v375, %v4371
    %v4388 = vadd.f32 %v376, %v4372
    %v4389 = vadd.f32 %v377, %v4373
    %v4390 = vadd.f32 %v378, %v4374
    %v4391 = vadd.f32 %v379, %v4375
    %v4392 = vadd.f32 %v380, %v4376
    %v4393 = vadd.f32 %v381, %v4377
    %v4394 = vadd.f32 %v382, %v4378
    %v4395 = vadd.f32 %v383, %v4379
    %v4396 = vadd.f32 %v384, %v4380
    %v4397 = vld [vmem:[%s2 + $0x30] sm:$0x1]
    %v4398 = vld [vmem:[%s2 + $0x38] sm:$0x1]
    %v4399 = vsel %vm401, %v4381, 0.0
    %4400 = vadd.xlane.f32.xlu0 %v4399
    %v4401 = vpop.xlane.xlu0 %4400
    %v4402 = vsel %vm401, %v4382, 0.0
    %4403 = vadd.xlane.f32.xlu0 %v4402
    %v4404 = vpop.xlane.xlu0 %4403
    %v4405 = vsel %vm401, %v4383, 0.0
    %4406 = vadd.xlane.f32.xlu0 %v4405
    %v4407 = vpop.xlane.xlu0 %4406
    %v4408 = vsel %vm401, %v4384, 0.0
    %4409 = vadd.xlane.f32.xlu0 %v4408
    %v4410 = vpop.xlane.xlu0 %4409
    %v4411 = vsel %vm401, %v4385, 0.0
    %4412 = vadd.xlane.f32.xlu0 %v4411
    %v4413 = vpop.xlane.xlu0 %4412
    %v4414 = vsel %vm401, %v4386, 0.0
    %4415 = vadd.xlane.f32.xlu0 %v4414
    %v4416 = vpop.xlane.xlu0 %4415
    %v4417 = vsel %vm401, %v4387, 0.0
    %4418 = vadd.xlane.f32.xlu0 %v4417
    %v4419 = vpop.xlane.xlu0 %4418
    %v4420 = vsel %vm401, %v4388, 0.0
    %4421 = vadd.xlane.f32.xlu0 %v4420
    %v4422 = vpop.xlane.xlu0 %4421
    %v4423 = vsel %vm401, %v4389, 0.0
    %4424 = vadd.xlane.f32.xlu0 %v4423
    %v4425 = vpop.xlane.xlu0 %4424
    %v4426 = vsel %vm401, %v4390, 0.0
    %4427 = vadd.xlane.f32.xlu0 %v4426
    %v4428 = vpop.xlane.xlu0 %4427
    %v4429 = vsel %vm401, %v4391, 0.0
    %4430 = vadd.xlane.f32.xlu0 %v4429
    %v4431 = vpop.xlane.xlu0 %4430
    %v4432 = vsel %vm401, %v4392, 0.0
    %4433 = vadd.xlane.f32.xlu0 %v4432
    %v4434 = vpop.xlane.xlu0 %4433
    %v4435 = vsel %vm401, %v4393, 0.0
    %4436 = vadd.xlane.f32.xlu0 %v4435
    %v4437 = vpop.xlane.xlu0 %4436
    %v4438 = vsel %vm401, %v4394, 0.0
    %4439 = vadd.xlane.f32.xlu0 %v4438
    %v4440 = vpop.xlane.xlu0 %4439
    %v4441 = vsel %vm401, %v4395, 0.0
    %4442 = vadd.xlane.f32.xlu0 %v4441
    %v4443 = vpop.xlane.xlu0 %4442
    %v4444 = vsel %vm401, %v4396, 0.0
    %4445 = vadd.xlane.f32.xlu0 %v4444
    %v4446 = vpop.xlane.xlu0 %4445
    %v4447 = vrcp.pop 16.0
    %v4448 = vmul.f32 %v4401, %v4447
    %v4449 = vmul.f32 %v4404, %v4447
    %v4450 = vmul.f32 %v4407, %v4447
    %v4451 = vmul.f32 %v4410, %v4447
    %v4452 = vmul.f32 %v4413, %v4447
    %v4453 = vmul.f32 %v4416, %v4447
    %v4454 = vmul.f32 %v4419, %v4447
    %v4455 = vmul.f32 %v4422, %v4447
    %v4456 = vmul.f32 %v4425, %v4447
    %v4457 = vmul.f32 %v4428, %v4447
    %v4458 = vmul.f32 %v4431, %v4447
    %v4459 = vmul.f32 %v4434, %v4447
    %v4460 = vmul.f32 %v4437, %v4447
    %v4461 = vmul.f32 %v4440, %v4447
    %v4462 = vmul.f32 %v4443, %v4447
    %v4463 = vmul.f32 %v4446, %v4447
    %v4464 = vsub.f32 %v4381, %v4448
    %v4465 = vsub.f32 %v4382, %v4449
    %v4466 = vsub.f32 %v4383, %v4450
    %v4467 = vsub.f32 %v4384, %v4451
    %v4468 = vsub.f32 %v4385, %v4452
    %v4469 = vsub.f32 %v4386, %v4453
    %v4470 = vsub.f32 %v4387, %v4454
    %v4471 = vsub.f32 %v4388, %v4455
    %v4472 = vsub.f32 %v4389, %v4456
    %v4473 = vsub.f32 %v4390, %v4457
    %v4474 = vsub.f32 %v4391, %v4458
    %v4475 = vsub.f32 %v4392, %v4459
    %v4476 = vsub.f32 %v4393, %v4460
    %v4477 = vsub.f32 %v4394, %v4461
    %v4478 = vsub.f32 %v4395, %v4462
    %v4479 = vsub.f32 %v4396, %v4463
    %v4480 = vmul.f32 %v4464, %v4464
    %v4481 = vmul.f32 %v4465, %v4465
    %v4482 = vmul.f32 %v4466, %v4466
    %v4483 = vmul.f32 %v4467, %v4467
    %v4484 = vmul.f32 %v4468, %v4468
    %v4485 = vmul.f32 %v4469, %v4469
    %v4486 = vmul.f32 %v4470, %v4470
    %v4487 = vmul.f32 %v4471, %v4471
    %v4488 = vmul.f32 %v4472, %v4472
    %v4489 = vmul.f32 %v4473, %v4473
    %v4490 = vmul.f32 %v4474, %v4474
    %v4491 = vmul.f32 %v4475, %v4475
    %v4492 = vmul.f32 %v4476, %v4476
    %v4493 = vmul.f32 %v4477, %v4477
    %v4494 = vmul.f32 %v4478, %v4478
    %v4495 = vmul.f32 %v4479, %v4479
    %v4496 = vsel %vm401, %v4480, 0.0
    %4497 = vadd.xlane.f32.xlu0 %v4496
    %v4498 = vpop.xlane.xlu0 %4497
    %v4499 = vsel %vm401, %v4481, 0.0
    %4500 = vadd.xlane.f32.xlu0 %v4499
    %v4501 = vpop.xlane.xlu0 %4500
    %v4502 = vsel %vm401, %v4482, 0.0
    %4503 = vadd.xlane.f32.xlu0 %v4502
    %v4504 = vpop.xlane.xlu0 %4503
    %v4505 = vsel %vm401, %v4483, 0.0
    %4506 = vadd.xlane.f32.xlu0 %v4505
    %v4507 = vpop.xlane.xlu0 %4506
    %v4508 = vsel %vm401, %v4484, 0.0
    %4509 = vadd.xlane.f32.xlu0 %v4508
    %v4510 = vpop.xlane.xlu0 %4509
    %v4511 = vsel %vm401, %v4485, 0.0
    %4512 = vadd.xlane.f32.xlu0 %v4511
    %v4513 = vpop.xlane.xlu0 %4512
    %v4514 = vsel %vm401, %v4486, 0.0
    %4515 = vadd.xlane.f32.xlu0 %v4514
    %v4516 = vpop.xlane.xlu0 %4515
    %v4517 = vsel %vm401, %v4487, 0.0
    %4518 = vadd.xlane.f32.xlu0 %v4517
    %v4519 = vpop.xlane.xlu0 %4518
    %v4520 = vsel %vm401, %v4488, 0.0
    %4521 = vadd.xlane.f32.xlu0 %v4520
    %v4522 = vpop.xlane.xlu0 %4521
    %v4523 = vsel %vm401, %v4489, 0.0
    %4524 = vadd.xlane.f32.xlu0 %v4523
    %v4525 = vpop.xlane.xlu0 %4524
    %v4526 = vsel %vm401, %v4490, 0.0
    %4527 = vadd.xlane.f32.xlu0 %v4526
    %v4528 = vpop.xlane.xlu0 %4527
    %v4529 = vsel %vm401, %v4491, 0.0
    %4530 = vadd.xlane.f32.xlu0 %v4529
    %v4531 = vpop.xlane.xlu0 %4530
    %v4532 = vsel %vm401, %v4492, 0.0
    %4533 = vadd.xlane.f32.xlu0 %v4532
    %v4534 = vpop.xlane.xlu0 %4533
    %v4535 = vsel %vm401, %v4493, 0.0
    %4536 = vadd.xlane.f32.xlu0 %v4535
    %v4537 = vpop.xlane.xlu0 %4536
    %v4538 = vsel %vm401, %v4494, 0.0
    %4539 = vadd.xlane.f32.xlu0 %v4538
    %v4540 = vpop.xlane.xlu0 %4539
    %v4541 = vsel %vm401, %v4495, 0.0
    %4542 = vadd.xlane.f32.xlu0 %v4541
    %v4543 = vpop.xlane.xlu0 %4542
    %v4544 = vmul.f32 %v4498, %v4447
    %v4545 = vmul.f32 %v4501, %v4447
    %v4546 = vmul.f32 %v4504, %v4447
    %v4547 = vmul.f32 %v4507, %v4447
    %v4548 = vmul.f32 %v4510, %v4447
    %v4549 = vmul.f32 %v4513, %v4447
    %v4550 = vmul.f32 %v4516, %v4447
    %v4551 = vmul.f32 %v4519, %v4447
    %v4552 = vmul.f32 %v4522, %v4447
    %v4553 = vmul.f32 %v4525, %v4447
    %v4554 = vmul.f32 %v4528, %v4447
    %v4555 = vmul.f32 %v4531, %v4447
    %v4556 = vmul.f32 %v4534, %v4447
    %v4557 = vmul.f32 %v4537, %v4447
    %v4558 = vmul.f32 %v4540, %v4447
    %v4559 = vmul.f32 %v4543, %v4447
    %v4560 = vadd.f32 %v4544, 1e-05
    %v4561 = vadd.f32 %v4545, 1e-05
    %v4562 = vadd.f32 %v4546, 1e-05
    %v4563 = vadd.f32 %v4547, 1e-05
    %v4564 = vadd.f32 %v4548, 1e-05
    %v4565 = vadd.f32 %v4549, 1e-05
    %v4566 = vadd.f32 %v4550, 1e-05
    %v4567 = vadd.f32 %v4551, 1e-05
    %v4568 = vadd.f32 %v4552, 1e-05
    %v4569 = vadd.f32 %v4553, 1e-05
    %v4570 = vadd.f32 %v4554, 1e-05
    %v4571 = vadd.f32 %v4555, 1e-05
    %v4572 = vadd.f32 %v4556, 1e-05
    %v4573 = vadd.f32 %v4557, 1e-05
    %v4574 = vadd.f32 %v4558, 1e-05
    %v4575 = vadd.f32 %v4559, 1e-05
    %v4576 = vrsqrt.pop %v4560
    %v4577 = vrsqrt.pop %v4561
    %v4578 = vrsqrt.pop %v4562
    %v4579 = vrsqrt.pop %v4563
    %v4580 = vrsqrt.pop %v4564
    %v4581 = vrsqrt.pop %v4565
    %v4582 = vrsqrt.pop %v4566
    %v4583 = vrsqrt.pop %v4567
    %v4584 = vrsqrt.pop %v4568
    %v4585 = vrsqrt.pop %v4569
    %v4586 = vrsqrt.pop %v4570
    %v4587 = vrsqrt.pop %v4571
    %v4588 = vrsqrt.pop %v4572
    %v4589 = vrsqrt.pop %v4573
    %v4590 = vrsqrt.pop %v4574
    %v4591 = vrsqrt.pop %v4575
    %v4592 = vmul.f32 %v4464, %v4576
    %v4593 = vmul.f32 %v4465, %v4577
    %v4594 = vmul.f32 %v4466, %v4578
    %v4595 = vmul.f32 %v4467, %v4579
    %v4596 = vmul.f32 %v4468, %v4580
    %v4597 = vmul.f32 %v4469, %v4581
    %v4598 = vmul.f32 %v4470, %v4582
    %v4599 = vmul.f32 %v4471, %v4583
    %v4600 = vmul.f32 %v4472, %v4584
    %v4601 = vmul.f32 %v4473, %v4585
    %v4602 = vmul.f32 %v4474, %v4586
    %v4603 = vmul.f32 %v4475, %v4587
    %v4604 = vmul.f32 %v4476, %v4588
    %v4605 = vmul.f32 %v4477, %v4589
    %v4606 = vmul.f32 %v4478, %v4590
    %v4607 = vmul.f32 %v4479, %v4591
    %v4608 = vlaneseq
    %v4609 = vshrl.u32 %v4608, 7
    %v4610 = vsub.s32 0, %v4609
    %v4611 = vrot.slane %v4397, %v4610
    %v4612 = vmul.f32 %v4592, %v4611
    %v4613 = vmul.f32 %v4593, %v4611
    %v4614 = vmul.f32 %v4594, %v4611
    %v4615 = vmul.f32 %v4595, %v4611
    %v4616 = vmul.f32 %v4596, %v4611
    %v4617 = vmul.f32 %v4597, %v4611
    %v4618 = vmul.f32 %v4598, %v4611
    %v4619 = vmul.f32 %v4599, %v4611
    %v4620 = vmul.f32 %v4600, %v4611
    %v4621 = vmul.f32 %v4601, %v4611
    %v4622 = vmul.f32 %v4602, %v4611
    %v4623 = vmul.f32 %v4603, %v4611
    %v4624 = vmul.f32 %v4604, %v4611
    %v4625 = vmul.f32 %v4605, %v4611
    %v4626 = vmul.f32 %v4606, %v4611
    %v4627 = vmul.f32 %v4607, %v4611
    %v4628 = vlaneseq
    %v4629 = vshrl.u32 %v4628, 7
    %v4630 = vsub.s32 0, %v4629
    %v4631 = vrot.slane %v4398, %v4630
    %v4632 = vadd.f32 %v4612, %v4631
    %v4633 = vadd.f32 %v4613, %v4631
    %v4634 = vadd.f32 %v4614, %v4631
    %v4635 = vadd.f32 %v4615, %v4631
    %v4636 = vadd.f32 %v4616, %v4631
    %v4637 = vadd.f32 %v4617, %v4631
    %v4638 = vadd.f32 %v4618, %v4631
    %v4639 = vadd.f32 %v4619, %v4631
    %v4640 = vadd.f32 %v4620, %v4631
    %v4641 = vadd.f32 %v4621, %v4631
    %v4642 = vadd.f32 %v4622, %v4631
    %v4643 = vadd.f32 %v4623, %v4631
    %v4644 = vadd.f32 %v4624, %v4631
    %v4645 = vadd.f32 %v4625, %v4631
    %v4646 = vadd.f32 %v4626, %v4631
    %v4647 = vadd.f32 %v4627, %v4631
    %v4648 = vld [vmem:[%s2 + $0x40] sm:$0xff]
    %v4649 = vld [vmem:[%s2 + $0x48] sm:$0xff]
    %v4650 = vpack.c.bf16 %v4633, %v4632
    %v4651 = vpack.c.bf16 %v4635, %v4634
    %v4652 = vpack.c.bf16 %v4637, %v4636
    %v4653 = vpack.c.bf16 %v4639, %v4638
    %v4654 = vpack.c.bf16 %v4641, %v4640
    %v4655 = vpack.c.bf16 %v4643, %v4642
    %v4656 = vpack.c.bf16 %v4645, %v4644
    %v4657 = vpack.c.bf16 %v4647, %v4646
    %v4658 = vpack.c.bf16 %v4649, %v4648
    %v4659 = vld [vmem:[%s2 + $0x50] sm:$0x1]
    %v4660 = vlaneseq
    %v4661 = vshrl.u32 %v4660, 7
    %v4662 = vsub.s32 0, %v4661
    %v4663 = vrot.slane %v4659, %v4662
    %v4665 = vsel %vm401, %v4650, 0
    %v4668 = vsel %vm401, %v4651, 0
    %v4671 = vsel %vm401, %v4652, 0
    %v4674 = vsel %vm401, %v4653, 0
    %v4677 = vsel %vm401, %v4654, 0
    %v4680 = vsel %vm401, %v4655, 0
    %v4683 = vsel %vm401, %v4656, 0
    %v4686 = vsel %vm401, %v4657, 0
    %4688 = vmatprep.subr.bf16.mxu0 0
    %4689 = vmatpush1.bf16.msra.mxu0 %v4658
    %4690 = vmatprep.subr.bf16.mxu0 0
    %4691 = vmatpush1.bf16.msra.mxu0 0
    %4692 = vmatprep.subr.bf16.mxu0 0
    %4693 = vmatpush1.bf16.msra.mxu0 0
    %4694 = vmatprep.subr.bf16.mxu0 0
    %4695 = vmatpush1.bf16.msra.mxu0 0
    %4696 = vmatprep.subr.bf16.mxu0 0
    %4697 = vmatpush1.bf16.msra.mxu0 0
    %4698 = vmatprep.subr.bf16.mxu0 0
    %4699 = vmatpush1.bf16.msra.mxu0 0
    %4700 = vmatprep.subr.bf16.mxu0 0
    %4701 = vmatpush1.bf16.msra.mxu0 0
    %4702 = vmatprep.subr.bf16.mxu0 0
    %4703 = vmatpush1.bf16.msra.mxu0 0
    %4704 = vmatprep.subr.bf16.mxu0 0
    %4705 = vmatpush1.bf16.msra.mxu0 0
    %4706 = vmatprep.subr.bf16.mxu0 0
    %4707 = vmatpush1.bf16.msra.mxu0 0
    %4708 = vmatprep.subr.bf16.mxu0 0
    %4709 = vmatpush1.bf16.msra.mxu0 0
    %4710 = vmatprep.subr.bf16.mxu0 0
    %4711 = vmatpush1.bf16.msra.mxu0 0
    %4712 = vmatprep.subr.bf16.mxu0 0
    %4713 = vmatpush1.bf16.msra.mxu0 0
    %4714 = vmatprep.subr.bf16.mxu0 0
    %4715 = vmatpush1.bf16.msra.mxu0 0
    %4716 = vmatprep.subr.bf16.mxu0 0
    %4717 = vmatpush1.bf16.msra.mxu0 0
    %4718 = vmatprep.subr.bf16.mxu0 0
    %4719 = vmatpush1.bf16.msra.mxu0 0
    %4720 = vmatprep.mubr.bf16.mxu0 0
    %4721 = vmatmul.mubr.bf16.gmra.mrb[0].mxu0 %v4665
    %v4722 = vpop.f32.mrb[0].mxu0
    %v4723 = vadd.f32 %v4663, %v4722
    %v4724 = vpop.f32.mrb[0].mxu0
    %v4725 = vpop.f32.mrb[0].mxu0
    %v4726 = vadd.f32 %v4663, %v4725
    %v4727 = vpop.f32.mrb[0].mxu0
    %4728 = vmatprep.mubr.bf16.mxu0 0
    %4729 = vmatmul.mubr.bf16.gmra.mrb[0].mxu0 %v4668
    %v4730 = vpop.f32.mrb[0].mxu0
    %v4731 = vadd.f32 %v4663, %v4730
    %v4732 = vpop.f32.mrb[0].mxu0
    %v4733 = vpop.f32.mrb[0].mxu0
    %v4734 = vadd.f32 %v4663, %v4733
    %v4735 = vpop.f32.mrb[0].mxu0
    %4736 = vmatprep.mubr.bf16.mxu0 0
    %4737 = vmatmul.mubr.bf16.gmra.mrb[0].mxu0 %v4671
    %v4738 = vpop.f32.mrb[0].mxu0
    %v4739 = vadd.f32 %v4663, %v4738
    %v4740 = vpop.f32.mrb[0].mxu0
    %v4741 = vpop.f32.mrb[0].mxu0
    %v4742 = vadd.f32 %v4663, %v4741
    %v4743 = vpop.f32.mrb[0].mxu0
    %4744 = vmatprep.mubr.bf16.mxu0 0
    %4745 = vmatmul.mubr.bf16.gmra.mrb[0].mxu0 %v4674
    %v4746 = vpop.f32.mrb[0].mxu0
    %v4747 = vadd.f32 %v4663, %v4746
    %v4748 = vpop.f32.mrb[0].mxu0
    %v4749 = vpop.f32.mrb[0].mxu0
    %v4750 = vadd.f32 %v4663, %v4749
    %v4751 = vpop.f32.mrb[0].mxu0
    %4752 = vmatprep.mubr.bf16.mxu0 0
    %4753 = vmatmul.mubr.bf16.gmra.mrb[0].mxu0 %v4677
    %v4754 = vpop.f32.mrb[0].mxu0
    %v4755 = vadd.f32 %v4663, %v4754
    %v4756 = vpop.f32.mrb[0].mxu0
    %v4757 = vpop.f32.mrb[0].mxu0
    %v4758 = vadd.f32 %v4663, %v4757
    %v4759 = vpop.f32.mrb[0].mxu0
    %4760 = vmatprep.mubr.bf16.mxu0 0
    %4761 = vmatmul.mubr.bf16.gmra.mrb[0].mxu0 %v4680
    %v4762 = vpop.f32.mrb[0].mxu0
    %v4763 = vadd.f32 %v4663, %v4762
    %v4764 = vpop.f32.mrb[0].mxu0
    %v4765 = vpop.f32.mrb[0].mxu0
    %v4766 = vadd.f32 %v4663, %v4765
    %v4767 = vpop.f32.mrb[0].mxu0
    %4768 = vmatprep.mubr.bf16.mxu0 0
    %4769 = vmatmul.mubr.bf16.gmra.mrb[0].mxu0 %v4683
    %v4770 = vpop.f32.mrb[0].mxu0
    %v4771 = vadd.f32 %v4663, %v4770
    %v4772 = vpop.f32.mrb[0].mxu0
    %v4773 = vpop.f32.mrb[0].mxu0
    %v4774 = vadd.f32 %v4663, %v4773
    %v4775 = vpop.f32.mrb[0].mxu0
    %4776 = vmatprep.mubr.bf16.mxu0 0
    %4777 = vmatmul.mubr.bf16.gmra.mrb[0].mxu0 %v4686
    %v4778 = vpop.f32.mrb[0].mxu0
    %v4779 = vadd.f32 %v4663, %v4778
    %v4780 = vpop.f32.mrb[0].mxu0
    %v4781 = vpop.f32.mrb[0].mxu0
    %v4782 = vadd.f32 %v4663, %v4781
    %v4783 = vpop.f32.mrb[0].mxu0
    %4784 = vdwg.mxu0
    %v4785 = vmax.f32 %v4723, 0.0
    %v4786 = vmax.f32 %v4726, 0.0
    %v4787 = vmax.f32 %v4731, 0.0
    %v4788 = vmax.f32 %v4734, 0.0
    %v4789 = vmax.f32 %v4739, 0.0
    %v4790 = vmax.f32 %v4742, 0.0
    %v4791 = vmax.f32 %v4747, 0.0
    %v4792 = vmax.f32 %v4750, 0.0
    %v4793 = vmax.f32 %v4755, 0.0
    %v4794 = vmax.f32 %v4758, 0.0
    %v4795 = vmax.f32 %v4763, 0.0
    %v4796 = vmax.f32 %v4766, 0.0
    %v4797 = vmax.f32 %v4771, 0.0
    %v4798 = vmax.f32 %v4774, 0.0
    %v4799 = vmax.f32 %v4779, 0.0
    %v4800 = vmax.f32 %v4782, 0.0
    %v4801 = vld [vmem:[%s2 + $0x58] sm:$0xff]
    %v4802 = vld [vmem:[%s2 + $0x60] sm:$0xff]
    %v4803 = vld [vmem:[%s2 + $0x68] sm:$0xff]
    %v4804 = vld [vmem:[%s2 + $0x70] sm:$0xff]
    %v4805 = vpack.c.bf16 %v4786, %v4785
    %v4806 = vpack.c.bf16 %v4788, %v4787
    %v4807 = vpack.c.bf16 %v4790, %v4789
    %v4808 = vpack.c.bf16 %v4792, %v4791
    %v4809 = vpack.c.bf16 %v4794, %v4793
    %v4810 = vpack.c.bf16 %v4796, %v4795
    %v4811 = vpack.c.bf16 %v4798, %v4797
    %v4812 = vpack.c.bf16 %v4800, %v4799
    %v4813 = vpack.c.bf16 %v4802, %v4801
    %v4814 = vpack.c.bf16 %v4804, %v4803
    %v4815 = vld [vmem:[%s2 + $0x78] sm:$0x1]
    %v4816 = vlaneseq
    %v4817 = vshrl.u32 %v4816, 7
    %v4818 = vsub.s32 0, %v4817
    %v4819 = vrot.slane %v4815, %v4818
    %vm4820 = vcmask 261120
    %v4822 = vsel %vm4820, %v4805, 0
    %v4825 = vsel %vm4820, %v4806, 0
    %v4828 = vsel %vm4820, %v4807, 0
    %v4831 = vsel %vm4820, %v4808, 0
    %v4834 = vsel %vm4820, %v4809, 0
    %v4837 = vsel %vm4820, %v4810, 0
    %v4840 = vsel %vm4820, %v4811, 0
    %v4843 = vsel %vm4820, %v4812, 0
    %4845 = vmatprep.subr.bf16.mxu0 0
    %4846 = vmatpush1.bf16.msra.mxu0 %v4813
    %4847 = vmatprep.subr.bf16.mxu0 0
    %4848 = vmatpush1.bf16.msra.mxu0 %v4814
    %4849 = vmatprep.subr.bf16.mxu0 0
    %4850 = vmatpush1.bf16.msra.mxu0 0
    %4851 = vmatprep.subr.bf16.mxu0 0
    %4852 = vmatpush1.bf16.msra.mxu0 0
    %4853 = vmatprep.subr.bf16.mxu0 0
    %4854 = vmatpush1.bf16.msra.mxu0 0
    %4855 = vmatprep.subr.bf16.mxu0 0
    %4856 = vmatpush1.bf16.msra.mxu0 0
    %4857 = vmatprep.subr.bf16.mxu0 0
    %4858 = vmatpush1.bf16.msra.mxu0 0
    %4859 = vmatprep.subr.bf16.mxu0 0
    %4860 = vmatpush1.bf16.msra.mxu0 0
    %4861 = vmatprep.subr.bf16.mxu0 0
    %4862 = vmatpush1.bf16.msra.mxu0 0
    %4863 = vmatprep.subr.bf16.mxu0 0
    %4864 = vmatpush1.bf16.msra.mxu0 0
    %4865 = vmatprep.subr.bf16.mxu0 0
    %4866 = vmatpush1.bf16.msra.mxu0 0
    %4867 = vmatprep.subr.bf16.mxu0 0
    %4868 = vmatpush1.bf16.msra.mxu0 0
    %4869 = vmatprep.subr.bf16.mxu0 0
    %4870 = vmatpush1.bf16.msra.mxu0 0
    %4871 = vmatprep.subr.bf16.mxu0 0
    %4872 = vmatpush1.bf16.msra.mxu0 0
    %4873 = vmatprep.subr.bf16.mxu0 0
    %4874 = vmatpush1.bf16.msra.mxu0 0
    %4875 = vmatprep.subr.bf16.mxu0 0
    %4876 = vmatpush1.bf16.msra.mxu0 0
    %4877 = vmatprep.mubr.bf16.mxu0 0
    %4878 = vmatmul.mubr.bf16.gmra.mrb[0].mxu0 %v4822
    %v4879 = vpop.f32.mrb[0].mxu0
    %v4880 = vadd.f32 %v4819, %v4879
    %v4881 = vpop.f32.mrb[0].mxu0
    %v4882 = vpop.f32.mrb[0].mxu0
    %v4883 = vadd.f32 %v4819, %v4882
    %v4884 = vpop.f32.mrb[0].mxu0
    %4885 = vmatprep.mubr.bf16.mxu0 0
    %4886 = vmatmul.mubr.bf16.gmra.mrb[0].mxu0 %v4825
    %v4887 = vpop.f32.mrb[0].mxu0
    %v4888 = vadd.f32 %v4819, %v4887
    %v4889 = vpop.f32.mrb[0].mxu0
    %v4890 = vpop.f32.mrb[0].mxu0
    %v4891 = vadd.f32 %v4819, %v4890
    %v4892 = vpop.f32.mrb[0].mxu0
    %4893 = vmatprep.mubr.bf16.mxu0 0
    %4894 = vmatmul.mubr.bf16.gmra.mrb[0].mxu0 %v4828
    %v4895 = vpop.f32.mrb[0].mxu0
    %v4896 = vadd.f32 %v4819, %v4895
    %v4897 = vpop.f32.mrb[0].mxu0
    %v4898 = vpop.f32.mrb[0].mxu0
    %v4899 = vadd.f32 %v4819, %v4898
    %v4900 = vpop.f32.mrb[0].mxu0
    %4901 = vmatprep.mubr.bf16.mxu0 0
    %4902 = vmatmul.mubr.bf16.gmra.mrb[0].mxu0 %v4831
    %v4903 = vpop.f32.mrb[0].mxu0
    %v4904 = vadd.f32 %v4819, %v4903
    %v4905 = vpop.f32.mrb[0].mxu0
    %v4906 = vpop.f32.mrb[0].mxu0
    %v4907 = vadd.f32 %v4819, %v4906
    %v4908 = vpop.f32.mrb[0].mxu0
    %4909 = vmatprep.mubr.bf16.mxu0 0
    %4910 = vmatmul.mubr.bf16.gmra.mrb[0].mxu0 %v4834
    %v4911 = vpop.f32.mrb[0].mxu0
    %v4912 = vadd.f32 %v4819, %v4911
    %v4913 = vpop.f32.mrb[0].mxu0
    %v4914 = vpop.f32.mrb[0].mxu0
    %v4915 = vadd.f32 %v4819, %v4914
    %v4916 = vpop.f32.mrb[0].mxu0
    %4917 = vmatprep.mubr.bf16.mxu0 0
    %4918 = vmatmul.mubr.bf16.gmra.mrb[0].mxu0 %v4837
    %v4919 = vpop.f32.mrb[0].mxu0
    %v4920 = vadd.f32 %v4819, %v4919
    %v4921 = vpop.f32.mrb[0].mxu0
    %v4922 = vpop.f32.mrb[0].mxu0
    %v4923 = vadd.f32 %v4819, %v4922
    %v4924 = vpop.f32.mrb[0].mxu0
    %4925 = vmatprep.mubr.bf16.mxu0 0
    %4926 = vmatmul.mubr.bf16.gmra.mrb[0].mxu0 %v4840
    %v4927 = vpop.f32.mrb[0].mxu0
    %v4928 = vadd.f32 %v4819, %v4927
    %v4929 = vpop.f32.mrb[0].mxu0
    %v4930 = vpop.f32.mrb[0].mxu0
    %v4931 = vadd.f32 %v4819, %v4930
    %v4932 = vpop.f32.mrb[0].mxu0
    %4933 = vmatprep.mubr.bf16.mxu0 0
    %4934 = vmatmul.mubr.bf16.gmra.mrb[0].mxu0 %v4843
    %v4935 = vpop.f32.mrb[0].mxu0
    %v4936 = vadd.f32 %v4819, %v4935
    %v4937 = vpop.f32.mrb[0].mxu0
    %v4938 = vpop.f32.mrb[0].mxu0
    %v4939 = vadd.f32 %v4819, %v4938
    %v4940 = vpop.f32.mrb[0].mxu0
    %4941 = vdwg.mxu0
    %v4942 = vadd.f32 %v4632, %v4880
    %v4943 = vadd.f32 %v4633, %v4883
    %v4944 = vadd.f32 %v4634, %v4888
    %v4945 = vadd.f32 %v4635, %v4891
    %v4946 = vadd.f32 %v4636, %v4896
    %v4947 = vadd.f32 %v4637, %v4899
    %v4948 = vadd.f32 %v4638, %v4904
    %v4949 = vadd.f32 %v4639, %v4907
    %v4950 = vadd.f32 %v4640, %v4912
    %v4951 = vadd.f32 %v4641, %v4915
    %v4952 = vadd.f32 %v4642, %v4920
    %v4953 = vadd.f32 %v4643, %v4923
    %v4954 = vadd.f32 %v4644, %v4928
    %v4955 = vadd.f32 %v4645, %v4931
    %v4956 = vadd.f32 %v4646, %v4936
    %v4957 = vadd.f32 %v4647, %v4939
    %v4958 = vld [vmem:[%s2 + $0x80] sm:$0x1]
    %v4959 = vld [vmem:[%s2 + $0x88] sm:$0x1]
    %v4960 = vsel %vm401, %v4942, 0.0
    %4961 = vadd.xlane.f32.xlu0 %v4960
    %v4962 = vpop.xlane.xlu0 %4961
    %v4963 = vsel %vm401, %v4943, 0.0
    %4964 = vadd.xlane.f32.xlu0 %v4963
    %v4965 = vpop.xlane.xlu0 %4964
    %v4966 = vsel %vm401, %v4944, 0.0
    %4967 = vadd.xlane.f32.xlu0 %v4966
    %v4968 = vpop.xlane.xlu0 %4967
    %v4969 = vsel %vm401, %v4945, 0.0
    %4970 = vadd.xlane.f32.xlu0 %v4969
    %v4971 = vpop.xlane.xlu0 %4970
    %v4972 = vsel %vm401, %v4946, 0.0
    %4973 = vadd.xlane.f32.xlu0 %v4972
    %v4974 = vpop.xlane.xlu0 %4973
    %v4975 = vsel %vm401, %v4947, 0.0
    %4976 = vadd.xlane.f32.xlu0 %v4975
    %v4977 = vpop.xlane.xlu0 %4976
    %v4978 = vsel %vm401, %v4948, 0.0
    %4979 = vadd.xlane.f32.xlu0 %v4978
    %v4980 = vpop.xlane.xlu0 %4979
    %v4981 = vsel %vm401, %v4949, 0.0
    %4982 = vadd.xlane.f32.xlu0 %v4981
    %v4983 = vpop.xlane.xlu0 %4982
    %v4984 = vsel %vm401, %v4950, 0.0
    %4985 = vadd.xlane.f32.xlu0 %v4984
    %v4986 = vpop.xlane.xlu0 %4985
    %v4987 = vsel %vm401, %v4951, 0.0
    %4988 = vadd.xlane.f32.xlu0 %v4987
    %v4989 = vpop.xlane.xlu0 %4988
    %v4990 = vsel %vm401, %v4952, 0.0
    %4991 = vadd.xlane.f32.xlu0 %v4990
    %v4992 = vpop.xlane.xlu0 %4991
    %v4993 = vsel %vm401, %v4953, 0.0
    %4994 = vadd.xlane.f32.xlu0 %v4993
    %v4995 = vpop.xlane.xlu0 %4994
    %v4996 = vsel %vm401, %v4954, 0.0
    %4997 = vadd.xlane.f32.xlu0 %v4996
    %v4998 = vpop.xlane.xlu0 %4997
    %v4999 = vsel %vm401, %v4955, 0.0
    %5000 = vadd.xlane.f32.xlu0 %v4999
    %v5001 = vpop.xlane.xlu0 %5000
    %v5002 = vsel %vm401, %v4956, 0.0
    %5003 = vadd.xlane.f32.xlu0 %v5002
    %v5004 = vpop.xlane.xlu0 %5003
    %v5005 = vsel %vm401, %v4957, 0.0
    %5006 = vadd.xlane.f32.xlu0 %v5005
    %v5007 = vpop.xlane.xlu0 %5006
    %v5008 = vmul.f32 %v4962, %v4447
    %v5009 = vmul.f32 %v4965, %v4447
    %v5010 = vmul.f32 %v4968, %v4447
    %v5011 = vmul.f32 %v4971, %v4447
    %v5012 = vmul.f32 %v4974, %v4447
    %v5013 = vmul.f32 %v4977, %v4447
    %v5014 = vmul.f32 %v4980, %v4447
    %v5015 = vmul.f32 %v4983, %v4447
    %v5016 = vmul.f32 %v4986, %v4447
    %v5017 = vmul.f32 %v4989, %v4447
    %v5018 = vmul.f32 %v4992, %v4447
    %v5019 = vmul.f32 %v4995, %v4447
    %v5020 = vmul.f32 %v4998, %v4447
    %v5021 = vmul.f32 %v5001, %v4447
    %v5022 = vmul.f32 %v5004, %v4447
    %v5023 = vmul.f32 %v5007, %v4447
    %v5024 = vsub.f32 %v4942, %v5008
    %v5025 = vsub.f32 %v4943, %v5009
    %v5026 = vsub.f32 %v4944, %v5010
    %v5027 = vsub.f32 %v4945, %v5011
    %v5028 = vsub.f32 %v4946, %v5012
    %v5029 = vsub.f32 %v4947, %v5013
    %v5030 = vsub.f32 %v4948, %v5014
    %v5031 = vsub.f32 %v4949, %v5015
    %v5032 = vsub.f32 %v4950, %v5016
    %v5033 = vsub.f32 %v4951, %v5017
    %v5034 = vsub.f32 %v4952, %v5018
    %v5035 = vsub.f32 %v4953, %v5019
    %v5036 = vsub.f32 %v4954, %v5020
    %v5037 = vsub.f32 %v4955, %v5021
    %v5038 = vsub.f32 %v4956, %v5022
    %v5039 = vsub.f32 %v4957, %v5023
    %v5040 = vmul.f32 %v5024, %v5024
    %v5041 = vmul.f32 %v5025, %v5025
    %v5042 = vmul.f32 %v5026, %v5026
    %v5043 = vmul.f32 %v5027, %v5027
    %v5044 = vmul.f32 %v5028, %v5028
    %v5045 = vmul.f32 %v5029, %v5029
    %v5046 = vmul.f32 %v5030, %v5030
    %v5047 = vmul.f32 %v5031, %v5031
    %v5048 = vmul.f32 %v5032, %v5032
    %v5049 = vmul.f32 %v5033, %v5033
    %v5050 = vmul.f32 %v5034, %v5034
    %v5051 = vmul.f32 %v5035, %v5035
    %v5052 = vmul.f32 %v5036, %v5036
    %v5053 = vmul.f32 %v5037, %v5037
    %v5054 = vmul.f32 %v5038, %v5038
    %v5055 = vmul.f32 %v5039, %v5039
    %v5056 = vsel %vm401, %v5040, 0.0
    %5057 = vadd.xlane.f32.xlu0 %v5056
    %v5058 = vpop.xlane.xlu0 %5057
    %v5059 = vsel %vm401, %v5041, 0.0
    %5060 = vadd.xlane.f32.xlu0 %v5059
    %v5061 = vpop.xlane.xlu0 %5060
    %v5062 = vsel %vm401, %v5042, 0.0
    %5063 = vadd.xlane.f32.xlu0 %v5062
    %v5064 = vpop.xlane.xlu0 %5063
    %v5065 = vsel %vm401, %v5043, 0.0
    %5066 = vadd.xlane.f32.xlu0 %v5065
    %v5067 = vpop.xlane.xlu0 %5066
    %v5068 = vsel %vm401, %v5044, 0.0
    %5069 = vadd.xlane.f32.xlu0 %v5068
    %v5070 = vpop.xlane.xlu0 %5069
    %v5071 = vsel %vm401, %v5045, 0.0
    %5072 = vadd.xlane.f32.xlu0 %v5071
    %v5073 = vpop.xlane.xlu0 %5072
    %v5074 = vsel %vm401, %v5046, 0.0
    %5075 = vadd.xlane.f32.xlu0 %v5074
    %v5076 = vpop.xlane.xlu0 %5075
    %v5077 = vsel %vm401, %v5047, 0.0
    %5078 = vadd.xlane.f32.xlu0 %v5077
    %v5079 = vpop.xlane.xlu0 %5078
    %v5080 = vsel %vm401, %v5048, 0.0
    %5081 = vadd.xlane.f32.xlu0 %v5080
    %v5082 = vpop.xlane.xlu0 %5081
    %v5083 = vsel %vm401, %v5049, 0.0
    %5084 = vadd.xlane.f32.xlu0 %v5083
    %v5085 = vpop.xlane.xlu0 %5084
    %v5086 = vsel %vm401, %v5050, 0.0
    %5087 = vadd.xlane.f32.xlu0 %v5086
    %v5088 = vpop.xlane.xlu0 %5087
    %v5089 = vsel %vm401, %v5051, 0.0
    %5090 = vadd.xlane.f32.xlu0 %v5089
    %v5091 = vpop.xlane.xlu0 %5090
    %v5092 = vsel %vm401, %v5052, 0.0
    %5093 = vadd.xlane.f32.xlu0 %v5092
    %v5094 = vpop.xlane.xlu0 %5093
    %v5095 = vsel %vm401, %v5053, 0.0
    %5096 = vadd.xlane.f32.xlu0 %v5095
    %v5097 = vpop.xlane.xlu0 %5096
    %v5098 = vsel %vm401, %v5054, 0.0
    %5099 = vadd.xlane.f32.xlu0 %v5098
    %v5100 = vpop.xlane.xlu0 %5099
    %v5101 = vsel %vm401, %v5055, 0.0
    %5102 = vadd.xlane.f32.xlu0 %v5101
    %v5103 = vpop.xlane.xlu0 %5102
    %v5104 = vmul.f32 %v5058, %v4447
    %v5105 = vmul.f32 %v5061, %v4447
    %v5106 = vmul.f32 %v5064, %v4447
    %v5107 = vmul.f32 %v5067, %v4447
    %v5108 = vmul.f32 %v5070, %v4447
    %v5109 = vmul.f32 %v5073, %v4447
    %v5110 = vmul.f32 %v5076, %v4447
    %v5111 = vmul.f32 %v5079, %v4447
    %v5112 = vmul.f32 %v5082, %v4447
    %v5113 = vmul.f32 %v5085, %v4447
    %v5114 = vmul.f32 %v5088, %v4447
    %v5115 = vmul.f32 %v5091, %v4447
    %v5116 = vmul.f32 %v5094, %v4447
    %v5117 = vmul.f32 %v5097, %v4447
    %v5118 = vmul.f32 %v5100, %v4447
    %v5119 = vmul.f32 %v5103, %v4447
    %v5120 = vadd.f32 %v5104, 1e-05
    %v5121 = vadd.f32 %v5105, 1e-05
    %v5122 = vadd.f32 %v5106, 1e-05
    %v5123 = vadd.f32 %v5107, 1e-05
    %v5124 = vadd.f32 %v5108, 1e-05
    %v5125 = vadd.f32 %v5109, 1e-05
    %v5126 = vadd.f32 %v5110, 1e-05
    %v5127 = vadd.f32 %v5111, 1e-05
    %v5128 = vadd.f32 %v5112, 1e-05
    %v5129 = vadd.f32 %v5113, 1e-05
    %v5130 = vadd.f32 %v5114, 1e-05
    %v5131 = vadd.f32 %v5115, 1e-05
    %v5132 = vadd.f32 %v5116, 1e-05
    %v5133 = vadd.f32 %v5117, 1e-05
    %v5134 = vadd.f32 %v5118, 1e-05
    %v5135 = vadd.f32 %v5119, 1e-05
    %v5136 = vrsqrt.pop %v5120
    %v5137 = vrsqrt.pop %v5121
    %v5138 = vrsqrt.pop %v5122
    %v5139 = vrsqrt.pop %v5123
    %v5140 = vrsqrt.pop %v5124
    %v5141 = vrsqrt.pop %v5125
    %v5142 = vrsqrt.pop %v5126
    %v5143 = vrsqrt.pop %v5127
    %v5144 = vrsqrt.pop %v5128
    %v5145 = vrsqrt.pop %v5129
    %v5146 = vrsqrt.pop %v5130
    %v5147 = vrsqrt.pop %v5131
    %v5148 = vrsqrt.pop %v5132
    %v5149 = vrsqrt.pop %v5133
    %v5150 = vrsqrt.pop %v5134
    %v5151 = vrsqrt.pop %v5135
    %v5152 = vmul.f32 %v5024, %v5136
    %v5153 = vmul.f32 %v5025, %v5137
    %v5154 = vmul.f32 %v5026, %v5138
    %v5155 = vmul.f32 %v5027, %v5139
    %v5156 = vmul.f32 %v5028, %v5140
    %v5157 = vmul.f32 %v5029, %v5141
    %v5158 = vmul.f32 %v5030, %v5142
    %v5159 = vmul.f32 %v5031, %v5143
    %v5160 = vmul.f32 %v5032, %v5144
    %v5161 = vmul.f32 %v5033, %v5145
    %v5162 = vmul.f32 %v5034, %v5146
    %v5163 = vmul.f32 %v5035, %v5147
    %v5164 = vmul.f32 %v5036, %v5148
    %v5165 = vmul.f32 %v5037, %v5149
    %v5166 = vmul.f32 %v5038, %v5150
    %v5167 = vmul.f32 %v5039, %v5151
    %v5168 = vlaneseq
    %v5169 = vshrl.u32 %v5168, 7
    %v5170 = vsub.s32 0, %v5169
    %v5171 = vrot.slane %v4958, %v5170
    %v5172 = vmul.f32 %v5152, %v5171
    %v5173 = vmul.f32 %v5153, %v5171
    %v5174 = vmul.f32 %v5154, %v5171
    %v5175 = vmul.f32 %v5155, %v5171
    %v5176 = vmul.f32 %v5156, %v5171
    %v5177 = vmul.f32 %v5157, %v5171
    %v5178 = vmul.f32 %v5158, %v5171
    %v5179 = vmul.f32 %v5159, %v5171
    %v5180 = vmul.f32 %v5160, %v5171
    %v5181 = vmul.f32 %v5161, %v5171
    %v5182 = vmul.f32 %v5162, %v5171
    %v5183 = vmul.f32 %v5163, %v5171
    %v5184 = vmul.f32 %v5164, %v5171
    %v5185 = vmul.f32 %v5165, %v5171
    %v5186 = vmul.f32 %v5166, %v5171
    %v5187 = vmul.f32 %v5167, %v5171
    %v5188 = vlaneseq
    %v5189 = vshrl.u32 %v5188, 7
    %v5190 = vsub.s32 0, %v5189
    %v5191 = vrot.slane %v4959, %v5190
    %v5192 = vadd.f32 %v5172, %v5191
    %v5193 = vadd.f32 %v5173, %v5191
    %v5194 = vadd.f32 %v5174, %v5191
    %v5195 = vadd.f32 %v5175, %v5191
    %v5196 = vadd.f32 %v5176, %v5191
    %v5197 = vadd.f32 %v5177, %v5191
    %v5198 = vadd.f32 %v5178, %v5191
    %v5199 = vadd.f32 %v5179, %v5191
    %v5200 = vadd.f32 %v5180, %v5191
    %v5201 = vadd.f32 %v5181, %v5191
    %v5202 = vadd.f32 %v5182, %v5191
    %v5203 = vadd.f32 %v5183, %v5191
    %v5204 = vadd.f32 %v5184, %v5191
    %v5205 = vadd.f32 %v5185, %v5191
    %v5206 = vadd.f32 %v5186, %v5191
    %v5207 = vadd.f32 %v5187, %v5191
    %v5208 = vld [vmem:[%s2 + $0x90] sm:$0xff]
    %v5209 = vld [vmem:[%s2 + $0x98] sm:$0xff]
    %v5210 = vpack.c.bf16 %v5193, %v5192
    %v5211 = vpack.c.bf16 %v5195, %v5194
    %v5212 = vpack.c.bf16 %v5197, %v5196
    %v5213 = vpack.c.bf16 %v5199, %v5198
    %v5214 = vpack.c.bf16 %v5201, %v5200
    %v5215 = vpack.c.bf16 %v5203, %v5202
    %v5216 = vpack.c.bf16 %v5205, %v5204
    %v5217 = vpack.c.bf16 %v5207, %v5206
    %v5218 = vpack.c.bf16 %v5209, %v5208
    %v5219 = vld [vmem:[%s2 + $0xa0] sm:$0x1]
    %v5220 = vlaneseq
    %v5221 = vshrl.u32 %v5220, 7
    %v5222 = vsub.s32 0, %v5221
    %v5223 = vrot.slane %v5219, %v5222
    %v5225 = vsel %vm401, %v5210, 0
    %v5228 = vsel %vm401, %v5211, 0
    %v5231 = vsel %vm401, %v5212, 0
    %v5234 = vsel %vm401, %v5213, 0
    %v5237 = vsel %vm401, %v5214, 0
    %v5240 = vsel %vm401, %v5215, 0
    %v5243 = vsel %vm401, %v5216, 0
    %v5246 = vsel %vm401, %v5217, 0
    %5248 = vmatprep.subr.bf16.mxu0 0
    %5249 = vmatpush1.bf16.msra.mxu0 %v5218
    %5250 = vmatprep.subr.bf16.mxu0 0
    %5251 = vmatpush1.bf16.msra.mxu0 0
    %5252 = vmatprep.subr.bf16.mxu0 0
    %5253 = vmatpush1.bf16.msra.mxu0 0
    %5254 = vmatprep.subr.bf16.mxu0 0
    %5255 = vmatpush1.bf16.msra.mxu0 0
    %5256 = vmatprep.subr.bf16.mxu0 0
    %5257 = vmatpush1.bf16.msra.mxu0 0
    %5258 = vmatprep.subr.bf16.mxu0 0
    %5259 = vmatpush1.bf16.msra.mxu0 0
    %5260 = vmatprep.subr.bf16.mxu0 0
    %5261 = vmatpush1.bf16.msra.mxu0 0
    %5262 = vmatprep.subr.bf16.mxu0 0
    %5263 = vmatpush1.bf16.msra.mxu0 0
    %5264 = vmatprep.subr.bf16.mxu0 0
    %5265 = vmatpush1.bf16.msra.mxu0 0
    %5266 = vmatprep.subr.bf16.mxu0 0
    %5267 = vmatpush1.bf16.msra.mxu0 0
    %5268 = vmatprep.subr.bf16.mxu0 0
    %5269 = vmatpush1.bf16.msra.mxu0 0
    %5270 = vmatprep.subr.bf16.mxu0 0
    %5271 = vmatpush1.bf16.msra.mxu0 0
    %5272 = vmatprep.subr.bf16.mxu0 0
    %5273 = vmatpush1.bf16.msra.mxu0 0
    %5274 = vmatprep.subr.bf16.mxu0 0
    %5275 = vmatpush1.bf16.msra.mxu0 0
    %5276 = vmatprep.subr.bf16.mxu0 0
    %5277 = vmatpush1.bf16.msra.mxu0 0
    %5278 = vmatprep.subr.bf16.mxu0 0
    %5279 = vmatpush1.bf16.msra.mxu0 0
    %5280 = vmatprep.mubr.bf16.mxu0 0
    %5281 = vmatmul.mubr.bf16.gmra.mrb[0].mxu0 %v5225
    %v5282 = vpop.f32.mrb[0].mxu0
    %v5283 = vadd.f32 %v5223, %v5282
    %v5284 = vpop.f32.mrb[0].mxu0
    %v5285 = vpop.f32.mrb[0].mxu0
    %v5286 = vadd.f32 %v5223, %v5285
    %v5287 = vpop.f32.mrb[0].mxu0
    %5288 = vmatprep.mubr.bf16.mxu0 0
    %5289 = vmatmul.mubr.bf16.gmra.mrb[0].mxu0 %v5228
    %v5290 = vpop.f32.mrb[0].mxu0
    %v5291 = vadd.f32 %v5223, %v5290
    %v5292 = vpop.f32.mrb[0].mxu0
    %v5293 = vpop.f32.mrb[0].mxu0
    %v5294 = vadd.f32 %v5223, %v5293
    %v5295 = vpop.f32.mrb[0].mxu0
    %5296 = vmatprep.mubr.bf16.mxu0 0
    %5297 = vmatmul.mubr.bf16.gmra.mrb[0].mxu0 %v5231
    %v5298 = vpop.f32.mrb[0].mxu0
    %v5299 = vadd.f32 %v5223, %v5298
    %v5300 = vpop.f32.mrb[0].mxu0
    %v5301 = vpop.f32.mrb[0].mxu0
    %v5302 = vadd.f32 %v5223, %v5301
    %v5303 = vpop.f32.mrb[0].mxu0
    %5304 = vmatprep.mubr.bf16.mxu0 0
    %5305 = vmatmul.mubr.bf16.gmra.mrb[0].mxu0 %v5234
    %v5306 = vpop.f32.mrb[0].mxu0
    %v5307 = vadd.f32 %v5223, %v5306
    %v5308 = vpop.f32.mrb[0].mxu0
    %v5309 = vpop.f32.mrb[0].mxu0
    %v5310 = vadd.f32 %v5223, %v5309
    %v5311 = vpop.f32.mrb[0].mxu0
    %5312 = vmatprep.mubr.bf16.mxu0 0
    %5313 = vmatmul.mubr.bf16.gmra.mrb[0].mxu0 %v5237
    %v5314 = vpop.f32.mrb[0].mxu0
    %v5315 = vadd.f32 %v5223, %v5314
    %v5316 = vpop.f32.mrb[0].mxu0
    %v5317 = vpop.f32.mrb[0].mxu0
    %v5318 = vadd.f32 %v5223, %v5317
    %v5319 = vpop.f32.mrb[0].mxu0
    %5320 = vmatprep.mubr.bf16.mxu0 0
    %5321 = vmatmul.mubr.bf16.gmra.mrb[0].mxu0 %v5240
    %v5322 = vpop.f32.mrb[0].mxu0
    %v5323 = vadd.f32 %v5223, %v5322
    %v5324 = vpop.f32.mrb[0].mxu0
    %v5325 = vpop.f32.mrb[0].mxu0
    %v5326 = vadd.f32 %v5223, %v5325
    %v5327 = vpop.f32.mrb[0].mxu0
    %5328 = vmatprep.mubr.bf16.mxu0 0
    %5329 = vmatmul.mubr.bf16.gmra.mrb[0].mxu0 %v5243
    %v5330 = vpop.f32.mrb[0].mxu0
    %v5331 = vadd.f32 %v5223, %v5330
    %v5332 = vpop.f32.mrb[0].mxu0
    %v5333 = vpop.f32.mrb[0].mxu0
    %v5334 = vadd.f32 %v5223, %v5333
    %v5335 = vpop.f32.mrb[0].mxu0
    %5336 = vmatprep.mubr.bf16.mxu0 0
    %5337 = vmatmul.mubr.bf16.gmra.mrb[0].mxu0 %v5246
    %v5338 = vpop.f32.mrb[0].mxu0
    %v5339 = vadd.f32 %v5223, %v5338
    %v5340 = vpop.f32.mrb[0].mxu0
    %v5341 = vpop.f32.mrb[0].mxu0
    %v5342 = vadd.f32 %v5223, %v5341
    %v5343 = vpop.f32.mrb[0].mxu0
    %5344 = vdwg.mxu0
    %v5345 = vld [vmem:[%s2 + $0xa8] sm:$0xff]
    %v5346 = vld [vmem:[%s2 + $0xb0] sm:$0xff]
    %v5347 = vmul.f32 %v5283, 0.35355338
    %v5348 = vmul.f32 %v5286, 0.35355338
    %v5349 = vmul.f32 %v5291, 0.35355338
    %v5350 = vmul.f32 %v5294, 0.35355338
    %v5351 = vmul.f32 %v5299, 0.35355338
    %v5352 = vmul.f32 %v5302, 0.35355338
    %v5353 = vmul.f32 %v5307, 0.35355338
    %v5354 = vmul.f32 %v5310, 0.35355338
    %v5355 = vmul.f32 %v5315, 0.35355338
    %v5356 = vmul.f32 %v5318, 0.35355338
    %v5357 = vmul.f32 %v5323, 0.35355338
    %v5358 = vmul.f32 %v5326, 0.35355338
    %v5359 = vmul.f32 %v5331, 0.35355338
    %v5360 = vmul.f32 %v5334, 0.35355338
    %v5361 = vmul.f32 %v5339, 0.35355338
    %v5362 = vmul.f32 %v5342, 0.35355338
    %v5363 = vpack.c.bf16 %v5347, %v5347
    %v5364 = vpack.c.bf16 %v5348, %v5348
    %v5365 = vpack.c.bf16 %v5349, %v5349
    %v5366 = vpack.c.bf16 %v5350, %v5350
    %v5367 = vpack.c.bf16 %v5351, %v5351
    %v5368 = vpack.c.bf16 %v5352, %v5352
    %v5369 = vpack.c.bf16 %v5353, %v5353
    %v5370 = vpack.c.bf16 %v5354, %v5354
    %v5371 = vpack.c.bf16 %v5355, %v5355
    %v5372 = vpack.c.bf16 %v5356, %v5356
    %v5373 = vpack.c.bf16 %v5357, %v5357
    %v5374 = vpack.c.bf16 %v5358, %v5358
    %v5375 = vpack.c.bf16 %v5359, %v5359
    %v5376 = vpack.c.bf16 %v5360, %v5360
    %v5377 = vpack.c.bf16 %v5361, %v5361
    %v5378 = vpack.c.bf16 %v5362, %v5362
    %v5379 = vpack.c.bf16 %v5283, %v5283
    %v5380 = vpack.c.bf16 %v5286, %v5286
    %v5381 = vpack.c.bf16 %v5291, %v5291
    %v5382 = vpack.c.bf16 %v5294, %v5294
    %v5383 = vpack.c.bf16 %v5299, %v5299
    %v5384 = vpack.c.bf16 %v5302, %v5302
    %v5385 = vpack.c.bf16 %v5307, %v5307
    %v5386 = vpack.c.bf16 %v5310, %v5310
    %v5387 = vpack.c.bf16 %v5315, %v5315
    %v5388 = vpack.c.bf16 %v5318, %v5318
    %v5389 = vpack.c.bf16 %v5323, %v5323
    %v5390 = vpack.c.bf16 %v5326, %v5326
    %v5391 = vpack.c.bf16 %v5331, %v5331
    %v5392 = vpack.c.bf16 %v5334, %v5334
    %v5393 = vpack.c.bf16 %v5339, %v5339
    %v5394 = vpack.c.bf16 %v5342, %v5342
    %5396 = vrot.lane.b32.xlu0 %v5379, 112
    %v5397 = vpop.permute.xlu0 %5396
    %v5399 = vsel %vm576, %v5363, 0
    %v5402 = vsel %vm576, %v5397, 0
    %5404 = vmatprep.subr.bf16.mxu0 0
    %5405 = vmatpush1.bf16.xpose.msra.mxu0 %v5402
    %5406 = vmatprep.subr.bf16.mxu0 0
    %5407 = vmatpush1.bf16.xpose.msra.mxu0 0
    %5408 = vmatprep.subr.bf16.mxu0 0
    %5409 = vmatpush1.bf16.xpose.msra.mxu0 0
    %5410 = vmatprep.subr.bf16.mxu0 0
    %5411 = vmatpush1.bf16.xpose.msra.mxu0 0
    %5412 = vmatprep.subr.bf16.mxu0 0
    %5413 = vmatpush1.bf16.xpose.msra.mxu0 0
    %5414 = vmatprep.subr.bf16.mxu0 0
    %5415 = vmatpush1.bf16.xpose.msra.mxu0 0
    %5416 = vmatprep.subr.bf16.mxu0 0
    %5417 = vmatpush1.bf16.xpose.msra.mxu0 0
    %5418 = vmatprep.subr.bf16.mxu0 0
    %5419 = vmatpush1.bf16.xpose.msra.mxu0 0
    %5420 = vmatprep.subr.bf16.mxu0 0
    %5421 = vmatpush1.bf16.xpose.msra.mxu0 0
    %5422 = vmatprep.subr.bf16.mxu0 0
    %5423 = vmatpush1.bf16.xpose.msra.mxu0 0
    %5424 = vmatprep.subr.bf16.mxu0 0
    %5425 = vmatpush1.bf16.xpose.msra.mxu0 0
    %5426 = vmatprep.subr.bf16.mxu0 0
    %5427 = vmatpush1.bf16.xpose.msra.mxu0 0
    %5428 = vmatprep.subr.bf16.mxu0 0
    %5429 = vmatpush1.bf16.xpose.msra.mxu0 0
    %5430 = vmatprep.subr.bf16.mxu0 0
    %5431 = vmatpush1.bf16.xpose.msra.mxu0 0
    %5432 = vmatprep.subr.bf16.mxu0 0
    %5433 = vmatpush1.bf16.xpose.msra.mxu0 0
    %5434 = vmatprep.subr.bf16.mxu0 0
    %5435 = vmatpush1.bf16.xpose.msra.mxu0 0
    %5436 = vmatprep.mubr.bf16.mxu0 0
    %5437 = vmatmul.mubr.bf16.gmra.mrb[0].mxu0 %v5399
    %v5438 = vpop.f32.mrb[0].mxu0
    %v5439 = vadd.f32 0.0, %v5438
    %v5440 = vpop.f32.mrb[0].mxu0
    %v5441 = vpop.f32.mrb[0].mxu0
    %v5442 = vpop.f32.mrb[0].mxu0
    %5443 = vdwg.mxu0
    %5445 = vrot.lane.b32.xlu0 %v5380, 112
    %v5446 = vpop.permute.xlu0 %5445
    %v5448 = vsel %vm576, %v5364, 0
    %v5451 = vsel %vm576, %v5446, 0
    %5453 = vmatprep.subr.bf16.mxu0 0
    %5454 = vmatpush1.bf16.xpose.msra.mxu0 %v5451
    %5455 = vmatprep.subr.bf16.mxu0 0
    %5456 = vmatpush1.bf16.xpose.msra.mxu0 0
    %5457 = vmatprep.subr.bf16.mxu0 0
    %5458 = vmatpush1.bf16.xpose.msra.mxu0 0
    %5459 = vmatprep.subr.bf16.mxu0 0
    %5460 = vmatpush1.bf16.xpose.msra.mxu0 0
    %5461 = vmatprep.subr.bf16.mxu0 0
    %5462 = vmatpush1.bf16.xpose.msra.mxu0 0
    %5463 = vmatprep.subr.bf16.mxu0 0
    %5464 = vmatpush1.bf16.xpose.msra.mxu0 0
    %5465 = vmatprep.subr.bf16.mxu0 0
    %5466 = vmatpush1.bf16.xpose.msra.mxu0 0
    %5467 = vmatprep.subr.bf16.mxu0 0
    %5468 = vmatpush1.bf16.xpose.msra.mxu0 0
    %5469 = vmatprep.subr.bf16.mxu0 0
    %5470 = vmatpush1.bf16.xpose.msra.mxu0 0
    %5471 = vmatprep.subr.bf16.mxu0 0
    %5472 = vmatpush1.bf16.xpose.msra.mxu0 0
    %5473 = vmatprep.subr.bf16.mxu0 0
    %5474 = vmatpush1.bf16.xpose.msra.mxu0 0
    %5475 = vmatprep.subr.bf16.mxu0 0
    %5476 = vmatpush1.bf16.xpose.msra.mxu0 0
    %5477 = vmatprep.subr.bf16.mxu0 0
    %5478 = vmatpush1.bf16.xpose.msra.mxu0 0
    %5479 = vmatprep.subr.bf16.mxu0 0
    %5480 = vmatpush1.bf16.xpose.msra.mxu0 0
    %5481 = vmatprep.subr.bf16.mxu0 0
    %5482 = vmatpush1.bf16.xpose.msra.mxu0 0
    %5483 = vmatprep.subr.bf16.mxu0 0
    %5484 = vmatpush1.bf16.xpose.msra.mxu0 0
    %5485 = vmatprep.mubr.bf16.mxu0 0
    %5486 = vmatmul.mubr.bf16.gmra.mrb[0].mxu0 %v5448
    %v5487 = vpop.f32.mrb[0].mxu0
    %v5488 = vadd.f32 0.0, %v5487
    %v5489 = vpop.f32.mrb[0].mxu0
    %v5490 = vpop.f32.mrb[0].mxu0
    %v5491 = vpop.f32.mrb[0].mxu0
    %5492 = vdwg.mxu0
    %5494 = vrot.lane.b32.xlu0 %v5381, 112
    %v5495 = vpop.permute.xlu0 %5494
    %v5497 = vsel %vm576, %v5365, 0
    %v5500 = vsel %vm576, %v5495, 0
    %5502 = vmatprep.subr.bf16.mxu0 0
    %5503 = vmatpush1.bf16.xpose.msra.mxu0 %v5500
    %5504 = vmatprep.subr.bf16.mxu0 0
    %5505 = vmatpush1.bf16.xpose.msra.mxu0 0
    %5506 = vmatprep.subr.bf16.mxu0 0
    %5507 = vmatpush1.bf16.xpose.msra.mxu0 0
    %5508 = vmatprep.subr.bf16.mxu0 0
    %5509 = vmatpush1.bf16.xpose.msra.mxu0 0
    %5510 = vmatprep.subr.bf16.mxu0 0
    %5511 = vmatpush1.bf16.xpose.msra.mxu0 0
    %5512 = vmatprep.subr.bf16.mxu0 0
    %5513 = vmatpush1.bf16.xpose.msra.mxu0 0
    %5514 = vmatprep.subr.bf16.mxu0 0
    %5515 = vmatpush1.bf16.xpose.msra.mxu0 0
    %5516 = vmatprep.subr.bf16.mxu0 0
    %5517 = vmatpush1.bf16.xpose.msra.mxu0 0
    %5518 = vmatprep.subr.bf16.mxu0 0
    %5519 = vmatpush1.bf16.xpose.msra.mxu0 0
    %5520 = vmatprep.subr.bf16.mxu0 0
    %5521 = vmatpush1.bf16.xpose.msra.mxu0 0
    %5522 = vmatprep.subr.bf16.mxu0 0
    %5523 = vmatpush1.bf16.xpose.msra.mxu0 0
    %5524 = vmatprep.subr.bf16.mxu0 0
    %5525 = vmatpush1.bf16.xpose.msra.mxu0 0
    %5526 = vmatprep.subr.bf16.mxu0 0
    %5527 = vmatpush1.bf16.xpose.msra.mxu0 0
    %5528 = vmatprep.subr.bf16.mxu0 0
    %5529 = vmatpush1.bf16.xpose.msra.mxu0 0
    %5530 = vmatprep.subr.bf16.mxu0 0
    %5531 = vmatpush1.bf16.xpose.msra.mxu0 0
    %5532 = vmatprep.subr.bf16.mxu0 0
    %5533 = vmatpush1.bf16.xpose.msra.mxu0 0
    %5534 = vmatprep.mubr.bf16.mxu0 0
    %5535 = vmatmul.mubr.bf16.gmra.mrb[0].mxu0 %v5497
    %v5536 = vpop.f32.mrb[0].mxu0
    %v5537 = vadd.f32 0.0, %v5536
    %v5538 = vpop.f32.mrb[0].mxu0
    %v5539 = vpop.f32.mrb[0].mxu0
    %v5540 = vpop.f32.mrb[0].mxu0
    %5541 = vdwg.mxu0
    %5543 = vrot.lane.b32.xlu0 %v5382, 112
    %v5544 = vpop.permute.xlu0 %5543
    %v5546 = vsel %vm576, %v5366, 0
    %v5549 = vsel %vm576, %v5544, 0
    %5551 = vmatprep.subr.bf16.mxu0 0
    %5552 = vmatpush1.bf16.xpose.msra.mxu0 %v5549
    %5553 = vmatprep.subr.bf16.mxu0 0
    %5554 = vmatpush1.bf16.xpose.msra.mxu0 0
    %5555 = vmatprep.subr.bf16.mxu0 0
    %5556 = vmatpush1.bf16.xpose.msra.mxu0 0
    %5557 = vmatprep.subr.bf16.mxu0 0
    %5558 = vmatpush1.bf16.xpose.msra.mxu0 0
    %5559 = vmatprep.subr.bf16.mxu0 0
    %5560 = vmatpush1.bf16.xpose.msra.mxu0 0
    %5561 = vmatprep.subr.bf16.mxu0 0
    %5562 = vmatpush1.bf16.xpose.msra.mxu0 0
    %5563 = vmatprep.subr.bf16.mxu0 0
    %5564 = vmatpush1.bf16.xpose.msra.mxu0 0
    %5565 = vmatprep.subr.bf16.mxu0 0
    %5566 = vmatpush1.bf16.xpose.msra.mxu0 0
    %5567 = vmatprep.subr.bf16.mxu0 0
    %5568 = vmatpush1.bf16.xpose.msra.mxu0 0
    %5569 = vmatprep.subr.bf16.mxu0 0
    %5570 = vmatpush1.bf16.xpose.msra.mxu0 0
    %5571 = vmatprep.subr.bf16.mxu0 0
    %5572 = vmatpush1.bf16.xpose.msra.mxu0 0
    %5573 = vmatprep.subr.bf16.mxu0 0
    %5574 = vmatpush1.bf16.xpose.msra.mxu0 0
    %5575 = vmatprep.subr.bf16.mxu0 0
    %5576 = vmatpush1.bf16.xpose.msra.mxu0 0
    %5577 = vmatprep.subr.bf16.mxu0 0
    %5578 = vmatpush1.bf16.xpose.msra.mxu0 0
    %5579 = vmatprep.subr.bf16.mxu0 0
    %5580 = vmatpush1.bf16.xpose.msra.mxu0 0
    %5581 = vmatprep.subr.bf16.mxu0 0
    %5582 = vmatpush1.bf16.xpose.msra.mxu0 0
    %5583 = vmatprep.mubr.bf16.mxu0 0
    %5584 = vmatmul.mubr.bf16.gmra.mrb[0].mxu0 %v5546
    %v5585 = vpop.f32.mrb[0].mxu0
    %v5586 = vadd.f32 0.0, %v5585
    %v5587 = vpop.f32.mrb[0].mxu0
    %v5588 = vpop.f32.mrb[0].mxu0
    %v5589 = vpop.f32.mrb[0].mxu0
    %5590 = vdwg.mxu0
    %5592 = vrot.lane.b32.xlu0 %v5383, 112
    %v5593 = vpop.permute.xlu0 %5592
    %v5595 = vsel %vm576, %v5367, 0
    %v5598 = vsel %vm576, %v5593, 0
    %5600 = vmatprep.subr.bf16.mxu0 0
    %5601 = vmatpush1.bf16.xpose.msra.mxu0 %v5598
    %5602 = vmatprep.subr.bf16.mxu0 0
    %5603 = vmatpush1.bf16.xpose.msra.mxu0 0
    %5604 = vmatprep.subr.bf16.mxu0 0
    %5605 = vmatpush1.bf16.xpose.msra.mxu0 0
    %5606 = vmatprep.subr.bf16.mxu0 0
    %5607 = vmatpush1.bf16.xpose.msra.mxu0 0
    %5608 = vmatprep.subr.bf16.mxu0 0
    %5609 = vmatpush1.bf16.xpose.msra.mxu0 0
    %5610 = vmatprep.subr.bf16.mxu0 0
    %5611 = vmatpush1.bf16.xpose.msra.mxu0 0
    %5612 = vmatprep.subr.bf16.mxu0 0
    %5613 = vmatpush1.bf16.xpose.msra.mxu0 0
    %5614 = vmatprep.subr.bf16.mxu0 0
    %5615 = vmatpush1.bf16.xpose.msra.mxu0 0
    %5616 = vmatprep.subr.bf16.mxu0 0
    %5617 = vmatpush1.bf16.xpose.msra.mxu0 0
    %5618 = vmatprep.subr.bf16.mxu0 0
    %5619 = vmatpush1.bf16.xpose.msra.mxu0 0
    %5620 = vmatprep.subr.bf16.mxu0 0
    %5621 = vmatpush1.bf16.xpose.msra.mxu0 0
    %5622 = vmatprep.subr.bf16.mxu0 0
    %5623 = vmatpush1.bf16.xpose.msra.mxu0 0
    %5624 = vmatprep.subr.bf16.mxu0 0
    %5625 = vmatpush1.bf16.xpose.msra.mxu0 0
    %5626 = vmatprep.subr.bf16.mxu0 0
    %5627 = vmatpush1.bf16.xpose.msra.mxu0 0
    %5628 = vmatprep.subr.bf16.mxu0 0
    %5629 = vmatpush1.bf16.xpose.msra.mxu0 0
    %5630 = vmatprep.subr.bf16.mxu0 0
    %5631 = vmatpush1.bf16.xpose.msra.mxu0 0
    %5632 = vmatprep.mubr.bf16.mxu0 0
    %5633 = vmatmul.mubr.bf16.gmra.mrb[0].mxu0 %v5595
    %v5634 = vpop.f32.mrb[0].mxu0
    %v5635 = vadd.f32 0.0, %v5634
    %v5636 = vpop.f32.mrb[0].mxu0
    %v5637 = vpop.f32.mrb[0].mxu0
    %v5638 = vpop.f32.mrb[0].mxu0
    %5639 = vdwg.mxu0
    %5641 = vrot.lane.b32.xlu0 %v5384, 112
    %v5642 = vpop.permute.xlu0 %5641
    %v5644 = vsel %vm576, %v5368, 0
    %v5647 = vsel %vm576, %v5642, 0
    %5649 = vmatprep.subr.bf16.mxu0 0
    %5650 = vmatpush1.bf16.xpose.msra.mxu0 %v5647
    %5651 = vmatprep.subr.bf16.mxu0 0
    %5652 = vmatpush1.bf16.xpose.msra.mxu0 0
    %5653 = vmatprep.subr.bf16.mxu0 0
    %5654 = vmatpush1.bf16.xpose.msra.mxu0 0
    %5655 = vmatprep.subr.bf16.mxu0 0
    %5656 = vmatpush1.bf16.xpose.msra.mxu0 0
    %5657 = vmatprep.subr.bf16.mxu0 0
    %5658 = vmatpush1.bf16.xpose.msra.mxu0 0
    %5659 = vmatprep.subr.bf16.mxu0 0
    %5660 = vmatpush1.bf16.xpose.msra.mxu0 0
    %5661 = vmatprep.subr.bf16.mxu0 0
    %5662 = vmatpush1.bf16.xpose.msra.mxu0 0
    %5663 = vmatprep.subr.bf16.mxu0 0
    %5664 = vmatpush1.bf16.xpose.msra.mxu0 0
    %5665 = vmatprep.subr.bf16.mxu0 0
    %5666 = vmatpush1.bf16.xpose.msra.mxu0 0
    %5667 = vmatprep.subr.bf16.mxu0 0
    %5668 = vmatpush1.bf16.xpose.msra.mxu0 0
    %5669 = vmatprep.subr.bf16.mxu0 0
    %5670 = vmatpush1.bf16.xpose.msra.mxu0 0
    %5671 = vmatprep.subr.bf16.mxu0 0
    %5672 = vmatpush1.bf16.xpose.msra.mxu0 0
    %5673 = vmatprep.subr.bf16.mxu0 0
    %5674 = vmatpush1.bf16.xpose.msra.mxu0 0
    %5675 = vmatprep.subr.bf16.mxu0 0
    %5676 = vmatpush1.bf16.xpose.msra.mxu0 0
    %5677 = vmatprep.subr.bf16.mxu0 0
    %5678 = vmatpush1.bf16.xpose.msra.mxu0 0
    %5679 = vmatprep.subr.bf16.mxu0 0
    %5680 = vmatpush1.bf16.xpose.msra.mxu0 0
    %5681 = vmatprep.mubr.bf16.mxu0 0
    %5682 = vmatmul.mubr.bf16.gmra.mrb[0].mxu0 %v5644
    %v5683 = vpop.f32.mrb[0].mxu0
    %v5684 = vadd.f32 0.0, %v5683
    %v5685 = vpop.f32.mrb[0].mxu0
    %v5686 = vpop.f32.mrb[0].mxu0
    %v5687 = vpop.f32.mrb[0].mxu0
    %5688 = vdwg.mxu0
    %5690 = vrot.lane.b32.xlu0 %v5385, 112
    %v5691 = vpop.permute.xlu0 %5690
    %v5693 = vsel %vm576, %v5369, 0
    %v5696 = vsel %vm576, %v5691, 0
    %5698 = vmatprep.subr.bf16.mxu0 0
    %5699 = vmatpush1.bf16.xpose.msra.mxu0 %v5696
    %5700 = vmatprep.subr.bf16.mxu0 0
    %5701 = vmatpush1.bf16.xpose.msra.mxu0 0
    %5702 = vmatprep.subr.bf16.mxu0 0
    %5703 = vmatpush1.bf16.xpose.msra.mxu0 0
    %5704 = vmatprep.subr.bf16.mxu0 0
    %5705 = vmatpush1.bf16.xpose.msra.mxu0 0
    %5706 = vmatprep.subr.bf16.mxu0 0
    %5707 = vmatpush1.bf16.xpose.msra.mxu0 0
    %5708 = vmatprep.subr.bf16.mxu0 0
    %5709 = vmatpush1.bf16.xpose.msra.mxu0 0
    %5710 = vmatprep.subr.bf16.mxu0 0
    %5711 = vmatpush1.bf16.xpose.msra.mxu0 0
    %5712 = vmatprep.subr.bf16.mxu0 0
    %5713 = vmatpush1.bf16.xpose.msra.mxu0 0
    %5714 = vmatprep.subr.bf16.mxu0 0
    %5715 = vmatpush1.bf16.xpose.msra.mxu0 0
    %5716 = vmatprep.subr.bf16.mxu0 0
    %5717 = vmatpush1.bf16.xpose.msra.mxu0 0
    %5718 = vmatprep.subr.bf16.mxu0 0
    %5719 = vmatpush1.bf16.xpose.msra.mxu0 0
    %5720 = vmatprep.subr.bf16.mxu0 0
    %5721 = vmatpush1.bf16.xpose.msra.mxu0 0
    %5722 = vmatprep.subr.bf16.mxu0 0
    %5723 = vmatpush1.bf16.xpose.msra.mxu0 0
    %5724 = vmatprep.subr.bf16.mxu0 0
    %5725 = vmatpush1.bf16.xpose.msra.mxu0 0
    %5726 = vmatprep.subr.bf16.mxu0 0
    %5727 = vmatpush1.bf16.xpose.msra.mxu0 0
    %5728 = vmatprep.subr.bf16.mxu0 0
    %5729 = vmatpush1.bf16.xpose.msra.mxu0 0
    %5730 = vmatprep.mubr.bf16.mxu0 0
    %5731 = vmatmul.mubr.bf16.gmra.mrb[0].mxu0 %v5693
    %v5732 = vpop.f32.mrb[0].mxu0
    %v5733 = vadd.f32 0.0, %v5732
    %v5734 = vpop.f32.mrb[0].mxu0
    %v5735 = vpop.f32.mrb[0].mxu0
    %v5736 = vpop.f32.mrb[0].mxu0
    %5737 = vdwg.mxu0
    %5739 = vrot.lane.b32.xlu0 %v5386, 112
    %v5740 = vpop.permute.xlu0 %5739
    %v5742 = vsel %vm576, %v5370, 0
    %v5745 = vsel %vm576, %v5740, 0
    %5747 = vmatprep.subr.bf16.mxu0 0
    %5748 = vmatpush1.bf16.xpose.msra.mxu0 %v5745
    %5749 = vmatprep.subr.bf16.mxu0 0
    %5750 = vmatpush1.bf16.xpose.msra.mxu0 0
    %5751 = vmatprep.subr.bf16.mxu0 0
    %5752 = vmatpush1.bf16.xpose.msra.mxu0 0
    %5753 = vmatprep.subr.bf16.mxu0 0
    %5754 = vmatpush1.bf16.xpose.msra.mxu0 0
    %5755 = vmatprep.subr.bf16.mxu0 0
    %5756 = vmatpush1.bf16.xpose.msra.mxu0 0
    %5757 = vmatprep.subr.bf16.mxu0 0
    %5758 = vmatpush1.bf16.xpose.msra.mxu0 0
    %5759 = vmatprep.subr.bf16.mxu0 0
    %5760 = vmatpush1.bf16.xpose.msra.mxu0 0
    %5761 = vmatprep.subr.bf16.mxu0 0
    %5762 = vmatpush1.bf16.xpose.msra.mxu0 0
    %5763 = vmatprep.subr.bf16.mxu0 0
    %5764 = vmatpush1.bf16.xpose.msra.mxu0 0
    %5765 = vmatprep.subr.bf16.mxu0 0
    %5766 = vmatpush1.bf16.xpose.msra.mxu0 0
    %5767 = vmatprep.subr.bf16.mxu0 0
    %5768 = vmatpush1.bf16.xpose.msra.mxu0 0
    %5769 = vmatprep.subr.bf16.mxu0 0
    %5770 = vmatpush1.bf16.xpose.msra.mxu0 0
    %5771 = vmatprep.subr.bf16.mxu0 0
    %5772 = vmatpush1.bf16.xpose.msra.mxu0 0
    %5773 = vmatprep.subr.bf16.mxu0 0
    %5774 = vmatpush1.bf16.xpose.msra.mxu0 0
    %5775 = vmatprep.subr.bf16.mxu0 0
    %5776 = vmatpush1.bf16.xpose.msra.mxu0 0
    %5777 = vmatprep.subr.bf16.mxu0 0
    %5778 = vmatpush1.bf16.xpose.msra.mxu0 0
    %5779 = vmatprep.mubr.bf16.mxu0 0
    %5780 = vmatmul.mubr.bf16.gmra.mrb[0].mxu0 %v5742
    %v5781 = vpop.f32.mrb[0].mxu0
    %v5782 = vadd.f32 0.0, %v5781
    %v5783 = vpop.f32.mrb[0].mxu0
    %v5784 = vpop.f32.mrb[0].mxu0
    %v5785 = vpop.f32.mrb[0].mxu0
    %5786 = vdwg.mxu0
    %5788 = vrot.lane.b32.xlu0 %v5387, 112
    %v5789 = vpop.permute.xlu0 %5788
    %v5791 = vsel %vm576, %v5371, 0
    %v5794 = vsel %vm576, %v5789, 0
    %5796 = vmatprep.subr.bf16.mxu0 0
    %5797 = vmatpush1.bf16.xpose.msra.mxu0 %v5794
    %5798 = vmatprep.subr.bf16.mxu0 0
    %5799 = vmatpush1.bf16.xpose.msra.mxu0 0
    %5800 = vmatprep.subr.bf16.mxu0 0
    %5801 = vmatpush1.bf16.xpose.msra.mxu0 0
    %5802 = vmatprep.subr.bf16.mxu0 0
    %5803 = vmatpush1.bf16.xpose.msra.mxu0 0
    %5804 = vmatprep.subr.bf16.mxu0 0
    %5805 = vmatpush1.bf16.xpose.msra.mxu0 0
    %5806 = vmatprep.subr.bf16.mxu0 0
    %5807 = vmatpush1.bf16.xpose.msra.mxu0 0
    %5808 = vmatprep.subr.bf16.mxu0 0
    %5809 = vmatpush1.bf16.xpose.msra.mxu0 0
    %5810 = vmatprep.subr.bf16.mxu0 0
    %5811 = vmatpush1.bf16.xpose.msra.mxu0 0
    %5812 = vmatprep.subr.bf16.mxu0 0
    %5813 = vmatpush1.bf16.xpose.msra.mxu0 0
    %5814 = vmatprep.subr.bf16.mxu0 0
    %5815 = vmatpush1.bf16.xpose.msra.mxu0 0
    %5816 = vmatprep.subr.bf16.mxu0 0
    %5817 = vmatpush1.bf16.xpose.msra.mxu0 0
    %5818 = vmatprep.subr.bf16.mxu0 0
    %5819 = vmatpush1.bf16.xpose.msra.mxu0 0
    %5820 = vmatprep.subr.bf16.mxu0 0
    %5821 = vmatpush1.bf16.xpose.msra.mxu0 0
    %5822 = vmatprep.subr.bf16.mxu0 0
    %5823 = vmatpush1.bf16.xpose.msra.mxu0 0
    %5824 = vmatprep.subr.bf16.mxu0 0
    %5825 = vmatpush1.bf16.xpose.msra.mxu0 0
    %5826 = vmatprep.subr.bf16.mxu0 0
    %5827 = vmatpush1.bf16.xpose.msra.mxu0 0
    %5828 = vmatprep.mubr.bf16.mxu0 0
    %5829 = vmatmul.mubr.bf16.gmra.mrb[0].mxu0 %v5791
    %v5830 = vpop.f32.mrb[0].mxu0
    %v5831 = vadd.f32 0.0, %v5830
    %v5832 = vpop.f32.mrb[0].mxu0
    %v5833 = vpop.f32.mrb[0].mxu0
    %v5834 = vpop.f32.mrb[0].mxu0
    %5835 = vdwg.mxu0
    %5837 = vrot.lane.b32.xlu0 %v5388, 112
    %v5838 = vpop.permute.xlu0 %5837
    %v5840 = vsel %vm576, %v5372, 0
    %v5843 = vsel %vm576, %v5838, 0
    %5845 = vmatprep.subr.bf16.mxu0 0
    %5846 = vmatpush1.bf16.xpose.msra.mxu0 %v5843
    %5847 = vmatprep.subr.bf16.mxu0 0
    %5848 = vmatpush1.bf16.xpose.msra.mxu0 0
    %5849 = vmatprep.subr.bf16.mxu0 0
    %5850 = vmatpush1.bf16.xpose.msra.mxu0 0
    %5851 = vmatprep.subr.bf16.mxu0 0
    %5852 = vmatpush1.bf16.xpose.msra.mxu0 0
    %5853 = vmatprep.subr.bf16.mxu0 0
    %5854 = vmatpush1.bf16.xpose.msra.mxu0 0
    %5855 = vmatprep.subr.bf16.mxu0 0
    %5856 = vmatpush1.bf16.xpose.msra.mxu0 0
    %5857 = vmatprep.subr.bf16.mxu0 0
    %5858 = vmatpush1.bf16.xpose.msra.mxu0 0
    %5859 = vmatprep.subr.bf16.mxu0 0
    %5860 = vmatpush1.bf16.xpose.msra.mxu0 0
    %5861 = vmatprep.subr.bf16.mxu0 0
    %5862 = vmatpush1.bf16.xpose.msra.mxu0 0
    %5863 = vmatprep.subr.bf16.mxu0 0
    %5864 = vmatpush1.bf16.xpose.msra.mxu0 0
    %5865 = vmatprep.subr.bf16.mxu0 0
    %5866 = vmatpush1.bf16.xpose.msra.mxu0 0
    %5867 = vmatprep.subr.bf16.mxu0 0
    %5868 = vmatpush1.bf16.xpose.msra.mxu0 0
    %5869 = vmatprep.subr.bf16.mxu0 0
    %5870 = vmatpush1.bf16.xpose.msra.mxu0 0
    %5871 = vmatprep.subr.bf16.mxu0 0
    %5872 = vmatpush1.bf16.xpose.msra.mxu0 0
    %5873 = vmatprep.subr.bf16.mxu0 0
    %5874 = vmatpush1.bf16.xpose.msra.mxu0 0
    %5875 = vmatprep.subr.bf16.mxu0 0
    %5876 = vmatpush1.bf16.xpose.msra.mxu0 0
    %5877 = vmatprep.mubr.bf16.mxu0 0
    %5878 = vmatmul.mubr.bf16.gmra.mrb[0].mxu0 %v5840
    %v5879 = vpop.f32.mrb[0].mxu0
    %v5880 = vadd.f32 0.0, %v5879
    %v5881 = vpop.f32.mrb[0].mxu0
    %v5882 = vpop.f32.mrb[0].mxu0
    %v5883 = vpop.f32.mrb[0].mxu0
    %5884 = vdwg.mxu0
    %5886 = vrot.lane.b32.xlu0 %v5389, 112
    %v5887 = vpop.permute.xlu0 %5886
    %v5889 = vsel %vm576, %v5373, 0
    %v5892 = vsel %vm576, %v5887, 0
    %5894 = vmatprep.subr.bf16.mxu0 0
    %5895 = vmatpush1.bf16.xpose.msra.mxu0 %v5892
    %5896 = vmatprep.subr.bf16.mxu0 0
    %5897 = vmatpush1.bf16.xpose.msra.mxu0 0
    %5898 = vmatprep.subr.bf16.mxu0 0
    %5899 = vmatpush1.bf16.xpose.msra.mxu0 0
    %5900 = vmatprep.subr.bf16.mxu0 0
    %5901 = vmatpush1.bf16.xpose.msra.mxu0 0
    %5902 = vmatprep.subr.bf16.mxu0 0
    %5903 = vmatpush1.bf16.xpose.msra.mxu0 0
    %5904 = vmatprep.subr.bf16.mxu0 0
    %5905 = vmatpush1.bf16.xpose.msra.mxu0 0
    %5906 = vmatprep.subr.bf16.mxu0 0
    %5907 = vmatpush1.bf16.xpose.msra.mxu0 0
    %5908 = vmatprep.subr.bf16.mxu0 0
    %5909 = vmatpush1.bf16.xpose.msra.mxu0 0
    %5910 = vmatprep.subr.bf16.mxu0 0
    %5911 = vmatpush1.bf16.xpose.msra.mxu0 0
    %5912 = vmatprep.subr.bf16.mxu0 0
    %5913 = vmatpush1.bf16.xpose.msra.mxu0 0
    %5914 = vmatprep.subr.bf16.mxu0 0
    %5915 = vmatpush1.bf16.xpose.msra.mxu0 0
    %5916 = vmatprep.subr.bf16.mxu0 0
    %5917 = vmatpush1.bf16.xpose.msra.mxu0 0
    %5918 = vmatprep.subr.bf16.mxu0 0
    %5919 = vmatpush1.bf16.xpose.msra.mxu0 0
    %5920 = vmatprep.subr.bf16.mxu0 0
    %5921 = vmatpush1.bf16.xpose.msra.mxu0 0
    %5922 = vmatprep.subr.bf16.mxu0 0
    %5923 = vmatpush1.bf16.xpose.msra.mxu0 0
    %5924 = vmatprep.subr.bf16.mxu0 0
    %5925 = vmatpush1.bf16.xpose.msra.mxu0 0
    %5926 = vmatprep.mubr.bf16.mxu0 0
    %5927 = vmatmul.mubr.bf16.gmra.mrb[0].mxu0 %v5889
    %v5928 = vpop.f32.mrb[0].mxu0
    %v5929 = vadd.f32 0.0, %v5928
    %v5930 = vpop.f32.mrb[0].mxu0
    %v5931 = vpop.f32.mrb[0].mxu0
    %v5932 = vpop.f32.mrb[0].mxu0
    %5933 = vdwg.mxu0
    %5935 = vrot.lane.b32.xlu0 %v5390, 112
    %v5936 = vpop.permute.xlu0 %5935
    %v5938 = vsel %vm576, %v5374, 0
    %v5941 = vsel %vm576, %v5936, 0
    %5943 = vmatprep.subr.bf16.mxu0 0
    %5944 = vmatpush1.bf16.xpose.msra.mxu0 %v5941
    %5945 = vmatprep.subr.bf16.mxu0 0
    %5946 = vmatpush1.bf16.xpose.msra.mxu0 0
    %5947 = vmatprep.subr.bf16.mxu0 0
    %5948 = vmatpush1.bf16.xpose.msra.mxu0 0
    %5949 = vmatprep.subr.bf16.mxu0 0
    %5950 = vmatpush1.bf16.xpose.msra.mxu0 0
    %5951 = vmatprep.subr.bf16.mxu0 0
    %5952 = vmatpush1.bf16.xpose.msra.mxu0 0
    %5953 = vmatprep.subr.bf16.mxu0 0
    %5954 = vmatpush1.bf16.xpose.msra.mxu0 0
    %5955 = vmatprep.subr.bf16.mxu0 0
    %5956 = vmatpush1.bf16.xpose.msra.mxu0 0
    %5957 = vmatprep.subr.bf16.mxu0 0
    %5958 = vmatpush1.bf16.xpose.msra.mxu0 0
    %5959 = vmatprep.subr.bf16.mxu0 0
    %5960 = vmatpush1.bf16.xpose.msra.mxu0 0
    %5961 = vmatprep.subr.bf16.mxu0 0
    %5962 = vmatpush1.bf16.xpose.msra.mxu0 0
    %5963 = vmatprep.subr.bf16.mxu0 0
    %5964 = vmatpush1.bf16.xpose.msra.mxu0 0
    %5965 = vmatprep.subr.bf16.mxu0 0
    %5966 = vmatpush1.bf16.xpose.msra.mxu0 0
    %5967 = vmatprep.subr.bf16.mxu0 0
    %5968 = vmatpush1.bf16.xpose.msra.mxu0 0
    %5969 = vmatprep.subr.bf16.mxu0 0
    %5970 = vmatpush1.bf16.xpose.msra.mxu0 0
    %5971 = vmatprep.subr.bf16.mxu0 0
    %5972 = vmatpush1.bf16.xpose.msra.mxu0 0
    %5973 = vmatprep.subr.bf16.mxu0 0
    %5974 = vmatpush1.bf16.xpose.msra.mxu0 0
    %5975 = vmatprep.mubr.bf16.mxu0 0
    %5976 = vmatmul.mubr.bf16.gmra.mrb[0].mxu0 %v5938
    %v5977 = vpop.f32.mrb[0].mxu0
    %v5978 = vadd.f32 0.0, %v5977
    %v5979 = vpop.f32.mrb[0].mxu0
    %v5980 = vpop.f32.mrb[0].mxu0
    %v5981 = vpop.f32.mrb[0].mxu0
    %5982 = vdwg.mxu0
    %5984 = vrot.lane.b32.xlu0 %v5391, 112
    %v5985 = vpop.permute.xlu0 %5984
    %v5987 = vsel %vm576, %v5375, 0
    %v5990 = vsel %vm576, %v5985, 0
    %5992 = vmatprep.subr.bf16.mxu0 0
    %5993 = vmatpush1.bf16.xpose.msra.mxu0 %v5990
    %5994 = vmatprep.subr.bf16.mxu0 0
    %5995 = vmatpush1.bf16.xpose.msra.mxu0 0
    %5996 = vmatprep.subr.bf16.mxu0 0
    %5997 = vmatpush1.bf16.xpose.msra.mxu0 0
    %5998 = vmatprep.subr.bf16.mxu0 0
    %5999 = vmatpush1.bf16.xpose.msra.mxu0 0
    %6000 = vmatprep.subr.bf16.mxu0 0
    %6001 = vmatpush1.bf16.xpose.msra.mxu0 0
    %6002 = vmatprep.subr.bf16.mxu0 0
    %6003 = vmatpush1.bf16.xpose.msra.mxu0 0
    %6004 = vmatprep.subr.bf16.mxu0 0
    %6005 = vmatpush1.bf16.xpose.msra.mxu0 0
    %6006 = vmatprep.subr.bf16.mxu0 0
    %6007 = vmatpush1.bf16.xpose.msra.mxu0 0
    %6008 = vmatprep.subr.bf16.mxu0 0
    %6009 = vmatpush1.bf16.xpose.msra.mxu0 0
    %6010 = vmatprep.subr.bf16.mxu0 0
    %6011 = vmatpush1.bf16.xpose.msra.mxu0 0
    %6012 = vmatprep.subr.bf16.mxu0 0
    %6013 = vmatpush1.bf16.xpose.msra.mxu0 0
    %6014 = vmatprep.subr.bf16.mxu0 0
    %6015 = vmatpush1.bf16.xpose.msra.mxu0 0
    %6016 = vmatprep.subr.bf16.mxu0 0
    %6017 = vmatpush1.bf16.xpose.msra.mxu0 0
    %6018 = vmatprep.subr.bf16.mxu0 0
    %6019 = vmatpush1.bf16.xpose.msra.mxu0 0
    %6020 = vmatprep.subr.bf16.mxu0 0
    %6021 = vmatpush1.bf16.xpose.msra.mxu0 0
    %6022 = vmatprep.subr.bf16.mxu0 0
    %6023 = vmatpush1.bf16.xpose.msra.mxu0 0
    %6024 = vmatprep.mubr.bf16.mxu0 0
    %6025 = vmatmul.mubr.bf16.gmra.mrb[0].mxu0 %v5987
    %v6026 = vpop.f32.mrb[0].mxu0
    %v6027 = vadd.f32 0.0, %v6026
    %v6028 = vpop.f32.mrb[0].mxu0
    %v6029 = vpop.f32.mrb[0].mxu0
    %v6030 = vpop.f32.mrb[0].mxu0
    %6031 = vdwg.mxu0
    %6033 = vrot.lane.b32.xlu0 %v5392, 112
    %v6034 = vpop.permute.xlu0 %6033
    %v6036 = vsel %vm576, %v5376, 0
    %v6039 = vsel %vm576, %v6034, 0
    %6041 = vmatprep.subr.bf16.mxu0 0
    %6042 = vmatpush1.bf16.xpose.msra.mxu0 %v6039
    %6043 = vmatprep.subr.bf16.mxu0 0
    %6044 = vmatpush1.bf16.xpose.msra.mxu0 0
    %6045 = vmatprep.subr.bf16.mxu0 0
    %6046 = vmatpush1.bf16.xpose.msra.mxu0 0
    %6047 = vmatprep.subr.bf16.mxu0 0
    %6048 = vmatpush1.bf16.xpose.msra.mxu0 0
    %6049 = vmatprep.subr.bf16.mxu0 0
    %6050 = vmatpush1.bf16.xpose.msra.mxu0 0
    %6051 = vmatprep.subr.bf16.mxu0 0
    %6052 = vmatpush1.bf16.xpose.msra.mxu0 0
    %6053 = vmatprep.subr.bf16.mxu0 0
    %6054 = vmatpush1.bf16.xpose.msra.mxu0 0
    %6055 = vmatprep.subr.bf16.mxu0 0
    %6056 = vmatpush1.bf16.xpose.msra.mxu0 0
    %6057 = vmatprep.subr.bf16.mxu0 0
    %6058 = vmatpush1.bf16.xpose.msra.mxu0 0
    %6059 = vmatprep.subr.bf16.mxu0 0
    %6060 = vmatpush1.bf16.xpose.msra.mxu0 0
    %6061 = vmatprep.subr.bf16.mxu0 0
    %6062 = vmatpush1.bf16.xpose.msra.mxu0 0
    %6063 = vmatprep.subr.bf16.mxu0 0
    %6064 = vmatpush1.bf16.xpose.msra.mxu0 0
    %6065 = vmatprep.subr.bf16.mxu0 0
    %6066 = vmatpush1.bf16.xpose.msra.mxu0 0
    %6067 = vmatprep.subr.bf16.mxu0 0
    %6068 = vmatpush1.bf16.xpose.msra.mxu0 0
    %6069 = vmatprep.subr.bf16.mxu0 0
    %6070 = vmatpush1.bf16.xpose.msra.mxu0 0
    %6071 = vmatprep.subr.bf16.mxu0 0
    %6072 = vmatpush1.bf16.xpose.msra.mxu0 0
    %6073 = vmatprep.mubr.bf16.mxu0 0
    %6074 = vmatmul.mubr.bf16.gmra.mrb[0].mxu0 %v6036
    %v6075 = vpop.f32.mrb[0].mxu0
    %v6076 = vadd.f32 0.0, %v6075
    %v6077 = vpop.f32.mrb[0].mxu0
    %v6078 = vpop.f32.mrb[0].mxu0
    %v6079 = vpop.f32.mrb[0].mxu0
    %6080 = vdwg.mxu0
    %6082 = vrot.lane.b32.xlu0 %v5393, 112
    %v6083 = vpop.permute.xlu0 %6082
    %v6085 = vsel %vm576, %v5377, 0
    %v6088 = vsel %vm576, %v6083, 0
    %6090 = vmatprep.subr.bf16.mxu0 0
    %6091 = vmatpush1.bf16.xpose.msra.mxu0 %v6088
    %6092 = vmatprep.subr.bf16.mxu0 0
    %6093 = vmatpush1.bf16.xpose.msra.mxu0 0
    %6094 = vmatprep.subr.bf16.mxu0 0
    %6095 = vmatpush1.bf16.xpose.msra.mxu0 0
    %6096 = vmatprep.subr.bf16.mxu0 0
    %6097 = vmatpush1.bf16.xpose.msra.mxu0 0
    %6098 = vmatprep.subr.bf16.mxu0 0
    %6099 = vmatpush1.bf16.xpose.msra.mxu0 0
    %6100 = vmatprep.subr.bf16.mxu0 0
    %6101 = vmatpush1.bf16.xpose.msra.mxu0 0
    %6102 = vmatprep.subr.bf16.mxu0 0
    %6103 = vmatpush1.bf16.xpose.msra.mxu0 0
    %6104 = vmatprep.subr.bf16.mxu0 0
    %6105 = vmatpush1.bf16.xpose.msra.mxu0 0
    %6106 = vmatprep.subr.bf16.mxu0 0
    %6107 = vmatpush1.bf16.xpose.msra.mxu0 0
    %6108 = vmatprep.subr.bf16.mxu0 0
    %6109 = vmatpush1.bf16.xpose.msra.mxu0 0
    %6110 = vmatprep.subr.bf16.mxu0 0
    %6111 = vmatpush1.bf16.xpose.msra.mxu0 0
    %6112 = vmatprep.subr.bf16.mxu0 0
    %6113 = vmatpush1.bf16.xpose.msra.mxu0 0
    %6114 = vmatprep.subr.bf16.mxu0 0
    %6115 = vmatpush1.bf16.xpose.msra.mxu0 0
    %6116 = vmatprep.subr.bf16.mxu0 0
    %6117 = vmatpush1.bf16.xpose.msra.mxu0 0
    %6118 = vmatprep.subr.bf16.mxu0 0
    %6119 = vmatpush1.bf16.xpose.msra.mxu0 0
    %6120 = vmatprep.subr.bf16.mxu0 0
    %6121 = vmatpush1.bf16.xpose.msra.mxu0 0
    %6122 = vmatprep.mubr.bf16.mxu0 0
    %6123 = vmatmul.mubr.bf16.gmra.mrb[0].mxu0 %v6085
    %v6124 = vpop.f32.mrb[0].mxu0
    %v6125 = vadd.f32 0.0, %v6124
    %v6126 = vpop.f32.mrb[0].mxu0
    %v6127 = vpop.f32.mrb[0].mxu0
    %v6128 = vpop.f32.mrb[0].mxu0
    %6129 = vdwg.mxu0
    %6131 = vrot.lane.b32.xlu0 %v5394, 112
    %v6132 = vpop.permute.xlu0 %6131
    %v6134 = vsel %vm576, %v5378, 0
    %v6137 = vsel %vm576, %v6132, 0
    %6139 = vmatprep.subr.bf16.mxu0 0
    %6140 = vmatpush1.bf16.xpose.msra.mxu0 %v6137
    %6141 = vmatprep.subr.bf16.mxu0 0
    %6142 = vmatpush1.bf16.xpose.msra.mxu0 0
    %6143 = vmatprep.subr.bf16.mxu0 0
    %6144 = vmatpush1.bf16.xpose.msra.mxu0 0
    %6145 = vmatprep.subr.bf16.mxu0 0
    %6146 = vmatpush1.bf16.xpose.msra.mxu0 0
    %6147 = vmatprep.subr.bf16.mxu0 0
    %6148 = vmatpush1.bf16.xpose.msra.mxu0 0
    %6149 = vmatprep.subr.bf16.mxu0 0
    %6150 = vmatpush1.bf16.xpose.msra.mxu0 0
    %6151 = vmatprep.subr.bf16.mxu0 0
    %6152 = vmatpush1.bf16.xpose.msra.mxu0 0
    %6153 = vmatprep.subr.bf16.mxu0 0
    %6154 = vmatpush1.bf16.xpose.msra.mxu0 0
    %6155 = vmatprep.subr.bf16.mxu0 0
    %6156 = vmatpush1.bf16.xpose.msra.mxu0 0
    %6157 = vmatprep.subr.bf16.mxu0 0
    %6158 = vmatpush1.bf16.xpose.msra.mxu0 0
    %6159 = vmatprep.subr.bf16.mxu0 0
    %6160 = vmatpush1.bf16.xpose.msra.mxu0 0
    %6161 = vmatprep.subr.bf16.mxu0 0
    %6162 = vmatpush1.bf16.xpose.msra.mxu0 0
    %6163 = vmatprep.subr.bf16.mxu0 0
    %6164 = vmatpush1.bf16.xpose.msra.mxu0 0
    %6165 = vmatprep.subr.bf16.mxu0 0
    %6166 = vmatpush1.bf16.xpose.msra.mxu0 0
    %6167 = vmatprep.subr.bf16.mxu0 0
    %6168 = vmatpush1.bf16.xpose.msra.mxu0 0
    %6169 = vmatprep.subr.bf16.mxu0 0
    %6170 = vmatpush1.bf16.xpose.msra.mxu0 0
    %6171 = vmatprep.mubr.bf16.mxu0 0
    %6172 = vmatmul.mubr.bf16.gmra.mrb[0].mxu0 %v6134
    %v6173 = vpop.f32.mrb[0].mxu0
    %v6174 = vadd.f32 0.0, %v6173
    %v6175 = vpop.f32.mrb[0].mxu0
    %v6176 = vpop.f32.mrb[0].mxu0
    %v6177 = vpop.f32.mrb[0].mxu0
    %6178 = vdwg.mxu0
    %v6179 = vsel %vm576, %v5439, -inf
    %6180 = vmax.xlane.f32.xlu0 %v6179
    %v6181 = vpop.xlane.xlu0 %6180
    %v6182 = vsel %vm576, %v5488, -inf
    %6183 = vmax.xlane.f32.xlu0 %v6182
    %v6184 = vpop.xlane.xlu0 %6183
    %v6185 = vsel %vm576, %v5537, -inf
    %6186 = vmax.xlane.f32.xlu0 %v6185
    %v6187 = vpop.xlane.xlu0 %6186
    %v6188 = vsel %vm576, %v5586, -inf
    %6189 = vmax.xlane.f32.xlu0 %v6188
    %v6190 = vpop.xlane.xlu0 %6189
    %v6191 = vsel %vm576, %v5635, -inf
    %6192 = vmax.xlane.f32.xlu0 %v6191
    %v6193 = vpop.xlane.xlu0 %6192
    %v6194 = vsel %vm576, %v5684, -inf
    %6195 = vmax.xlane.f32.xlu0 %v6194
    %v6196 = vpop.xlane.xlu0 %6195
    %v6197 = vsel %vm576, %v5733, -inf
    %6198 = vmax.xlane.f32.xlu0 %v6197
    %v6199 = vpop.xlane.xlu0 %6198
    %v6200 = vsel %vm576, %v5782, -inf
    %6201 = vmax.xlane.f32.xlu0 %v6200
    %v6202 = vpop.xlane.xlu0 %6201
    %v6203 = vsel %vm576, %v5831, -inf
    %6204 = vmax.xlane.f32.xlu0 %v6203
    %v6205 = vpop.xlane.xlu0 %6204
    %v6206 = vsel %vm576, %v5880, -inf
    %6207 = vmax.xlane.f32.xlu0 %v6206
    %v6208 = vpop.xlane.xlu0 %6207
    %v6209 = vsel %vm576, %v5929, -inf
    %6210 = vmax.xlane.f32.xlu0 %v6209
    %v6211 = vpop.xlane.xlu0 %6210
    %v6212 = vsel %vm576, %v5978, -inf
    %6213 = vmax.xlane.f32.xlu0 %v6212
    %v6214 = vpop.xlane.xlu0 %6213
    %v6215 = vsel %vm576, %v6027, -inf
    %6216 = vmax.xlane.f32.xlu0 %v6215
    %v6217 = vpop.xlane.xlu0 %6216
    %v6218 = vsel %vm576, %v6076, -inf
    %6219 = vmax.xlane.f32.xlu0 %v6218
    %v6220 = vpop.xlane.xlu0 %6219
    %v6221 = vsel %vm576, %v6125, -inf
    %6222 = vmax.xlane.f32.xlu0 %v6221
    %v6223 = vpop.xlane.xlu0 %6222
    %v6224 = vsel %vm576, %v6174, -inf
    %6225 = vmax.xlane.f32.xlu0 %v6224
    %v6226 = vpop.xlane.xlu0 %6225
    %v6227 = vsub.f32 %v5439, %v6181
    %v6228 = vsub.f32 %v5488, %v6184
    %v6229 = vsub.f32 %v5537, %v6187
    %v6230 = vsub.f32 %v5586, %v6190
    %v6231 = vsub.f32 %v5635, %v6193
    %v6232 = vsub.f32 %v5684, %v6196
    %v6233 = vsub.f32 %v5733, %v6199
    %v6234 = vsub.f32 %v5782, %v6202
    %v6235 = vsub.f32 %v5831, %v6205
    %v6236 = vsub.f32 %v5880, %v6208
    %v6237 = vsub.f32 %v5929, %v6211
    %v6238 = vsub.f32 %v5978, %v6214
    %v6239 = vsub.f32 %v6027, %v6217
    %v6240 = vsub.f32 %v6076, %v6220
    %v6241 = vsub.f32 %v6125, %v6223
    %v6242 = vsub.f32 %v6174, %v6226
    %v6243 = vmul.f32 %v6227, 1.442695
    %v6244 = vpow.pop %v6243
    %v6245 = vmul.f32 %v6228, 1.442695
    %v6246 = vpow.pop %v6245
    %v6247 = vmul.f32 %v6229, 1.442695
    %v6248 = vpow.pop %v6247
    %v6249 = vmul.f32 %v6230, 1.442695
    %v6250 = vpow.pop %v6249
    %v6251 = vmul.f32 %v6231, 1.442695
    %v6252 = vpow.pop %v6251
    %v6253 = vmul.f32 %v6232, 1.442695
    %v6254 = vpow.pop %v6253
    %v6255 = vmul.f32 %v6233, 1.442695
    %v6256 = vpow.pop %v6255
    %v6257 = vmul.f32 %v6234, 1.442695
    %v6258 = vpow.pop %v6257
    %v6259 = vmul.f32 %v6235, 1.442695
    %v6260 = vpow.pop %v6259
    %v6261 = vmul.f32 %v6236, 1.442695
    %v6262 = vpow.pop %v6261
    %v6263 = vmul.f32 %v6237, 1.442695
    %v6264 = vpow.pop %v6263
    %v6265 = vmul.f32 %v6238, 1.442695
    %v6266 = vpow.pop %v6265
    %v6267 = vmul.f32 %v6239, 1.442695
    %v6268 = vpow.pop %v6267
    %v6269 = vmul.f32 %v6240, 1.442695
    %v6270 = vpow.pop %v6269
    %v6271 = vmul.f32 %v6241, 1.442695
    %v6272 = vpow.pop %v6271
    %v6273 = vmul.f32 %v6242, 1.442695
    %v6274 = vpow.pop %v6273
    %v6275 = vsel %vm576, %v6244, 0.0
    %6276 = vadd.xlane.f32.xlu0 %v6275
    %v6277 = vpop.xlane.xlu0 %6276
    %v6278 = vsel %vm576, %v6246, 0.0
    %6279 = vadd.xlane.f32.xlu0 %v6278
    %v6280 = vpop.xlane.xlu0 %6279
    %v6281 = vsel %vm576, %v6248, 0.0
    %6282 = vadd.xlane.f32.xlu0 %v6281
    %v6283 = vpop.xlane.xlu0 %6282
    %v6284 = vsel %vm576, %v6250, 0.0
    %6285 = vadd.xlane.f32.xlu0 %v6284
    %v6286 = vpop.xlane.xlu0 %6285
    %v6287 = vsel %vm576, %v6252, 0.0
    %6288 = vadd.xlane.f32.xlu0 %v6287
    %v6289 = vpop.xlane.xlu0 %6288
    %v6290 = vsel %vm576, %v6254, 0.0
    %6291 = vadd.xlane.f32.xlu0 %v6290
    %v6292 = vpop.xlane.xlu0 %6291
    %v6293 = vsel %vm576, %v6256, 0.0
    %6294 = vadd.xlane.f32.xlu0 %v6293
    %v6295 = vpop.xlane.xlu0 %6294
    %v6296 = vsel %vm576, %v6258, 0.0
    %6297 = vadd.xlane.f32.xlu0 %v6296
    %v6298 = vpop.xlane.xlu0 %6297
    %v6299 = vsel %vm576, %v6260, 0.0
    %6300 = vadd.xlane.f32.xlu0 %v6299
    %v6301 = vpop.xlane.xlu0 %6300
    %v6302 = vsel %vm576, %v6262, 0.0
    %6303 = vadd.xlane.f32.xlu0 %v6302
    %v6304 = vpop.xlane.xlu0 %6303
    %v6305 = vsel %vm576, %v6264, 0.0
    %6306 = vadd.xlane.f32.xlu0 %v6305
    %v6307 = vpop.xlane.xlu0 %6306
    %v6308 = vsel %vm576, %v6266, 0.0
    %6309 = vadd.xlane.f32.xlu0 %v6308
    %v6310 = vpop.xlane.xlu0 %6309
    %v6311 = vsel %vm576, %v6268, 0.0
    %6312 = vadd.xlane.f32.xlu0 %v6311
    %v6313 = vpop.xlane.xlu0 %6312
    %v6314 = vsel %vm576, %v6270, 0.0
    %6315 = vadd.xlane.f32.xlu0 %v6314
    %v6316 = vpop.xlane.xlu0 %6315
    %v6317 = vsel %vm576, %v6272, 0.0
    %6318 = vadd.xlane.f32.xlu0 %v6317
    %v6319 = vpop.xlane.xlu0 %6318
    %v6320 = vsel %vm576, %v6274, 0.0
    %6321 = vadd.xlane.f32.xlu0 %v6320
    %v6322 = vpop.xlane.xlu0 %6321
    %v6323 = vrcp.pop %v6277
    %v6324 = vrcp.pop %v6280
    %v6325 = vrcp.pop %v6283
    %v6326 = vrcp.pop %v6286
    %v6327 = vrcp.pop %v6289
    %v6328 = vrcp.pop %v6292
    %v6329 = vrcp.pop %v6295
    %v6330 = vrcp.pop %v6298
    %v6331 = vrcp.pop %v6301
    %v6332 = vrcp.pop %v6304
    %v6333 = vrcp.pop %v6307
    %v6334 = vrcp.pop %v6310
    %v6335 = vrcp.pop %v6313
    %v6336 = vrcp.pop %v6316
    %v6337 = vrcp.pop %v6319
    %v6338 = vrcp.pop %v6322
    %v6339 = vmul.f32 %v6244, %v6323
    %v6340 = vmul.f32 %v6246, %v6324
    %v6341 = vmul.f32 %v6248, %v6325
    %v6342 = vmul.f32 %v6250, %v6326
    %v6343 = vmul.f32 %v6252, %v6327
    %v6344 = vmul.f32 %v6254, %v6328
    %v6345 = vmul.f32 %v6256, %v6329
    %v6346 = vmul.f32 %v6258, %v6330
    %v6347 = vmul.f32 %v6260, %v6331
    %v6348 = vmul.f32 %v6262, %v6332
    %v6349 = vmul.f32 %v6264, %v6333
    %v6350 = vmul.f32 %v6266, %v6334
    %v6351 = vmul.f32 %v6268, %v6335
    %v6352 = vmul.f32 %v6270, %v6336
    %v6353 = vmul.f32 %v6272, %v6337
    %v6354 = vmul.f32 %v6274, %v6338
    %v6355 = vpack.c.bf16 %v6339, %v6339
    %v6356 = vpack.c.bf16 %v6340, %v6340
    %v6357 = vpack.c.bf16 %v6341, %v6341
    %v6358 = vpack.c.bf16 %v6342, %v6342
    %v6359 = vpack.c.bf16 %v6343, %v6343
    %v6360 = vpack.c.bf16 %v6344, %v6344
    %v6361 = vpack.c.bf16 %v6345, %v6345
    %v6362 = vpack.c.bf16 %v6346, %v6346
    %v6363 = vpack.c.bf16 %v6347, %v6347
    %v6364 = vpack.c.bf16 %v6348, %v6348
    %v6365 = vpack.c.bf16 %v6349, %v6349
    %v6366 = vpack.c.bf16 %v6350, %v6350
    %v6367 = vpack.c.bf16 %v6351, %v6351
    %v6368 = vpack.c.bf16 %v6352, %v6352
    %v6369 = vpack.c.bf16 %v6353, %v6353
    %v6370 = vpack.c.bf16 %v6354, %v6354
    %6371 = vrot.lane.b32.xlu0 %v5379, 96
    %v6372 = vpop.permute.xlu0 %6371
    %v6374 = vsel %vm576, %v6355, 0
    %v6377 = vsel %vm251, %v6372, 0
    %6379 = vmatprep.subr.bf16.mxu0 0
    %6380 = vmatpush1.bf16.msra.mxu0 %v6377
    %6381 = vmatprep.subr.bf16.mxu0 0
    %6382 = vmatpush1.bf16.msra.mxu0 0
    %6383 = vmatprep.subr.bf16.mxu0 0
    %6384 = vmatpush1.bf16.msra.mxu0 0
    %6385 = vmatprep.subr.bf16.mxu0 0
    %6386 = vmatpush1.bf16.msra.mxu0 0
    %6387 = vmatprep.subr.bf16.mxu0 0
    %6388 = vmatpush1.bf16.msra.mxu0 0
    %6389 = vmatprep.subr.bf16.mxu0 0
    %6390 = vmatpush1.bf16.msra.mxu0 0
    %6391 = vmatprep.subr.bf16.mxu0 0
    %6392 = vmatpush1.bf16.msra.mxu0 0
    %6393 = vmatprep.subr.bf16.mxu0 0
    %6394 = vmatpush1.bf16.msra.mxu0 0
    %6395 = vmatprep.subr.bf16.mxu0 0
    %6396 = vmatpush1.bf16.msra.mxu0 0
    %6397 = vmatprep.subr.bf16.mxu0 0
    %6398 = vmatpush1.bf16.msra.mxu0 0
    %6399 = vmatprep.subr.bf16.mxu0 0
    %6400 = vmatpush1.bf16.msra.mxu0 0
    %6401 = vmatprep.subr.bf16.mxu0 0
    %6402 = vmatpush1.bf16.msra.mxu0 0
    %6403 = vmatprep.subr.bf16.mxu0 0
    %6404 = vmatpush1.bf16.msra.mxu0 0
    %6405 = vmatprep.subr.bf16.mxu0 0
    %6406 = vmatpush1.bf16.msra.mxu0 0
    %6407 = vmatprep.subr.bf16.mxu0 0
    %6408 = vmatpush1.bf16.msra.mxu0 0
    %6409 = vmatprep.subr.bf16.mxu0 0
    %6410 = vmatpush1.bf16.msra.mxu0 0
    %6411 = vmatprep.mubr.bf16.mxu0 0
    %6412 = vmatmul.mubr.bf16.gmra.mrb[0].mxu0 %v6374
    %v6413 = vpop.f32.mrb[0].mxu0
    %v6414 = vadd.f32 0.0, %v6413
    %v6415 = vpop.f32.mrb[0].mxu0
    %v6416 = vpop.f32.mrb[0].mxu0
    %v6417 = vpop.f32.mrb[0].mxu0
    %6418 = vdwg.mxu0
    %6419 = vrot.lane.b32.xlu0 %v5380, 96
    %v6420 = vpop.permute.xlu0 %6419
    %v6422 = vsel %vm576, %v6356, 0
    %v6425 = vsel %vm251, %v6420, 0
    %6427 = vmatprep.subr.bf16.mxu0 0
    %6428 = vmatpush1.bf16.msra.mxu0 %v6425
    %6429 = vmatprep.subr.bf16.mxu0 0
    %6430 = vmatpush1.bf16.msra.mxu0 0
    %6431 = vmatprep.subr.bf16.mxu0 0
    %6432 = vmatpush1.bf16.msra.mxu0 0
    %6433 = vmatprep.subr.bf16.mxu0 0
    %6434 = vmatpush1.bf16.msra.mxu0 0
    %6435 = vmatprep.subr.bf16.mxu0 0
    %6436 = vmatpush1.bf16.msra.mxu0 0
    %6437 = vmatprep.subr.bf16.mxu0 0
    %6438 = vmatpush1.bf16.msra.mxu0 0
    %6439 = vmatprep.subr.bf16.mxu0 0
    %6440 = vmatpush1.bf16.msra.mxu0 0
    %6441 = vmatprep.subr.bf16.mxu0 0
    %6442 = vmatpush1.bf16.msra.mxu0 0
    %6443 = vmatprep.subr.bf16.mxu0 0
    %6444 = vmatpush1.bf16.msra.mxu0 0
    %6445 = vmatprep.subr.bf16.mxu0 0
    %6446 = vmatpush1.bf16.msra.mxu0 0
    %6447 = vmatprep.subr.bf16.mxu0 0
    %6448 = vmatpush1.bf16.msra.mxu0 0
    %6449 = vmatprep.subr.bf16.mxu0 0
    %6450 = vmatpush1.bf16.msra.mxu0 0
    %6451 = vmatprep.subr.bf16.mxu0 0
    %6452 = vmatpush1.bf16.msra.mxu0 0
    %6453 = vmatprep.subr.bf16.mxu0 0
    %6454 = vmatpush1.bf16.msra.mxu0 0
    %6455 = vmatprep.subr.bf16.mxu0 0
    %6456 = vmatpush1.bf16.msra.mxu0 0
    %6457 = vmatprep.subr.bf16.mxu0 0
    %6458 = vmatpush1.bf16.msra.mxu0 0
    %6459 = vmatprep.mubr.bf16.mxu0 0
    %6460 = vmatmul.mubr.bf16.gmra.mrb[0].mxu0 %v6422
    %v6461 = vpop.f32.mrb[0].mxu0
    %v6462 = vadd.f32 0.0, %v6461
    %v6463 = vpop.f32.mrb[0].mxu0
    %v6464 = vpop.f32.mrb[0].mxu0
    %v6465 = vpop.f32.mrb[0].mxu0
    %6466 = vdwg.mxu0
    %6467 = vrot.lane.b32.xlu0 %v5381, 96
    %v6468 = vpop.permute.xlu0 %6467
    %v6470 = vsel %vm576, %v6357, 0
    %v6473 = vsel %vm251, %v6468, 0
    %6475 = vmatprep.subr.bf16.mxu0 0
    %6476 = vmatpush1.bf16.msra.mxu0 %v6473
    %6477 = vmatprep.subr.bf16.mxu0 0
    %6478 = vmatpush1.bf16.msra.mxu0 0
    %6479 = vmatprep.subr.bf16.mxu0 0
    %6480 = vmatpush1.bf16.msra.mxu0 0
    %6481 = vmatprep.subr.bf16.mxu0 0
    %6482 = vmatpush1.bf16.msra.mxu0 0
    %6483 = vmatprep.subr.bf16.mxu0 0
    %6484 = vmatpush1.bf16.msra.mxu0 0
    %6485 = vmatprep.subr.bf16.mxu0 0
    %6486 = vmatpush1.bf16.msra.mxu0 0
    %6487 = vmatprep.subr.bf16.mxu0 0
    %6488 = vmatpush1.bf16.msra.mxu0 0
    %6489 = vmatprep.subr.bf16.mxu0 0
    %6490 = vmatpush1.bf16.msra.mxu0 0
    %6491 = vmatprep.subr.bf16.mxu0 0
    %6492 = vmatpush1.bf16.msra.mxu0 0
    %6493 = vmatprep.subr.bf16.mxu0 0
    %6494 = vmatpush1.bf16.msra.mxu0 0
    %6495 = vmatprep.subr.bf16.mxu0 0
    %6496 = vmatpush1.bf16.msra.mxu0 0
    %6497 = vmatprep.subr.bf16.mxu0 0
    %6498 = vmatpush1.bf16.msra.mxu0 0
    %6499 = vmatprep.subr.bf16.mxu0 0
    %6500 = vmatpush1.bf16.msra.mxu0 0
    %6501 = vmatprep.subr.bf16.mxu0 0
    %6502 = vmatpush1.bf16.msra.mxu0 0
    %6503 = vmatprep.subr.bf16.mxu0 0
    %6504 = vmatpush1.bf16.msra.mxu0 0
    %6505 = vmatprep.subr.bf16.mxu0 0
    %6506 = vmatpush1.bf16.msra.mxu0 0
    %6507 = vmatprep.mubr.bf16.mxu0 0
    %6508 = vmatmul.mubr.bf16.gmra.mrb[0].mxu0 %v6470
    %v6509 = vpop.f32.mrb[0].mxu0
    %v6510 = vadd.f32 0.0, %v6509
    %v6511 = vpop.f32.mrb[0].mxu0
    %v6512 = vpop.f32.mrb[0].mxu0
    %v6513 = vpop.f32.mrb[0].mxu0
    %6514 = vdwg.mxu0
    %6515 = vrot.lane.b32.xlu0 %v5382, 96
    %v6516 = vpop.permute.xlu0 %6515
    %v6518 = vsel %vm576, %v6358, 0
    %v6521 = vsel %vm251, %v6516, 0
    %6523 = vmatprep.subr.bf16.mxu0 0
    %6524 = vmatpush1.bf16.msra.mxu0 %v6521
    %6525 = vmatprep.subr.bf16.mxu0 0
    %6526 = vmatpush1.bf16.msra.mxu0 0
    %6527 = vmatprep.subr.bf16.mxu0 0
    %6528 = vmatpush1.bf16.msra.mxu0 0
    %6529 = vmatprep.subr.bf16.mxu0 0
    %6530 = vmatpush1.bf16.msra.mxu0 0
    %6531 = vmatprep.subr.bf16.mxu0 0
    %6532 = vmatpush1.bf16.msra.mxu0 0
    %6533 = vmatprep.subr.bf16.mxu0 0
    %6534 = vmatpush1.bf16.msra.mxu0 0
    %6535 = vmatprep.subr.bf16.mxu0 0
    %6536 = vmatpush1.bf16.msra.mxu0 0
    %6537 = vmatprep.subr.bf16.mxu0 0
    %6538 = vmatpush1.bf16.msra.mxu0 0
    %6539 = vmatprep.subr.bf16.mxu0 0
    %6540 = vmatpush1.bf16.msra.mxu0 0
    %6541 = vmatprep.subr.bf16.mxu0 0
    %6542 = vmatpush1.bf16.msra.mxu0 0
    %6543 = vmatprep.subr.bf16.mxu0 0
    %6544 = vmatpush1.bf16.msra.mxu0 0
    %6545 = vmatprep.subr.bf16.mxu0 0
    %6546 = vmatpush1.bf16.msra.mxu0 0
    %6547 = vmatprep.subr.bf16.mxu0 0
    %6548 = vmatpush1.bf16.msra.mxu0 0
    %6549 = vmatprep.subr.bf16.mxu0 0
    %6550 = vmatpush1.bf16.msra.mxu0 0
    %6551 = vmatprep.subr.bf16.mxu0 0
    %6552 = vmatpush1.bf16.msra.mxu0 0
    %6553 = vmatprep.subr.bf16.mxu0 0
    %6554 = vmatpush1.bf16.msra.mxu0 0
    %6555 = vmatprep.mubr.bf16.mxu0 0
    %6556 = vmatmul.mubr.bf16.gmra.mrb[0].mxu0 %v6518
    %v6557 = vpop.f32.mrb[0].mxu0
    %v6558 = vadd.f32 0.0, %v6557
    %v6559 = vpop.f32.mrb[0].mxu0
    %v6560 = vpop.f32.mrb[0].mxu0
    %v6561 = vpop.f32.mrb[0].mxu0
    %6562 = vdwg.mxu0
    %6563 = vrot.lane.b32.xlu0 %v5383, 96
    %v6564 = vpop.permute.xlu0 %6563
    %v6566 = vsel %vm576, %v6359, 0
    %v6569 = vsel %vm251, %v6564, 0
    %6571 = vmatprep.subr.bf16.mxu0 0
    %6572 = vmatpush1.bf16.msra.mxu0 %v6569
    %6573 = vmatprep.subr.bf16.mxu0 0
    %6574 = vmatpush1.bf16.msra.mxu0 0
    %6575 = vmatprep.subr.bf16.mxu0 0
    %6576 = vmatpush1.bf16.msra.mxu0 0
    %6577 = vmatprep.subr.bf16.mxu0 0
    %6578 = vmatpush1.bf16.msra.mxu0 0
    %6579 = vmatprep.subr.bf16.mxu0 0
    %6580 = vmatpush1.bf16.msra.mxu0 0
    %6581 = vmatprep.subr.bf16.mxu0 0
    %6582 = vmatpush1.bf16.msra.mxu0 0
    %6583 = vmatprep.subr.bf16.mxu0 0
    %6584 = vmatpush1.bf16.msra.mxu0 0
    %6585 = vmatprep.subr.bf16.mxu0 0
    %6586 = vmatpush1.bf16.msra.mxu0 0
    %6587 = vmatprep.subr.bf16.mxu0 0
    %6588 = vmatpush1.bf16.msra.mxu0 0
    %6589 = vmatprep.subr.bf16.mxu0 0
    %6590 = vmatpush1.bf16.msra.mxu0 0
    %6591 = vmatprep.subr.bf16.mxu0 0
    %6592 = vmatpush1.bf16.msra.mxu0 0
    %6593 = vmatprep.subr.bf16.mxu0 0
    %6594 = vmatpush1.bf16.msra.mxu0 0
    %6595 = vmatprep.subr.bf16.mxu0 0
    %6596 = vmatpush1.bf16.msra.mxu0 0
    %6597 = vmatprep.subr.bf16.mxu0 0
    %6598 = vmatpush1.bf16.msra.mxu0 0
    %6599 = vmatprep.subr.bf16.mxu0 0
    %6600 = vmatpush1.bf16.msra.mxu0 0
    %6601 = vmatprep.subr.bf16.mxu0 0
    %6602 = vmatpush1.bf16.msra.mxu0 0
    %6603 = vmatprep.mubr.bf16.mxu0 0
    %6604 = vmatmul.mubr.bf16.gmra.mrb[0].mxu0 %v6566
    %v6605 = vpop.f32.mrb[0].mxu0
    %v6606 = vadd.f32 0.0, %v6605
    %v6607 = vpop.f32.mrb[0].mxu0
    %v6608 = vpop.f32.mrb[0].mxu0
    %v6609 = vpop.f32.mrb[0].mxu0
    %6610 = vdwg.mxu0
    %6611 = vrot.lane.b32.xlu0 %v5384, 96
    %v6612 = vpop.permute.xlu0 %6611
    %v6614 = vsel %vm576, %v6360, 0
    %v6617 = vsel %vm251, %v6612, 0
    %6619 = vmatprep.subr.bf16.mxu0 0
    %6620 = vmatpush1.bf16.msra.mxu0 %v6617
    %6621 = vmatprep.subr.bf16.mxu0 0
    %6622 = vmatpush1.bf16.msra.mxu0 0
    %6623 = vmatprep.subr.bf16.mxu0 0
    %6624 = vmatpush1.bf16.msra.mxu0 0
    %6625 = vmatprep.subr.bf16.mxu0 0
    %6626 = vmatpush1.bf16.msra.mxu0 0
    %6627 = vmatprep.subr.bf16.mxu0 0
    %6628 = vmatpush1.bf16.msra.mxu0 0
    %6629 = vmatprep.subr.bf16.mxu0 0
    %6630 = vmatpush1.bf16.msra.mxu0 0
    %6631 = vmatprep.subr.bf16.mxu0 0
    %6632 = vmatpush1.bf16.msra.mxu0 0
    %6633 = vmatprep.subr.bf16.mxu0 0
    %6634 = vmatpush1.bf16.msra.mxu0 0
    %6635 = vmatprep.subr.bf16.mxu0 0
    %6636 = vmatpush1.bf16.msra.mxu0 0
    %6637 = vmatprep.subr.bf16.mxu0 0
    %6638 = vmatpush1.bf16.msra.mxu0 0
    %6639 = vmatprep.subr.bf16.mxu0 0
    %6640 = vmatpush1.bf16.msra.mxu0 0
    %6641 = vmatprep.subr.bf16.mxu0 0
    %6642 = vmatpush1.bf16.msra.mxu0 0
    %6643 = vmatprep.subr.bf16.mxu0 0
    %6644 = vmatpush1.bf16.msra.mxu0 0
    %6645 = vmatprep.subr.bf16.mxu0 0
    %6646 = vmatpush1.bf16.msra.mxu0 0
    %6647 = vmatprep.subr.bf16.mxu0 0
    %6648 = vmatpush1.bf16.msra.mxu0 0
    %6649 = vmatprep.subr.bf16.mxu0 0
    %6650 = vmatpush1.bf16.msra.mxu0 0
    %6651 = vmatprep.mubr.bf16.mxu0 0
    %6652 = vmatmul.mubr.bf16.gmra.mrb[0].mxu0 %v6614
    %v6653 = vpop.f32.mrb[0].mxu0
    %v6654 = vadd.f32 0.0, %v6653
    %v6655 = vpop.f32.mrb[0].mxu0
    %v6656 = vpop.f32.mrb[0].mxu0
    %v6657 = vpop.f32.mrb[0].mxu0
    %6658 = vdwg.mxu0
    %6659 = vrot.lane.b32.xlu0 %v5385, 96
    %v6660 = vpop.permute.xlu0 %6659
    %v6662 = vsel %vm576, %v6361, 0
    %v6665 = vsel %vm251, %v6660, 0
    %6667 = vmatprep.subr.bf16.mxu0 0
    %6668 = vmatpush1.bf16.msra.mxu0 %v6665
    %6669 = vmatprep.subr.bf16.mxu0 0
    %6670 = vmatpush1.bf16.msra.mxu0 0
    %6671 = vmatprep.subr.bf16.mxu0 0
    %6672 = vmatpush1.bf16.msra.mxu0 0
    %6673 = vmatprep.subr.bf16.mxu0 0
    %6674 = vmatpush1.bf16.msra.mxu0 0
    %6675 = vmatprep.subr.bf16.mxu0 0
    %6676 = vmatpush1.bf16.msra.mxu0 0
    %6677 = vmatprep.subr.bf16.mxu0 0
    %6678 = vmatpush1.bf16.msra.mxu0 0
    %6679 = vmatprep.subr.bf16.mxu0 0
    %6680 = vmatpush1.bf16.msra.mxu0 0
    %6681 = vmatprep.subr.bf16.mxu0 0
    %6682 = vmatpush1.bf16.msra.mxu0 0
    %6683 = vmatprep.subr.bf16.mxu0 0
    %6684 = vmatpush1.bf16.msra.mxu0 0
    %6685 = vmatprep.subr.bf16.mxu0 0
    %6686 = vmatpush1.bf16.msra.mxu0 0
    %6687 = vmatprep.subr.bf16.mxu0 0
    %6688 = vmatpush1.bf16.msra.mxu0 0
    %6689 = vmatprep.subr.bf16.mxu0 0
    %6690 = vmatpush1.bf16.msra.mxu0 0
    %6691 = vmatprep.subr.bf16.mxu0 0
    %6692 = vmatpush1.bf16.msra.mxu0 0
    %6693 = vmatprep.subr.bf16.mxu0 0
    %6694 = vmatpush1.bf16.msra.mxu0 0
    %6695 = vmatprep.subr.bf16.mxu0 0
    %6696 = vmatpush1.bf16.msra.mxu0 0
    %6697 = vmatprep.subr.bf16.mxu0 0
    %6698 = vmatpush1.bf16.msra.mxu0 0
    %6699 = vmatprep.mubr.bf16.mxu0 0
    %6700 = vmatmul.mubr.bf16.gmra.mrb[0].mxu0 %v6662
    %v6701 = vpop.f32.mrb[0].mxu0
    %v6702 = vadd.f32 0.0, %v6701
    %v6703 = vpop.f32.mrb[0].mxu0
    %v6704 = vpop.f32.mrb[0].mxu0
    %v6705 = vpop.f32.mrb[0].mxu0
    %6706 = vdwg.mxu0
    %6707 = vrot.lane.b32.xlu0 %v5386, 96
    %v6708 = vpop.permute.xlu0 %6707
    %v6710 = vsel %vm576, %v6362, 0
    %v6713 = vsel %vm251, %v6708, 0
    %6715 = vmatprep.subr.bf16.mxu0 0
    %6716 = vmatpush1.bf16.msra.mxu0 %v6713
    %6717 = vmatprep.subr.bf16.mxu0 0
    %6718 = vmatpush1.bf16.msra.mxu0 0
    %6719 = vmatprep.subr.bf16.mxu0 0
    %6720 = vmatpush1.bf16.msra.mxu0 0
    %6721 = vmatprep.subr.bf16.mxu0 0
    %6722 = vmatpush1.bf16.msra.mxu0 0
    %6723 = vmatprep.subr.bf16.mxu0 0
    %6724 = vmatpush1.bf16.msra.mxu0 0
    %6725 = vmatprep.subr.bf16.mxu0 0
    %6726 = vmatpush1.bf16.msra.mxu0 0
    %6727 = vmatprep.subr.bf16.mxu0 0
    %6728 = vmatpush1.bf16.msra.mxu0 0
    %6729 = vmatprep.subr.bf16.mxu0 0
    %6730 = vmatpush1.bf16.msra.mxu0 0
    %6731 = vmatprep.subr.bf16.mxu0 0
    %6732 = vmatpush1.bf16.msra.mxu0 0
    %6733 = vmatprep.subr.bf16.mxu0 0
    %6734 = vmatpush1.bf16.msra.mxu0 0
    %6735 = vmatprep.subr.bf16.mxu0 0
    %6736 = vmatpush1.bf16.msra.mxu0 0
    %6737 = vmatprep.subr.bf16.mxu0 0
    %6738 = vmatpush1.bf16.msra.mxu0 0
    %6739 = vmatprep.subr.bf16.mxu0 0
    %6740 = vmatpush1.bf16.msra.mxu0 0
    %6741 = vmatprep.subr.bf16.mxu0 0
    %6742 = vmatpush1.bf16.msra.mxu0 0
    %6743 = vmatprep.subr.bf16.mxu0 0
    %6744 = vmatpush1.bf16.msra.mxu0 0
    %6745 = vmatprep.subr.bf16.mxu0 0
    %6746 = vmatpush1.bf16.msra.mxu0 0
    %6747 = vmatprep.mubr.bf16.mxu0 0
    %6748 = vmatmul.mubr.bf16.gmra.mrb[0].mxu0 %v6710
    %v6749 = vpop.f32.mrb[0].mxu0
    %v6750 = vadd.f32 0.0, %v6749
    %v6751 = vpop.f32.mrb[0].mxu0
    %v6752 = vpop.f32.mrb[0].mxu0
    %v6753 = vpop.f32.mrb[0].mxu0
    %6754 = vdwg.mxu0
    %6755 = vrot.lane.b32.xlu0 %v5387, 96
    %v6756 = vpop.permute.xlu0 %6755
    %v6758 = vsel %vm576, %v6363, 0
    %v6761 = vsel %vm251, %v6756, 0
    %6763 = vmatprep.subr.bf16.mxu0 0
    %6764 = vmatpush1.bf16.msra.mxu0 %v6761
    %6765 = vmatprep.subr.bf16.mxu0 0
    %6766 = vmatpush1.bf16.msra.mxu0 0
    %6767 = vmatprep.subr.bf16.mxu0 0
    %6768 = vmatpush1.bf16.msra.mxu0 0
    %6769 = vmatprep.subr.bf16.mxu0 0
    %6770 = vmatpush1.bf16.msra.mxu0 0
    %6771 = vmatprep.subr.bf16.mxu0 0
    %6772 = vmatpush1.bf16.msra.mxu0 0
    %6773 = vmatprep.subr.bf16.mxu0 0
    %6774 = vmatpush1.bf16.msra.mxu0 0
    %6775 = vmatprep.subr.bf16.mxu0 0
    %6776 = vmatpush1.bf16.msra.mxu0 0
    %6777 = vmatprep.subr.bf16.mxu0 0
    %6778 = vmatpush1.bf16.msra.mxu0 0
    %6779 = vmatprep.subr.bf16.mxu0 0
    %6780 = vmatpush1.bf16.msra.mxu0 0
    %6781 = vmatprep.subr.bf16.mxu0 0
    %6782 = vmatpush1.bf16.msra.mxu0 0
    %6783 = vmatprep.subr.bf16.mxu0 0
    %6784 = vmatpush1.bf16.msra.mxu0 0
    %6785 = vmatprep.subr.bf16.mxu0 0
    %6786 = vmatpush1.bf16.msra.mxu0 0
    %6787 = vmatprep.subr.bf16.mxu0 0
    %6788 = vmatpush1.bf16.msra.mxu0 0
    %6789 = vmatprep.subr.bf16.mxu0 0
    %6790 = vmatpush1.bf16.msra.mxu0 0
    %6791 = vmatprep.subr.bf16.mxu0 0
    %6792 = vmatpush1.bf16.msra.mxu0 0
    %6793 = vmatprep.subr.bf16.mxu0 0
    %6794 = vmatpush1.bf16.msra.mxu0 0
    %6795 = vmatprep.mubr.bf16.mxu0 0
    %6796 = vmatmul.mubr.bf16.gmra.mrb[0].mxu0 %v6758
    %v6797 = vpop.f32.mrb[0].mxu0
    %v6798 = vadd.f32 0.0, %v6797
    %v6799 = vpop.f32.mrb[0].mxu0
    %v6800 = vpop.f32.mrb[0].mxu0
    %v6801 = vpop.f32.mrb[0].mxu0
    %6802 = vdwg.mxu0
    %6803 = vrot.lane.b32.xlu0 %v5388, 96
    %v6804 = vpop.permute.xlu0 %6803
    %v6806 = vsel %vm576, %v6364, 0
    %v6809 = vsel %vm251, %v6804, 0
    %6811 = vmatprep.subr.bf16.mxu0 0
    %6812 = vmatpush1.bf16.msra.mxu0 %v6809
    %6813 = vmatprep.subr.bf16.mxu0 0
    %6814 = vmatpush1.bf16.msra.mxu0 0
    %6815 = vmatprep.subr.bf16.mxu0 0
    %6816 = vmatpush1.bf16.msra.mxu0 0
    %6817 = vmatprep.subr.bf16.mxu0 0
    %6818 = vmatpush1.bf16.msra.mxu0 0
    %6819 = vmatprep.subr.bf16.mxu0 0
    %6820 = vmatpush1.bf16.msra.mxu0 0
    %6821 = vmatprep.subr.bf16.mxu0 0
    %6822 = vmatpush1.bf16.msra.mxu0 0
    %6823 = vmatprep.subr.bf16.mxu0 0
    %6824 = vmatpush1.bf16.msra.mxu0 0
    %6825 = vmatprep.subr.bf16.mxu0 0
    %6826 = vmatpush1.bf16.msra.mxu0 0
    %6827 = vmatprep.subr.bf16.mxu0 0
    %6828 = vmatpush1.bf16.msra.mxu0 0
    %6829 = vmatprep.subr.bf16.mxu0 0
    %6830 = vmatpush1.bf16.msra.mxu0 0
    %6831 = vmatprep.subr.bf16.mxu0 0
    %6832 = vmatpush1.bf16.msra.mxu0 0
    %6833 = vmatprep.subr.bf16.mxu0 0
    %6834 = vmatpush1.bf16.msra.mxu0 0
    %6835 = vmatprep.subr.bf16.mxu0 0
    %6836 = vmatpush1.bf16.msra.mxu0 0
    %6837 = vmatprep.subr.bf16.mxu0 0
    %6838 = vmatpush1.bf16.msra.mxu0 0
    %6839 = vmatprep.subr.bf16.mxu0 0
    %6840 = vmatpush1.bf16.msra.mxu0 0
    %6841 = vmatprep.subr.bf16.mxu0 0
    %6842 = vmatpush1.bf16.msra.mxu0 0
    %6843 = vmatprep.mubr.bf16.mxu0 0
    %6844 = vmatmul.mubr.bf16.gmra.mrb[0].mxu0 %v6806
    %v6845 = vpop.f32.mrb[0].mxu0
    %v6846 = vadd.f32 0.0, %v6845
    %v6847 = vpop.f32.mrb[0].mxu0
    %v6848 = vpop.f32.mrb[0].mxu0
    %v6849 = vpop.f32.mrb[0].mxu0
    %6850 = vdwg.mxu0
    %6851 = vrot.lane.b32.xlu0 %v5389, 96
    %v6852 = vpop.permute.xlu0 %6851
    %v6854 = vsel %vm576, %v6365, 0
    %v6857 = vsel %vm251, %v6852, 0
    %6859 = vmatprep.subr.bf16.mxu0 0
    %6860 = vmatpush1.bf16.msra.mxu0 %v6857
    %6861 = vmatprep.subr.bf16.mxu0 0
    %6862 = vmatpush1.bf16.msra.mxu0 0
    %6863 = vmatprep.subr.bf16.mxu0 0
    %6864 = vmatpush1.bf16.msra.mxu0 0
    %6865 = vmatprep.subr.bf16.mxu0 0
    %6866 = vmatpush1.bf16.msra.mxu0 0
    %6867 = vmatprep.subr.bf16.mxu0 0
    %6868 = vmatpush1.bf16.msra.mxu0 0
    %6869 = vmatprep.subr.bf16.mxu0 0
    %6870 = vmatpush1.bf16.msra.mxu0 0
    %6871 = vmatprep.subr.bf16.mxu0 0
    %6872 = vmatpush1.bf16.msra.mxu0 0
    %6873 = vmatprep.subr.bf16.mxu0 0
    %6874 = vmatpush1.bf16.msra.mxu0 0
    %6875 = vmatprep.subr.bf16.mxu0 0
    %6876 = vmatpush1.bf16.msra.mxu0 0
    %6877 = vmatprep.subr.bf16.mxu0 0
    %6878 = vmatpush1.bf16.msra.mxu0 0
    %6879 = vmatprep.subr.bf16.mxu0 0
    %6880 = vmatpush1.bf16.msra.mxu0 0
    %6881 = vmatprep.subr.bf16.mxu0 0
    %6882 = vmatpush1.bf16.msra.mxu0 0
    %6883 = vmatprep.subr.bf16.mxu0 0
    %6884 = vmatpush1.bf16.msra.mxu0 0
    %6885 = vmatprep.subr.bf16.mxu0 0
    %6886 = vmatpush1.bf16.msra.mxu0 0
    %6887 = vmatprep.subr.bf16.mxu0 0
    %6888 = vmatpush1.bf16.msra.mxu0 0
    %6889 = vmatprep.subr.bf16.mxu0 0
    %6890 = vmatpush1.bf16.msra.mxu0 0
    %6891 = vmatprep.mubr.bf16.mxu0 0
    %6892 = vmatmul.mubr.bf16.gmra.mrb[0].mxu0 %v6854
    %v6893 = vpop.f32.mrb[0].mxu0
    %v6894 = vadd.f32 0.0, %v6893
    %v6895 = vpop.f32.mrb[0].mxu0
    %v6896 = vpop.f32.mrb[0].mxu0
    %v6897 = vpop.f32.mrb[0].mxu0
    %6898 = vdwg.mxu0
    %6899 = vrot.lane.b32.xlu0 %v5390, 96
    %v6900 = vpop.permute.xlu0 %6899
    %v6902 = vsel %vm576, %v6366, 0
    %v6905 = vsel %vm251, %v6900, 0
    %6907 = vmatprep.subr.bf16.mxu0 0
    %6908 = vmatpush1.bf16.msra.mxu0 %v6905
    %6909 = vmatprep.subr.bf16.mxu0 0
    %6910 = vmatpush1.bf16.msra.mxu0 0
    %6911 = vmatprep.subr.bf16.mxu0 0
    %6912 = vmatpush1.bf16.msra.mxu0 0
    %6913 = vmatprep.subr.bf16.mxu0 0
    %6914 = vmatpush1.bf16.msra.mxu0 0
    %6915 = vmatprep.subr.bf16.mxu0 0
    %6916 = vmatpush1.bf16.msra.mxu0 0
    %6917 = vmatprep.subr.bf16.mxu0 0
    %6918 = vmatpush1.bf16.msra.mxu0 0
    %6919 = vmatprep.subr.bf16.mxu0 0
    %6920 = vmatpush1.bf16.msra.mxu0 0
    %6921 = vmatprep.subr.bf16.mxu0 0
    %6922 = vmatpush1.bf16.msra.mxu0 0
    %6923 = vmatprep.subr.bf16.mxu0 0
    %6924 = vmatpush1.bf16.msra.mxu0 0
    %6925 = vmatprep.subr.bf16.mxu0 0
    %6926 = vmatpush1.bf16.msra.mxu0 0
    %6927 = vmatprep.subr.bf16.mxu0 0
    %6928 = vmatpush1.bf16.msra.mxu0 0
    %6929 = vmatprep.subr.bf16.mxu0 0
    %6930 = vmatpush1.bf16.msra.mxu0 0
    %6931 = vmatprep.subr.bf16.mxu0 0
    %6932 = vmatpush1.bf16.msra.mxu0 0
    %6933 = vmatprep.subr.bf16.mxu0 0
    %6934 = vmatpush1.bf16.msra.mxu0 0
    %6935 = vmatprep.subr.bf16.mxu0 0
    %6936 = vmatpush1.bf16.msra.mxu0 0
    %6937 = vmatprep.subr.bf16.mxu0 0
    %6938 = vmatpush1.bf16.msra.mxu0 0
    %6939 = vmatprep.mubr.bf16.mxu0 0
    %6940 = vmatmul.mubr.bf16.gmra.mrb[0].mxu0 %v6902
    %v6941 = vpop.f32.mrb[0].mxu0
    %v6942 = vadd.f32 0.0, %v6941
    %v6943 = vpop.f32.mrb[0].mxu0
    %v6944 = vpop.f32.mrb[0].mxu0
    %v6945 = vpop.f32.mrb[0].mxu0
    %6946 = vdwg.mxu0
    %6947 = vrot.lane.b32.xlu0 %v5391, 96
    %v6948 = vpop.permute.xlu0 %6947
    %v6950 = vsel %vm576, %v6367, 0
    %v6953 = vsel %vm251, %v6948, 0
    %6955 = vmatprep.subr.bf16.mxu0 0
    %6956 = vmatpush1.bf16.msra.mxu0 %v6953
    %6957 = vmatprep.subr.bf16.mxu0 0
    %6958 = vmatpush1.bf16.msra.mxu0 0
    %6959 = vmatprep.subr.bf16.mxu0 0
    %6960 = vmatpush1.bf16.msra.mxu0 0
    %6961 = vmatprep.subr.bf16.mxu0 0
    %6962 = vmatpush1.bf16.msra.mxu0 0
    %6963 = vmatprep.subr.bf16.mxu0 0
    %6964 = vmatpush1.bf16.msra.mxu0 0
    %6965 = vmatprep.subr.bf16.mxu0 0
    %6966 = vmatpush1.bf16.msra.mxu0 0
    %6967 = vmatprep.subr.bf16.mxu0 0
    %6968 = vmatpush1.bf16.msra.mxu0 0
    %6969 = vmatprep.subr.bf16.mxu0 0
    %6970 = vmatpush1.bf16.msra.mxu0 0
    %6971 = vmatprep.subr.bf16.mxu0 0
    %6972 = vmatpush1.bf16.msra.mxu0 0
    %6973 = vmatprep.subr.bf16.mxu0 0
    %6974 = vmatpush1.bf16.msra.mxu0 0
    %6975 = vmatprep.subr.bf16.mxu0 0
    %6976 = vmatpush1.bf16.msra.mxu0 0
    %6977 = vmatprep.subr.bf16.mxu0 0
    %6978 = vmatpush1.bf16.msra.mxu0 0
    %6979 = vmatprep.subr.bf16.mxu0 0
    %6980 = vmatpush1.bf16.msra.mxu0 0
    %6981 = vmatprep.subr.bf16.mxu0 0
    %6982 = vmatpush1.bf16.msra.mxu0 0
    %6983 = vmatprep.subr.bf16.mxu0 0
    %6984 = vmatpush1.bf16.msra.mxu0 0
    %6985 = vmatprep.subr.bf16.mxu0 0
    %6986 = vmatpush1.bf16.msra.mxu0 0
    %6987 = vmatprep.mubr.bf16.mxu0 0
    %6988 = vmatmul.mubr.bf16.gmra.mrb[0].mxu0 %v6950
    %v6989 = vpop.f32.mrb[0].mxu0
    %v6990 = vadd.f32 0.0, %v6989
    %v6991 = vpop.f32.mrb[0].mxu0
    %v6992 = vpop.f32.mrb[0].mxu0
    %v6993 = vpop.f32.mrb[0].mxu0
    %6994 = vdwg.mxu0
    %6995 = vrot.lane.b32.xlu0 %v5392, 96
    %v6996 = vpop.permute.xlu0 %6995
    %v6998 = vsel %vm576, %v6368, 0
    %v7001 = vsel %vm251, %v6996, 0
    %7003 = vmatprep.subr.bf16.mxu0 0
    %7004 = vmatpush1.bf16.msra.mxu0 %v7001
    %7005 = vmatprep.subr.bf16.mxu0 0
    %7006 = vmatpush1.bf16.msra.mxu0 0
    %7007 = vmatprep.subr.bf16.mxu0 0
    %7008 = vmatpush1.bf16.msra.mxu0 0
    %7009 = vmatprep.subr.bf16.mxu0 0
    %7010 = vmatpush1.bf16.msra.mxu0 0
    %7011 = vmatprep.subr.bf16.mxu0 0
    %7012 = vmatpush1.bf16.msra.mxu0 0
    %7013 = vmatprep.subr.bf16.mxu0 0
    %7014 = vmatpush1.bf16.msra.mxu0 0
    %7015 = vmatprep.subr.bf16.mxu0 0
    %7016 = vmatpush1.bf16.msra.mxu0 0
    %7017 = vmatprep.subr.bf16.mxu0 0
    %7018 = vmatpush1.bf16.msra.mxu0 0
    %7019 = vmatprep.subr.bf16.mxu0 0
    %7020 = vmatpush1.bf16.msra.mxu0 0
    %7021 = vmatprep.subr.bf16.mxu0 0
    %7022 = vmatpush1.bf16.msra.mxu0 0
    %7023 = vmatprep.subr.bf16.mxu0 0
    %7024 = vmatpush1.bf16.msra.mxu0 0
    %7025 = vmatprep.subr.bf16.mxu0 0
    %7026 = vmatpush1.bf16.msra.mxu0 0
    %7027 = vmatprep.subr.bf16.mxu0 0
    %7028 = vmatpush1.bf16.msra.mxu0 0
    %7029 = vmatprep.subr.bf16.mxu0 0
    %7030 = vmatpush1.bf16.msra.mxu0 0
    %7031 = vmatprep.subr.bf16.mxu0 0
    %7032 = vmatpush1.bf16.msra.mxu0 0
    %7033 = vmatprep.subr.bf16.mxu0 0
    %7034 = vmatpush1.bf16.msra.mxu0 0
    %7035 = vmatprep.mubr.bf16.mxu0 0
    %7036 = vmatmul.mubr.bf16.gmra.mrb[0].mxu0 %v6998
    %v7037 = vpop.f32.mrb[0].mxu0
    %v7038 = vadd.f32 0.0, %v7037
    %v7039 = vpop.f32.mrb[0].mxu0
    %v7040 = vpop.f32.mrb[0].mxu0
    %v7041 = vpop.f32.mrb[0].mxu0
    %7042 = vdwg.mxu0
    %7043 = vrot.lane.b32.xlu0 %v5393, 96
    %v7044 = vpop.permute.xlu0 %7043
    %v7046 = vsel %vm576, %v6369, 0
    %v7049 = vsel %vm251, %v7044, 0
    %7051 = vmatprep.subr.bf16.mxu0 0
    %7052 = vmatpush1.bf16.msra.mxu0 %v7049
    %7053 = vmatprep.subr.bf16.mxu0 0
    %7054 = vmatpush1.bf16.msra.mxu0 0
    %7055 = vmatprep.subr.bf16.mxu0 0
    %7056 = vmatpush1.bf16.msra.mxu0 0
    %7057 = vmatprep.subr.bf16.mxu0 0
    %7058 = vmatpush1.bf16.msra.mxu0 0
    %7059 = vmatprep.subr.bf16.mxu0 0
    %7060 = vmatpush1.bf16.msra.mxu0 0
    %7061 = vmatprep.subr.bf16.mxu0 0
    %7062 = vmatpush1.bf16.msra.mxu0 0
    %7063 = vmatprep.subr.bf16.mxu0 0
    %7064 = vmatpush1.bf16.msra.mxu0 0
    %7065 = vmatprep.subr.bf16.mxu0 0
    %7066 = vmatpush1.bf16.msra.mxu0 0
    %7067 = vmatprep.subr.bf16.mxu0 0
    %7068 = vmatpush1.bf16.msra.mxu0 0
    %7069 = vmatprep.subr.bf16.mxu0 0
    %7070 = vmatpush1.bf16.msra.mxu0 0
    %7071 = vmatprep.subr.bf16.mxu0 0
    %7072 = vmatpush1.bf16.msra.mxu0 0
    %7073 = vmatprep.subr.bf16.mxu0 0
    %7074 = vmatpush1.bf16.msra.mxu0 0
    %7075 = vmatprep.subr.bf16.mxu0 0
    %7076 = vmatpush1.bf16.msra.mxu0 0
    %7077 = vmatprep.subr.bf16.mxu0 0
    %7078 = vmatpush1.bf16.msra.mxu0 0
    %7079 = vmatprep.subr.bf16.mxu0 0
    %7080 = vmatpush1.bf16.msra.mxu0 0
    %7081 = vmatprep.subr.bf16.mxu0 0
    %7082 = vmatpush1.bf16.msra.mxu0 0
    %7083 = vmatprep.mubr.bf16.mxu0 0
    %7084 = vmatmul.mubr.bf16.gmra.mrb[0].mxu0 %v7046
    %v7085 = vpop.f32.mrb[0].mxu0
    %v7086 = vadd.f32 0.0, %v7085
    %v7087 = vpop.f32.mrb[0].mxu0
    %v7088 = vpop.f32.mrb[0].mxu0
    %v7089 = vpop.f32.mrb[0].mxu0
    %7090 = vdwg.mxu0
    %7091 = vrot.lane.b32.xlu0 %v5394, 96
    %v7092 = vpop.permute.xlu0 %7091
    %v7094 = vsel %vm576, %v6370, 0
    %v7097 = vsel %vm251, %v7092, 0
    %7099 = vmatprep.subr.bf16.mxu0 0
    %7100 = vmatpush1.bf16.msra.mxu0 %v7097
    %7101 = vmatprep.subr.bf16.mxu0 0
    %7102 = vmatpush1.bf16.msra.mxu0 0
    %7103 = vmatprep.subr.bf16.mxu0 0
    %7104 = vmatpush1.bf16.msra.mxu0 0
    %7105 = vmatprep.subr.bf16.mxu0 0
    %7106 = vmatpush1.bf16.msra.mxu0 0
    %7107 = vmatprep.subr.bf16.mxu0 0
    %7108 = vmatpush1.bf16.msra.mxu0 0
    %7109 = vmatprep.subr.bf16.mxu0 0
    %7110 = vmatpush1.bf16.msra.mxu0 0
    %7111 = vmatprep.subr.bf16.mxu0 0
    %7112 = vmatpush1.bf16.msra.mxu0 0
    %7113 = vmatprep.subr.bf16.mxu0 0
    %7114 = vmatpush1.bf16.msra.mxu0 0
    %7115 = vmatprep.subr.bf16.mxu0 0
    %7116 = vmatpush1.bf16.msra.mxu0 0
    %7117 = vmatprep.subr.bf16.mxu0 0
    %7118 = vmatpush1.bf16.msra.mxu0 0
    %7119 = vmatprep.subr.bf16.mxu0 0
    %7120 = vmatpush1.bf16.msra.mxu0 0
    %7121 = vmatprep.subr.bf16.mxu0 0
    %7122 = vmatpush1.bf16.msra.mxu0 0
    %7123 = vmatprep.subr.bf16.mxu0 0
    %7124 = vmatpush1.bf16.msra.mxu0 0
    %7125 = vmatprep.subr.bf16.mxu0 0
    %7126 = vmatpush1.bf16.msra.mxu0 0
    %7127 = vmatprep.subr.bf16.mxu0 0
    %7128 = vmatpush1.bf16.msra.mxu0 0
    %7129 = vmatprep.subr.bf16.mxu0 0
    %7130 = vmatpush1.bf16.msra.mxu0 0
    %7131 = vmatprep.mubr.bf16.mxu0 0
    %7132 = vmatmul.mubr.bf16.gmra.mrb[0].mxu0 %v7094
    %v7133 = vpop.f32.mrb[0].mxu0
    %v7134 = vadd.f32 0.0, %v7133
    %v7135 = vpop.f32.mrb[0].mxu0
    %v7136 = vpop.f32.mrb[0].mxu0
    %v7137 = vpop.f32.mrb[0].mxu0
    %7138 = vdwg.mxu0
    %v7139 = vpack.c.bf16 %v6462, %v6414
    %v7140 = vpack.c.bf16 %v6558, %v6510
    %v7141 = vpack.c.bf16 %v6654, %v6606
    %v7142 = vpack.c.bf16 %v6750, %v6702
    %v7143 = vpack.c.bf16 %v6846, %v6798
    %v7144 = vpack.c.bf16 %v6942, %v6894
    %v7145 = vpack.c.bf16 %v7038, %v6990
    %v7146 = vpack.c.bf16 %v7134, %v7086
    %v7147 = vpack.c.bf16 %v5345, %v5345
    %7149 = vrot.lane.b32.xlu0 %v5363, 120
    %v7150 = vpop.permute.xlu0 %7149
    %7151 = vrot.lane.b32.xlu0 %v5379, 104
    %v7152 = vpop.permute.xlu0 %7151
    %v7154 = vsel %vm576, %v7150, 0
    %v7157 = vsel %vm576, %v7152, 0
    %7159 = vmatprep.subr.bf16.mxu0 0
    %7160 = vmatpush1.bf16.xpose.msra.mxu0 %v7157
    %7161 = vmatprep.subr.bf16.mxu0 0
    %7162 = vmatpush1.bf16.xpose.msra.mxu0 0
    %7163 = vmatprep.subr.bf16.mxu0 0
    %7164 = vmatpush1.bf16.xpose.msra.mxu0 0
    %7165 = vmatprep.subr.bf16.mxu0 0
    %7166 = vmatpush1.bf16.xpose.msra.mxu0 0
    %7167 = vmatprep.subr.bf16.mxu0 0
    %7168 = vmatpush1.bf16.xpose.msra.mxu0 0
    %7169 = vmatprep.subr.bf16.mxu0 0
    %7170 = vmatpush1.bf16.xpose.msra.mxu0 0
    %7171 = vmatprep.subr.bf16.mxu0 0
    %7172 = vmatpush1.bf16.xpose.msra.mxu0 0
    %7173 = vmatprep.subr.bf16.mxu0 0
    %7174 = vmatpush1.bf16.xpose.msra.mxu0 0
    %7175 = vmatprep.subr.bf16.mxu0 0
    %7176 = vmatpush1.bf16.xpose.msra.mxu0 0
    %7177 = vmatprep.subr.bf16.mxu0 0
    %7178 = vmatpush1.bf16.xpose.msra.mxu0 0
    %7179 = vmatprep.subr.bf16.mxu0 0
    %7180 = vmatpush1.bf16.xpose.msra.mxu0 0
    %7181 = vmatprep.subr.bf16.mxu0 0
    %7182 = vmatpush1.bf16.xpose.msra.mxu0 0
    %7183 = vmatprep.subr.bf16.mxu0 0
    %7184 = vmatpush1.bf16.xpose.msra.mxu0 0
    %7185 = vmatprep.subr.bf16.mxu0 0
    %7186 = vmatpush1.bf16.xpose.msra.mxu0 0
    %7187 = vmatprep.subr.bf16.mxu0 0
    %7188 = vmatpush1.bf16.xpose.msra.mxu0 0
    %7189 = vmatprep.subr.bf16.mxu0 0
    %7190 = vmatpush1.bf16.xpose.msra.mxu0 0
    %7191 = vmatprep.mubr.bf16.mxu0 0
    %7192 = vmatmul.mubr.bf16.gmra.mrb[0].mxu0 %v7154
    %v7193 = vpop.f32.mrb[0].mxu0
    %v7194 = vadd.f32 0.0, %v7193
    %v7195 = vpop.f32.mrb[0].mxu0
    %v7196 = vpop.f32.mrb[0].mxu0
    %v7197 = vpop.f32.mrb[0].mxu0
    %7198 = vdwg.mxu0
    %7200 = vrot.lane.b32.xlu0 %v5364, 120
    %v7201 = vpop.permute.xlu0 %7200
    %7202 = vrot.lane.b32.xlu0 %v5380, 104
    %v7203 = vpop.permute.xlu0 %7202
    %v7205 = vsel %vm576, %v7201, 0
    %v7208 = vsel %vm576, %v7203, 0
    %7210 = vmatprep.subr.bf16.mxu0 0
    %7211 = vmatpush1.bf16.xpose.msra.mxu0 %v7208
    %7212 = vmatprep.subr.bf16.mxu0 0
    %7213 = vmatpush1.bf16.xpose.msra.mxu0 0
    %7214 = vmatprep.subr.bf16.mxu0 0
    %7215 = vmatpush1.bf16.xpose.msra.mxu0 0
    %7216 = vmatprep.subr.bf16.mxu0 0
    %7217 = vmatpush1.bf16.xpose.msra.mxu0 0
    %7218 = vmatprep.subr.bf16.mxu0 0
    %7219 = vmatpush1.bf16.xpose.msra.mxu0 0
    %7220 = vmatprep.subr.bf16.mxu0 0
    %7221 = vmatpush1.bf16.xpose.msra.mxu0 0
    %7222 = vmatprep.subr.bf16.mxu0 0
    %7223 = vmatpush1.bf16.xpose.msra.mxu0 0
    %7224 = vmatprep.subr.bf16.mxu0 0
    %7225 = vmatpush1.bf16.xpose.msra.mxu0 0
    %7226 = vmatprep.subr.bf16.mxu0 0
    %7227 = vmatpush1.bf16.xpose.msra.mxu0 0
    %7228 = vmatprep.subr.bf16.mxu0 0
    %7229 = vmatpush1.bf16.xpose.msra.mxu0 0
    %7230 = vmatprep.subr.bf16.mxu0 0
    %7231 = vmatpush1.bf16.xpose.msra.mxu0 0
    %7232 = vmatprep.subr.bf16.mxu0 0
    %7233 = vmatpush1.bf16.xpose.msra.mxu0 0
    %7234 = vmatprep.subr.bf16.mxu0 0
    %7235 = vmatpush1.bf16.xpose.msra.mxu0 0
    %7236 = vmatprep.subr.bf16.mxu0 0
    %7237 = vmatpush1.bf16.xpose.msra.mxu0 0
    %7238 = vmatprep.subr.bf16.mxu0 0
    %7239 = vmatpush1.bf16.xpose.msra.mxu0 0
    %7240 = vmatprep.subr.bf16.mxu0 0
    %7241 = vmatpush1.bf16.xpose.msra.mxu0 0
    %7242 = vmatprep.mubr.bf16.mxu0 0
    %7243 = vmatmul.mubr.bf16.gmra.mrb[0].mxu0 %v7205
    %v7244 = vpop.f32.mrb[0].mxu0
    %v7245 = vadd.f32 0.0, %v7244
    %v7246 = vpop.f32.mrb[0].mxu0
    %v7247 = vpop.f32.mrb[0].mxu0
    %v7248 = vpop.f32.mrb[0].mxu0
    %7249 = vdwg.mxu0
    %7251 = vrot.lane.b32.xlu0 %v5365, 120
    %v7252 = vpop.permute.xlu0 %7251
    %7253 = vrot.lane.b32.xlu0 %v5381, 104
    %v7254 = vpop.permute.xlu0 %7253
    %v7256 = vsel %vm576, %v7252, 0
    %v7259 = vsel %vm576, %v7254, 0
    %7261 = vmatprep.subr.bf16.mxu0 0
    %7262 = vmatpush1.bf16.xpose.msra.mxu0 %v7259
    %7263 = vmatprep.subr.bf16.mxu0 0
    %7264 = vmatpush1.bf16.xpose.msra.mxu0 0
    %7265 = vmatprep.subr.bf16.mxu0 0
    %7266 = vmatpush1.bf16.xpose.msra.mxu0 0
    %7267 = vmatprep.subr.bf16.mxu0 0
    %7268 = vmatpush1.bf16.xpose.msra.mxu0 0
    %7269 = vmatprep.subr.bf16.mxu0 0
    %7270 = vmatpush1.bf16.xpose.msra.mxu0 0
    %7271 = vmatprep.subr.bf16.mxu0 0
    %7272 = vmatpush1.bf16.xpose.msra.mxu0 0
    %7273 = vmatprep.subr.bf16.mxu0 0
    %7274 = vmatpush1.bf16.xpose.msra.mxu0 0
    %7275 = vmatprep.subr.bf16.mxu0 0
    %7276 = vmatpush1.bf16.xpose.msra.mxu0 0
    %7277 = vmatprep.subr.bf16.mxu0 0
    %7278 = vmatpush1.bf16.xpose.msra.mxu0 0
    %7279 = vmatprep.subr.bf16.mxu0 0
    %7280 = vmatpush1.bf16.xpose.msra.mxu0 0
    %7281 = vmatprep.subr.bf16.mxu0 0
    %7282 = vmatpush1.bf16.xpose.msra.mxu0 0
    %7283 = vmatprep.subr.bf16.mxu0 0
    %7284 = vmatpush1.bf16.xpose.msra.mxu0 0
    %7285 = vmatprep.subr.bf16.mxu0 0
    %7286 = vmatpush1.bf16.xpose.msra.mxu0 0
    %7287 = vmatprep.subr.bf16.mxu0 0
    %7288 = vmatpush1.bf16.xpose.msra.mxu0 0
    %7289 = vmatprep.subr.bf16.mxu0 0
    %7290 = vmatpush1.bf16.xpose.msra.mxu0 0
    %7291 = vmatprep.subr.bf16.mxu0 0
    %7292 = vmatpush1.bf16.xpose.msra.mxu0 0
    %7293 = vmatprep.mubr.bf16.mxu0 0
    %7294 = vmatmul.mubr.bf16.gmra.mrb[0].mxu0 %v7256
    %v7295 = vpop.f32.mrb[0].mxu0
    %v7296 = vadd.f32 0.0, %v7295
    %v7297 = vpop.f32.mrb[0].mxu0
    %v7298 = vpop.f32.mrb[0].mxu0
    %v7299 = vpop.f32.mrb[0].mxu0
    %7300 = vdwg.mxu0
    %7302 = vrot.lane.b32.xlu0 %v5366, 120
    %v7303 = vpop.permute.xlu0 %7302
    %7304 = vrot.lane.b32.xlu0 %v5382, 104
    %v7305 = vpop.permute.xlu0 %7304
    %v7307 = vsel %vm576, %v7303, 0
    %v7310 = vsel %vm576, %v7305, 0
    %7312 = vmatprep.subr.bf16.mxu0 0
    %7313 = vmatpush1.bf16.xpose.msra.mxu0 %v7310
    %7314 = vmatprep.subr.bf16.mxu0 0
    %7315 = vmatpush1.bf16.xpose.msra.mxu0 0
    %7316 = vmatprep.subr.bf16.mxu0 0
    %7317 = vmatpush1.bf16.xpose.msra.mxu0 0
    %7318 = vmatprep.subr.bf16.mxu0 0
    %7319 = vmatpush1.bf16.xpose.msra.mxu0 0
    %7320 = vmatprep.subr.bf16.mxu0 0
    %7321 = vmatpush1.bf16.xpose.msra.mxu0 0
    %7322 = vmatprep.subr.bf16.mxu0 0
    %7323 = vmatpush1.bf16.xpose.msra.mxu0 0
    %7324 = vmatprep.subr.bf16.mxu0 0
    %7325 = vmatpush1.bf16.xpose.msra.mxu0 0
    %7326 = vmatprep.subr.bf16.mxu0 0
    %7327 = vmatpush1.bf16.xpose.msra.mxu0 0
    %7328 = vmatprep.subr.bf16.mxu0 0
    %7329 = vmatpush1.bf16.xpose.msra.mxu0 0
    %7330 = vmatprep.subr.bf16.mxu0 0
    %7331 = vmatpush1.bf16.xpose.msra.mxu0 0
    %7332 = vmatprep.subr.bf16.mxu0 0
    %7333 = vmatpush1.bf16.xpose.msra.mxu0 0
    %7334 = vmatprep.subr.bf16.mxu0 0
    %7335 = vmatpush1.bf16.xpose.msra.mxu0 0
    %7336 = vmatprep.subr.bf16.mxu0 0
    %7337 = vmatpush1.bf16.xpose.msra.mxu0 0
    %7338 = vmatprep.subr.bf16.mxu0 0
    %7339 = vmatpush1.bf16.xpose.msra.mxu0 0
    %7340 = vmatprep.subr.bf16.mxu0 0
    %7341 = vmatpush1.bf16.xpose.msra.mxu0 0
    %7342 = vmatprep.subr.bf16.mxu0 0
    %7343 = vmatpush1.bf16.xpose.msra.mxu0 0
    %7344 = vmatprep.mubr.bf16.mxu0 0
    %7345 = vmatmul.mubr.bf16.gmra.mrb[0].mxu0 %v7307
    %v7346 = vpop.f32.mrb[0].mxu0
    %v7347 = vadd.f32 0.0, %v7346
    %v7348 = vpop.f32.mrb[0].mxu0
    %v7349 = vpop.f32.mrb[0].mxu0
    %v7350 = vpop.f32.mrb[0].mxu0
    %7351 = vdwg.mxu0
    %7353 = vrot.lane.b32.xlu0 %v5367, 120
    %v7354 = vpop.permute.xlu0 %7353
    %7355 = vrot.lane.b32.xlu0 %v5383, 104
    %v7356 = vpop.permute.xlu0 %7355
    %v7358 = vsel %vm576, %v7354, 0
    %v7361 = vsel %vm576, %v7356, 0
    %7363 = vmatprep.subr.bf16.mxu0 0
    %7364 = vmatpush1.bf16.xpose.msra.mxu0 %v7361
    %7365 = vmatprep.subr.bf16.mxu0 0
    %7366 = vmatpush1.bf16.xpose.msra.mxu0 0
    %7367 = vmatprep.subr.bf16.mxu0 0
    %7368 = vmatpush1.bf16.xpose.msra.mxu0 0
    %7369 = vmatprep.subr.bf16.mxu0 0
    %7370 = vmatpush1.bf16.xpose.msra.mxu0 0
    %7371 = vmatprep.subr.bf16.mxu0 0
    %7372 = vmatpush1.bf16.xpose.msra.mxu0 0
    %7373 = vmatprep.subr.bf16.mxu0 0
    %7374 = vmatpush1.bf16.xpose.msra.mxu0 0
    %7375 = vmatprep.subr.bf16.mxu0 0
    %7376 = vmatpush1.bf16.xpose.msra.mxu0 0
    %7377 = vmatprep.subr.bf16.mxu0 0
    %7378 = vmatpush1.bf16.xpose.msra.mxu0 0
    %7379 = vmatprep.subr.bf16.mxu0 0
    %7380 = vmatpush1.bf16.xpose.msra.mxu0 0
    %7381 = vmatprep.subr.bf16.mxu0 0
    %7382 = vmatpush1.bf16.xpose.msra.mxu0 0
    %7383 = vmatprep.subr.bf16.mxu0 0
    %7384 = vmatpush1.bf16.xpose.msra.mxu0 0
    %7385 = vmatprep.subr.bf16.mxu0 0
    %7386 = vmatpush1.bf16.xpose.msra.mxu0 0
    %7387 = vmatprep.subr.bf16.mxu0 0
    %7388 = vmatpush1.bf16.xpose.msra.mxu0 0
    %7389 = vmatprep.subr.bf16.mxu0 0
    %7390 = vmatpush1.bf16.xpose.msra.mxu0 0
    %7391 = vmatprep.subr.bf16.mxu0 0
    %7392 = vmatpush1.bf16.xpose.msra.mxu0 0
    %7393 = vmatprep.subr.bf16.mxu0 0
    %7394 = vmatpush1.bf16.xpose.msra.mxu0 0
    %7395 = vmatprep.mubr.bf16.mxu0 0
    %7396 = vmatmul.mubr.bf16.gmra.mrb[0].mxu0 %v7358
    %v7397 = vpop.f32.mrb[0].mxu0
    %v7398 = vadd.f32 0.0, %v7397
    %v7399 = vpop.f32.mrb[0].mxu0
    %v7400 = vpop.f32.mrb[0].mxu0
    %v7401 = vpop.f32.mrb[0].mxu0
    %7402 = vdwg.mxu0
    %7404 = vrot.lane.b32.xlu0 %v5368, 120
    %v7405 = vpop.permute.xlu0 %7404
    %7406 = vrot.lane.b32.xlu0 %v5384, 104
    %v7407 = vpop.permute.xlu0 %7406
    %v7409 = vsel %vm576, %v7405, 0
    %v7412 = vsel %vm576, %v7407, 0
    %7414 = vmatprep.subr.bf16.mxu0 0
    %7415 = vmatpush1.bf16.xpose.msra.mxu0 %v7412
    %7416 = vmatprep.subr.bf16.mxu0 0
    %7417 = vmatpush1.bf16.xpose.msra.mxu0 0
    %7418 = vmatprep.subr.bf16.mxu0 0
    %7419 = vmatpush1.bf16.xpose.msra.mxu0 0
    %7420 = vmatprep.subr.bf16.mxu0 0
    %7421 = vmatpush1.bf16.xpose.msra.mxu0 0
    %7422 = vmatprep.subr.bf16.mxu0 0
    %7423 = vmatpush1.bf16.xpose.msra.mxu0 0
    %7424 = vmatprep.subr.bf16.mxu0 0
    %7425 = vmatpush1.bf16.xpose.msra.mxu0 0
    %7426 = vmatprep.subr.bf16.mxu0 0
    %7427 = vmatpush1.bf16.xpose.msra.mxu0 0
    %7428 = vmatprep.subr.bf16.mxu0 0
    %7429 = vmatpush1.bf16.xpose.msra.mxu0 0
    %7430 = vmatprep.subr.bf16.mxu0 0
    %7431 = vmatpush1.bf16.xpose.msra.mxu0 0
    %7432 = vmatprep.subr.bf16.mxu0 0
    %7433 = vmatpush1.bf16.xpose.msra.mxu0 0
    %7434 = vmatprep.subr.bf16.mxu0 0
    %7435 = vmatpush1.bf16.xpose.msra.mxu0 0
    %7436 = vmatprep.subr.bf16.mxu0 0
    %7437 = vmatpush1.bf16.xpose.msra.mxu0 0
    %7438 = vmatprep.subr.bf16.mxu0 0
    %7439 = vmatpush1.bf16.xpose.msra.mxu0 0
    %7440 = vmatprep.subr.bf16.mxu0 0
    %7441 = vmatpush1.bf16.xpose.msra.mxu0 0
    %7442 = vmatprep.subr.bf16.mxu0 0
    %7443 = vmatpush1.bf16.xpose.msra.mxu0 0
    %7444 = vmatprep.subr.bf16.mxu0 0
    %7445 = vmatpush1.bf16.xpose.msra.mxu0 0
    %7446 = vmatprep.mubr.bf16.mxu0 0
    %7447 = vmatmul.mubr.bf16.gmra.mrb[0].mxu0 %v7409
    %v7448 = vpop.f32.mrb[0].mxu0
    %v7449 = vadd.f32 0.0, %v7448
    %v7450 = vpop.f32.mrb[0].mxu0
    %v7451 = vpop.f32.mrb[0].mxu0
    %v7452 = vpop.f32.mrb[0].mxu0
    %7453 = vdwg.mxu0
    %7455 = vrot.lane.b32.xlu0 %v5369, 120
    %v7456 = vpop.permute.xlu0 %7455
    %7457 = vrot.lane.b32.xlu0 %v5385, 104
    %v7458 = vpop.permute.xlu0 %7457
    %v7460 = vsel %vm576, %v7456, 0
    %v7463 = vsel %vm576, %v7458, 0
    %7465 = vmatprep.subr.bf16.mxu0 0
    %7466 = vmatpush1.bf16.xpose.msra.mxu0 %v7463
    %7467 = vmatprep.subr.bf16.mxu0 0
    %7468 = vmatpush1.bf16.xpose.msra.mxu0 0
    %7469 = vmatprep.subr.bf16.mxu0 0
    %7470 = vmatpush1.bf16.xpose.msra.mxu0 0
    %7471 = vmatprep.subr.bf16.mxu0 0
    %7472 = vmatpush1.bf16.xpose.msra.mxu0 0
    %7473 = vmatprep.subr.bf16.mxu0 0
    %7474 = vmatpush1.bf16.xpose.msra.mxu0 0
    %7475 = vmatprep.subr.bf16.mxu0 0
    %7476 = vmatpush1.bf16.xpose.msra.mxu0 0
    %7477 = vmatprep.subr.bf16.mxu0 0
    %7478 = vmatpush1.bf16.xpose.msra.mxu0 0
    %7479 = vmatprep.subr.bf16.mxu0 0
    %7480 = vmatpush1.bf16.xpose.msra.mxu0 0
    %7481 = vmatprep.subr.bf16.mxu0 0
    %7482 = vmatpush1.bf16.xpose.msra.mxu0 0
    %7483 = vmatprep.subr.bf16.mxu0 0
    %7484 = vmatpush1.bf16.xpose.msra.mxu0 0
    %7485 = vmatprep.subr.bf16.mxu0 0
    %7486 = vmatpush1.bf16.xpose.msra.mxu0 0
    %7487 = vmatprep.subr.bf16.mxu0 0
    %7488 = vmatpush1.bf16.xpose.msra.mxu0 0
    %7489 = vmatprep.subr.bf16.mxu0 0
    %7490 = vmatpush1.bf16.xpose.msra.mxu0 0
    %7491 = vmatprep.subr.bf16.mxu0 0
    %7492 = vmatpush1.bf16.xpose.msra.mxu0 0
    %7493 = vmatprep.subr.bf16.mxu0 0
    %7494 = vmatpush1.bf16.xpose.msra.mxu0 0
    %7495 = vmatprep.subr.bf16.mxu0 0
    %7496 = vmatpush1.bf16.xpose.msra.mxu0 0
    %7497 = vmatprep.mubr.bf16.mxu0 0
    %7498 = vmatmul.mubr.bf16.gmra.mrb[0].mxu0 %v7460
    %v7499 = vpop.f32.mrb[0].mxu0
    %v7500 = vadd.f32 0.0, %v7499
    %v7501 = vpop.f32.mrb[0].mxu0
    %v7502 = vpop.f32.mrb[0].mxu0
    %v7503 = vpop.f32.mrb[0].mxu0
    %7504 = vdwg.mxu0
    %7506 = vrot.lane.b32.xlu0 %v5370, 120
    %v7507 = vpop.permute.xlu0 %7506
    %7508 = vrot.lane.b32.xlu0 %v5386, 104
    %v7509 = vpop.permute.xlu0 %7508
    %v7511 = vsel %vm576, %v7507, 0
    %v7514 = vsel %vm576, %v7509, 0
    %7516 = vmatprep.subr.bf16.mxu0 0
    %7517 = vmatpush1.bf16.xpose.msra.mxu0 %v7514
    %7518 = vmatprep.subr.bf16.mxu0 0
    %7519 = vmatpush1.bf16.xpose.msra.mxu0 0
    %7520 = vmatprep.subr.bf16.mxu0 0
    %7521 = vmatpush1.bf16.xpose.msra.mxu0 0
    %7522 = vmatprep.subr.bf16.mxu0 0
    %7523 = vmatpush1.bf16.xpose.msra.mxu0 0
    %7524 = vmatprep.subr.bf16.mxu0 0
    %7525 = vmatpush1.bf16.xpose.msra.mxu0 0
    %7526 = vmatprep.subr.bf16.mxu0 0
    %7527 = vmatpush1.bf16.xpose.msra.mxu0 0
    %7528 = vmatprep.subr.bf16.mxu0 0
    %7529 = vmatpush1.bf16.xpose.msra.mxu0 0
    %7530 = vmatprep.subr.bf16.mxu0 0
    %7531 = vmatpush1.bf16.xpose.msra.mxu0 0
    %7532 = vmatprep.subr.bf16.mxu0 0
    %7533 = vmatpush1.bf16.xpose.msra.mxu0 0
    %7534 = vmatprep.subr.bf16.mxu0 0
    %7535 = vmatpush1.bf16.xpose.msra.mxu0 0
    %7536 = vmatprep.subr.bf16.mxu0 0
    %7537 = vmatpush1.bf16.xpose.msra.mxu0 0
    %7538 = vmatprep.subr.bf16.mxu0 0
    %7539 = vmatpush1.bf16.xpose.msra.mxu0 0
    %7540 = vmatprep.subr.bf16.mxu0 0
    %7541 = vmatpush1.bf16.xpose.msra.mxu0 0
    %7542 = vmatprep.subr.bf16.mxu0 0
    %7543 = vmatpush1.bf16.xpose.msra.mxu0 0
    %7544 = vmatprep.subr.bf16.mxu0 0
    %7545 = vmatpush1.bf16.xpose.msra.mxu0 0
    %7546 = vmatprep.subr.bf16.mxu0 0
    %7547 = vmatpush1.bf16.xpose.msra.mxu0 0
    %7548 = vmatprep.mubr.bf16.mxu0 0
    %7549 = vmatmul.mubr.bf16.gmra.mrb[0].mxu0 %v7511
    %v7550 = vpop.f32.mrb[0].mxu0
    %v7551 = vadd.f32 0.0, %v7550
    %v7552 = vpop.f32.mrb[0].mxu0
    %v7553 = vpop.f32.mrb[0].mxu0
    %v7554 = vpop.f32.mrb[0].mxu0
    %7555 = vdwg.mxu0
    %7557 = vrot.lane.b32.xlu0 %v5371, 120
    %v7558 = vpop.permute.xlu0 %7557
    %7559 = vrot.lane.b32.xlu0 %v5387, 104
    %v7560 = vpop.permute.xlu0 %7559
    %v7562 = vsel %vm576, %v7558, 0
    %v7565 = vsel %vm576, %v7560, 0
    %7567 = vmatprep.subr.bf16.mxu0 0
    %7568 = vmatpush1.bf16.xpose.msra.mxu0 %v7565
    %7569 = vmatprep.subr.bf16.mxu0 0
    %7570 = vmatpush1.bf16.xpose.msra.mxu0 0
    %7571 = vmatprep.subr.bf16.mxu0 0
    %7572 = vmatpush1.bf16.xpose.msra.mxu0 0
    %7573 = vmatprep.subr.bf16.mxu0 0
    %7574 = vmatpush1.bf16.xpose.msra.mxu0 0
    %7575 = vmatprep.subr.bf16.mxu0 0
    %7576 = vmatpush1.bf16.xpose.msra.mxu0 0
    %7577 = vmatprep.subr.bf16.mxu0 0
    %7578 = vmatpush1.bf16.xpose.msra.mxu0 0
    %7579 = vmatprep.subr.bf16.mxu0 0
    %7580 = vmatpush1.bf16.xpose.msra.mxu0 0
    %7581 = vmatprep.subr.bf16.mxu0 0
    %7582 = vmatpush1.bf16.xpose.msra.mxu0 0
    %7583 = vmatprep.subr.bf16.mxu0 0
    %7584 = vmatpush1.bf16.xpose.msra.mxu0 0
    %7585 = vmatprep.subr.bf16.mxu0 0
    %7586 = vmatpush1.bf16.xpose.msra.mxu0 0
    %7587 = vmatprep.subr.bf16.mxu0 0
    %7588 = vmatpush1.bf16.xpose.msra.mxu0 0
    %7589 = vmatprep.subr.bf16.mxu0 0
    %7590 = vmatpush1.bf16.xpose.msra.mxu0 0
    %7591 = vmatprep.subr.bf16.mxu0 0
    %7592 = vmatpush1.bf16.xpose.msra.mxu0 0
    %7593 = vmatprep.subr.bf16.mxu0 0
    %7594 = vmatpush1.bf16.xpose.msra.mxu0 0
    %7595 = vmatprep.subr.bf16.mxu0 0
    %7596 = vmatpush1.bf16.xpose.msra.mxu0 0
    %7597 = vmatprep.subr.bf16.mxu0 0
    %7598 = vmatpush1.bf16.xpose.msra.mxu0 0
    %7599 = vmatprep.mubr.bf16.mxu0 0
    %7600 = vmatmul.mubr.bf16.gmra.mrb[0].mxu0 %v7562
    %v7601 = vpop.f32.mrb[0].mxu0
    %v7602 = vadd.f32 0.0, %v7601
    %v7603 = vpop.f32.mrb[0].mxu0
    %v7604 = vpop.f32.mrb[0].mxu0
    %v7605 = vpop.f32.mrb[0].mxu0
    %7606 = vdwg.mxu0
    %7608 = vrot.lane.b32.xlu0 %v5372, 120
    %v7609 = vpop.permute.xlu0 %7608
    %7610 = vrot.lane.b32.xlu0 %v5388, 104
    %v7611 = vpop.permute.xlu0 %7610
    %v7613 = vsel %vm576, %v7609, 0
    %v7616 = vsel %vm576, %v7611, 0
    %7618 = vmatprep.subr.bf16.mxu0 0
    %7619 = vmatpush1.bf16.xpose.msra.mxu0 %v7616
    %7620 = vmatprep.subr.bf16.mxu0 0
    %7621 = vmatpush1.bf16.xpose.msra.mxu0 0
    %7622 = vmatprep.subr.bf16.mxu0 0
    %7623 = vmatpush1.bf16.xpose.msra.mxu0 0
    %7624 = vmatprep.subr.bf16.mxu0 0
    %7625 = vmatpush1.bf16.xpose.msra.mxu0 0
    %7626 = vmatprep.subr.bf16.mxu0 0
    %7627 = vmatpush1.bf16.xpose.msra.mxu0 0
    %7628 = vmatprep.subr.bf16.mxu0 0
    %7629 = vmatpush1.bf16.xpose.msra.mxu0 0
    %7630 = vmatprep.subr.bf16.mxu0 0
    %7631 = vmatpush1.bf16.xpose.msra.mxu0 0
    %7632 = vmatprep.subr.bf16.mxu0 0
    %7633 = vmatpush1.bf16.xpose.msra.mxu0 0
    %7634 = vmatprep.subr.bf16.mxu0 0
    %7635 = vmatpush1.bf16.xpose.msra.mxu0 0
    %7636 = vmatprep.subr.bf16.mxu0 0
    %7637 = vmatpush1.bf16.xpose.msra.mxu0 0
    %7638 = vmatprep.subr.bf16.mxu0 0
    %7639 = vmatpush1.bf16.xpose.msra.mxu0 0
    %7640 = vmatprep.subr.bf16.mxu0 0
    %7641 = vmatpush1.bf16.xpose.msra.mxu0 0
    %7642 = vmatprep.subr.bf16.mxu0 0
    %7643 = vmatpush1.bf16.xpose.msra.mxu0 0
    %7644 = vmatprep.subr.bf16.mxu0 0
    %7645 = vmatpush1.bf16.xpose.msra.mxu0 0
    %7646 = vmatprep.subr.bf16.mxu0 0
    %7647 = vmatpush1.bf16.xpose.msra.mxu0 0
    %7648 = vmatprep.subr.bf16.mxu0 0
    %7649 = vmatpush1.bf16.xpose.msra.mxu0 0
    %7650 = vmatprep.mubr.bf16.mxu0 0
    %7651 = vmatmul.mubr.bf16.gmra.mrb[0].mxu0 %v7613
    %v7652 = vpop.f32.mrb[0].mxu0
    %v7653 = vadd.f32 0.0, %v7652
    %v7654 = vpop.f32.mrb[0].mxu0
    %v7655 = vpop.f32.mrb[0].mxu0
    %v7656 = vpop.f32.mrb[0].mxu0
    %7657 = vdwg.mxu0
    %7659 = vrot.lane.b32.xlu0 %v5373, 120
    %v7660 = vpop.permute.xlu0 %7659
    %7661 = vrot.lane.b32.xlu0 %v5389, 104
    %v7662 = vpop.permute.xlu0 %7661
    %v7664 = vsel %vm576, %v7660, 0
    %v7667 = vsel %vm576, %v7662, 0
    %7669 = vmatprep.subr.bf16.mxu0 0
    %7670 = vmatpush1.bf16.xpose.msra.mxu0 %v7667
    %7671 = vmatprep.subr.bf16.mxu0 0
    %7672 = vmatpush1.bf16.xpose.msra.mxu0 0
    %7673 = vmatprep.subr.bf16.mxu0 0
    %7674 = vmatpush1.bf16.xpose.msra.mxu0 0
    %7675 = vmatprep.subr.bf16.mxu0 0
    %7676 = vmatpush1.bf16.xpose.msra.mxu0 0
    %7677 = vmatprep.subr.bf16.mxu0 0
    %7678 = vmatpush1.bf16.xpose.msra.mxu0 0
    %7679 = vmatprep.subr.bf16.mxu0 0
    %7680 = vmatpush1.bf16.xpose.msra.mxu0 0
    %7681 = vmatprep.subr.bf16.mxu0 0
    %7682 = vmatpush1.bf16.xpose.msra.mxu0 0
    %7683 = vmatprep.subr.bf16.mxu0 0
    %7684 = vmatpush1.bf16.xpose.msra.mxu0 0
    %7685 = vmatprep.subr.bf16.mxu0 0
    %7686 = vmatpush1.bf16.xpose.msra.mxu0 0
    %7687 = vmatprep.subr.bf16.mxu0 0
    %7688 = vmatpush1.bf16.xpose.msra.mxu0 0
    %7689 = vmatprep.subr.bf16.mxu0 0
    %7690 = vmatpush1.bf16.xpose.msra.mxu0 0
    %7691 = vmatprep.subr.bf16.mxu0 0
    %7692 = vmatpush1.bf16.xpose.msra.mxu0 0
    %7693 = vmatprep.subr.bf16.mxu0 0
    %7694 = vmatpush1.bf16.xpose.msra.mxu0 0
    %7695 = vmatprep.subr.bf16.mxu0 0
    %7696 = vmatpush1.bf16.xpose.msra.mxu0 0
    %7697 = vmatprep.subr.bf16.mxu0 0
    %7698 = vmatpush1.bf16.xpose.msra.mxu0 0
    %7699 = vmatprep.subr.bf16.mxu0 0
    %7700 = vmatpush1.bf16.xpose.msra.mxu0 0
    %7701 = vmatprep.mubr.bf16.mxu0 0
    %7702 = vmatmul.mubr.bf16.gmra.mrb[0].mxu0 %v7664
    %v7703 = vpop.f32.mrb[0].mxu0
    %v7704 = vadd.f32 0.0, %v7703
    %v7705 = vpop.f32.mrb[0].mxu0
    %v7706 = vpop.f32.mrb[0].mxu0
    %v7707 = vpop.f32.mrb[0].mxu0
    %7708 = vdwg.mxu0
    %7710 = vrot.lane.b32.xlu0 %v5374, 120
    %v7711 = vpop.permute.xlu0 %7710
    %7712 = vrot.lane.b32.xlu0 %v5390, 104
    %v7713 = vpop.permute.xlu0 %7712
    %v7715 = vsel %vm576, %v7711, 0
    %v7718 = vsel %vm576, %v7713, 0
    %7720 = vmatprep.subr.bf16.mxu0 0
    %7721 = vmatpush1.bf16.xpose.msra.mxu0 %v7718
    %7722 = vmatprep.subr.bf16.mxu0 0
    %7723 = vmatpush1.bf16.xpose.msra.mxu0 0
    %7724 = vmatprep.subr.bf16.mxu0 0
    %7725 = vmatpush1.bf16.xpose.msra.mxu0 0
    %7726 = vmatprep.subr.bf16.mxu0 0
    %7727 = vmatpush1.bf16.xpose.msra.mxu0 0
    %7728 = vmatprep.subr.bf16.mxu0 0
    %7729 = vmatpush1.bf16.xpose.msra.mxu0 0
    %7730 = vmatprep.subr.bf16.mxu0 0
    %7731 = vmatpush1.bf16.xpose.msra.mxu0 0
    %7732 = vmatprep.subr.bf16.mxu0 0
    %7733 = vmatpush1.bf16.xpose.msra.mxu0 0
    %7734 = vmatprep.subr.bf16.mxu0 0
    %7735 = vmatpush1.bf16.xpose.msra.mxu0 0
    %7736 = vmatprep.subr.bf16.mxu0 0
    %7737 = vmatpush1.bf16.xpose.msra.mxu0 0
    %7738 = vmatprep.subr.bf16.mxu0 0
    %7739 = vmatpush1.bf16.xpose.msra.mxu0 0
    %7740 = vmatprep.subr.bf16.mxu0 0
    %7741 = vmatpush1.bf16.xpose.msra.mxu0 0
    %7742 = vmatprep.subr.bf16.mxu0 0
    %7743 = vmatpush1.bf16.xpose.msra.mxu0 0
    %7744 = vmatprep.subr.bf16.mxu0 0
    %7745 = vmatpush1.bf16.xpose.msra.mxu0 0
    %7746 = vmatprep.subr.bf16.mxu0 0
    %7747 = vmatpush1.bf16.xpose.msra.mxu0 0
    %7748 = vmatprep.subr.bf16.mxu0 0
    %7749 = vmatpush1.bf16.xpose.msra.mxu0 0
    %7750 = vmatprep.subr.bf16.mxu0 0
    %7751 = vmatpush1.bf16.xpose.msra.mxu0 0
    %7752 = vmatprep.mubr.bf16.mxu0 0
    %7753 = vmatmul.mubr.bf16.gmra.mrb[0].mxu0 %v7715
    %v7754 = vpop.f32.mrb[0].mxu0
    %v7755 = vadd.f32 0.0, %v7754
    %v7756 = vpop.f32.mrb[0].mxu0
    %v7757 = vpop.f32.mrb[0].mxu0
    %v7758 = vpop.f32.mrb[0].mxu0
    %7759 = vdwg.mxu0
    %7761 = vrot.lane.b32.xlu0 %v5375, 120
    %v7762 = vpop.permute.xlu0 %7761
    %7763 = vrot.lane.b32.xlu0 %v5391, 104
    %v7764 = vpop.permute.xlu0 %7763
    %v7766 = vsel %vm576, %v7762, 0
    %v7769 = vsel %vm576, %v7764, 0
    %7771 = vmatprep.subr.bf16.mxu0 0
    %7772 = vmatpush1.bf16.xpose.msra.mxu0 %v7769
    %7773 = vmatprep.subr.bf16.mxu0 0
    %7774 = vmatpush1.bf16.xpose.msra.mxu0 0
    %7775 = vmatprep.subr.bf16.mxu0 0
    %7776 = vmatpush1.bf16.xpose.msra.mxu0 0
    %7777 = vmatprep.subr.bf16.mxu0 0
    %7778 = vmatpush1.bf16.xpose.msra.mxu0 0
    %7779 = vmatprep.subr.bf16.mxu0 0
    %7780 = vmatpush1.bf16.xpose.msra.mxu0 0
    %7781 = vmatprep.subr.bf16.mxu0 0
    %7782 = vmatpush1.bf16.xpose.msra.mxu0 0
    %7783 = vmatprep.subr.bf16.mxu0 0
    %7784 = vmatpush1.bf16.xpose.msra.mxu0 0
    %7785 = vmatprep.subr.bf16.mxu0 0
    %7786 = vmatpush1.bf16.xpose.msra.mxu0 0
    %7787 = vmatprep.subr.bf16.mxu0 0
    %7788 = vmatpush1.bf16.xpose.msra.mxu0 0
    %7789 = vmatprep.subr.bf16.mxu0 0
    %7790 = vmatpush1.bf16.xpose.msra.mxu0 0
    %7791 = vmatprep.subr.bf16.mxu0 0
    %7792 = vmatpush1.bf16.xpose.msra.mxu0 0
    %7793 = vmatprep.subr.bf16.mxu0 0
    %7794 = vmatpush1.bf16.xpose.msra.mxu0 0
    %7795 = vmatprep.subr.bf16.mxu0 0
    %7796 = vmatpush1.bf16.xpose.msra.mxu0 0
    %7797 = vmatprep.subr.bf16.mxu0 0
    %7798 = vmatpush1.bf16.xpose.msra.mxu0 0
    %7799 = vmatprep.subr.bf16.mxu0 0
    %7800 = vmatpush1.bf16.xpose.msra.mxu0 0
    %7801 = vmatprep.subr.bf16.mxu0 0
    %7802 = vmatpush1.bf16.xpose.msra.mxu0 0
    %7803 = vmatprep.mubr.bf16.mxu0 0
    %7804 = vmatmul.mubr.bf16.gmra.mrb[0].mxu0 %v7766
    %v7805 = vpop.f32.mrb[0].mxu0
    %v7806 = vadd.f32 0.0, %v7805
    %v7807 = vpop.f32.mrb[0].mxu0
    %v7808 = vpop.f32.mrb[0].mxu0
    %v7809 = vpop.f32.mrb[0].mxu0
    %7810 = vdwg.mxu0
    %7812 = vrot.lane.b32.xlu0 %v5376, 120
    %v7813 = vpop.permute.xlu0 %7812
    %7814 = vrot.lane.b32.xlu0 %v5392, 104
    %v7815 = vpop.permute.xlu0 %7814
    %v7817 = vsel %vm576, %v7813, 0
    %v7820 = vsel %vm576, %v7815, 0
    %7822 = vmatprep.subr.bf16.mxu0 0
    %7823 = vmatpush1.bf16.xpose.msra.mxu0 %v7820
    %7824 = vmatprep.subr.bf16.mxu0 0
    %7825 = vmatpush1.bf16.xpose.msra.mxu0 0
    %7826 = vmatprep.subr.bf16.mxu0 0
    %7827 = vmatpush1.bf16.xpose.msra.mxu0 0
    %7828 = vmatprep.subr.bf16.mxu0 0
    %7829 = vmatpush1.bf16.xpose.msra.mxu0 0
    %7830 = vmatprep.subr.bf16.mxu0 0
    %7831 = vmatpush1.bf16.xpose.msra.mxu0 0
    %7832 = vmatprep.subr.bf16.mxu0 0
    %7833 = vmatpush1.bf16.xpose.msra.mxu0 0
    %7834 = vmatprep.subr.bf16.mxu0 0
    %7835 = vmatpush1.bf16.xpose.msra.mxu0 0
    %7836 = vmatprep.subr.bf16.mxu0 0
    %7837 = vmatpush1.bf16.xpose.msra.mxu0 0
    %7838 = vmatprep.subr.bf16.mxu0 0
    %7839 = vmatpush1.bf16.xpose.msra.mxu0 0
    %7840 = vmatprep.subr.bf16.mxu0 0
    %7841 = vmatpush1.bf16.xpose.msra.mxu0 0
    %7842 = vmatprep.subr.bf16.mxu0 0
    %7843 = vmatpush1.bf16.xpose.msra.mxu0 0
    %7844 = vmatprep.subr.bf16.mxu0 0
    %7845 = vmatpush1.bf16.xpose.msra.mxu0 0
    %7846 = vmatprep.subr.bf16.mxu0 0
    %7847 = vmatpush1.bf16.xpose.msra.mxu0 0
    %7848 = vmatprep.subr.bf16.mxu0 0
    %7849 = vmatpush1.bf16.xpose.msra.mxu0 0
    %7850 = vmatprep.subr.bf16.mxu0 0
    %7851 = vmatpush1.bf16.xpose.msra.mxu0 0
    %7852 = vmatprep.subr.bf16.mxu0 0
    %7853 = vmatpush1.bf16.xpose.msra.mxu0 0
    %7854 = vmatprep.mubr.bf16.mxu0 0
    %7855 = vmatmul.mubr.bf16.gmra.mrb[0].mxu0 %v7817
    %v7856 = vpop.f32.mrb[0].mxu0
    %v7857 = vadd.f32 0.0, %v7856
    %v7858 = vpop.f32.mrb[0].mxu0
    %v7859 = vpop.f32.mrb[0].mxu0
    %v7860 = vpop.f32.mrb[0].mxu0
    %7861 = vdwg.mxu0
    %7863 = vrot.lane.b32.xlu0 %v5377, 120
    %v7864 = vpop.permute.xlu0 %7863
    %7865 = vrot.lane.b32.xlu0 %v5393, 104
    %v7866 = vpop.permute.xlu0 %7865
    %v7868 = vsel %vm576, %v7864, 0
    %v7871 = vsel %vm576, %v7866, 0
    %7873 = vmatprep.subr.bf16.mxu0 0
    %7874 = vmatpush1.bf16.xpose.msra.mxu0 %v7871
    %7875 = vmatprep.subr.bf16.mxu0 0
    %7876 = vmatpush1.bf16.xpose.msra.mxu0 0
    %7877 = vmatprep.subr.bf16.mxu0 0
    %7878 = vmatpush1.bf16.xpose.msra.mxu0 0
    %7879 = vmatprep.subr.bf16.mxu0 0
    %7880 = vmatpush1.bf16.xpose.msra.mxu0 0
    %7881 = vmatprep.subr.bf16.mxu0 0
    %7882 = vmatpush1.bf16.xpose.msra.mxu0 0
    %7883 = vmatprep.subr.bf16.mxu0 0
    %7884 = vmatpush1.bf16.xpose.msra.mxu0 0
    %7885 = vmatprep.subr.bf16.mxu0 0
    %7886 = vmatpush1.bf16.xpose.msra.mxu0 0
    %7887 = vmatprep.subr.bf16.mxu0 0
    %7888 = vmatpush1.bf16.xpose.msra.mxu0 0
    %7889 = vmatprep.subr.bf16.mxu0 0
    %7890 = vmatpush1.bf16.xpose.msra.mxu0 0
    %7891 = vmatprep.subr.bf16.mxu0 0
    %7892 = vmatpush1.bf16.xpose.msra.mxu0 0
    %7893 = vmatprep.subr.bf16.mxu0 0
    %7894 = vmatpush1.bf16.xpose.msra.mxu0 0
    %7895 = vmatprep.subr.bf16.mxu0 0
    %7896 = vmatpush1.bf16.xpose.msra.mxu0 0
    %7897 = vmatprep.subr.bf16.mxu0 0
    %7898 = vmatpush1.bf16.xpose.msra.mxu0 0
    %7899 = vmatprep.subr.bf16.mxu0 0
    %7900 = vmatpush1.bf16.xpose.msra.mxu0 0
    %7901 = vmatprep.subr.bf16.mxu0 0
    %7902 = vmatpush1.bf16.xpose.msra.mxu0 0
    %7903 = vmatprep.subr.bf16.mxu0 0
    %7904 = vmatpush1.bf16.xpose.msra.mxu0 0
    %7905 = vmatprep.mubr.bf16.mxu0 0
    %7906 = vmatmul.mubr.bf16.gmra.mrb[0].mxu0 %v7868
    %v7907 = vpop.f32.mrb[0].mxu0
    %v7908 = vadd.f32 0.0, %v7907
    %v7909 = vpop.f32.mrb[0].mxu0
    %v7910 = vpop.f32.mrb[0].mxu0
    %v7911 = vpop.f32.mrb[0].mxu0
    %7912 = vdwg.mxu0
    %7914 = vrot.lane.b32.xlu0 %v5378, 120
    %v7915 = vpop.permute.xlu0 %7914
    %7916 = vrot.lane.b32.xlu0 %v5394, 104
    %v7917 = vpop.permute.xlu0 %7916
    %v7919 = vsel %vm576, %v7915, 0
    %v7922 = vsel %vm576, %v7917, 0
    %7924 = vmatprep.subr.bf16.mxu0 0
    %7925 = vmatpush1.bf16.xpose.msra.mxu0 %v7922
    %7926 = vmatprep.subr.bf16.mxu0 0
    %7927 = vmatpush1.bf16.xpose.msra.mxu0 0
    %7928 = vmatprep.subr.bf16.mxu0 0
    %7929 = vmatpush1.bf16.xpose.msra.mxu0 0
    %7930 = vmatprep.subr.bf16.mxu0 0
    %7931 = vmatpush1.bf16.xpose.msra.mxu0 0
    %7932 = vmatprep.subr.bf16.mxu0 0
    %7933 = vmatpush1.bf16.xpose.msra.mxu0 0
    %7934 = vmatprep.subr.bf16.mxu0 0
    %7935 = vmatpush1.bf16.xpose.msra.mxu0 0
    %7936 = vmatprep.subr.bf16.mxu0 0
    %7937 = vmatpush1.bf16.xpose.msra.mxu0 0
    %7938 = vmatprep.subr.bf16.mxu0 0
    %7939 = vmatpush1.bf16.xpose.msra.mxu0 0
    %7940 = vmatprep.subr.bf16.mxu0 0
    %7941 = vmatpush1.bf16.xpose.msra.mxu0 0
    %7942 = vmatprep.subr.bf16.mxu0 0
    %7943 = vmatpush1.bf16.xpose.msra.mxu0 0
    %7944 = vmatprep.subr.bf16.mxu0 0
    %7945 = vmatpush1.bf16.xpose.msra.mxu0 0
    %7946 = vmatprep.subr.bf16.mxu0 0
    %7947 = vmatpush1.bf16.xpose.msra.mxu0 0
    %7948 = vmatprep.subr.bf16.mxu0 0
    %7949 = vmatpush1.bf16.xpose.msra.mxu0 0
    %7950 = vmatprep.subr.bf16.mxu0 0
    %7951 = vmatpush1.bf16.xpose.msra.mxu0 0
    %7952 = vmatprep.subr.bf16.mxu0 0
    %7953 = vmatpush1.bf16.xpose.msra.mxu0 0
    %7954 = vmatprep.subr.bf16.mxu0 0
    %7955 = vmatpush1.bf16.xpose.msra.mxu0 0
    %7956 = vmatprep.mubr.bf16.mxu0 0
    %7957 = vmatmul.mubr.bf16.gmra.mrb[0].mxu0 %v7919
    %v7958 = vpop.f32.mrb[0].mxu0
    %v7959 = vadd.f32 0.0, %v7958
    %v7960 = vpop.f32.mrb[0].mxu0
    %v7961 = vpop.f32.mrb[0].mxu0
    %v7962 = vpop.f32.mrb[0].mxu0
    %7963 = vdwg.mxu0
    %v7964 = vsel %vm576, %v7194, -inf
    %7965 = vmax.xlane.f32.xlu0 %v7964
    %v7966 = vpop.xlane.xlu0 %7965
    %v7967 = vsel %vm576, %v7245, -inf
    %7968 = vmax.xlane.f32.xlu0 %v7967
    %v7969 = vpop.xlane.xlu0 %7968
    %v7970 = vsel %vm576, %v7296, -inf
    %7971 = vmax.xlane.f32.xlu0 %v7970
    %v7972 = vpop.xlane.xlu0 %7971
    %v7973 = vsel %vm576, %v7347, -inf
    %7974 = vmax.xlane.f32.xlu0 %v7973
    %v7975 = vpop.xlane.xlu0 %7974
    %v7976 = vsel %vm576, %v7398, -inf
    %7977 = vmax.xlane.f32.xlu0 %v7976
    %v7978 = vpop.xlane.xlu0 %7977
    %v7979 = vsel %vm576, %v7449, -inf
    %7980 = vmax.xlane.f32.xlu0 %v7979
    %v7981 = vpop.xlane.xlu0 %7980
    %v7982 = vsel %vm576, %v7500, -inf
    %7983 = vmax.xlane.f32.xlu0 %v7982
    %v7984 = vpop.xlane.xlu0 %7983
    %v7985 = vsel %vm576, %v7551, -inf
    %7986 = vmax.xlane.f32.xlu0 %v7985
    %v7987 = vpop.xlane.xlu0 %7986
    %v7988 = vsel %vm576, %v7602, -inf
    %7989 = vmax.xlane.f32.xlu0 %v7988
    %v7990 = vpop.xlane.xlu0 %7989
    %v7991 = vsel %vm576, %v7653, -inf
    %7992 = vmax.xlane.f32.xlu0 %v7991
    %v7993 = vpop.xlane.xlu0 %7992
    %v7994 = vsel %vm576, %v7704, -inf
    %7995 = vmax.xlane.f32.xlu0 %v7994
    %v7996 = vpop.xlane.xlu0 %7995
    %v7997 = vsel %vm576, %v7755, -inf
    %7998 = vmax.xlane.f32.xlu0 %v7997
    %v7999 = vpop.xlane.xlu0 %7998
    %v8000 = vsel %vm576, %v7806, -inf
    %8001 = vmax.xlane.f32.xlu0 %v8000
    %v8002 = vpop.xlane.xlu0 %8001
    %v8003 = vsel %vm576, %v7857, -inf
    %8004 = vmax.xlane.f32.xlu0 %v8003
    %v8005 = vpop.xlane.xlu0 %8004
    %v8006 = vsel %vm576, %v7908, -inf
    %8007 = vmax.xlane.f32.xlu0 %v8006
    %v8008 = vpop.xlane.xlu0 %8007
    %v8009 = vsel %vm576, %v7959, -inf
    %8010 = vmax.xlane.f32.xlu0 %v8009
    %v8011 = vpop.xlane.xlu0 %8010
    %v8012 = vsub.f32 %v7194, %v7966
    %v8013 = vsub.f32 %v7245, %v7969
    %v8014 = vsub.f32 %v7296, %v7972
    %v8015 = vsub.f32 %v7347, %v7975
    %v8016 = vsub.f32 %v7398, %v7978
    %v8017 = vsub.f32 %v7449, %v7981
    %v8018 = vsub.f32 %v7500, %v7984
    %v8019 = vsub.f32 %v7551, %v7987
    %v8020 = vsub.f32 %v7602, %v7990
    %v8021 = vsub.f32 %v7653, %v7993
    %v8022 = vsub.f32 %v7704, %v7996
    %v8023 = vsub.f32 %v7755, %v7999
    %v8024 = vsub.f32 %v7806, %v8002
    %v8025 = vsub.f32 %v7857, %v8005
    %v8026 = vsub.f32 %v7908, %v8008
    %v8027 = vsub.f32 %v7959, %v8011
    %v8028 = vmul.f32 %v8012, 1.442695
    %v8029 = vpow.pop %v8028
    %v8030 = vmul.f32 %v8013, 1.442695
    %v8031 = vpow.pop %v8030
    %v8032 = vmul.f32 %v8014, 1.442695
    %v8033 = vpow.pop %v8032
    %v8034 = vmul.f32 %v8015, 1.442695
    %v8035 = vpow.pop %v8034
    %v8036 = vmul.f32 %v8016, 1.442695
    %v8037 = vpow.pop %v8036
    %v8038 = vmul.f32 %v8017, 1.442695
    %v8039 = vpow.pop %v8038
    %v8040 = vmul.f32 %v8018, 1.442695
    %v8041 = vpow.pop %v8040
    %v8042 = vmul.f32 %v8019, 1.442695
    %v8043 = vpow.pop %v8042
    %v8044 = vmul.f32 %v8020, 1.442695
    %v8045 = vpow.pop %v8044
    %v8046 = vmul.f32 %v8021, 1.442695
    %v8047 = vpow.pop %v8046
    %v8048 = vmul.f32 %v8022, 1.442695
    %v8049 = vpow.pop %v8048
    %v8050 = vmul.f32 %v8023, 1.442695
    %v8051 = vpow.pop %v8050
    %v8052 = vmul.f32 %v8024, 1.442695
    %v8053 = vpow.pop %v8052
    %v8054 = vmul.f32 %v8025, 1.442695
    %v8055 = vpow.pop %v8054
    %v8056 = vmul.f32 %v8026, 1.442695
    %v8057 = vpow.pop %v8056
    %v8058 = vmul.f32 %v8027, 1.442695
    %v8059 = vpow.pop %v8058
    %v8060 = vsel %vm576, %v8029, 0.0
    %8061 = vadd.xlane.f32.xlu0 %v8060
    %v8062 = vpop.xlane.xlu0 %8061
    %v8063 = vsel %vm576, %v8031, 0.0
    %8064 = vadd.xlane.f32.xlu0 %v8063
    %v8065 = vpop.xlane.xlu0 %8064
    %v8066 = vsel %vm576, %v8033, 0.0
    %8067 = vadd.xlane.f32.xlu0 %v8066
    %v8068 = vpop.xlane.xlu0 %8067
    %v8069 = vsel %vm576, %v8035, 0.0
    %8070 = vadd.xlane.f32.xlu0 %v8069
    %v8071 = vpop.xlane.xlu0 %8070
    %v8072 = vsel %vm576, %v8037, 0.0
    %8073 = vadd.xlane.f32.xlu0 %v8072
    %v8074 = vpop.xlane.xlu0 %8073
    %v8075 = vsel %vm576, %v8039, 0.0
    %8076 = vadd.xlane.f32.xlu0 %v8075
    %v8077 = vpop.xlane.xlu0 %8076
    %v8078 = vsel %vm576, %v8041, 0.0
    %8079 = vadd.xlane.f32.xlu0 %v8078
    %v8080 = vpop.xlane.xlu0 %8079
    %v8081 = vsel %vm576, %v8043, 0.0
    %8082 = vadd.xlane.f32.xlu0 %v8081
    %v8083 = vpop.xlane.xlu0 %8082
    %v8084 = vsel %vm576, %v8045, 0.0
    %8085 = vadd.xlane.f32.xlu0 %v8084
    %v8086 = vpop.xlane.xlu0 %8085
    %v8087 = vsel %vm576, %v8047, 0.0
    %8088 = vadd.xlane.f32.xlu0 %v8087
    %v8089 = vpop.xlane.xlu0 %8088
    %v8090 = vsel %vm576, %v8049, 0.0
    %8091 = vadd.xlane.f32.xlu0 %v8090
    %v8092 = vpop.xlane.xlu0 %8091
    %v8093 = vsel %vm576, %v8051, 0.0
    %8094 = vadd.xlane.f32.xlu0 %v8093
    %v8095 = vpop.xlane.xlu0 %8094
    %v8096 = vsel %vm576, %v8053, 0.0
    %8097 = vadd.xlane.f32.xlu0 %v8096
    %v8098 = vpop.xlane.xlu0 %8097
    %v8099 = vsel %vm576, %v8055, 0.0
    %8100 = vadd.xlane.f32.xlu0 %v8099
    %v8101 = vpop.xlane.xlu0 %8100
    %v8102 = vsel %vm576, %v8057, 0.0
    %8103 = vadd.xlane.f32.xlu0 %v8102
    %v8104 = vpop.xlane.xlu0 %8103
    %v8105 = vsel %vm576, %v8059, 0.0
    %8106 = vadd.xlane.f32.xlu0 %v8105
    %v8107 = vpop.xlane.xlu0 %8106
    %v8108 = vrcp.pop %v8062
    %v8109 = vrcp.pop %v8065
    %v8110 = vrcp.pop %v8068
    %v8111 = vrcp.pop %v8071
    %v8112 = vrcp.pop %v8074
    %v8113 = vrcp.pop %v8077
    %v8114 = vrcp.pop %v8080
    %v8115 = vrcp.pop %v8083
    %v8116 = vrcp.pop %v8086
    %v8117 = vrcp.pop %v8089
    %v8118 = vrcp.pop %v8092
    %v8119 = vrcp.pop %v8095
    %v8120 = vrcp.pop %v8098
    %v8121 = vrcp.pop %v8101
    %v8122 = vrcp.pop %v8104
    %v8123 = vrcp.pop %v8107
    %v8124 = vmul.f32 %v8029, %v8108
    %v8125 = vmul.f32 %v8031, %v8109
    %v8126 = vmul.f32 %v8033, %v8110
    %v8127 = vmul.f32 %v8035, %v8111
    %v8128 = vmul.f32 %v8037, %v8112
    %v8129 = vmul.f32 %v8039, %v8113
    %v8130 = vmul.f32 %v8041, %v8114
    %v8131 = vmul.f32 %v8043, %v8115
    %v8132 = vmul.f32 %v8045, %v8116
    %v8133 = vmul.f32 %v8047, %v8117
    %v8134 = vmul.f32 %v8049, %v8118
    %v8135 = vmul.f32 %v8051, %v8119
    %v8136 = vmul.f32 %v8053, %v8120
    %v8137 = vmul.f32 %v8055, %v8121
    %v8138 = vmul.f32 %v8057, %v8122
    %v8139 = vmul.f32 %v8059, %v8123
    %v8140 = vpack.c.bf16 %v8124, %v8124
    %v8141 = vpack.c.bf16 %v8125, %v8125
    %v8142 = vpack.c.bf16 %v8126, %v8126
    %v8143 = vpack.c.bf16 %v8127, %v8127
    %v8144 = vpack.c.bf16 %v8128, %v8128
    %v8145 = vpack.c.bf16 %v8129, %v8129
    %v8146 = vpack.c.bf16 %v8130, %v8130
    %v8147 = vpack.c.bf16 %v8131, %v8131
    %v8148 = vpack.c.bf16 %v8132, %v8132
    %v8149 = vpack.c.bf16 %v8133, %v8133
    %v8150 = vpack.c.bf16 %v8134, %v8134
    %v8151 = vpack.c.bf16 %v8135, %v8135
    %v8152 = vpack.c.bf16 %v8136, %v8136
    %v8153 = vpack.c.bf16 %v8137, %v8137
    %v8154 = vpack.c.bf16 %v8138, %v8138
    %v8155 = vpack.c.bf16 %v8139, %v8139
    %8156 = vrot.lane.b32.xlu0 %v5379, 88
    %v8157 = vpop.permute.xlu0 %8156
    %v8159 = vsel %vm576, %v8140, 0
    %v8162 = vsel %vm251, %v8157, 0
    %8164 = vmatprep.subr.bf16.mxu0 0
    %8165 = vmatpush1.bf16.msra.mxu0 %v8162
    %8166 = vmatprep.subr.bf16.mxu0 0
    %8167 = vmatpush1.bf16.msra.mxu0 0
    %8168 = vmatprep.subr.bf16.mxu0 0
    %8169 = vmatpush1.bf16.msra.mxu0 0
    %8170 = vmatprep.subr.bf16.mxu0 0
    %8171 = vmatpush1.bf16.msra.mxu0 0
    %8172 = vmatprep.subr.bf16.mxu0 0
    %8173 = vmatpush1.bf16.msra.mxu0 0
    %8174 = vmatprep.subr.bf16.mxu0 0
    %8175 = vmatpush1.bf16.msra.mxu0 0
    %8176 = vmatprep.subr.bf16.mxu0 0
    %8177 = vmatpush1.bf16.msra.mxu0 0
    %8178 = vmatprep.subr.bf16.mxu0 0
    %8179 = vmatpush1.bf16.msra.mxu0 0
    %8180 = vmatprep.subr.bf16.mxu0 0
    %8181 = vmatpush1.bf16.msra.mxu0 0
    %8182 = vmatprep.subr.bf16.mxu0 0
    %8183 = vmatpush1.bf16.msra.mxu0 0
    %8184 = vmatprep.subr.bf16.mxu0 0
    %8185 = vmatpush1.bf16.msra.mxu0 0
    %8186 = vmatprep.subr.bf16.mxu0 0
    %8187 = vmatpush1.bf16.msra.mxu0 0
    %8188 = vmatprep.subr.bf16.mxu0 0
    %8189 = vmatpush1.bf16.msra.mxu0 0
    %8190 = vmatprep.subr.bf16.mxu0 0
    %8191 = vmatpush1.bf16.msra.mxu0 0
    %8192 = vmatprep.subr.bf16.mxu0 0
    %8193 = vmatpush1.bf16.msra.mxu0 0
    %8194 = vmatprep.subr.bf16.mxu0 0
    %8195 = vmatpush1.bf16.msra.mxu0 0
    %8196 = vmatprep.mubr.bf16.mxu0 0
    %8197 = vmatmul.mubr.bf16.gmra.mrb[0].mxu0 %v8159
    %v8198 = vpop.f32.mrb[0].mxu0
    %v8199 = vadd.f32 0.0, %v8198
    %v8200 = vpop.f32.mrb[0].mxu0
    %v8201 = vpop.f32.mrb[0].mxu0
    %v8202 = vpop.f32.mrb[0].mxu0
    %8203 = vdwg.mxu0
    %8204 = vrot.lane.b32.xlu0 %v5380, 88
    %v8205 = vpop.permute.xlu0 %8204
    %v8207 = vsel %vm576, %v8141, 0
    %v8210 = vsel %vm251, %v8205, 0
    %8212 = vmatprep.subr.bf16.mxu0 0
    %8213 = vmatpush1.bf16.msra.mxu0 %v8210
    %8214 = vmatprep.subr.bf16.mxu0 0
    %8215 = vmatpush1.bf16.msra.mxu0 0
    %8216 = vmatprep.subr.bf16.mxu0 0
    %8217 = vmatpush1.bf16.msra.mxu0 0
    %8218 = vmatprep.subr.bf16.mxu0 0
    %8219 = vmatpush1.bf16.msra.mxu0 0
    %8220 = vmatprep.subr.bf16.mxu0 0
    %8221 = vmatpush1.bf16.msra.mxu0 0
    %8222 = vmatprep.subr.bf16.mxu0 0
    %8223 = vmatpush1.bf16.msra.mxu0 0
    %8224 = vmatprep.subr.bf16.mxu0 0
    %8225 = vmatpush1.bf16.msra.mxu0 0
    %8226 = vmatprep.subr.bf16.mxu0 0
    %8227 = vmatpush1.bf16.msra.mxu0 0
    %8228 = vmatprep.subr.bf16.mxu0 0
    %8229 = vmatpush1.bf16.msra.mxu0 0
    %8230 = vmatprep.subr.bf16.mxu0 0
    %8231 = vmatpush1.bf16.msra.mxu0 0
    %8232 = vmatprep.subr.bf16.mxu0 0
    %8233 = vmatpush1.bf16.msra.mxu0 0
    %8234 = vmatprep.subr.bf16.mxu0 0
    %8235 = vmatpush1.bf16.msra.mxu0 0
    %8236 = vmatprep.subr.bf16.mxu0 0
    %8237 = vmatpush1.bf16.msra.mxu0 0
    %8238 = vmatprep.subr.bf16.mxu0 0
    %8239 = vmatpush1.bf16.msra.mxu0 0
    %8240 = vmatprep.subr.bf16.mxu0 0
    %8241 = vmatpush1.bf16.msra.mxu0 0
    %8242 = vmatprep.subr.bf16.mxu0 0
    %8243 = vmatpush1.bf16.msra.mxu0 0
    %8244 = vmatprep.mubr.bf16.mxu0 0
    %8245 = vmatmul.mubr.bf16.gmra.mrb[0].mxu0 %v8207
    %v8246 = vpop.f32.mrb[0].mxu0
    %v8247 = vadd.f32 0.0, %v8246
    %v8248 = vpop.f32.mrb[0].mxu0
    %v8249 = vpop.f32.mrb[0].mxu0
    %v8250 = vpop.f32.mrb[0].mxu0
    %8251 = vdwg.mxu0
    %8252 = vrot.lane.b32.xlu0 %v5381, 88
    %v8253 = vpop.permute.xlu0 %8252
    %v8255 = vsel %vm576, %v8142, 0
    %v8258 = vsel %vm251, %v8253, 0
    %8260 = vmatprep.subr.bf16.mxu0 0
    %8261 = vmatpush1.bf16.msra.mxu0 %v8258
    %8262 = vmatprep.subr.bf16.mxu0 0
    %8263 = vmatpush1.bf16.msra.mxu0 0
    %8264 = vmatprep.subr.bf16.mxu0 0
    %8265 = vmatpush1.bf16.msra.mxu0 0
    %8266 = vmatprep.subr.bf16.mxu0 0
    %8267 = vmatpush1.bf16.msra.mxu0 0
    %8268 = vmatprep.subr.bf16.mxu0 0
    %8269 = vmatpush1.bf16.msra.mxu0 0
    %8270 = vmatprep.subr.bf16.mxu0 0
    %8271 = vmatpush1.bf16.msra.mxu0 0
    %8272 = vmatprep.subr.bf16.mxu0 0
    %8273 = vmatpush1.bf16.msra.mxu0 0
    %8274 = vmatprep.subr.bf16.mxu0 0
    %8275 = vmatpush1.bf16.msra.mxu0 0
    %8276 = vmatprep.subr.bf16.mxu0 0
    %8277 = vmatpush1.bf16.msra.mxu0 0
    %8278 = vmatprep.subr.bf16.mxu0 0
    %8279 = vmatpush1.bf16.msra.mxu0 0
    %8280 = vmatprep.subr.bf16.mxu0 0
    %8281 = vmatpush1.bf16.msra.mxu0 0
    %8282 = vmatprep.subr.bf16.mxu0 0
    %8283 = vmatpush1.bf16.msra.mxu0 0
    %8284 = vmatprep.subr.bf16.mxu0 0
    %8285 = vmatpush1.bf16.msra.mxu0 0
    %8286 = vmatprep.subr.bf16.mxu0 0
    %8287 = vmatpush1.bf16.msra.mxu0 0
    %8288 = vmatprep.subr.bf16.mxu0 0
    %8289 = vmatpush1.bf16.msra.mxu0 0
    %8290 = vmatprep.subr.bf16.mxu0 0
    %8291 = vmatpush1.bf16.msra.mxu0 0
    %8292 = vmatprep.mubr.bf16.mxu0 0
    %8293 = vmatmul.mubr.bf16.gmra.mrb[0].mxu0 %v8255
    %v8294 = vpop.f32.mrb[0].mxu0
    %v8295 = vadd.f32 0.0, %v8294
    %v8296 = vpop.f32.mrb[0].mxu0
    %v8297 = vpop.f32.mrb[0].mxu0
    %v8298 = vpop.f32.mrb[0].mxu0
    %8299 = vdwg.mxu0
    %8300 = vrot.lane.b32.xlu0 %v5382, 88
    %v8301 = vpop.permute.xlu0 %8300
    %v8303 = vsel %vm576, %v8143, 0
    %v8306 = vsel %vm251, %v8301, 0
    %8308 = vmatprep.subr.bf16.mxu0 0
    %8309 = vmatpush1.bf16.msra.mxu0 %v8306
    %8310 = vmatprep.subr.bf16.mxu0 0
    %8311 = vmatpush1.bf16.msra.mxu0 0
    %8312 = vmatprep.subr.bf16.mxu0 0
    %8313 = vmatpush1.bf16.msra.mxu0 0
    %8314 = vmatprep.subr.bf16.mxu0 0
    %8315 = vmatpush1.bf16.msra.mxu0 0
    %8316 = vmatprep.subr.bf16.mxu0 0
    %8317 = vmatpush1.bf16.msra.mxu0 0
    %8318 = vmatprep.subr.bf16.mxu0 0
    %8319 = vmatpush1.bf16.msra.mxu0 0
    %8320 = vmatprep.subr.bf16.mxu0 0
    %8321 = vmatpush1.bf16.msra.mxu0 0
    %8322 = vmatprep.subr.bf16.mxu0 0
    %8323 = vmatpush1.bf16.msra.mxu0 0
    %8324 = vmatprep.subr.bf16.mxu0 0
    %8325 = vmatpush1.bf16.msra.mxu0 0
    %8326 = vmatprep.subr.bf16.mxu0 0
    %8327 = vmatpush1.bf16.msra.mxu0 0
    %8328 = vmatprep.subr.bf16.mxu0 0
    %8329 = vmatpush1.bf16.msra.mxu0 0
    %8330 = vmatprep.subr.bf16.mxu0 0
    %8331 = vmatpush1.bf16.msra.mxu0 0
    %8332 = vmatprep.subr.bf16.mxu0 0
    %8333 = vmatpush1.bf16.msra.mxu0 0
    %8334 = vmatprep.subr.bf16.mxu0 0
    %8335 = vmatpush1.bf16.msra.mxu0 0
    %8336 = vmatprep.subr.bf16.mxu0 0
    %8337 = vmatpush1.bf16.msra.mxu0 0
    %8338 = vmatprep.subr.bf16.mxu0 0
    %8339 = vmatpush1.bf16.msra.mxu0 0
    %8340 = vmatprep.mubr.bf16.mxu0 0
    %8341 = vmatmul.mubr.bf16.gmra.mrb[0].mxu0 %v8303
    %v8342 = vpop.f32.mrb[0].mxu0
    %v8343 = vadd.f32 0.0, %v8342
    %v8344 = vpop.f32.mrb[0].mxu0
    %v8345 = vpop.f32.mrb[0].mxu0
    %v8346 = vpop.f32.mrb[0].mxu0
    %8347 = vdwg.mxu0
    %8348 = vrot.lane.b32.xlu0 %v5383, 88
    %v8349 = vpop.permute.xlu0 %8348
    %v8351 = vsel %vm576, %v8144, 0
    %v8354 = vsel %vm251, %v8349, 0
    %8356 = vmatprep.subr.bf16.mxu0 0
    %8357 = vmatpush1.bf16.msra.mxu0 %v8354
    %8358 = vmatprep.subr.bf16.mxu0 0
    %8359 = vmatpush1.bf16.msra.mxu0 0
    %8360 = vmatprep.subr.bf16.mxu0 0
    %8361 = vmatpush1.bf16.msra.mxu0 0
    %8362 = vmatprep.subr.bf16.mxu0 0
    %8363 = vmatpush1.bf16.msra.mxu0 0
    %8364 = vmatprep.subr.bf16.mxu0 0
    %8365 = vmatpush1.bf16.msra.mxu0 0
    %8366 = vmatprep.subr.bf16.mxu0 0
    %8367 = vmatpush1.bf16.msra.mxu0 0
    %8368 = vmatprep.subr.bf16.mxu0 0
    %8369 = vmatpush1.bf16.msra.mxu0 0
    %8370 = vmatprep.subr.bf16.mxu0 0
    %8371 = vmatpush1.bf16.msra.mxu0 0
    %8372 = vmatprep.subr.bf16.mxu0 0
    %8373 = vmatpush1.bf16.msra.mxu0 0
    %8374 = vmatprep.subr.bf16.mxu0 0
    %8375 = vmatpush1.bf16.msra.mxu0 0
    %8376 = vmatprep.subr.bf16.mxu0 0
    %8377 = vmatpush1.bf16.msra.mxu0 0
    %8378 = vmatprep.subr.bf16.mxu0 0
    %8379 = vmatpush1.bf16.msra.mxu0 0
    %8380 = vmatprep.subr.bf16.mxu0 0
    %8381 = vmatpush1.bf16.msra.mxu0 0
    %8382 = vmatprep.subr.bf16.mxu0 0
    %8383 = vmatpush1.bf16.msra.mxu0 0
    %8384 = vmatprep.subr.bf16.mxu0 0
    %8385 = vmatpush1.bf16.msra.mxu0 0
    %8386 = vmatprep.subr.bf16.mxu0 0
    %8387 = vmatpush1.bf16.msra.mxu0 0
    %8388 = vmatprep.mubr.bf16.mxu0 0
    %8389 = vmatmul.mubr.bf16.gmra.mrb[0].mxu0 %v8351
    %v8390 = vpop.f32.mrb[0].mxu0
    %v8391 = vadd.f32 0.0, %v8390
    %v8392 = vpop.f32.mrb[0].mxu0
    %v8393 = vpop.f32.mrb[0].mxu0
    %v8394 = vpop.f32.mrb[0].mxu0
    %8395 = vdwg.mxu0
    %8396 = vrot.lane.b32.xlu0 %v5384, 88
    %v8397 = vpop.permute.xlu0 %8396
    %v8399 = vsel %vm576, %v8145, 0
    %v8402 = vsel %vm251, %v8397, 0
    %8404 = vmatprep.subr.bf16.mxu0 0
    %8405 = vmatpush1.bf16.msra.mxu0 %v8402
    %8406 = vmatprep.subr.bf16.mxu0 0
    %8407 = vmatpush1.bf16.msra.mxu0 0
    %8408 = vmatprep.subr.bf16.mxu0 0
    %8409 = vmatpush1.bf16.msra.mxu0 0
    %8410 = vmatprep.subr.bf16.mxu0 0
    %8411 = vmatpush1.bf16.msra.mxu0 0
    %8412 = vmatprep.subr.bf16.mxu0 0
    %8413 = vmatpush1.bf16.msra.mxu0 0
    %8414 = vmatprep.subr.bf16.mxu0 0
    %8415 = vmatpush1.bf16.msra.mxu0 0
    %8416 = vmatprep.subr.bf16.mxu0 0
    %8417 = vmatpush1.bf16.msra.mxu0 0
    %8418 = vmatprep.subr.bf16.mxu0 0
    %8419 = vmatpush1.bf16.msra.mxu0 0
    %8420 = vmatprep.subr.bf16.mxu0 0
    %8421 = vmatpush1.bf16.msra.mxu0 0
    %8422 = vmatprep.subr.bf16.mxu0 0
    %8423 = vmatpush1.bf16.msra.mxu0 0
    %8424 = vmatprep.subr.bf16.mxu0 0
    %8425 = vmatpush1.bf16.msra.mxu0 0
    %8426 = vmatprep.subr.bf16.mxu0 0
    %8427 = vmatpush1.bf16.msra.mxu0 0
    %8428 = vmatprep.subr.bf16.mxu0 0
    %8429 = vmatpush1.bf16.msra.mxu0 0
    %8430 = vmatprep.subr.bf16.mxu0 0
    %8431 = vmatpush1.bf16.msra.mxu0 0
    %8432 = vmatprep.subr.bf16.mxu0 0
    %8433 = vmatpush1.bf16.msra.mxu0 0
    %8434 = vmatprep.subr.bf16.mxu0 0
    %8435 = vmatpush1.bf16.msra.mxu0 0
    %8436 = vmatprep.mubr.bf16.mxu0 0
    %8437 = vmatmul.mubr.bf16.gmra.mrb[0].mxu0 %v8399
    %v8438 = vpop.f32.mrb[0].mxu0
    %v8439 = vadd.f32 0.0, %v8438
    %v8440 = vpop.f32.mrb[0].mxu0
    %v8441 = vpop.f32.mrb[0].mxu0
    %v8442 = vpop.f32.mrb[0].mxu0
    %8443 = vdwg.mxu0
    %8444 = vrot.lane.b32.xlu0 %v5385, 88
    %v8445 = vpop.permute.xlu0 %8444
    %v8447 = vsel %vm576, %v8146, 0
    %v8450 = vsel %vm251, %v8445, 0
    %8452 = vmatprep.subr.bf16.mxu0 0
    %8453 = vmatpush1.bf16.msra.mxu0 %v8450
    %8454 = vmatprep.subr.bf16.mxu0 0
    %8455 = vmatpush1.bf16.msra.mxu0 0
    %8456 = vmatprep.subr.bf16.mxu0 0
    %8457 = vmatpush1.bf16.msra.mxu0 0
    %8458 = vmatprep.subr.bf16.mxu0 0
    %8459 = vmatpush1.bf16.msra.mxu0 0
    %8460 = vmatprep.subr.bf16.mxu0 0
    %8461 = vmatpush1.bf16.msra.mxu0 0
    %8462 = vmatprep.subr.bf16.mxu0 0
    %8463 = vmatpush1.bf16.msra.mxu0 0
    %8464 = vmatprep.subr.bf16.mxu0 0
    %8465 = vmatpush1.bf16.msra.mxu0 0
    %8466 = vmatprep.subr.bf16.mxu0 0
    %8467 = vmatpush1.bf16.msra.mxu0 0
    %8468 = vmatprep.subr.bf16.mxu0 0
    %8469 = vmatpush1.bf16.msra.mxu0 0
    %8470 = vmatprep.subr.bf16.mxu0 0
    %8471 = vmatpush1.bf16.msra.mxu0 0
    %8472 = vmatprep.subr.bf16.mxu0 0
    %8473 = vmatpush1.bf16.msra.mxu0 0
    %8474 = vmatprep.subr.bf16.mxu0 0
    %8475 = vmatpush1.bf16.msra.mxu0 0
    %8476 = vmatprep.subr.bf16.mxu0 0
    %8477 = vmatpush1.bf16.msra.mxu0 0
    %8478 = vmatprep.subr.bf16.mxu0 0
    %8479 = vmatpush1.bf16.msra.mxu0 0
    %8480 = vmatprep.subr.bf16.mxu0 0
    %8481 = vmatpush1.bf16.msra.mxu0 0
    %8482 = vmatprep.subr.bf16.mxu0 0
    %8483 = vmatpush1.bf16.msra.mxu0 0
    %8484 = vmatprep.mubr.bf16.mxu0 0
    %8485 = vmatmul.mubr.bf16.gmra.mrb[0].mxu0 %v8447
    %v8486 = vpop.f32.mrb[0].mxu0
    %v8487 = vadd.f32 0.0, %v8486
    %v8488 = vpop.f32.mrb[0].mxu0
    %v8489 = vpop.f32.mrb[0].mxu0
    %v8490 = vpop.f32.mrb[0].mxu0
    %8491 = vdwg.mxu0
    %8492 = vrot.lane.b32.xlu0 %v5386, 88
    %v8493 = vpop.permute.xlu0 %8492
    %v8495 = vsel %vm576, %v8147, 0
    %v8498 = vsel %vm251, %v8493, 0
    %8500 = vmatprep.subr.bf16.mxu0 0
    %8501 = vmatpush1.bf16.msra.mxu0 %v8498
    %8502 = vmatprep.subr.bf16.mxu0 0
    %8503 = vmatpush1.bf16.msra.mxu0 0
    %8504 = vmatprep.subr.bf16.mxu0 0
    %8505 = vmatpush1.bf16.msra.mxu0 0
    %8506 = vmatprep.subr.bf16.mxu0 0
    %8507 = vmatpush1.bf16.msra.mxu0 0
    %8508 = vmatprep.subr.bf16.mxu0 0
    %8509 = vmatpush1.bf16.msra.mxu0 0
    %8510 = vmatprep.subr.bf16.mxu0 0
    %8511 = vmatpush1.bf16.msra.mxu0 0
    %8512 = vmatprep.subr.bf16.mxu0 0
    %8513 = vmatpush1.bf16.msra.mxu0 0
    %8514 = vmatprep.subr.bf16.mxu0 0
    %8515 = vmatpush1.bf16.msra.mxu0 0
    %8516 = vmatprep.subr.bf16.mxu0 0
    %8517 = vmatpush1.bf16.msra.mxu0 0
    %8518 = vmatprep.subr.bf16.mxu0 0
    %8519 = vmatpush1.bf16.msra.mxu0 0
    %8520 = vmatprep.subr.bf16.mxu0 0
    %8521 = vmatpush1.bf16.msra.mxu0 0
    %8522 = vmatprep.subr.bf16.mxu0 0
    %8523 = vmatpush1.bf16.msra.mxu0 0
    %8524 = vmatprep.subr.bf16.mxu0 0
    %8525 = vmatpush1.bf16.msra.mxu0 0
    %8526 = vmatprep.subr.bf16.mxu0 0
    %8527 = vmatpush1.bf16.msra.mxu0 0
    %8528 = vmatprep.subr.bf16.mxu0 0
    %8529 = vmatpush1.bf16.msra.mxu0 0
    %8530 = vmatprep.subr.bf16.mxu0 0
    %8531 = vmatpush1.bf16.msra.mxu0 0
    %8532 = vmatprep.mubr.bf16.mxu0 0
    %8533 = vmatmul.mubr.bf16.gmra.mrb[0].mxu0 %v8495
    %v8534 = vpop.f32.mrb[0].mxu0
    %v8535 = vadd.f32 0.0, %v8534
    %v8536 = vpop.f32.mrb[0].mxu0
    %v8537 = vpop.f32.mrb[0].mxu0
    %v8538 = vpop.f32.mrb[0].mxu0
    %8539 = vdwg.mxu0
    %8540 = vrot.lane.b32.xlu0 %v5387, 88
    %v8541 = vpop.permute.xlu0 %8540
    %v8543 = vsel %vm576, %v8148, 0
    %v8546 = vsel %vm251, %v8541, 0
    %8548 = vmatprep.subr.bf16.mxu0 0
    %8549 = vmatpush1.bf16.msra.mxu0 %v8546
    %8550 = vmatprep.subr.bf16.mxu0 0
    %8551 = vmatpush1.bf16.msra.mxu0 0
    %8552 = vmatprep.subr.bf16.mxu0 0
    %8553 = vmatpush1.bf16.msra.mxu0 0
    %8554 = vmatprep.subr.bf16.mxu0 0
    %8555 = vmatpush1.bf16.msra.mxu0 0
    %8556 = vmatprep.subr.bf16.mxu0 0
    %8557 = vmatpush1.bf16.msra.mxu0 0
    %8558 = vmatprep.subr.bf16.mxu0 0
    %8559 = vmatpush1.bf16.msra.mxu0 0
    %8560 = vmatprep.subr.bf16.mxu0 0
    %8561 = vmatpush1.bf16.msra.mxu0 0
    %8562 = vmatprep.subr.bf16.mxu0 0
    %8563 = vmatpush1.bf16.msra.mxu0 0
    %8564 = vmatprep.subr.bf16.mxu0 0
    %8565 = vmatpush1.bf16.msra.mxu0 0
    %8566 = vmatprep.subr.bf16.mxu0 0
    %8567 = vmatpush1.bf16.msra.mxu0 0
    %8568 = vmatprep.subr.bf16.mxu0 0
    %8569 = vmatpush1.bf16.msra.mxu0 0
    %8570 = vmatprep.subr.bf16.mxu0 0
    %8571 = vmatpush1.bf16.msra.mxu0 0
    %8572 = vmatprep.subr.bf16.mxu0 0
    %8573 = vmatpush1.bf16.msra.mxu0 0
    %8574 = vmatprep.subr.bf16.mxu0 0
    %8575 = vmatpush1.bf16.msra.mxu0 0
    %8576 = vmatprep.subr.bf16.mxu0 0
    %8577 = vmatpush1.bf16.msra.mxu0 0
    %8578 = vmatprep.subr.bf16.mxu0 0
    %8579 = vmatpush1.bf16.msra.mxu0 0
    %8580 = vmatprep.mubr.bf16.mxu0 0
    %8581 = vmatmul.mubr.bf16.gmra.mrb[0].mxu0 %v8543
    %v8582 = vpop.f32.mrb[0].mxu0
    %v8583 = vadd.f32 0.0, %v8582
    %v8584 = vpop.f32.mrb[0].mxu0
    %v8585 = vpop.f32.mrb[0].mxu0
    %v8586 = vpop.f32.mrb[0].mxu0
    %8587 = vdwg.mxu0
    %8588 = vrot.lane.b32.xlu0 %v5388, 88
    %v8589 = vpop.permute.xlu0 %8588
    %v8591 = vsel %vm576, %v8149, 0
    %v8594 = vsel %vm251, %v8589, 0
    %8596 = vmatprep.subr.bf16.mxu0 0
    %8597 = vmatpush1.bf16.msra.mxu0 %v8594
    %8598 = vmatprep.subr.bf16.mxu0 0
    %8599 = vmatpush1.bf16.msra.mxu0 0
    %8600 = vmatprep.subr.bf16.mxu0 0
    %8601 = vmatpush1.bf16.msra.mxu0 0
    %8602 = vmatprep.subr.bf16.mxu0 0
    %8603 = vmatpush1.bf16.msra.mxu0 0
    %8604 = vmatprep.subr.bf16.mxu0 0
    %8605 = vmatpush1.bf16.msra.mxu0 0
    %8606 = vmatprep.subr.bf16.mxu0 0
    %8607 = vmatpush1.bf16.msra.mxu0 0
    %8608 = vmatprep.subr.bf16.mxu0 0
    %8609 = vmatpush1.bf16.msra.mxu0 0
    %8610 = vmatprep.subr.bf16.mxu0 0
    %8611 = vmatpush1.bf16.msra.mxu0 0
    %8612 = vmatprep.subr.bf16.mxu0 0
    %8613 = vmatpush1.bf16.msra.mxu0 0
    %8614 = vmatprep.subr.bf16.mxu0 0
    %8615 = vmatpush1.bf16.msra.mxu0 0
    %8616 = vmatprep.subr.bf16.mxu0 0
    %8617 = vmatpush1.bf16.msra.mxu0 0
    %8618 = vmatprep.subr.bf16.mxu0 0
    %8619 = vmatpush1.bf16.msra.mxu0 0
    %8620 = vmatprep.subr.bf16.mxu0 0
    %8621 = vmatpush1.bf16.msra.mxu0 0
    %8622 = vmatprep.subr.bf16.mxu0 0
    %8623 = vmatpush1.bf16.msra.mxu0 0
    %8624 = vmatprep.subr.bf16.mxu0 0
    %8625 = vmatpush1.bf16.msra.mxu0 0
    %8626 = vmatprep.subr.bf16.mxu0 0
    %8627 = vmatpush1.bf16.msra.mxu0 0
    %8628 = vmatprep.mubr.bf16.mxu0 0
    %8629 = vmatmul.mubr.bf16.gmra.mrb[0].mxu0 %v8591
    %v8630 = vpop.f32.mrb[0].mxu0
    %v8631 = vadd.f32 0.0, %v8630
    %v8632 = vpop.f32.mrb[0].mxu0
    %v8633 = vpop.f32.mrb[0].mxu0
    %v8634 = vpop.f32.mrb[0].mxu0
    %8635 = vdwg.mxu0
    %8636 = vrot.lane.b32.xlu0 %v5389, 88
    %v8637 = vpop.permute.xlu0 %8636
    %v8639 = vsel %vm576, %v8150, 0
    %v8642 = vsel %vm251, %v8637, 0
    %8644 = vmatprep.subr.bf16.mxu0 0
    %8645 = vmatpush1.bf16.msra.mxu0 %v8642
    %8646 = vmatprep.subr.bf16.mxu0 0
    %8647 = vmatpush1.bf16.msra.mxu0 0
    %8648 = vmatprep.subr.bf16.mxu0 0
    %8649 = vmatpush1.bf16.msra.mxu0 0
    %8650 = vmatprep.subr.bf16.mxu0 0
    %8651 = vmatpush1.bf16.msra.mxu0 0
    %8652 = vmatprep.subr.bf16.mxu0 0
    %8653 = vmatpush1.bf16.msra.mxu0 0
    %8654 = vmatprep.subr.bf16.mxu0 0
    %8655 = vmatpush1.bf16.msra.mxu0 0
    %8656 = vmatprep.subr.bf16.mxu0 0
    %8657 = vmatpush1.bf16.msra.mxu0 0
    %8658 = vmatprep.subr.bf16.mxu0 0
    %8659 = vmatpush1.bf16.msra.mxu0 0
    %8660 = vmatprep.subr.bf16.mxu0 0
    %8661 = vmatpush1.bf16.msra.mxu0 0
    %8662 = vmatprep.subr.bf16.mxu0 0
    %8663 = vmatpush1.bf16.msra.mxu0 0
    %8664 = vmatprep.subr.bf16.mxu0 0
    %8665 = vmatpush1.bf16.msra.mxu0 0
    %8666 = vmatprep.subr.bf16.mxu0 0
    %8667 = vmatpush1.bf16.msra.mxu0 0
    %8668 = vmatprep.subr.bf16.mxu0 0
    %8669 = vmatpush1.bf16.msra.mxu0 0
    %8670 = vmatprep.subr.bf16.mxu0 0
    %8671 = vmatpush1.bf16.msra.mxu0 0
    %8672 = vmatprep.subr.bf16.mxu0 0
    %8673 = vmatpush1.bf16.msra.mxu0 0
    %8674 = vmatprep.subr.bf16.mxu0 0
    %8675 = vmatpush1.bf16.msra.mxu0 0
    %8676 = vmatprep.mubr.bf16.mxu0 0
    %8677 = vmatmul.mubr.bf16.gmra.mrb[0].mxu0 %v8639
    %v8678 = vpop.f32.mrb[0].mxu0
    %v8679 = vadd.f32 0.0, %v8678
    %v8680 = vpop.f32.mrb[0].mxu0
    %v8681 = vpop.f32.mrb[0].mxu0
    %v8682 = vpop.f32.mrb[0].mxu0
    %8683 = vdwg.mxu0
    %8684 = vrot.lane.b32.xlu0 %v5390, 88
    %v8685 = vpop.permute.xlu0 %8684
    %v8687 = vsel %vm576, %v8151, 0
    %v8690 = vsel %vm251, %v8685, 0
    %8692 = vmatprep.subr.bf16.mxu0 0
    %8693 = vmatpush1.bf16.msra.mxu0 %v8690
    %8694 = vmatprep.subr.bf16.mxu0 0
    %8695 = vmatpush1.bf16.msra.mxu0 0
    %8696 = vmatprep.subr.bf16.mxu0 0
    %8697 = vmatpush1.bf16.msra.mxu0 0
    %8698 = vmatprep.subr.bf16.mxu0 0
    %8699 = vmatpush1.bf16.msra.mxu0 0
    %8700 = vmatprep.subr.bf16.mxu0 0
    %8701 = vmatpush1.bf16.msra.mxu0 0
    %8702 = vmatprep.subr.bf16.mxu0 0
    %8703 = vmatpush1.bf16.msra.mxu0 0
    %8704 = vmatprep.subr.bf16.mxu0 0
    %8705 = vmatpush1.bf16.msra.mxu0 0
    %8706 = vmatprep.subr.bf16.mxu0 0
    %8707 = vmatpush1.bf16.msra.mxu0 0
    %8708 = vmatprep.subr.bf16.mxu0 0
    %8709 = vmatpush1.bf16.msra.mxu0 0
    %8710 = vmatprep.subr.bf16.mxu0 0
    %8711 = vmatpush1.bf16.msra.mxu0 0
    %8712 = vmatprep.subr.bf16.mxu0 0
    %8713 = vmatpush1.bf16.msra.mxu0 0
    %8714 = vmatprep.subr.bf16.mxu0 0
    %8715 = vmatpush1.bf16.msra.mxu0 0
    %8716 = vmatprep.subr.bf16.mxu0 0
    %8717 = vmatpush1.bf16.msra.mxu0 0
    %8718 = vmatprep.subr.bf16.mxu0 0
    %8719 = vmatpush1.bf16.msra.mxu0 0
    %8720 = vmatprep.subr.bf16.mxu0 0
    %8721 = vmatpush1.bf16.msra.mxu0 0
    %8722 = vmatprep.subr.bf16.mxu0 0
    %8723 = vmatpush1.bf16.msra.mxu0 0
    %8724 = vmatprep.mubr.bf16.mxu0 0
    %8725 = vmatmul.mubr.bf16.gmra.mrb[0].mxu0 %v8687
    %v8726 = vpop.f32.mrb[0].mxu0
    %v8727 = vadd.f32 0.0, %v8726
    %v8728 = vpop.f32.mrb[0].mxu0
    %v8729 = vpop.f32.mrb[0].mxu0
    %v8730 = vpop.f32.mrb[0].mxu0
    %8731 = vdwg.mxu0
    %8732 = vrot.lane.b32.xlu0 %v5391, 88
    %v8733 = vpop.permute.xlu0 %8732
    %v8735 = vsel %vm576, %v8152, 0
    %v8738 = vsel %vm251, %v8733, 0
    %8740 = vmatprep.subr.bf16.mxu0 0
    %8741 = vmatpush1.bf16.msra.mxu0 %v8738
    %8742 = vmatprep.subr.bf16.mxu0 0
    %8743 = vmatpush1.bf16.msra.mxu0 0
    %8744 = vmatprep.subr.bf16.mxu0 0
    %8745 = vmatpush1.bf16.msra.mxu0 0
    %8746 = vmatprep.subr.bf16.mxu0 0
    %8747 = vmatpush1.bf16.msra.mxu0 0
    %8748 = vmatprep.subr.bf16.mxu0 0
    %8749 = vmatpush1.bf16.msra.mxu0 0
    %8750 = vmatprep.subr.bf16.mxu0 0
    %8751 = vmatpush1.bf16.msra.mxu0 0
    %8752 = vmatprep.subr.bf16.mxu0 0
    %8753 = vmatpush1.bf16.msra.mxu0 0
    %8754 = vmatprep.subr.bf16.mxu0 0
    %8755 = vmatpush1.bf16.msra.mxu0 0
    %8756 = vmatprep.subr.bf16.mxu0 0
    %8757 = vmatpush1.bf16.msra.mxu0 0
    %8758 = vmatprep.subr.bf16.mxu0 0
    %8759 = vmatpush1.bf16.msra.mxu0 0
    %8760 = vmatprep.subr.bf16.mxu0 0
    %8761 = vmatpush1.bf16.msra.mxu0 0
    %8762 = vmatprep.subr.bf16.mxu0 0
    %8763 = vmatpush1.bf16.msra.mxu0 0
    %8764 = vmatprep.subr.bf16.mxu0 0
    %8765 = vmatpush1.bf16.msra.mxu0 0
    %8766 = vmatprep.subr.bf16.mxu0 0
    %8767 = vmatpush1.bf16.msra.mxu0 0
    %8768 = vmatprep.subr.bf16.mxu0 0
    %8769 = vmatpush1.bf16.msra.mxu0 0
    %8770 = vmatprep.subr.bf16.mxu0 0
    %8771 = vmatpush1.bf16.msra.mxu0 0
    %8772 = vmatprep.mubr.bf16.mxu0 0
    %8773 = vmatmul.mubr.bf16.gmra.mrb[0].mxu0 %v8735
    %v8774 = vpop.f32.mrb[0].mxu0
    %v8775 = vadd.f32 0.0, %v8774
    %v8776 = vpop.f32.mrb[0].mxu0
    %v8777 = vpop.f32.mrb[0].mxu0
    %v8778 = vpop.f32.mrb[0].mxu0
    %8779 = vdwg.mxu0
    %8780 = vrot.lane.b32.xlu0 %v5392, 88
    %v8781 = vpop.permute.xlu0 %8780
    %v8783 = vsel %vm576, %v8153, 0
    %v8786 = vsel %vm251, %v8781, 0
    %8788 = vmatprep.subr.bf16.mxu0 0
    %8789 = vmatpush1.bf16.msra.mxu0 %v8786
    %8790 = vmatprep.subr.bf16.mxu0 0
    %8791 = vmatpush1.bf16.msra.mxu0 0
    %8792 = vmatprep.subr.bf16.mxu0 0
    %8793 = vmatpush1.bf16.msra.mxu0 0
    %8794 = vmatprep.subr.bf16.mxu0 0
    %8795 = vmatpush1.bf16.msra.mxu0 0
    %8796 = vmatprep.subr.bf16.mxu0 0
    %8797 = vmatpush1.bf16.msra.mxu0 0
    %8798 = vmatprep.subr.bf16.mxu0 0
    %8799 = vmatpush1.bf16.msra.mxu0 0
    %8800 = vmatprep.subr.bf16.mxu0 0
    %8801 = vmatpush1.bf16.msra.mxu0 0
    %8802 = vmatprep.subr.bf16.mxu0 0
    %8803 = vmatpush1.bf16.msra.mxu0 0
    %8804 = vmatprep.subr.bf16.mxu0 0
    %8805 = vmatpush1.bf16.msra.mxu0 0
    %8806 = vmatprep.subr.bf16.mxu0 0
    %8807 = vmatpush1.bf16.msra.mxu0 0
    %8808 = vmatprep.subr.bf16.mxu0 0
    %8809 = vmatpush1.bf16.msra.mxu0 0
    %8810 = vmatprep.subr.bf16.mxu0 0
    %8811 = vmatpush1.bf16.msra.mxu0 0
    %8812 = vmatprep.subr.bf16.mxu0 0
    %8813 = vmatpush1.bf16.msra.mxu0 0
    %8814 = vmatprep.subr.bf16.mxu0 0
    %8815 = vmatpush1.bf16.msra.mxu0 0
    %8816 = vmatprep.subr.bf16.mxu0 0
    %8817 = vmatpush1.bf16.msra.mxu0 0
    %8818 = vmatprep.subr.bf16.mxu0 0
    %8819 = vmatpush1.bf16.msra.mxu0 0
    %8820 = vmatprep.mubr.bf16.mxu0 0
    %8821 = vmatmul.mubr.bf16.gmra.mrb[0].mxu0 %v8783
    %v8822 = vpop.f32.mrb[0].mxu0
    %v8823 = vadd.f32 0.0, %v8822
    %v8824 = vpop.f32.mrb[0].mxu0
    %v8825 = vpop.f32.mrb[0].mxu0
    %v8826 = vpop.f32.mrb[0].mxu0
    %8827 = vdwg.mxu0
    %8828 = vrot.lane.b32.xlu0 %v5393, 88
    %v8829 = vpop.permute.xlu0 %8828
    %v8831 = vsel %vm576, %v8154, 0
    %v8834 = vsel %vm251, %v8829, 0
    %8836 = vmatprep.subr.bf16.mxu0 0
    %8837 = vmatpush1.bf16.msra.mxu0 %v8834
    %8838 = vmatprep.subr.bf16.mxu0 0
    %8839 = vmatpush1.bf16.msra.mxu0 0
    %8840 = vmatprep.subr.bf16.mxu0 0
    %8841 = vmatpush1.bf16.msra.mxu0 0
    %8842 = vmatprep.subr.bf16.mxu0 0
    %8843 = vmatpush1.bf16.msra.mxu0 0
    %8844 = vmatprep.subr.bf16.mxu0 0
    %8845 = vmatpush1.bf16.msra.mxu0 0
    %8846 = vmatprep.subr.bf16.mxu0 0
    %8847 = vmatpush1.bf16.msra.mxu0 0
    %8848 = vmatprep.subr.bf16.mxu0 0
    %8849 = vmatpush1.bf16.msra.mxu0 0
    %8850 = vmatprep.subr.bf16.mxu0 0
    %8851 = vmatpush1.bf16.msra.mxu0 0
    %8852 = vmatprep.subr.bf16.mxu0 0
    %8853 = vmatpush1.bf16.msra.mxu0 0
    %8854 = vmatprep.subr.bf16.mxu0 0
    %8855 = vmatpush1.bf16.msra.mxu0 0
    %8856 = vmatprep.subr.bf16.mxu0 0
    %8857 = vmatpush1.bf16.msra.mxu0 0
    %8858 = vmatprep.subr.bf16.mxu0 0
    %8859 = vmatpush1.bf16.msra.mxu0 0
    %8860 = vmatprep.subr.bf16.mxu0 0
    %8861 = vmatpush1.bf16.msra.mxu0 0
    %8862 = vmatprep.subr.bf16.mxu0 0
    %8863 = vmatpush1.bf16.msra.mxu0 0
    %8864 = vmatprep.subr.bf16.mxu0 0
    %8865 = vmatpush1.bf16.msra.mxu0 0
    %8866 = vmatprep.subr.bf16.mxu0 0
    %8867 = vmatpush1.bf16.msra.mxu0 0
    %8868 = vmatprep.mubr.bf16.mxu0 0
    %8869 = vmatmul.mubr.bf16.gmra.mrb[0].mxu0 %v8831
    %v8870 = vpop.f32.mrb[0].mxu0
    %v8871 = vadd.f32 0.0, %v8870
    %v8872 = vpop.f32.mrb[0].mxu0
    %v8873 = vpop.f32.mrb[0].mxu0
    %v8874 = vpop.f32.mrb[0].mxu0
    %8875 = vdwg.mxu0
    %8876 = vrot.lane.b32.xlu0 %v5394, 88
    %v8877 = vpop.permute.xlu0 %8876
    %v8879 = vsel %vm576, %v8155, 0
    %v8882 = vsel %vm251, %v8877, 0
    %8884 = vmatprep.subr.bf16.mxu0 0
    %8885 = vmatpush1.bf16.msra.mxu0 %v8882
    %8886 = vmatprep.subr.bf16.mxu0 0
    %8887 = vmatpush1.bf16.msra.mxu0 0
    %8888 = vmatprep.subr.bf16.mxu0 0
    %8889 = vmatpush1.bf16.msra.mxu0 0
    %8890 = vmatprep.subr.bf16.mxu0 0
    %8891 = vmatpush1.bf16.msra.mxu0 0
    %8892 = vmatprep.subr.bf16.mxu0 0
    %8893 = vmatpush1.bf16.msra.mxu0 0
    %8894 = vmatprep.subr.bf16.mxu0 0
    %8895 = vmatpush1.bf16.msra.mxu0 0
    %8896 = vmatprep.subr.bf16.mxu0 0
    %8897 = vmatpush1.bf16.msra.mxu0 0
    %8898 = vmatprep.subr.bf16.mxu0 0
    %8899 = vmatpush1.bf16.msra.mxu0 0
    %8900 = vmatprep.subr.bf16.mxu0 0
    %8901 = vmatpush1.bf16.msra.mxu0 0
    %8902 = vmatprep.subr.bf16.mxu0 0
    %8903 = vmatpush1.bf16.msra.mxu0 0
    %8904 = vmatprep.subr.bf16.mxu0 0
    %8905 = vmatpush1.bf16.msra.mxu0 0
    %8906 = vmatprep.subr.bf16.mxu0 0
    %8907 = vmatpush1.bf16.msra.mxu0 0
    %8908 = vmatprep.subr.bf16.mxu0 0
    %8909 = vmatpush1.bf16.msra.mxu0 0
    %8910 = vmatprep.subr.bf16.mxu0 0
    %8911 = vmatpush1.bf16.msra.mxu0 0
    %8912 = vmatprep.subr.bf16.mxu0 0
    %8913 = vmatpush1.bf16.msra.mxu0 0
    %8914 = vmatprep.subr.bf16.mxu0 0
    %8915 = vmatpush1.bf16.msra.mxu0 0
    %8916 = vmatprep.mubr.bf16.mxu0 0
    %8917 = vmatmul.mubr.bf16.gmra.mrb[0].mxu0 %v8879
    %v8918 = vpop.f32.mrb[0].mxu0
    %v8919 = vadd.f32 0.0, %v8918
    %v8920 = vpop.f32.mrb[0].mxu0
    %v8921 = vpop.f32.mrb[0].mxu0
    %v8922 = vpop.f32.mrb[0].mxu0
    %8923 = vdwg.mxu0
    %v8924 = vpack.c.bf16 %v8247, %v8199
    %v8925 = vpack.c.bf16 %v8343, %v8295
    %v8926 = vpack.c.bf16 %v8439, %v8391
    %v8927 = vpack.c.bf16 %v8535, %v8487
    %v8928 = vpack.c.bf16 %v8631, %v8583
    %v8929 = vpack.c.bf16 %v8727, %v8679
    %v8930 = vpack.c.bf16 %v8823, %v8775
    %v8931 = vpack.c.bf16 %v8919, %v8871
    %v8932 = vpack.c.bf16 %v5346, %v5346
    %v8934 = vsel %vm576, %v8924, 0
    %v8937 = vsel %vm576, %v8925, 0
    %v8940 = vsel %vm576, %v8926, 0
    %v8943 = vsel %vm576, %v8927, 0
    %v8946 = vsel %vm576, %v8928, 0
    %v8949 = vsel %vm576, %v8929, 0
    %v8952 = vsel %vm576, %v8930, 0
    %v8955 = vsel %vm576, %v8931, 0
    %v8958 = vsel %vm251, %v8932, 0
    %8960 = vmatprep.subr.bf16.mxu0 0
    %8961 = vmatpush1.bf16.msra.mxu0 %v8958
    %8962 = vmatprep.subr.bf16.mxu0 0
    %8963 = vmatpush1.bf16.msra.mxu0 0
    %8964 = vmatprep.subr.bf16.mxu0 0
    %8965 = vmatpush1.bf16.msra.mxu0 0
    %8966 = vmatprep.subr.bf16.mxu0 0
    %8967 = vmatpush1.bf16.msra.mxu0 0
    %8968 = vmatprep.subr.bf16.mxu0 0
    %8969 = vmatpush1.bf16.msra.mxu0 0
    %8970 = vmatprep.subr.bf16.mxu0 0
    %8971 = vmatpush1.bf16.msra.mxu0 0
    %8972 = vmatprep.subr.bf16.mxu0 0
    %8973 = vmatpush1.bf16.msra.mxu0 0
    %8974 = vmatprep.subr.bf16.mxu0 0
    %8975 = vmatpush1.bf16.msra.mxu0 0
    %8976 = vmatprep.subr.bf16.mxu0 0
    %8977 = vmatpush1.bf16.msra.mxu0 0
    %8978 = vmatprep.subr.bf16.mxu0 0
    %8979 = vmatpush1.bf16.msra.mxu0 0
    %8980 = vmatprep.subr.bf16.mxu0 0
    %8981 = vmatpush1.bf16.msra.mxu0 0
    %8982 = vmatprep.subr.bf16.mxu0 0
    %8983 = vmatpush1.bf16.msra.mxu0 0
    %8984 = vmatprep.subr.bf16.mxu0 0
    %8985 = vmatpush1.bf16.msra.mxu0 0
    %8986 = vmatprep.subr.bf16.mxu0 0
    %8987 = vmatpush1.bf16.msra.mxu0 0
    %8988 = vmatprep.subr.bf16.mxu0 0
    %8989 = vmatpush1.bf16.msra.mxu0 0
    %8990 = vmatprep.subr.bf16.mxu0 0
    %8991 = vmatpush1.bf16.msra.mxu0 0
    %8992 = vmatprep.mubr.bf16.mxu0 0
    %8993 = vmatmul.mubr.bf16.gmra.mrb[0].mxu0 %v8934
    %v8994 = vpop.f32.mrb[0].mxu0
    %v8995 = vadd.f32 0.0, %v8994
    %v8996 = vpop.f32.mrb[0].mxu0
    %v8997 = vpop.f32.mrb[0].mxu0
    %v8998 = vadd.f32 0.0, %v8997
    %v8999 = vpop.f32.mrb[0].mxu0
    %9000 = vmatprep.mubr.bf16.mxu0 0
    %9001 = vmatmul.mubr.bf16.gmra.mrb[0].mxu0 %v8937
    %v9002 = vpop.f32.mrb[0].mxu0
    %v9003 = vadd.f32 0.0, %v9002
    %v9004 = vpop.f32.mrb[0].mxu0
    %v9005 = vpop.f32.mrb[0].mxu0
    %v9006 = vadd.f32 0.0, %v9005
    %v9007 = vpop.f32.mrb[0].mxu0
    %9008 = vmatprep.mubr.bf16.mxu0 0
    %9009 = vmatmul.mubr.bf16.gmra.mrb[0].mxu0 %v8940
    %v9010 = vpop.f32.mrb[0].mxu0
    %v9011 = vadd.f32 0.0, %v9010
    %v9012 = vpop.f32.mrb[0].mxu0
    %v9013 = vpop.f32.mrb[0].mxu0
    %v9014 = vadd.f32 0.0, %v9013
    %v9015 = vpop.f32.mrb[0].mxu0
    %9016 = vmatprep.mubr.bf16.mxu0 0
    %9017 = vmatmul.mubr.bf16.gmra.mrb[0].mxu0 %v8943
    %v9018 = vpop.f32.mrb[0].mxu0
    %v9019 = vadd.f32 0.0, %v9018
    %v9020 = vpop.f32.mrb[0].mxu0
    %v9021 = vpop.f32.mrb[0].mxu0
    %v9022 = vadd.f32 0.0, %v9021
    %v9023 = vpop.f32.mrb[0].mxu0
    %9024 = vmatprep.mubr.bf16.mxu0 0
    %9025 = vmatmul.mubr.bf16.gmra.mrb[0].mxu0 %v8946
    %v9026 = vpop.f32.mrb[0].mxu0
    %v9027 = vadd.f32 0.0, %v9026
    %v9028 = vpop.f32.mrb[0].mxu0
    %v9029 = vpop.f32.mrb[0].mxu0
    %v9030 = vadd.f32 0.0, %v9029
    %v9031 = vpop.f32.mrb[0].mxu0
    %9032 = vmatprep.mubr.bf16.mxu0 0
    %9033 = vmatmul.mubr.bf16.gmra.mrb[0].mxu0 %v8949
    %v9034 = vpop.f32.mrb[0].mxu0
    %v9035 = vadd.f32 0.0, %v9034
    %v9036 = vpop.f32.mrb[0].mxu0
    %v9037 = vpop.f32.mrb[0].mxu0
    %v9038 = vadd.f32 0.0, %v9037
    %v9039 = vpop.f32.mrb[0].mxu0
    %9040 = vmatprep.mubr.bf16.mxu0 0
    %9041 = vmatmul.mubr.bf16.gmra.mrb[0].mxu0 %v8952
    %v9042 = vpop.f32.mrb[0].mxu0
    %v9043 = vadd.f32 0.0, %v9042
    %v9044 = vpop.f32.mrb[0].mxu0
    %v9045 = vpop.f32.mrb[0].mxu0
    %v9046 = vadd.f32 0.0, %v9045
    %v9047 = vpop.f32.mrb[0].mxu0
    %9048 = vmatprep.mubr.bf16.mxu0 0
    %9049 = vmatmul.mubr.bf16.gmra.mrb[0].mxu0 %v8955
    %v9050 = vpop.f32.mrb[0].mxu0
    %v9051 = vadd.f32 0.0, %v9050
    %v9052 = vpop.f32.mrb[0].mxu0
    %v9053 = vpop.f32.mrb[0].mxu0
    %v9054 = vadd.f32 0.0, %v9053
    %v9055 = vpop.f32.mrb[0].mxu0
    %9056 = vdwg.mxu0
    %v9058 = vsel %vm576, %v7139, 0
    %v9061 = vsel %vm576, %v7140, 0
    %v9064 = vsel %vm576, %v7141, 0
    %v9067 = vsel %vm576, %v7142, 0
    %v9070 = vsel %vm576, %v7143, 0
    %v9073 = vsel %vm576, %v7144, 0
    %v9076 = vsel %vm576, %v7145, 0
    %v9079 = vsel %vm576, %v7146, 0
    %v9082 = vsel %vm251, %v7147, 0
    %9084 = vmatprep.subr.bf16.mxu0 0
    %9085 = vmatpush1.bf16.msra.mxu0 %v9082
    %9086 = vmatprep.subr.bf16.mxu0 0
    %9087 = vmatpush1.bf16.msra.mxu0 0
    %9088 = vmatprep.subr.bf16.mxu0 0
    %9089 = vmatpush1.bf16.msra.mxu0 0
    %9090 = vmatprep.subr.bf16.mxu0 0
    %9091 = vmatpush1.bf16.msra.mxu0 0
    %9092 = vmatprep.subr.bf16.mxu0 0
    %9093 = vmatpush1.bf16.msra.mxu0 0
    %9094 = vmatprep.subr.bf16.mxu0 0
    %9095 = vmatpush1.bf16.msra.mxu0 0
    %9096 = vmatprep.subr.bf16.mxu0 0
    %9097 = vmatpush1.bf16.msra.mxu0 0
    %9098 = vmatprep.subr.bf16.mxu0 0
    %9099 = vmatpush1.bf16.msra.mxu0 0
    %9100 = vmatprep.subr.bf16.mxu0 0
    %9101 = vmatpush1.bf16.msra.mxu0 0
    %9102 = vmatprep.subr.bf16.mxu0 0
    %9103 = vmatpush1.bf16.msra.mxu0 0
    %9104 = vmatprep.subr.bf16.mxu0 0
    %9105 = vmatpush1.bf16.msra.mxu0 0
    %9106 = vmatprep.subr.bf16.mxu0 0
    %9107 = vmatpush1.bf16.msra.mxu0 0
    %9108 = vmatprep.subr.bf16.mxu0 0
    %9109 = vmatpush1.bf16.msra.mxu0 0
    %9110 = vmatprep.subr.bf16.mxu0 0
    %9111 = vmatpush1.bf16.msra.mxu0 0
    %9112 = vmatprep.subr.bf16.mxu0 0
    %9113 = vmatpush1.bf16.msra.mxu0 0
    %9114 = vmatprep.subr.bf16.mxu0 0
    %9115 = vmatpush1.bf16.msra.mxu0 0
    %9116 = vmatprep.mubr.bf16.mxu0 0
    %9117 = vmatmul.mubr.bf16.gmra.mrb[0].mxu0 %v9058
    %v9118 = vpop.f32.mrb[0].mxu0
    %v9119 = vadd.f32 %v8995, %v9118
    %v9120 = vpop.f32.mrb[0].mxu0
    %v9121 = vpop.f32.mrb[0].mxu0
    %v9122 = vadd.f32 %v8998, %v9121
    %v9123 = vpop.f32.mrb[0].mxu0
    %9124 = vmatprep.mubr.bf16.mxu0 0
    %9125 = vmatmul.mubr.bf16.gmra.mrb[0].mxu0 %v9061
    %v9126 = vpop.f32.mrb[0].mxu0
    %v9127 = vadd.f32 %v9003, %v9126
    %v9128 = vpop.f32.mrb[0].mxu0
    %v9129 = vpop.f32.mrb[0].mxu0
    %v9130 = vadd.f32 %v9006, %v9129
    %v9131 = vpop.f32.mrb[0].mxu0
    %9132 = vmatprep.mubr.bf16.mxu0 0
    %9133 = vmatmul.mubr.bf16.gmra.mrb[0].mxu0 %v9064
    %v9134 = vpop.f32.mrb[0].mxu0
    %v9135 = vadd.f32 %v9011, %v9134
    %v9136 = vpop.f32.mrb[0].mxu0
    %v9137 = vpop.f32.mrb[0].mxu0
    %v9138 = vadd.f32 %v9014, %v9137
    %v9139 = vpop.f32.mrb[0].mxu0
    %9140 = vmatprep.mubr.bf16.mxu0 0
    %9141 = vmatmul.mubr.bf16.gmra.mrb[0].mxu0 %v9067
    %v9142 = vpop.f32.mrb[0].mxu0
    %v9143 = vadd.f32 %v9019, %v9142
    %v9144 = vpop.f32.mrb[0].mxu0
    %v9145 = vpop.f32.mrb[0].mxu0
    %v9146 = vadd.f32 %v9022, %v9145
    %v9147 = vpop.f32.mrb[0].mxu0
    %9148 = vmatprep.mubr.bf16.mxu0 0
    %9149 = vmatmul.mubr.bf16.gmra.mrb[0].mxu0 %v9070
    %v9150 = vpop.f32.mrb[0].mxu0
    %v9151 = vadd.f32 %v9027, %v9150
    %v9152 = vpop.f32.mrb[0].mxu0
    %v9153 = vpop.f32.mrb[0].mxu0
    %v9154 = vadd.f32 %v9030, %v9153
    %v9155 = vpop.f32.mrb[0].mxu0
    %9156 = vmatprep.mubr.bf16.mxu0 0
    %9157 = vmatmul.mubr.bf16.gmra.mrb[0].mxu0 %v9073
    %v9158 = vpop.f32.mrb[0].mxu0
    %v9159 = vadd.f32 %v9035, %v9158
    %v9160 = vpop.f32.mrb[0].mxu0
    %v9161 = vpop.f32.mrb[0].mxu0
    %v9162 = vadd.f32 %v9038, %v9161
    %v9163 = vpop.f32.mrb[0].mxu0
    %9164 = vmatprep.mubr.bf16.mxu0 0
    %9165 = vmatmul.mubr.bf16.gmra.mrb[0].mxu0 %v9076
    %v9166 = vpop.f32.mrb[0].mxu0
    %v9167 = vadd.f32 %v9043, %v9166
    %v9168 = vpop.f32.mrb[0].mxu0
    %v9169 = vpop.f32.mrb[0].mxu0
    %v9170 = vadd.f32 %v9046, %v9169
    %v9171 = vpop.f32.mrb[0].mxu0
    %9172 = vmatprep.mubr.bf16.mxu0 0
    %9173 = vmatmul.mubr.bf16.gmra.mrb[0].mxu0 %v9079
    %v9174 = vpop.f32.mrb[0].mxu0
    %v9175 = vadd.f32 %v9051, %v9174
    %v9176 = vpop.f32.mrb[0].mxu0
    %v9177 = vpop.f32.mrb[0].mxu0
    %v9178 = vadd.f32 %v9054, %v9177
    %v9179 = vpop.f32.mrb[0].mxu0
    %9180 = vdwg.mxu0
    %v9181 = vld [vmem:[%s2 + $0xb8] sm:$0x1]
    %v9182 = vlaneseq
    %v9183 = vshrl.u32 %v9182, 7
    %v9184 = vsub.s32 0, %v9183
    %v9185 = vrot.slane %v9181, %v9184
    %v9186 = vadd.f32 %v9119, %v9185
    %v9187 = vadd.f32 %v9122, %v9185
    %v9188 = vadd.f32 %v9127, %v9185
    %v9189 = vadd.f32 %v9130, %v9185
    %v9190 = vadd.f32 %v9135, %v9185
    %v9191 = vadd.f32 %v9138, %v9185
    %v9192 = vadd.f32 %v9143, %v9185
    %v9193 = vadd.f32 %v9146, %v9185
    %v9194 = vadd.f32 %v9151, %v9185
    %v9195 = vadd.f32 %v9154, %v9185
    %v9196 = vadd.f32 %v9159, %v9185
    %v9197 = vadd.f32 %v9162, %v9185
    %v9198 = vadd.f32 %v9167, %v9185
    %v9199 = vadd.f32 %v9170, %v9185
    %v9200 = vadd.f32 %v9175, %v9185
    %v9201 = vadd.f32 %v9178, %v9185
    %v9202 = vadd.f32 %v5192, %v9186
    %v9203 = vadd.f32 %v5193, %v9187
    %v9204 = vadd.f32 %v5194, %v9188
    %v9205 = vadd.f32 %v5195, %v9189
    %v9206 = vadd.f32 %v5196, %v9190
    %v9207 = vadd.f32 %v5197, %v9191
    %v9208 = vadd.f32 %v5198, %v9192
    %v9209 = vadd.f32 %v5199, %v9193
    %v9210 = vadd.f32 %v5200, %v9194
    %v9211 = vadd.f32 %v5201, %v9195
    %v9212 = vadd.f32 %v5202, %v9196
    %v9213 = vadd.f32 %v5203, %v9197
    %v9214 = vadd.f32 %v5204, %v9198
    %v9215 = vadd.f32 %v5205, %v9199
    %v9216 = vadd.f32 %v5206, %v9200
    %v9217 = vadd.f32 %v5207, %v9201
    %v9218 = vld [vmem:[%s2 + $0xc0] sm:$0x1]
    %v9219 = vld [vmem:[%s2 + $0xc8] sm:$0x1]
    %v9220 = vsel %vm401, %v9202, 0.0
    %9221 = vadd.xlane.f32.xlu0 %v9220
    %v9222 = vpop.xlane.xlu0 %9221
    %v9223 = vsel %vm401, %v9203, 0.0
    %9224 = vadd.xlane.f32.xlu0 %v9223
    %v9225 = vpop.xlane.xlu0 %9224
    %v9226 = vsel %vm401, %v9204, 0.0
    %9227 = vadd.xlane.f32.xlu0 %v9226
    %v9228 = vpop.xlane.xlu0 %9227
    %v9229 = vsel %vm401, %v9205, 0.0
    %9230 = vadd.xlane.f32.xlu0 %v9229
    %v9231 = vpop.xlane.xlu0 %9230
    %v9232 = vsel %vm401, %v9206, 0.0
    %9233 = vadd.xlane.f32.xlu0 %v9232
    %v9234 = vpop.xlane.xlu0 %9233
    %v9235 = vsel %vm401, %v9207, 0.0
    %9236 = vadd.xlane.f32.xlu0 %v9235
    %v9237 = vpop.xlane.xlu0 %9236
    %v9238 = vsel %vm401, %v9208, 0.0
    %9239 = vadd.xlane.f32.xlu0 %v9238
    %v9240 = vpop.xlane.xlu0 %9239
    %v9241 = vsel %vm401, %v9209, 0.0
    %9242 = vadd.xlane.f32.xlu0 %v9241
    %v9243 = vpop.xlane.xlu0 %9242
    %v9244 = vsel %vm401, %v9210, 0.0
    %9245 = vadd.xlane.f32.xlu0 %v9244
    %v9246 = vpop.xlane.xlu0 %9245
    %v9247 = vsel %vm401, %v9211, 0.0
    %9248 = vadd.xlane.f32.xlu0 %v9247
    %v9249 = vpop.xlane.xlu0 %9248
    %v9250 = vsel %vm401, %v9212, 0.0
    %9251 = vadd.xlane.f32.xlu0 %v9250
    %v9252 = vpop.xlane.xlu0 %9251
    %v9253 = vsel %vm401, %v9213, 0.0
    %9254 = vadd.xlane.f32.xlu0 %v9253
    %v9255 = vpop.xlane.xlu0 %9254
    %v9256 = vsel %vm401, %v9214, 0.0
    %9257 = vadd.xlane.f32.xlu0 %v9256
    %v9258 = vpop.xlane.xlu0 %9257
    %v9259 = vsel %vm401, %v9215, 0.0
    %9260 = vadd.xlane.f32.xlu0 %v9259
    %v9261 = vpop.xlane.xlu0 %9260
    %v9262 = vsel %vm401, %v9216, 0.0
    %9263 = vadd.xlane.f32.xlu0 %v9262
    %v9264 = vpop.xlane.xlu0 %9263
    %v9265 = vsel %vm401, %v9217, 0.0
    %9266 = vadd.xlane.f32.xlu0 %v9265
    %v9267 = vpop.xlane.xlu0 %9266
    %v9268 = vmul.f32 %v9222, %v4447
    %v9269 = vmul.f32 %v9225, %v4447
    %v9270 = vmul.f32 %v9228, %v4447
    %v9271 = vmul.f32 %v9231, %v4447
    %v9272 = vmul.f32 %v9234, %v4447
    %v9273 = vmul.f32 %v9237, %v4447
    %v9274 = vmul.f32 %v9240, %v4447
    %v9275 = vmul.f32 %v9243, %v4447
    %v9276 = vmul.f32 %v9246, %v4447
    %v9277 = vmul.f32 %v9249, %v4447
    %v9278 = vmul.f32 %v9252, %v4447
    %v9279 = vmul.f32 %v9255, %v4447
    %v9280 = vmul.f32 %v9258, %v4447
    %v9281 = vmul.f32 %v9261, %v4447
    %v9282 = vmul.f32 %v9264, %v4447
    %v9283 = vmul.f32 %v9267, %v4447
    %v9284 = vsub.f32 %v9202, %v9268
    %v9285 = vsub.f32 %v9203, %v9269
    %v9286 = vsub.f32 %v9204, %v9270
    %v9287 = vsub.f32 %v9205, %v9271
    %v9288 = vsub.f32 %v9206, %v9272
    %v9289 = vsub.f32 %v9207, %v9273
    %v9290 = vsub.f32 %v9208, %v9274
    %v9291 = vsub.f32 %v9209, %v9275
    %v9292 = vsub.f32 %v9210, %v9276
    %v9293 = vsub.f32 %v9211, %v9277
    %v9294 = vsub.f32 %v9212, %v9278
    %v9295 = vsub.f32 %v9213, %v9279
    %v9296 = vsub.f32 %v9214, %v9280
    %v9297 = vsub.f32 %v9215, %v9281
    %v9298 = vsub.f32 %v9216, %v9282
    %v9299 = vsub.f32 %v9217, %v9283
    %v9300 = vmul.f32 %v9284, %v9284
    %v9301 = vmul.f32 %v9285, %v9285
    %v9302 = vmul.f32 %v9286, %v9286
    %v9303 = vmul.f32 %v9287, %v9287
    %v9304 = vmul.f32 %v9288, %v9288
    %v9305 = vmul.f32 %v9289, %v9289
    %v9306 = vmul.f32 %v9290, %v9290
    %v9307 = vmul.f32 %v9291, %v9291
    %v9308 = vmul.f32 %v9292, %v9292
    %v9309 = vmul.f32 %v9293, %v9293
    %v9310 = vmul.f32 %v9294, %v9294
    %v9311 = vmul.f32 %v9295, %v9295
    %v9312 = vmul.f32 %v9296, %v9296
    %v9313 = vmul.f32 %v9297, %v9297
    %v9314 = vmul.f32 %v9298, %v9298
    %v9315 = vmul.f32 %v9299, %v9299
    %v9316 = vsel %vm401, %v9300, 0.0
    %9317 = vadd.xlane.f32.xlu0 %v9316
    %v9318 = vpop.xlane.xlu0 %9317
    %v9319 = vsel %vm401, %v9301, 0.0
    %9320 = vadd.xlane.f32.xlu0 %v9319
    %v9321 = vpop.xlane.xlu0 %9320
    %v9322 = vsel %vm401, %v9302, 0.0
    %9323 = vadd.xlane.f32.xlu0 %v9322
    %v9324 = vpop.xlane.xlu0 %9323
    %v9325 = vsel %vm401, %v9303, 0.0
    %9326 = vadd.xlane.f32.xlu0 %v9325
    %v9327 = vpop.xlane.xlu0 %9326
    %v9328 = vsel %vm401, %v9304, 0.0
    %9329 = vadd.xlane.f32.xlu0 %v9328
    %v9330 = vpop.xlane.xlu0 %9329
    %v9331 = vsel %vm401, %v9305, 0.0
    %9332 = vadd.xlane.f32.xlu0 %v9331
    %v9333 = vpop.xlane.xlu0 %9332
    %v9334 = vsel %vm401, %v9306, 0.0
    %9335 = vadd.xlane.f32.xlu0 %v9334
    %v9336 = vpop.xlane.xlu0 %9335
    %v9337 = vsel %vm401, %v9307, 0.0
    %9338 = vadd.xlane.f32.xlu0 %v9337
    %v9339 = vpop.xlane.xlu0 %9338
    %v9340 = vsel %vm401, %v9308, 0.0
    %9341 = vadd.xlane.f32.xlu0 %v9340
    %v9342 = vpop.xlane.xlu0 %9341
    %v9343 = vsel %vm401, %v9309, 0.0
    %9344 = vadd.xlane.f32.xlu0 %v9343
    %v9345 = vpop.xlane.xlu0 %9344
    %v9346 = vsel %vm401, %v9310, 0.0
    %9347 = vadd.xlane.f32.xlu0 %v9346
    %v9348 = vpop.xlane.xlu0 %9347
    %v9349 = vsel %vm401, %v9311, 0.0
    %9350 = vadd.xlane.f32.xlu0 %v9349
    %v9351 = vpop.xlane.xlu0 %9350
    %v9352 = vsel %vm401, %v9312, 0.0
    %9353 = vadd.xlane.f32.xlu0 %v9352
    %v9354 = vpop.xlane.xlu0 %9353
    %v9355 = vsel %vm401, %v9313, 0.0
    %9356 = vadd.xlane.f32.xlu0 %v9355
    %v9357 = vpop.xlane.xlu0 %9356
    %v9358 = vsel %vm401, %v9314, 0.0
    %9359 = vadd.xlane.f32.xlu0 %v9358
    %v9360 = vpop.xlane.xlu0 %9359
    %v9361 = vsel %vm401, %v9315, 0.0
    %9362 = vadd.xlane.f32.xlu0 %v9361
    %v9363 = vpop.xlane.xlu0 %9362
    %v9364 = vmul.f32 %v9318, %v4447
    %v9365 = vmul.f32 %v9321, %v4447
    %v9366 = vmul.f32 %v9324, %v4447
    %v9367 = vmul.f32 %v9327, %v4447
    %v9368 = vmul.f32 %v9330, %v4447
    %v9369 = vmul.f32 %v9333, %v4447
    %v9370 = vmul.f32 %v9336, %v4447
    %v9371 = vmul.f32 %v9339, %v4447
    %v9372 = vmul.f32 %v9342, %v4447
    %v9373 = vmul.f32 %v9345, %v4447
    %v9374 = vmul.f32 %v9348, %v4447
    %v9375 = vmul.f32 %v9351, %v4447
    %v9376 = vmul.f32 %v9354, %v4447
    %v9377 = vmul.f32 %v9357, %v4447
    %v9378 = vmul.f32 %v9360, %v4447
    %v9379 = vmul.f32 %v9363, %v4447
    %v9380 = vadd.f32 %v9364, 1e-05
    %v9381 = vadd.f32 %v9365, 1e-05
    %v9382 = vadd.f32 %v9366, 1e-05
    %v9383 = vadd.f32 %v9367, 1e-05
    %v9384 = vadd.f32 %v9368, 1e-05
    %v9385 = vadd.f32 %v9369, 1e-05
    %v9386 = vadd.f32 %v9370, 1e-05
    %v9387 = vadd.f32 %v9371, 1e-05
    %v9388 = vadd.f32 %v9372, 1e-05
    %v9389 = vadd.f32 %v9373, 1e-05
    %v9390 = vadd.f32 %v9374, 1e-05
    %v9391 = vadd.f32 %v9375, 1e-05
    %v9392 = vadd.f32 %v9376, 1e-05
    %v9393 = vadd.f32 %v9377, 1e-05
    %v9394 = vadd.f32 %v9378, 1e-05
    %v9395 = vadd.f32 %v9379, 1e-05
    %v9396 = vrsqrt.pop %v9380
    %v9397 = vrsqrt.pop %v9381
    %v9398 = vrsqrt.pop %v9382
    %v9399 = vrsqrt.pop %v9383
    %v9400 = vrsqrt.pop %v9384
    %v9401 = vrsqrt.pop %v9385
    %v9402 = vrsqrt.pop %v9386
    %v9403 = vrsqrt.pop %v9387
    %v9404 = vrsqrt.pop %v9388
    %v9405 = vrsqrt.pop %v9389
    %v9406 = vrsqrt.pop %v9390
    %v9407 = vrsqrt.pop %v9391
    %v9408 = vrsqrt.pop %v9392
    %v9409 = vrsqrt.pop %v9393
    %v9410 = vrsqrt.pop %v9394
    %v9411 = vrsqrt.pop %v9395
    %v9412 = vmul.f32 %v9284, %v9396
    %v9413 = vmul.f32 %v9285, %v9397
    %v9414 = vmul.f32 %v9286, %v9398
    %v9415 = vmul.f32 %v9287, %v9399
    %v9416 = vmul.f32 %v9288, %v9400
    %v9417 = vmul.f32 %v9289, %v9401
    %v9418 = vmul.f32 %v9290, %v9402
    %v9419 = vmul.f32 %v9291, %v9403
    %v9420 = vmul.f32 %v9292, %v9404
    %v9421 = vmul.f32 %v9293, %v9405
    %v9422 = vmul.f32 %v9294, %v9406
    %v9423 = vmul.f32 %v9295, %v9407
    %v9424 = vmul.f32 %v9296, %v9408
    %v9425 = vmul.f32 %v9297, %v9409
    %v9426 = vmul.f32 %v9298, %v9410
    %v9427 = vmul.f32 %v9299, %v9411
    %v9428 = vlaneseq
    %v9429 = vshrl.u32 %v9428, 7
    %v9430 = vsub.s32 0, %v9429
    %v9431 = vrot.slane %v9218, %v9430
    %v9432 = vmul.f32 %v9412, %v9431
    %v9433 = vmul.f32 %v9413, %v9431
    %v9434 = vmul.f32 %v9414, %v9431
    %v9435 = vmul.f32 %v9415, %v9431
    %v9436 = vmul.f32 %v9416, %v9431
    %v9437 = vmul.f32 %v9417, %v9431
    %v9438 = vmul.f32 %v9418, %v9431
    %v9439 = vmul.f32 %v9419, %v9431
    %v9440 = vmul.f32 %v9420, %v9431
    %v9441 = vmul.f32 %v9421, %v9431
    %v9442 = vmul.f32 %v9422, %v9431
    %v9443 = vmul.f32 %v9423, %v9431
    %v9444 = vmul.f32 %v9424, %v9431
    %v9445 = vmul.f32 %v9425, %v9431
    %v9446 = vmul.f32 %v9426, %v9431
    %v9447 = vmul.f32 %v9427, %v9431
    %v9448 = vlaneseq
    %v9449 = vshrl.u32 %v9448, 7
    %v9450 = vsub.s32 0, %v9449
    %v9451 = vrot.slane %v9219, %v9450
    %v9452 = vadd.f32 %v9432, %v9451
    %v9453 = vadd.f32 %v9433, %v9451
    %v9454 = vadd.f32 %v9434, %v9451
    %v9455 = vadd.f32 %v9435, %v9451
    %v9456 = vadd.f32 %v9436, %v9451
    %v9457 = vadd.f32 %v9437, %v9451
    %v9458 = vadd.f32 %v9438, %v9451
    %v9459 = vadd.f32 %v9439, %v9451
    %v9460 = vadd.f32 %v9440, %v9451
    %v9461 = vadd.f32 %v9441, %v9451
    %v9462 = vadd.f32 %v9442, %v9451
    %v9463 = vadd.f32 %v9443, %v9451
    %v9464 = vadd.f32 %v9444, %v9451
    %v9465 = vadd.f32 %v9445, %v9451
    %v9466 = vadd.f32 %v9446, %v9451
    %v9467 = vadd.f32 %v9447, %v9451
    %v9468 = vld [vmem:[%s2 + $0xd0] sm:$0xff]
    %v9469 = vld [vmem:[%s2 + $0xd8] sm:$0xff]
    %v9470 = vpack.c.bf16 %v9453, %v9452
    %v9471 = vpack.c.bf16 %v9455, %v9454
    %v9472 = vpack.c.bf16 %v9457, %v9456
    %v9473 = vpack.c.bf16 %v9459, %v9458
    %v9474 = vpack.c.bf16 %v9461, %v9460
    %v9475 = vpack.c.bf16 %v9463, %v9462
    %v9476 = vpack.c.bf16 %v9465, %v9464
    %v9477 = vpack.c.bf16 %v9467, %v9466
    %v9478 = vpack.c.bf16 %v9469, %v9468
    %v9479 = vld [vmem:[%s2 + $0xe0] sm:$0x1]
    %v9480 = vlaneseq
    %v9481 = vshrl.u32 %v9480, 7
    %v9482 = vsub.s32 0, %v9481
    %v9483 = vrot.slane %v9479, %v9482
    %v9485 = vsel %vm401, %v9470, 0
    %v9488 = vsel %vm401, %v9471, 0
    %v9491 = vsel %vm401, %v9472, 0
    %v9494 = vsel %vm401, %v9473, 0
    %v9497 = vsel %vm401, %v9474, 0
    %v9500 = vsel %vm401, %v9475, 0
    %v9503 = vsel %vm401, %v9476, 0
    %v9506 = vsel %vm401, %v9477, 0
    %9508 = vmatprep.subr.bf16.mxu0 0
    %9509 = vmatpush1.bf16.msra.mxu0 %v9478
    %9510 = vmatprep.subr.bf16.mxu0 0
    %9511 = vmatpush1.bf16.msra.mxu0 0
    %9512 = vmatprep.subr.bf16.mxu0 0
    %9513 = vmatpush1.bf16.msra.mxu0 0
    %9514 = vmatprep.subr.bf16.mxu0 0
    %9515 = vmatpush1.bf16.msra.mxu0 0
    %9516 = vmatprep.subr.bf16.mxu0 0
    %9517 = vmatpush1.bf16.msra.mxu0 0
    %9518 = vmatprep.subr.bf16.mxu0 0
    %9519 = vmatpush1.bf16.msra.mxu0 0
    %9520 = vmatprep.subr.bf16.mxu0 0
    %9521 = vmatpush1.bf16.msra.mxu0 0
    %9522 = vmatprep.subr.bf16.mxu0 0
    %9523 = vmatpush1.bf16.msra.mxu0 0
    %9524 = vmatprep.subr.bf16.mxu0 0
    %9525 = vmatpush1.bf16.msra.mxu0 0
    %9526 = vmatprep.subr.bf16.mxu0 0
    %9527 = vmatpush1.bf16.msra.mxu0 0
    %9528 = vmatprep.subr.bf16.mxu0 0
    %9529 = vmatpush1.bf16.msra.mxu0 0
    %9530 = vmatprep.subr.bf16.mxu0 0
    %9531 = vmatpush1.bf16.msra.mxu0 0
    %9532 = vmatprep.subr.bf16.mxu0 0
    %9533 = vmatpush1.bf16.msra.mxu0 0
    %9534 = vmatprep.subr.bf16.mxu0 0
    %9535 = vmatpush1.bf16.msra.mxu0 0
    %9536 = vmatprep.subr.bf16.mxu0 0
    %9537 = vmatpush1.bf16.msra.mxu0 0
    %9538 = vmatprep.subr.bf16.mxu0 0
    %9539 = vmatpush1.bf16.msra.mxu0 0
    %9540 = vmatprep.mubr.bf16.mxu0 0
    %9541 = vmatmul.mubr.bf16.gmra.mrb[0].mxu0 %v9485
    %v9542 = vpop.f32.mrb[0].mxu0
    %v9543 = vadd.f32 %v9483, %v9542
    %v9544 = vpop.f32.mrb[0].mxu0
    %v9545 = vpop.f32.mrb[0].mxu0
    %v9546 = vadd.f32 %v9483, %v9545
    %v9547 = vpop.f32.mrb[0].mxu0
    %9548 = vmatprep.mubr.bf16.mxu0 0
    %9549 = vmatmul.mubr.bf16.gmra.mrb[0].mxu0 %v9488
    %v9550 = vpop.f32.mrb[0].mxu0
    %v9551 = vadd.f32 %v9483, %v9550
    %v9552 = vpop.f32.mrb[0].mxu0
    %v9553 = vpop.f32.mrb[0].mxu0
    %v9554 = vadd.f32 %v9483, %v9553
    %v9555 = vpop.f32.mrb[0].mxu0
    %9556 = vmatprep.mubr.bf16.mxu0 0
    %9557 = vmatmul.mubr.bf16.gmra.mrb[0].mxu0 %v9491
    %v9558 = vpop.f32.mrb[0].mxu0
    %v9559 = vadd.f32 %v9483, %v9558
    %v9560 = vpop.f32.mrb[0].mxu0
    %v9561 = vpop.f32.mrb[0].mxu0
    %v9562 = vadd.f32 %v9483, %v9561
    %v9563 = vpop.f32.mrb[0].mxu0
    %9564 = vmatprep.mubr.bf16.mxu0 0
    %9565 = vmatmul.mubr.bf16.gmra.mrb[0].mxu0 %v9494
    %v9566 = vpop.f32.mrb[0].mxu0
    %v9567 = vadd.f32 %v9483, %v9566
    %v9568 = vpop.f32.mrb[0].mxu0
    %v9569 = vpop.f32.mrb[0].mxu0
    %v9570 = vadd.f32 %v9483, %v9569
    %v9571 = vpop.f32.mrb[0].mxu0
    %9572 = vmatprep.mubr.bf16.mxu0 0
    %9573 = vmatmul.mubr.bf16.gmra.mrb[0].mxu0 %v9497
    %v9574 = vpop.f32.mrb[0].mxu0
    %v9575 = vadd.f32 %v9483, %v9574
    %v9576 = vpop.f32.mrb[0].mxu0
    %v9577 = vpop.f32.mrb[0].mxu0
    %v9578 = vadd.f32 %v9483, %v9577
    %v9579 = vpop.f32.mrb[0].mxu0
    %9580 = vmatprep.mubr.bf16.mxu0 0
    %9581 = vmatmul.mubr.bf16.gmra.mrb[0].mxu0 %v9500
    %v9582 = vpop.f32.mrb[0].mxu0
    %v9583 = vadd.f32 %v9483, %v9582
    %v9584 = vpop.f32.mrb[0].mxu0
    %v9585 = vpop.f32.mrb[0].mxu0
    %v9586 = vadd.f32 %v9483, %v9585
    %v9587 = vpop.f32.mrb[0].mxu0
    %9588 = vmatprep.mubr.bf16.mxu0 0
    %9589 = vmatmul.mubr.bf16.gmra.mrb[0].mxu0 %v9503
    %v9590 = vpop.f32.mrb[0].mxu0
    %v9591 = vadd.f32 %v9483, %v9590
    %v9592 = vpop.f32.mrb[0].mxu0
    %v9593 = vpop.f32.mrb[0].mxu0
    %v9594 = vadd.f32 %v9483, %v9593
    %v9595 = vpop.f32.mrb[0].mxu0
    %9596 = vmatprep.mubr.bf16.mxu0 0
    %9597 = vmatmul.mubr.bf16.gmra.mrb[0].mxu0 %v9506
    %v9598 = vpop.f32.mrb[0].mxu0
    %v9599 = vadd.f32 %v9483, %v9598
    %v9600 = vpop.f32.mrb[0].mxu0
    %v9601 = vpop.f32.mrb[0].mxu0
    %v9602 = vadd.f32 %v9483, %v9601
    %v9603 = vpop.f32.mrb[0].mxu0
    %9604 = vdwg.mxu0
    %v9605 = vmax.f32 %v9543, 0.0
    %v9606 = vmax.f32 %v9546, 0.0
    %v9607 = vmax.f32 %v9551, 0.0
    %v9608 = vmax.f32 %v9554, 0.0
    %v9609 = vmax.f32 %v9559, 0.0
    %v9610 = vmax.f32 %v9562, 0.0
    %v9611 = vmax.f32 %v9567, 0.0
    %v9612 = vmax.f32 %v9570, 0.0
    %v9613 = vmax.f32 %v9575, 0.0
    %v9614 = vmax.f32 %v9578, 0.0
    %v9615 = vmax.f32 %v9583, 0.0
    %v9616 = vmax.f32 %v9586, 0.0
    %v9617 = vmax.f32 %v9591, 0.0
    %v9618 = vmax.f32 %v9594, 0.0
    %v9619 = vmax.f32 %v9599, 0.0
    %v9620 = vmax.f32 %v9602, 0.0
    %v9621 = vld [vmem:[%s2 + $0xe8] sm:$0xff]
    %v9622 = vld [vmem:[%s2 + $0xf0] sm:$0xff]
    %v9623 = vld [vmem:[%s2 + $0xf8] sm:$0xff]
    %v9624 = vld [vmem:[%s2 + $0x100] sm:$0xff]
    %v9625 = vpack.c.bf16 %v9606, %v9605
    %v9626 = vpack.c.bf16 %v9608, %v9607
    %v9627 = vpack.c.bf16 %v9610, %v9609
    %v9628 = vpack.c.bf16 %v9612, %v9611
    %v9629 = vpack.c.bf16 %v9614, %v9613
    %v9630 = vpack.c.bf16 %v9616, %v9615
    %v9631 = vpack.c.bf16 %v9618, %v9617
    %v9632 = vpack.c.bf16 %v9620, %v9619
    %v9633 = vpack.c.bf16 %v9622, %v9621
    %v9634 = vpack.c.bf16 %v9624, %v9623
    %v9635 = vld [vmem:[%s2 + $0x108] sm:$0x1]
    %v9636 = vlaneseq
    %v9637 = vshrl.u32 %v9636, 7
    %v9638 = vsub.s32 0, %v9637
    %v9639 = vrot.slane %v9635, %v9638
    %v9641 = vsel %vm4820, %v9625, 0
    %v9644 = vsel %vm4820, %v9626, 0
    %v9647 = vsel %vm4820, %v9627, 0
    %v9650 = vsel %vm4820, %v9628, 0
    %v9653 = vsel %vm4820, %v9629, 0
    %v9656 = vsel %vm4820, %v9630, 0
    %v9659 = vsel %vm4820, %v9631, 0
    %v9662 = vsel %vm4820, %v9632, 0
    %9664 = vmatprep.subr.bf16.mxu0 0
    %9665 = vmatpush1.bf16.msra.mxu0 %v9633
    %9666 = vmatprep.subr.bf16.mxu0 0
    %9667 = vmatpush1.bf16.msra.mxu0 %v9634
    %9668 = vmatprep.subr.bf16.mxu0 0
    %9669 = vmatpush1.bf16.msra.mxu0 0
    %9670 = vmatprep.subr.bf16.mxu0 0
    %9671 = vmatpush1.bf16.msra.mxu0 0
    %9672 = vmatprep.subr.bf16.mxu0 0
    %9673 = vmatpush1.bf16.msra.mxu0 0
    %9674 = vmatprep.subr.bf16.mxu0 0
    %9675 = vmatpush1.bf16.msra.mxu0 0
    %9676 = vmatprep.subr.bf16.mxu0 0
    %9677 = vmatpush1.bf16.msra.mxu0 0
    %9678 = vmatprep.subr.bf16.mxu0 0
    %9679 = vmatpush1.bf16.msra.mxu0 0
    %9680 = vmatprep.subr.bf16.mxu0 0
    %9681 = vmatpush1.bf16.msra.mxu0 0
    %9682 = vmatprep.subr.bf16.mxu0 0
    %9683 = vmatpush1.bf16.msra.mxu0 0
    %9684 = vmatprep.subr.bf16.mxu0 0
    %9685 = vmatpush1.bf16.msra.mxu0 0
    %9686 = vmatprep.subr.bf16.mxu0 0
    %9687 = vmatpush1.bf16.msra.mxu0 0
    %9688 = vmatprep.subr.bf16.mxu0 0
    %9689 = vmatpush1.bf16.msra.mxu0 0
    %9690 = vmatprep.subr.bf16.mxu0 0
    %9691 = vmatpush1.bf16.msra.mxu0 0
    %9692 = vmatprep.subr.bf16.mxu0 0
    %9693 = vmatpush1.bf16.msra.mxu0 0
    %9694 = vmatprep.subr.bf16.mxu0 0
    %9695 = vmatpush1.bf16.msra.mxu0 0
    %9696 = vmatprep.mubr.bf16.mxu0 0
    %9697 = vmatmul.mubr.bf16.gmra.mrb[0].mxu0 %v9641
    %v9698 = vpop.f32.mrb[0].mxu0
    %v9699 = vadd.f32 %v9639, %v9698
    %v9700 = vpop.f32.mrb[0].mxu0
    %v9701 = vpop.f32.mrb[0].mxu0
    %v9702 = vadd.f32 %v9639, %v9701
    %v9703 = vpop.f32.mrb[0].mxu0
    %9704 = vmatprep.mubr.bf16.mxu0 0
    %9705 = vmatmul.mubr.bf16.gmra.mrb[0].mxu0 %v9644
    %v9706 = vpop.f32.mrb[0].mxu0
    %v9707 = vadd.f32 %v9639, %v9706
    %v9708 = vpop.f32.mrb[0].mxu0
    %v9709 = vpop.f32.mrb[0].mxu0
    %v9710 = vadd.f32 %v9639, %v9709
    %v9711 = vpop.f32.mrb[0].mxu0
    %9712 = vmatprep.mubr.bf16.mxu0 0
    %9713 = vmatmul.mubr.bf16.gmra.mrb[0].mxu0 %v9647
    %v9714 = vpop.f32.mrb[0].mxu0
    %v9715 = vadd.f32 %v9639, %v9714
    %v9716 = vpop.f32.mrb[0].mxu0
    %v9717 = vpop.f32.mrb[0].mxu0
    %v9718 = vadd.f32 %v9639, %v9717
    %v9719 = vpop.f32.mrb[0].mxu0
    %9720 = vmatprep.mubr.bf16.mxu0 0
    %9721 = vmatmul.mubr.bf16.gmra.mrb[0].mxu0 %v9650
    %v9722 = vpop.f32.mrb[0].mxu0
    %v9723 = vadd.f32 %v9639, %v9722
    %v9724 = vpop.f32.mrb[0].mxu0
    %v9725 = vpop.f32.mrb[0].mxu0
    %v9726 = vadd.f32 %v9639, %v9725
    %v9727 = vpop.f32.mrb[0].mxu0
    %9728 = vmatprep.mubr.bf16.mxu0 0
    %9729 = vmatmul.mubr.bf16.gmra.mrb[0].mxu0 %v9653
    %v9730 = vpop.f32.mrb[0].mxu0
    %v9731 = vadd.f32 %v9639, %v9730
    %v9732 = vpop.f32.mrb[0].mxu0
    %v9733 = vpop.f32.mrb[0].mxu0
    %v9734 = vadd.f32 %v9639, %v9733
    %v9735 = vpop.f32.mrb[0].mxu0
    %9736 = vmatprep.mubr.bf16.mxu0 0
    %9737 = vmatmul.mubr.bf16.gmra.mrb[0].mxu0 %v9656
    %v9738 = vpop.f32.mrb[0].mxu0
    %v9739 = vadd.f32 %v9639, %v9738
    %v9740 = vpop.f32.mrb[0].mxu0
    %v9741 = vpop.f32.mrb[0].mxu0
    %v9742 = vadd.f32 %v9639, %v9741
    %v9743 = vpop.f32.mrb[0].mxu0
    %9744 = vmatprep.mubr.bf16.mxu0 0
    %9745 = vmatmul.mubr.bf16.gmra.mrb[0].mxu0 %v9659
    %v9746 = vpop.f32.mrb[0].mxu0
    %v9747 = vadd.f32 %v9639, %v9746
    %v9748 = vpop.f32.mrb[0].mxu0
    %v9749 = vpop.f32.mrb[0].mxu0
    %v9750 = vadd.f32 %v9639, %v9749
    %v9751 = vpop.f32.mrb[0].mxu0
    %9752 = vmatprep.mubr.bf16.mxu0 0
    %9753 = vmatmul.mubr.bf16.gmra.mrb[0].mxu0 %v9662
    %v9754 = vpop.f32.mrb[0].mxu0
    %v9755 = vadd.f32 %v9639, %v9754
    %v9756 = vpop.f32.mrb[0].mxu0
    %v9757 = vpop.f32.mrb[0].mxu0
    %v9758 = vadd.f32 %v9639, %v9757
    %v9759 = vpop.f32.mrb[0].mxu0
    %9760 = vdwg.mxu0
    %v9761 = vadd.f32 %v9452, %v9699
    %v9762 = vadd.f32 %v9453, %v9702
    %v9763 = vadd.f32 %v9454, %v9707
    %v9764 = vadd.f32 %v9455, %v9710
    %v9765 = vadd.f32 %v9456, %v9715
    %v9766 = vadd.f32 %v9457, %v9718
    %v9767 = vadd.f32 %v9458, %v9723
    %v9768 = vadd.f32 %v9459, %v9726
    %v9769 = vadd.f32 %v9460, %v9731
    %v9770 = vadd.f32 %v9461, %v9734
    %v9771 = vadd.f32 %v9462, %v9739
    %v9772 = vadd.f32 %v9463, %v9742
    %v9773 = vadd.f32 %v9464, %v9747
    %v9774 = vadd.f32 %v9465, %v9750
    %v9775 = vadd.f32 %v9466, %v9755
    %v9776 = vadd.f32 %v9467, %v9758
    %v9777 = vld [vmem:[%s2 + $0x110] sm:$0x1]
    %v9778 = vld [vmem:[%s2 + $0x118] sm:$0x1]
    %v9779 = vsel %vm401, %v9761, 0.0
    %9780 = vadd.xlane.f32.xlu0 %v9779
    %v9781 = vpop.xlane.xlu0 %9780
    %v9782 = vsel %vm401, %v9762, 0.0
    %9783 = vadd.xlane.f32.xlu0 %v9782
    %v9784 = vpop.xlane.xlu0 %9783
    %v9785 = vsel %vm401, %v9763, 0.0
    %9786 = vadd.xlane.f32.xlu0 %v9785
    %v9787 = vpop.xlane.xlu0 %9786
    %v9788 = vsel %vm401, %v9764, 0.0
    %9789 = vadd.xlane.f32.xlu0 %v9788
    %v9790 = vpop.xlane.xlu0 %9789
    %v9791 = vsel %vm401, %v9765, 0.0
    %9792 = vadd.xlane.f32.xlu0 %v9791
    %v9793 = vpop.xlane.xlu0 %9792
    %v9794 = vsel %vm401, %v9766, 0.0
    %9795 = vadd.xlane.f32.xlu0 %v9794
    %v9796 = vpop.xlane.xlu0 %9795
    %v9797 = vsel %vm401, %v9767, 0.0
    %9798 = vadd.xlane.f32.xlu0 %v9797
    %v9799 = vpop.xlane.xlu0 %9798
    %v9800 = vsel %vm401, %v9768, 0.0
    %9801 = vadd.xlane.f32.xlu0 %v9800
    %v9802 = vpop.xlane.xlu0 %9801
    %v9803 = vsel %vm401, %v9769, 0.0
    %9804 = vadd.xlane.f32.xlu0 %v9803
    %v9805 = vpop.xlane.xlu0 %9804
    %v9806 = vsel %vm401, %v9770, 0.0
    %9807 = vadd.xlane.f32.xlu0 %v9806
    %v9808 = vpop.xlane.xlu0 %9807
    %v9809 = vsel %vm401, %v9771, 0.0
    %9810 = vadd.xlane.f32.xlu0 %v9809
    %v9811 = vpop.xlane.xlu0 %9810
    %v9812 = vsel %vm401, %v9772, 0.0
    %9813 = vadd.xlane.f32.xlu0 %v9812
    %v9814 = vpop.xlane.xlu0 %9813
    %v9815 = vsel %vm401, %v9773, 0.0
    %9816 = vadd.xlane.f32.xlu0 %v9815
    %v9817 = vpop.xlane.xlu0 %9816
    %v9818 = vsel %vm401, %v9774, 0.0
    %9819 = vadd.xlane.f32.xlu0 %v9818
    %v9820 = vpop.xlane.xlu0 %9819
    %v9821 = vsel %vm401, %v9775, 0.0
    %9822 = vadd.xlane.f32.xlu0 %v9821
    %v9823 = vpop.xlane.xlu0 %9822
    %v9824 = vsel %vm401, %v9776, 0.0
    %9825 = vadd.xlane.f32.xlu0 %v9824
    %v9826 = vpop.xlane.xlu0 %9825
    %v9827 = vmul.f32 %v9781, %v4447
    %v9828 = vmul.f32 %v9784, %v4447
    %v9829 = vmul.f32 %v9787, %v4447
    %v9830 = vmul.f32 %v9790, %v4447
    %v9831 = vmul.f32 %v9793, %v4447
    %v9832 = vmul.f32 %v9796, %v4447
    %v9833 = vmul.f32 %v9799, %v4447
    %v9834 = vmul.f32 %v9802, %v4447
    %v9835 = vmul.f32 %v9805, %v4447
    %v9836 = vmul.f32 %v9808, %v4447
    %v9837 = vmul.f32 %v9811, %v4447
    %v9838 = vmul.f32 %v9814, %v4447
    %v9839 = vmul.f32 %v9817, %v4447
    %v9840 = vmul.f32 %v9820, %v4447
    %v9841 = vmul.f32 %v9823, %v4447
    %v9842 = vmul.f32 %v9826, %v4447
    %v9843 = vsub.f32 %v9761, %v9827
    %v9844 = vsub.f32 %v9762, %v9828
    %v9845 = vsub.f32 %v9763, %v9829
    %v9846 = vsub.f32 %v9764, %v9830
    %v9847 = vsub.f32 %v9765, %v9831
    %v9848 = vsub.f32 %v9766, %v9832
    %v9849 = vsub.f32 %v9767, %v9833
    %v9850 = vsub.f32 %v9768, %v9834
    %v9851 = vsub.f32 %v9769, %v9835
    %v9852 = vsub.f32 %v9770, %v9836
    %v9853 = vsub.f32 %v9771, %v9837
    %v9854 = vsub.f32 %v9772, %v9838
    %v9855 = vsub.f32 %v9773, %v9839
    %v9856 = vsub.f32 %v9774, %v9840
    %v9857 = vsub.f32 %v9775, %v9841
    %v9858 = vsub.f32 %v9776, %v9842
    %v9859 = vmul.f32 %v9843, %v9843
    %v9860 = vmul.f32 %v9844, %v9844
    %v9861 = vmul.f32 %v9845, %v9845
    %v9862 = vmul.f32 %v9846, %v9846
    %v9863 = vmul.f32 %v9847, %v9847
    %v9864 = vmul.f32 %v9848, %v9848
    %v9865 = vmul.f32 %v9849, %v9849
    %v9866 = vmul.f32 %v9850, %v9850
    %v9867 = vmul.f32 %v9851, %v9851
    %v9868 = vmul.f32 %v9852, %v9852
    %v9869 = vmul.f32 %v9853, %v9853
    %v9870 = vmul.f32 %v9854, %v9854
    %v9871 = vmul.f32 %v9855, %v9855
    %v9872 = vmul.f32 %v9856, %v9856
    %v9873 = vmul.f32 %v9857, %v9857
    %v9874 = vmul.f32 %v9858, %v9858
    %v9875 = vsel %vm401, %v9859, 0.0
    %9876 = vadd.xlane.f32.xlu0 %v9875
    %v9877 = vpop.xlane.xlu0 %9876
    %v9878 = vsel %vm401, %v9860, 0.0
    %9879 = vadd.xlane.f32.xlu0 %v9878
    %v9880 = vpop.xlane.xlu0 %9879
    %v9881 = vsel %vm401, %v9861, 0.0
    %9882 = vadd.xlane.f32.xlu0 %v9881
    %v9883 = vpop.xlane.xlu0 %9882
    %v9884 = vsel %vm401, %v9862, 0.0
    %9885 = vadd.xlane.f32.xlu0 %v9884
    %v9886 = vpop.xlane.xlu0 %9885
    %v9887 = vsel %vm401, %v9863, 0.0
    %9888 = vadd.xlane.f32.xlu0 %v9887
    %v9889 = vpop.xlane.xlu0 %9888
    %v9890 = vsel %vm401, %v9864, 0.0
    %9891 = vadd.xlane.f32.xlu0 %v9890
    %v9892 = vpop.xlane.xlu0 %9891
    %v9893 = vsel %vm401, %v9865, 0.0
    %9894 = vadd.xlane.f32.xlu0 %v9893
    %v9895 = vpop.xlane.xlu0 %9894
    %v9896 = vsel %vm401, %v9866, 0.0
    %9897 = vadd.xlane.f32.xlu0 %v9896
    %v9898 = vpop.xlane.xlu0 %9897
    %v9899 = vsel %vm401, %v9867, 0.0
    %9900 = vadd.xlane.f32.xlu0 %v9899
    %v9901 = vpop.xlane.xlu0 %9900
    %v9902 = vsel %vm401, %v9868, 0.0
    %9903 = vadd.xlane.f32.xlu0 %v9902
    %v9904 = vpop.xlane.xlu0 %9903
    %v9905 = vsel %vm401, %v9869, 0.0
    %9906 = vadd.xlane.f32.xlu0 %v9905
    %v9907 = vpop.xlane.xlu0 %9906
    %v9908 = vsel %vm401, %v9870, 0.0
    %9909 = vadd.xlane.f32.xlu0 %v9908
    %v9910 = vpop.xlane.xlu0 %9909
    %v9911 = vsel %vm401, %v9871, 0.0
    %9912 = vadd.xlane.f32.xlu0 %v9911
    %v9913 = vpop.xlane.xlu0 %9912
    %v9914 = vsel %vm401, %v9872, 0.0
    %9915 = vadd.xlane.f32.xlu0 %v9914
    %v9916 = vpop.xlane.xlu0 %9915
    %v9917 = vsel %vm401, %v9873, 0.0
    %9918 = vadd.xlane.f32.xlu0 %v9917
    %v9919 = vpop.xlane.xlu0 %9918
    %v9920 = vsel %vm401, %v9874, 0.0
    %9921 = vadd.xlane.f32.xlu0 %v9920
    %v9922 = vpop.xlane.xlu0 %9921
    %v9923 = vmul.f32 %v9877, %v4447
    %v9924 = vmul.f32 %v9880, %v4447
    %v9925 = vmul.f32 %v9883, %v4447
    %v9926 = vmul.f32 %v9886, %v4447
    %v9927 = vmul.f32 %v9889, %v4447
    %v9928 = vmul.f32 %v9892, %v4447
    %v9929 = vmul.f32 %v9895, %v4447
    %v9930 = vmul.f32 %v9898, %v4447
    %v9931 = vmul.f32 %v9901, %v4447
    %v9932 = vmul.f32 %v9904, %v4447
    %v9933 = vmul.f32 %v9907, %v4447
    %v9934 = vmul.f32 %v9910, %v4447
    %v9935 = vmul.f32 %v9913, %v4447
    %v9936 = vmul.f32 %v9916, %v4447
    %v9937 = vmul.f32 %v9919, %v4447
    %v9938 = vmul.f32 %v9922, %v4447
    %v9939 = vadd.f32 %v9923, 1e-05
    %v9940 = vadd.f32 %v9924, 1e-05
    %v9941 = vadd.f32 %v9925, 1e-05
    %v9942 = vadd.f32 %v9926, 1e-05
    %v9943 = vadd.f32 %v9927, 1e-05
    %v9944 = vadd.f32 %v9928, 1e-05
    %v9945 = vadd.f32 %v9929, 1e-05
    %v9946 = vadd.f32 %v9930, 1e-05
    %v9947 = vadd.f32 %v9931, 1e-05
    %v9948 = vadd.f32 %v9932, 1e-05
    %v9949 = vadd.f32 %v9933, 1e-05
    %v9950 = vadd.f32 %v9934, 1e-05
    %v9951 = vadd.f32 %v9935, 1e-05
    %v9952 = vadd.f32 %v9936, 1e-05
    %v9953 = vadd.f32 %v9937, 1e-05
    %v9954 = vadd.f32 %v9938, 1e-05
    %v9955 = vrsqrt.pop %v9939
    %v9956 = vrsqrt.pop %v9940
    %v9957 = vrsqrt.pop %v9941
    %v9958 = vrsqrt.pop %v9942
    %v9959 = vrsqrt.pop %v9943
    %v9960 = vrsqrt.pop %v9944
    %v9961 = vrsqrt.pop %v9945
    %v9962 = vrsqrt.pop %v9946
    %v9963 = vrsqrt.pop %v9947
    %v9964 = vrsqrt.pop %v9948
    %v9965 = vrsqrt.pop %v9949
    %v9966 = vrsqrt.pop %v9950
    %v9967 = vrsqrt.pop %v9951
    %v9968 = vrsqrt.pop %v9952
    %v9969 = vrsqrt.pop %v9953
    %v9970 = vrsqrt.pop %v9954
    %v9971 = vmul.f32 %v9843, %v9955
    %v9972 = vmul.f32 %v9844, %v9956
    %v9973 = vmul.f32 %v9845, %v9957
    %v9974 = vmul.f32 %v9846, %v9958
    %v9975 = vmul.f32 %v9847, %v9959
    %v9976 = vmul.f32 %v9848, %v9960
    %v9977 = vmul.f32 %v9849, %v9961
    %v9978 = vmul.f32 %v9850, %v9962
    %v9979 = vmul.f32 %v9851, %v9963
    %v9980 = vmul.f32 %v9852, %v9964
    %v9981 = vmul.f32 %v9853, %v9965
    %v9982 = vmul.f32 %v9854, %v9966
    %v9983 = vmul.f32 %v9855, %v9967
    %v9984 = vmul.f32 %v9856, %v9968
    %v9985 = vmul.f32 %v9857, %v9969
    %v9986 = vmul.f32 %v9858, %v9970
    %v9987 = vlaneseq
    %v9988 = vshrl.u32 %v9987, 7
    %v9989 = vsub.s32 0, %v9988
    %v9990 = vrot.slane %v9777, %v9989
    %v9991 = vmul.f32 %v9971, %v9990
    %v9992 = vmul.f32 %v9972, %v9990
    %v9993 = vmul.f32 %v9973, %v9990
    %v9994 = vmul.f32 %v9974, %v9990
    %v9995 = vmul.f32 %v9975, %v9990
    %v9996 = vmul.f32 %v9976, %v9990
    %v9997 = vmul.f32 %v9977, %v9990
    %v9998 = vmul.f32 %v9978, %v9990
    %v9999 = vmul.f32 %v9979, %v9990
    %v10000 = vmul.f32 %v9980, %v9990
    %v10001 = vmul.f32 %v9981, %v9990
    %v10002 = vmul.f32 %v9982, %v9990
    %v10003 = vmul.f32 %v9983, %v9990
    %v10004 = vmul.f32 %v9984, %v9990
    %v10005 = vmul.f32 %v9985, %v9990
    %v10006 = vmul.f32 %v9986, %v9990
    %v10007 = vlaneseq
    %v10008 = vshrl.u32 %v10007, 7
    %v10009 = vsub.s32 0, %v10008
    %v10010 = vrot.slane %v9778, %v10009
    %v10011 = vadd.f32 %v9991, %v10010
    %v10012 = vadd.f32 %v9992, %v10010
    %v10013 = vadd.f32 %v9993, %v10010
    %v10014 = vadd.f32 %v9994, %v10010
    %v10015 = vadd.f32 %v9995, %v10010
    %v10016 = vadd.f32 %v9996, %v10010
    %v10017 = vadd.f32 %v9997, %v10010
    %v10018 = vadd.f32 %v9998, %v10010
    %v10019 = vadd.f32 %v9999, %v10010
    %v10020 = vadd.f32 %v10000, %v10010
    %v10021 = vadd.f32 %v10001, %v10010
    %v10022 = vadd.f32 %v10002, %v10010
    %v10023 = vadd.f32 %v10003, %v10010
    %v10024 = vadd.f32 %v10004, %v10010
    %v10025 = vadd.f32 %v10005, %v10010
    %v10026 = vadd.f32 %v10006, %v10010
    %10027 = vst.msk [vmem:[#allocation2] sm:$0xff] %vm401, %v112
    %10028 = vst.msk [vmem:[#allocation2 + $0x8] sm:$0xff] %vm401, %v113
    %v10045 = vrot.slane %v10012, 7
    %vm10046 = vcmask 1041409
    %v10047 = vsel %vm10046, %v10045, %v10011
    %v10048 = vrot.slane %v10013, 6
    %vm10049 = vcmask 1042434
    %v10050 = vsel %vm10049, %v10048, %v10047
    %v10051 = vrot.slane %v10014, 5
    %vm10052 = vcmask 1043459
    %v10053 = vsel %vm10052, %v10051, %v10050
    %v10054 = vrot.slane %v10015, 4
    %vm10055 = vcmask 1044484
    %v10056 = vsel %vm10055, %v10054, %v10053
    %v10057 = vrot.slane %v10016, 3
    %vm10058 = vcmask 1045509
    %v10059 = vsel %vm10058, %v10057, %v10056
    %v10060 = vrot.slane %v10017, 2
    %vm10061 = vcmask 1046534
    %v10062 = vsel %vm10061, %v10060, %v10059
    %v10063 = vrot.slane %v10018, 1
    %vm10064 = vcmask 1047559
    %v10065 = vsel %vm10064, %v10063, %v10062
    %v10066 = vrot.slane %v10020, 7
    %v10067 = vsel %vm10046, %v10066, %v10019
    %v10068 = vrot.slane %v10021, 6
    %v10069 = vsel %vm10049, %v10068, %v10067
    %v10070 = vrot.slane %v10022, 5
    %v10071 = vsel %vm10052, %v10070, %v10069
    %v10072 = vrot.slane %v10023, 4
    %v10073 = vsel %vm10055, %v10072, %v10071
    %v10074 = vrot.slane %v10024, 3
    %v10075 = vsel %vm10058, %v10074, %v10073
    %v10076 = vrot.slane %v10025, 2
    %v10077 = vsel %vm10061, %v10076, %v10075
    %v10078 = vrot.slane %v10026, 1
    %v10079 = vsel %vm10064, %v10078, %v10077
    %10080 = vrot.lane.b32.xlu0 %v10065, 16
    %v10081 = vpop.permute.xlu0 %10080
    %10082 = vrot.lane.b32.xlu0 %v10079, 16
    %v10083 = vpop.permute.xlu0 %10082
    %vm10086 = vcmask 261248
    %10087 = vst.msk [vmem:[#allocation2] sm:$0xff] %vm10086, %v10081
    %10088 = vst.msk [vmem:[#allocation2 + $0x8] sm:$0xff] %vm10086, %v10083
    %v10089 = vld [vmem:[#allocation2] sm:$0xff]
    %v10090 = vld [vmem:[#allocation2 + $0x8] sm:$0xff]
    %v10091 = vld [vmem:[%s2 + $0x120] sm:$0xff]
    %v10092 = vld [vmem:[%s2 + $0x128] sm:$0xff]
    %v10093 = vld [vmem:[%s2 + $0x130] sm:$0xff]
    %v10094 = vld [vmem:[%s2 + $0x138] sm:$0xff]
    %v10095 = vpack.c.bf16 %v10090, %v10089
    %v10096 = vpack.c.bf16 %v10092, %v10091
    %v10097 = vpack.c.bf16 %v10094, %v10093
    %v10098 = vld [vmem:[%s2 + $0x140] sm:$0x1]
    %v10099 = vlaneseq
    %v10100 = vshrl.u32 %v10099, 7
    %v10101 = vsub.s32 0, %v10100
    %v10102 = vrot.slane %v10098, %v10101
    %v10104 = vsel %vm4820, %v10095, 0
    %10106 = vmatprep.subr.bf16.mxu0 0
    %10107 = vmatpush1.bf16.msra.mxu0 %v10096
    %10108 = vmatprep.subr.bf16.mxu0 0
    %10109 = vmatpush1.bf16.msra.mxu0 %v10097
    %10110 = vmatprep.subr.bf16.mxu0 0
    %10111 = vmatpush1.bf16.msra.mxu0 0
    %10112 = vmatprep.subr.bf16.mxu0 0
    %10113 = vmatpush1.bf16.msra.mxu0 0
    %10114 = vmatprep.subr.bf16.mxu0 0
    %10115 = vmatpush1.bf16.msra.mxu0 0
    %10116 = vmatprep.subr.bf16.mxu0 0
    %10117 = vmatpush1.bf16.msra.mxu0 0
    %10118 = vmatprep.subr.bf16.mxu0 0
    %10119 = vmatpush1.bf16.msra.mxu0 0
    %10120 = vmatprep.subr.bf16.mxu0 0
    %10121 = vmatpush1.bf16.msra.mxu0 0
    %10122 = vmatprep.subr.bf16.mxu0 0
    %10123 = vmatpush1.bf16.msra.mxu0 0
    %10124 = vmatprep.subr.bf16.mxu0 0
    %10125 = vmatpush1.bf16.msra.mxu0 0
    %10126 = vmatprep.subr.bf16.mxu0 0
    %10127 = vmatpush1.bf16.msra.mxu0 0
    %10128 = vmatprep.subr.bf16.mxu0 0
    %10129 = vmatpush1.bf16.msra.mxu0 0
    %10130 = vmatprep.subr.bf16.mxu0 0
    %10131 = vmatpush1.bf16.msra.mxu0 0
    %10132 = vmatprep.subr.bf16.mxu0 0
    %10133 = vmatpush1.bf16.msra.mxu0 0
    %10134 = vmatprep.subr.bf16.mxu0 0
    %10135 = vmatpush1.bf16.msra.mxu0 0
    %10136 = vmatprep.subr.bf16.mxu0 0
    %10137 = vmatpush1.bf16.msra.mxu0 0
    %10138 = vmatprep.mubr.bf16.mxu0 0
    %10139 = vmatmul.mubr.bf16.gmra.mrb[0].mxu0 %v10104
    %v10140 = vpop.f32.mrb[0].mxu0
    %v10141 = vadd.f32 %v10102, %v10140
    %v10142 = vpop.f32.mrb[0].mxu0
    %v10143 = vpop.f32.mrb[0].mxu0
    %v10144 = vadd.f32 %v10102, %v10143
    %v10145 = vpop.f32.mrb[0].mxu0
    %10146 = vdwg.mxu0
    %v10147 = vld [vmem:[%s2 + $0x148] sm:$0xff]
    %v10148 = vld [vmem:[%s2 + $0x150] sm:$0xff]
    %v10149 = vld [vmem:[%s2 + $0x158] sm:$0xff]
    %v10150 = vld [vmem:[%s2 + $0x160] sm:$0xff]
    %v10151 = vmul.f32 %v10141, 0.25
    %v10152 = vmul.f32 %v10144, 0.25
    %v10153 = vpack.c.bf16 %v10151, %v10151
    %v10154 = vpack.c.bf16 %v10152, %v10152
    %v10155 = vpack.c.bf16 %v10141, %v10141
    %v10156 = vpack.c.bf16 %v10144, %v10144
    %10158 = vrot.lane.b32.xlu0 %v10155, 96
    %v10159 = vpop.permute.xlu0 %10158
    %v10161 = vsel %vm401, %v10153, 0
    %v10164 = vsel %vm401, %v10159, 0
    %10166 = vmatprep.subr.bf16.mxu0 0
    %10167 = vmatpush1.bf16.xpose.msra.mxu0 %v10164
    %10168 = vmatprep.subr.bf16.mxu0 0
    %10169 = vmatpush1.bf16.xpose.msra.mxu0 0
    %10170 = vmatprep.subr.bf16.mxu0 0
    %10171 = vmatpush1.bf16.xpose.msra.mxu0 0
    %10172 = vmatprep.subr.bf16.mxu0 0
    %10173 = vmatpush1.bf16.xpose.msra.mxu0 0
    %10174 = vmatprep.subr.bf16.mxu0 0
    %10175 = vmatpush1.bf16.xpose.msra.mxu0 0
    %10176 = vmatprep.subr.bf16.mxu0 0
    %10177 = vmatpush1.bf16.xpose.msra.mxu0 0
    %10178 = vmatprep.subr.bf16.mxu0 0
    %10179 = vmatpush1.bf16.xpose.msra.mxu0 0
    %10180 = vmatprep.subr.bf16.mxu0 0
    %10181 = vmatpush1.bf16.xpose.msra.mxu0 0
    %10182 = vmatprep.subr.bf16.mxu0 0
    %10183 = vmatpush1.bf16.xpose.msra.mxu0 0
    %10184 = vmatprep.subr.bf16.mxu0 0
    %10185 = vmatpush1.bf16.xpose.msra.mxu0 0
    %10186 = vmatprep.subr.bf16.mxu0 0
    %10187 = vmatpush1.bf16.xpose.msra.mxu0 0
    %10188 = vmatprep.subr.bf16.mxu0 0
    %10189 = vmatpush1.bf16.xpose.msra.mxu0 0
    %10190 = vmatprep.subr.bf16.mxu0 0
    %10191 = vmatpush1.bf16.xpose.msra.mxu0 0
    %10192 = vmatprep.subr.bf16.mxu0 0
    %10193 = vmatpush1.bf16.xpose.msra.mxu0 0
    %10194 = vmatprep.subr.bf16.mxu0 0
    %10195 = vmatpush1.bf16.xpose.msra.mxu0 0
    %10196 = vmatprep.subr.bf16.mxu0 0
    %10197 = vmatpush1.bf16.xpose.msra.mxu0 0
    %10198 = vmatprep.mubr.bf16.mxu0 0
    %10199 = vmatmul.mubr.bf16.gmra.mrb[0].mxu0 %v10161
    %v10200 = vpop.f32.mrb[0].mxu0
    %v10201 = vadd.f32 0.0, %v10200
    %v10202 = vpop.f32.mrb[0].mxu0
    %v10203 = vpop.f32.mrb[0].mxu0
    %v10204 = vpop.f32.mrb[0].mxu0
    %10205 = vdwg.mxu0
    %10207 = vrot.lane.b32.xlu0 %v10156, 96
    %v10208 = vpop.permute.xlu0 %10207
    %v10210 = vsel %vm401, %v10154, 0
    %v10213 = vsel %vm401, %v10208, 0
    %10215 = vmatprep.subr.bf16.mxu0 0
    %10216 = vmatpush1.bf16.xpose.msra.mxu0 %v10213
    %10217 = vmatprep.subr.bf16.mxu0 0
    %10218 = vmatpush1.bf16.xpose.msra.mxu0 0
    %10219 = vmatprep.subr.bf16.mxu0 0
    %10220 = vmatpush1.bf16.xpose.msra.mxu0 0
    %10221 = vmatprep.subr.bf16.mxu0 0
    %10222 = vmatpush1.bf16.xpose.msra.mxu0 0
    %10223 = vmatprep.subr.bf16.mxu0 0
    %10224 = vmatpush1.bf16.xpose.msra.mxu0 0
    %10225 = vmatprep.subr.bf16.mxu0 0
    %10226 = vmatpush1.bf16.xpose.msra.mxu0 0
    %10227 = vmatprep.subr.bf16.mxu0 0
    %10228 = vmatpush1.bf16.xpose.msra.mxu0 0
    %10229 = vmatprep.subr.bf16.mxu0 0
    %10230 = vmatpush1.bf16.xpose.msra.mxu0 0
    %10231 = vmatprep.subr.bf16.mxu0 0
    %10232 = vmatpush1.bf16.xpose.msra.mxu0 0
    %10233 = vmatprep.subr.bf16.mxu0 0
    %10234 = vmatpush1.bf16.xpose.msra.mxu0 0
    %10235 = vmatprep.subr.bf16.mxu0 0
    %10236 = vmatpush1.bf16.xpose.msra.mxu0 0
    %10237 = vmatprep.subr.bf16.mxu0 0
    %10238 = vmatpush1.bf16.xpose.msra.mxu0 0
    %10239 = vmatprep.subr.bf16.mxu0 0
    %10240 = vmatpush1.bf16.xpose.msra.mxu0 0
    %10241 = vmatprep.subr.bf16.mxu0 0
    %10242 = vmatpush1.bf16.xpose.msra.mxu0 0
    %10243 = vmatprep.subr.bf16.mxu0 0
    %10244 = vmatpush1.bf16.xpose.msra.mxu0 0
    %10245 = vmatprep.subr.bf16.mxu0 0
    %10246 = vmatpush1.bf16.xpose.msra.mxu0 0
    %10247 = vmatprep.mubr.bf16.mxu0 0
    %10248 = vmatmul.mubr.bf16.gmra.mrb[0].mxu0 %v10210
    %v10249 = vpop.f32.mrb[0].mxu0
    %v10250 = vadd.f32 0.0, %v10249
    %v10251 = vpop.f32.mrb[0].mxu0
    %v10252 = vpop.f32.mrb[0].mxu0
    %v10253 = vpop.f32.mrb[0].mxu0
    %10254 = vdwg.mxu0
    %v10255 = vsel %vm576, %v10201, -inf
    %10256 = vmax.xlane.f32.xlu0 %v10255
    %v10257 = vpop.xlane.xlu0 %10256
    %v10258 = vsel %vm576, %v10250, -inf
    %10259 = vmax.xlane.f32.xlu0 %v10258
    %v10260 = vpop.xlane.xlu0 %10259
    %v10261 = vsub.f32 %v10201, %v10257
    %v10262 = vsub.f32 %v10250, %v10260
    %v10263 = vmul.f32 %v10261, 1.442695
    %v10264 = vpow.pop %v10263
    %v10265 = vmul.f32 %v10262, 1.442695
    %v10266 = vpow.pop %v10265
    %v10267 = vsel %vm576, %v10264, 0.0
    %10268 = vadd.xlane.f32.xlu0 %v10267
    %v10269 = vpop.xlane.xlu0 %10268
    %v10270 = vsel %vm576, %v10266, 0.0
    %10271 = vadd.xlane.f32.xlu0 %v10270
    %v10272 = vpop.xlane.xlu0 %10271
    %v10273 = vrcp.pop %v10269
    %v10274 = vrcp.pop %v10272
    %v10275 = vmul.f32 %v10264, %v10273
    %v10276 = vmul.f32 %v10266, %v10274
    %v10277 = vpack.c.bf16 %v10275, %v10275
    %v10278 = vpack.c.bf16 %v10276, %v10276
    %10279 = vrot.lane.b32.xlu0 %v10155, 64
    %v10280 = vpop.permute.xlu0 %10279
    %v10282 = vsel %vm576, %v10277, 0
    %v10285 = vsel %vm251, %v10280, 0
    %10287 = vmatprep.subr.bf16.mxu0 0
    %10288 = vmatpush1.bf16.msra.mxu0 %v10285
    %10289 = vmatprep.subr.bf16.mxu0 0
    %10290 = vmatpush1.bf16.msra.mxu0 0
    %10291 = vmatprep.subr.bf16.mxu0 0
    %10292 = vmatpush1.bf16.msra.mxu0 0
    %10293 = vmatprep.subr.bf16.mxu0 0
    %10294 = vmatpush1.bf16.msra.mxu0 0
    %10295 = vmatprep.subr.bf16.mxu0 0
    %10296 = vmatpush1.bf16.msra.mxu0 0
    %10297 = vmatprep.subr.bf16.mxu0 0
    %10298 = vmatpush1.bf16.msra.mxu0 0
    %10299 = vmatprep.subr.bf16.mxu0 0
    %10300 = vmatpush1.bf16.msra.mxu0 0
    %10301 = vmatprep.subr.bf16.mxu0 0
    %10302 = vmatpush1.bf16.msra.mxu0 0
    %10303 = vmatprep.subr.bf16.mxu0 0
    %10304 = vmatpush1.bf16.msra.mxu0 0
    %10305 = vmatprep.subr.bf16.mxu0 0
    %10306 = vmatpush1.bf16.msra.mxu0 0
    %10307 = vmatprep.subr.bf16.mxu0 0
    %10308 = vmatpush1.bf16.msra.mxu0 0
    %10309 = vmatprep.subr.bf16.mxu0 0
    %10310 = vmatpush1.bf16.msra.mxu0 0
    %10311 = vmatprep.subr.bf16.mxu0 0
    %10312 = vmatpush1.bf16.msra.mxu0 0
    %10313 = vmatprep.subr.bf16.mxu0 0
    %10314 = vmatpush1.bf16.msra.mxu0 0
    %10315 = vmatprep.subr.bf16.mxu0 0
    %10316 = vmatpush1.bf16.msra.mxu0 0
    %10317 = vmatprep.subr.bf16.mxu0 0
    %10318 = vmatpush1.bf16.msra.mxu0 0
    %10319 = vmatprep.mubr.bf16.mxu0 0
    %10320 = vmatmul.mubr.bf16.gmra.mrb[0].mxu0 %v10282
    %v10321 = vpop.f32.mrb[0].mxu0
    %v10322 = vadd.f32 0.0, %v10321
    %v10323 = vpop.f32.mrb[0].mxu0
    %v10324 = vpop.f32.mrb[0].mxu0
    %v10325 = vpop.f32.mrb[0].mxu0
    %10326 = vdwg.mxu0
    %10327 = vrot.lane.b32.xlu0 %v10156, 64
    %v10328 = vpop.permute.xlu0 %10327
    %v10330 = vsel %vm576, %v10278, 0
    %v10333 = vsel %vm251, %v10328, 0
    %10335 = vmatprep.subr.bf16.mxu0 0
    %10336 = vmatpush1.bf16.msra.mxu0 %v10333
    %10337 = vmatprep.subr.bf16.mxu0 0
    %10338 = vmatpush1.bf16.msra.mxu0 0
    %10339 = vmatprep.subr.bf16.mxu0 0
    %10340 = vmatpush1.bf16.msra.mxu0 0
    %10341 = vmatprep.subr.bf16.mxu0 0
    %10342 = vmatpush1.bf16.msra.mxu0 0
    %10343 = vmatprep.subr.bf16.mxu0 0
    %10344 = vmatpush1.bf16.msra.mxu0 0
    %10345 = vmatprep.subr.bf16.mxu0 0
    %10346 = vmatpush1.bf16.msra.mxu0 0
    %10347 = vmatprep.subr.bf16.mxu0 0
    %10348 = vmatpush1.bf16.msra.mxu0 0
    %10349 = vmatprep.subr.bf16.mxu0 0
    %10350 = vmatpush1.bf16.msra.mxu0 0
    %10351 = vmatprep.subr.bf16.mxu0 0
    %10352 = vmatpush1.bf16.msra.mxu0 0
    %10353 = vmatprep.subr.bf16.mxu0 0
    %10354 = vmatpush1.bf16.msra.mxu0 0
    %10355 = vmatprep.subr.bf16.mxu0 0
    %10356 = vmatpush1.bf16.msra.mxu0 0
    %10357 = vmatprep.subr.bf16.mxu0 0
    %10358 = vmatpush1.bf16.msra.mxu0 0
    %10359 = vmatprep.subr.bf16.mxu0 0
    %10360 = vmatpush1.bf16.msra.mxu0 0
    %10361 = vmatprep.subr.bf16.mxu0 0
    %10362 = vmatpush1.bf16.msra.mxu0 0
    %10363 = vmatprep.subr.bf16.mxu0 0
    %10364 = vmatpush1.bf16.msra.mxu0 0
    %10365 = vmatprep.subr.bf16.mxu0 0
    %10366 = vmatpush1.bf16.msra.mxu0 0
    %10367 = vmatprep.mubr.bf16.mxu0 0
    %10368 = vmatmul.mubr.bf16.gmra.mrb[0].mxu0 %v10330
    %v10369 = vpop.f32.mrb[0].mxu0
    %v10370 = vadd.f32 0.0, %v10369
    %v10371 = vpop.f32.mrb[0].mxu0
    %v10372 = vpop.f32.mrb[0].mxu0
    %v10373 = vpop.f32.mrb[0].mxu0
    %10374 = vdwg.mxu0
    %v10375 = vpack.c.bf16 %v10370, %v10322
    %v10376 = vpack.c.bf16 %v10148, %v10147
    %10378 = vrot.lane.b32.xlu0 %v10153, 112
    %v10379 = vpop.permute.xlu0 %10378
    %10380 = vrot.lane.b32.xlu0 %v10155, 80
    %v10381 = vpop.permute.xlu0 %10380
    %v10383 = vsel %vm401, %v10379, 0
    %v10386 = vsel %vm401, %v10381, 0
    %10388 = vmatprep.subr.bf16.mxu0 0
    %10389 = vmatpush1.bf16.xpose.msra.mxu0 %v10386
    %10390 = vmatprep.subr.bf16.mxu0 0
    %10391 = vmatpush1.bf16.xpose.msra.mxu0 0
    %10392 = vmatprep.subr.bf16.mxu0 0
    %10393 = vmatpush1.bf16.xpose.msra.mxu0 0
    %10394 = vmatprep.subr.bf16.mxu0 0
    %10395 = vmatpush1.bf16.xpose.msra.mxu0 0
    %10396 = vmatprep.subr.bf16.mxu0 0
    %10397 = vmatpush1.bf16.xpose.msra.mxu0 0
    %10398 = vmatprep.subr.bf16.mxu0 0
    %10399 = vmatpush1.bf16.xpose.msra.mxu0 0
    %10400 = vmatprep.subr.bf16.mxu0 0
    %10401 = vmatpush1.bf16.xpose.msra.mxu0 0
    %10402 = vmatprep.subr.bf16.mxu0 0
    %10403 = vmatpush1.bf16.xpose.msra.mxu0 0
    %10404 = vmatprep.subr.bf16.mxu0 0
    %10405 = vmatpush1.bf16.xpose.msra.mxu0 0
    %10406 = vmatprep.subr.bf16.mxu0 0
    %10407 = vmatpush1.bf16.xpose.msra.mxu0 0
    %10408 = vmatprep.subr.bf16.mxu0 0
    %10409 = vmatpush1.bf16.xpose.msra.mxu0 0
    %10410 = vmatprep.subr.bf16.mxu0 0
    %10411 = vmatpush1.bf16.xpose.msra.mxu0 0
    %10412 = vmatprep.subr.bf16.mxu0 0
    %10413 = vmatpush1.bf16.xpose.msra.mxu0 0
    %10414 = vmatprep.subr.bf16.mxu0 0
    %10415 = vmatpush1.bf16.xpose.msra.mxu0 0
    %10416 = vmatprep.subr.bf16.mxu0 0
    %10417 = vmatpush1.bf16.xpose.msra.mxu0 0
    %10418 = vmatprep.subr.bf16.mxu0 0
    %10419 = vmatpush1.bf16.xpose.msra.mxu0 0
    %10420 = vmatprep.mubr.bf16.mxu0 0
    %10421 = vmatmul.mubr.bf16.gmra.mrb[0].mxu0 %v10383
    %v10422 = vpop.f32.mrb[0].mxu0
    %v10423 = vadd.f32 0.0, %v10422
    %v10424 = vpop.f32.mrb[0].mxu0
    %v10425 = vpop.f32.mrb[0].mxu0
    %v10426 = vpop.f32.mrb[0].mxu0
    %10427 = vdwg.mxu0
    %10429 = vrot.lane.b32.xlu0 %v10154, 112
    %v10430 = vpop.permute.xlu0 %10429
    %10431 = vrot.lane.b32.xlu0 %v10156, 80
    %v10432 = vpop.permute.xlu0 %10431
    %v10434 = vsel %vm401, %v10430, 0
    %v10437 = vsel %vm401, %v10432, 0
    %10439 = vmatprep.subr.bf16.mxu0 0
    %10440 = vmatpush1.bf16.xpose.msra.mxu0 %v10437
    %10441 = vmatprep.subr.bf16.mxu0 0
    %10442 = vmatpush1.bf16.xpose.msra.mxu0 0
    %10443 = vmatprep.subr.bf16.mxu0 0
    %10444 = vmatpush1.bf16.xpose.msra.mxu0 0
    %10445 = vmatprep.subr.bf16.mxu0 0
    %10446 = vmatpush1.bf16.xpose.msra.mxu0 0
    %10447 = vmatprep.subr.bf16.mxu0 0
    %10448 = vmatpush1.bf16.xpose.msra.mxu0 0
    %10449 = vmatprep.subr.bf16.mxu0 0
    %10450 = vmatpush1.bf16.xpose.msra.mxu0 0
    %10451 = vmatprep.subr.bf16.mxu0 0
    %10452 = vmatpush1.bf16.xpose.msra.mxu0 0
    %10453 = vmatprep.subr.bf16.mxu0 0
    %10454 = vmatpush1.bf16.xpose.msra.mxu0 0
    %10455 = vmatprep.subr.bf16.mxu0 0
    %10456 = vmatpush1.bf16.xpose.msra.mxu0 0
    %10457 = vmatprep.subr.bf16.mxu0 0
    %10458 = vmatpush1.bf16.xpose.msra.mxu0 0
    %10459 = vmatprep.subr.bf16.mxu0 0
    %10460 = vmatpush1.bf16.xpose.msra.mxu0 0
    %10461 = vmatprep.subr.bf16.mxu0 0
    %10462 = vmatpush1.bf16.xpose.msra.mxu0 0
    %10463 = vmatprep.subr.bf16.mxu0 0
    %10464 = vmatpush1.bf16.xpose.msra.mxu0 0
    %10465 = vmatprep.subr.bf16.mxu0 0
    %10466 = vmatpush1.bf16.xpose.msra.mxu0 0
    %10467 = vmatprep.subr.bf16.mxu0 0
    %10468 = vmatpush1.bf16.xpose.msra.mxu0 0
    %10469 = vmatprep.subr.bf16.mxu0 0
    %10470 = vmatpush1.bf16.xpose.msra.mxu0 0
    %10471 = vmatprep.mubr.bf16.mxu0 0
    %10472 = vmatmul.mubr.bf16.gmra.mrb[0].mxu0 %v10434
    %v10473 = vpop.f32.mrb[0].mxu0
    %v10474 = vadd.f32 0.0, %v10473
    %v10475 = vpop.f32.mrb[0].mxu0
    %v10476 = vpop.f32.mrb[0].mxu0
    %v10477 = vpop.f32.mrb[0].mxu0
    %10478 = vdwg.mxu0
    %v10479 = vsel %vm576, %v10423, -inf
    %10480 = vmax.xlane.f32.xlu0 %v10479
    %v10481 = vpop.xlane.xlu0 %10480
    %v10482 = vsel %vm576, %v10474, -inf
    %10483 = vmax.xlane.f32.xlu0 %v10482
    %v10484 = vpop.xlane.xlu0 %10483
    %v10485 = vsub.f32 %v10423, %v10481
    %v10486 = vsub.f32 %v10474, %v10484
    %v10487 = vmul.f32 %v10485, 1.442695
    %v10488 = vpow.pop %v10487
    %v10489 = vmul.f32 %v10486, 1.442695
    %v10490 = vpow.pop %v10489
    %v10491 = vsel %vm576, %v10488, 0.0
    %10492 = vadd.xlane.f32.xlu0 %v10491
    %v10493 = vpop.xlane.xlu0 %10492
    %v10494 = vsel %vm576, %v10490, 0.0
    %10495 = vadd.xlane.f32.xlu0 %v10494
    %v10496 = vpop.xlane.xlu0 %10495
    %v10497 = vrcp.pop %v10493
    %v10498 = vrcp.pop %v10496
    %v10499 = vmul.f32 %v10488, %v10497
    %v10500 = vmul.f32 %v10490, %v10498
    %v10501 = vpack.c.bf16 %v10499, %v10499
    %v10502 = vpack.c.bf16 %v10500, %v10500
    %10503 = vrot.lane.b32.xlu0 %v10155, 48
    %v10504 = vpop.permute.xlu0 %10503
    %v10506 = vsel %vm576, %v10501, 0
    %v10509 = vsel %vm251, %v10504, 0
    %10511 = vmatprep.subr.bf16.mxu0 0
    %10512 = vmatpush1.bf16.msra.mxu0 %v10509
    %10513 = vmatprep.subr.bf16.mxu0 0
    %10514 = vmatpush1.bf16.msra.mxu0 0
    %10515 = vmatprep.subr.bf16.mxu0 0
    %10516 = vmatpush1.bf16.msra.mxu0 0
    %10517 = vmatprep.subr.bf16.mxu0 0
    %10518 = vmatpush1.bf16.msra.mxu0 0
    %10519 = vmatprep.subr.bf16.mxu0 0
    %10520 = vmatpush1.bf16.msra.mxu0 0
    %10521 = vmatprep.subr.bf16.mxu0 0
    %10522 = vmatpush1.bf16.msra.mxu0 0
    %10523 = vmatprep.subr.bf16.mxu0 0
    %10524 = vmatpush1.bf16.msra.mxu0 0
    %10525 = vmatprep.subr.bf16.mxu0 0
    %10526 = vmatpush1.bf16.msra.mxu0 0
    %10527 = vmatprep.subr.bf16.mxu0 0
    %10528 = vmatpush1.bf16.msra.mxu0 0
    %10529 = vmatprep.subr.bf16.mxu0 0
    %10530 = vmatpush1.bf16.msra.mxu0 0
    %10531 = vmatprep.subr.bf16.mxu0 0
    %10532 = vmatpush1.bf16.msra.mxu0 0
    %10533 = vmatprep.subr.bf16.mxu0 0
    %10534 = vmatpush1.bf16.msra.mxu0 0
    %10535 = vmatprep.subr.bf16.mxu0 0
    %10536 = vmatpush1.bf16.msra.mxu0 0
    %10537 = vmatprep.subr.bf16.mxu0 0
    %10538 = vmatpush1.bf16.msra.mxu0 0
    %10539 = vmatprep.subr.bf16.mxu0 0
    %10540 = vmatpush1.bf16.msra.mxu0 0
    %10541 = vmatprep.subr.bf16.mxu0 0
    %10542 = vmatpush1.bf16.msra.mxu0 0
    %10543 = vmatprep.mubr.bf16.mxu0 0
    %10544 = vmatmul.mubr.bf16.gmra.mrb[0].mxu0 %v10506
    %v10545 = vpop.f32.mrb[0].mxu0
    %v10546 = vadd.f32 0.0, %v10545
    %v10547 = vpop.f32.mrb[0].mxu0
    %v10548 = vpop.f32.mrb[0].mxu0
    %v10549 = vpop.f32.mrb[0].mxu0
    %10550 = vdwg.mxu0
    %10551 = vrot.lane.b32.xlu0 %v10156, 48
    %v10552 = vpop.permute.xlu0 %10551
    %v10554 = vsel %vm576, %v10502, 0
    %v10557 = vsel %vm251, %v10552, 0
    %10559 = vmatprep.subr.bf16.mxu0 0
    %10560 = vmatpush1.bf16.msra.mxu0 %v10557
    %10561 = vmatprep.subr.bf16.mxu0 0
    %10562 = vmatpush1.bf16.msra.mxu0 0
    %10563 = vmatprep.subr.bf16.mxu0 0
    %10564 = vmatpush1.bf16.msra.mxu0 0
    %10565 = vmatprep.subr.bf16.mxu0 0
    %10566 = vmatpush1.bf16.msra.mxu0 0
    %10567 = vmatprep.subr.bf16.mxu0 0
    %10568 = vmatpush1.bf16.msra.mxu0 0
    %10569 = vmatprep.subr.bf16.mxu0 0
    %10570 = vmatpush1.bf16.msra.mxu0 0
    %10571 = vmatprep.subr.bf16.mxu0 0
    %10572 = vmatpush1.bf16.msra.mxu0 0
    %10573 = vmatprep.subr.bf16.mxu0 0
    %10574 = vmatpush1.bf16.msra.mxu0 0
    %10575 = vmatprep.subr.bf16.mxu0 0
    %10576 = vmatpush1.bf16.msra.mxu0 0
    %10577 = vmatprep.subr.bf16.mxu0 0
    %10578 = vmatpush1.bf16.msra.mxu0 0
    %10579 = vmatprep.subr.bf16.mxu0 0
    %10580 = vmatpush1.bf16.msra.mxu0 0
    %10581 = vmatprep.subr.bf16.mxu0 0
    %10582 = vmatpush1.bf16.msra.mxu0 0
    %10583 = vmatprep.subr.bf16.mxu0 0
    %10584 = vmatpush1.bf16.msra.mxu0 0
    %10585 = vmatprep.subr.bf16.mxu0 0
    %10586 = vmatpush1.bf16.msra.mxu0 0
    %10587 = vmatprep.subr.bf16.mxu0 0
    %10588 = vmatpush1.bf16.msra.mxu0 0
    %10589 = vmatprep.subr.bf16.mxu0 0
    %10590 = vmatpush1.bf16.msra.mxu0 0
    %10591 = vmatprep.mubr.bf16.mxu0 0
    %10592 = vmatmul.mubr.bf16.gmra.mrb[0].mxu0 %v10554
    %v10593 = vpop.f32.mrb[0].mxu0
    %v10594 = vadd.f32 0.0, %v10593
    %v10595 = vpop.f32.mrb[0].mxu0
    %v10596 = vpop.f32.mrb[0].mxu0
    %v10597 = vpop.f32.mrb[0].mxu0
    %10598 = vdwg.mxu0
    %v10599 = vpack.c.bf16 %v10594, %v10546
    %v10600 = vpack.c.bf16 %v10150, %v10149
    %v10602 = vsel %vm401, %v10599, 0
    %10604 = vmatprep.subr.bf16.mxu0 0
    %10605 = vmatpush1.bf16.msra.mxu0 %v10600
    %10606 = vmatprep.subr.bf16.mxu0 0
    %10607 = vmatpush1.bf16.msra.mxu0 0
    %10608 = vmatprep.subr.bf16.mxu0 0
    %10609 = vmatpush1.bf16.msra.mxu0 0
    %10610 = vmatprep.subr.bf16.mxu0 0
    %10611 = vmatpush1.bf16.msra.mxu0 0
    %10612 = vmatprep.subr.bf16.mxu0 0
    %10613 = vmatpush1.bf16.msra.mxu0 0
    %10614 = vmatprep.subr.bf16.mxu0 0
    %10615 = vmatpush1.bf16.msra.mxu0 0
    %10616 = vmatprep.subr.bf16.mxu0 0
    %10617 = vmatpush1.bf16.msra.mxu0 0
    %10618 = vmatprep.subr.bf16.mxu0 0
    %10619 = vmatpush1.bf16.msra.mxu0 0
    %10620 = vmatprep.subr.bf16.mxu0 0
    %10621 = vmatpush1.bf16.msra.mxu0 0
    %10622 = vmatprep.subr.bf16.mxu0 0
    %10623 = vmatpush1.bf16.msra.mxu0 0
    %10624 = vmatprep.subr.bf16.mxu0 0
    %10625 = vmatpush1.bf16.msra.mxu0 0
    %10626 = vmatprep.subr.bf16.mxu0 0
    %10627 = vmatpush1.bf16.msra.mxu0 0
    %10628 = vmatprep.subr.bf16.mxu0 0
    %10629 = vmatpush1.bf16.msra.mxu0 0
    %10630 = vmatprep.subr.bf16.mxu0 0
    %10631 = vmatpush1.bf16.msra.mxu0 0
    %10632 = vmatprep.subr.bf16.mxu0 0
    %10633 = vmatpush1.bf16.msra.mxu0 0
    %10634 = vmatprep.subr.bf16.mxu0 0
    %10635 = vmatpush1.bf16.msra.mxu0 0
    %10636 = vmatprep.mubr.bf16.mxu0 0
    %10637 = vmatmul.mubr.bf16.gmra.mrb[0].mxu0 %v10602
    %v10638 = vpop.f32.mrb[0].mxu0
    %v10639 = vadd.f32 0.0, %v10638
    %v10640 = vpop.f32.mrb[0].mxu0
    %v10641 = vpop.f32.mrb[0].mxu0
    %v10642 = vadd.f32 0.0, %v10641
    %v10643 = vpop.f32.mrb[0].mxu0
    %10644 = vdwg.mxu0
    %v10646 = vsel %vm401, %v10375, 0
    %10648 = vmatprep.subr.bf16.mxu0 0
    %10649 = vmatpush1.bf16.msra.mxu0 %v10376
    %10650 = vmatprep.subr.bf16.mxu0 0
    %10651 = vmatpush1.bf16.msra.mxu0 0
    %10652 = vmatprep.subr.bf16.mxu0 0
    %10653 = vmatpush1.bf16.msra.mxu0 0
    %10654 = vmatprep.subr.bf16.mxu0 0
    %10655 = vmatpush1.bf16.msra.mxu0 0
    %10656 = vmatprep.subr.bf16.mxu0 0
    %10657 = vmatpush1.bf16.msra.mxu0 0
    %10658 = vmatprep.subr.bf16.mxu0 0
    %10659 = vmatpush1.bf16.msra.mxu0 0
    %10660 = vmatprep.subr.bf16.mxu0 0
    %10661 = vmatpush1.bf16.msra.mxu0 0
    %10662 = vmatprep.subr.bf16.mxu0 0
    %10663 = vmatpush1.bf16.msra.mxu0 0
    %10664 = vmatprep.subr.bf16.mxu0 0
    %10665 = vmatpush1.bf16.msra.mxu0 0
    %10666 = vmatprep.subr.bf16.mxu0 0
    %10667 = vmatpush1.bf16.msra.mxu0 0
    %10668 = vmatprep.subr.bf16.mxu0 0
    %10669 = vmatpush1.bf16.msra.mxu0 0
    %10670 = vmatprep.subr.bf16.mxu0 0
    %10671 = vmatpush1.bf16.msra.mxu0 0
    %10672 = vmatprep.subr.bf16.mxu0 0
    %10673 = vmatpush1.bf16.msra.mxu0 0
    %10674 = vmatprep.subr.bf16.mxu0 0
    %10675 = vmatpush1.bf16.msra.mxu0 0
    %10676 = vmatprep.subr.bf16.mxu0 0
    %10677 = vmatpush1.bf16.msra.mxu0 0
    %10678 = vmatprep.subr.bf16.mxu0 0
    %10679 = vmatpush1.bf16.msra.mxu0 0
    %10680 = vmatprep.mubr.bf16.mxu0 0
    %10681 = vmatmul.mubr.bf16.gmra.mrb[0].mxu0 %v10646
    %v10682 = vpop.f32.mrb[0].mxu0
    %v10683 = vadd.f32 %v10639, %v10682
    %v10684 = vpop.f32.mrb[0].mxu0
    %v10685 = vpop.f32.mrb[0].mxu0
    %v10686 = vadd.f32 %v10642, %v10685
    %v10687 = vpop.f32.mrb[0].mxu0
    %10688 = vdwg.mxu0
    %v10689 = vld [vmem:[%s2 + $0x168] sm:$0x1]
    %v10690 = vlaneseq
    %v10691 = vshrl.u32 %v10690, 7
    %v10692 = vsub.s32 0, %v10691
    %v10693 = vrot.slane %v10689, %v10692
    %v10694 = vadd.f32 %v10683, %v10693
    %v10695 = vadd.f32 %v10686, %v10693
    %v10696 = vadd.f32 %v10089, %v10694
    %v10697 = vadd.f32 %v10090, %v10695
    %v10698 = vld [vmem:[%s2 + $0x170] sm:$0x1]
    %v10699 = vld [vmem:[%s2 + $0x178] sm:$0x1]
    %v10700 = vsel %vm4820, %v10696, 0.0
    %10701 = vadd.xlane.f32.xlu0 %v10700
    %v10702 = vpop.xlane.xlu0 %10701
    %v10703 = vsel %vm4820, %v10697, 0.0
    %10704 = vadd.xlane.f32.xlu0 %v10703
    %v10705 = vpop.xlane.xlu0 %10704
    %v10706 = vrcp.pop 32.0
    %v10707 = vmul.f32 %v10702, %v10706
    %v10708 = vmul.f32 %v10705, %v10706
    %v10709 = vsub.f32 %v10696, %v10707
    %v10710 = vsub.f32 %v10697, %v10708
    %v10711 = vmul.f32 %v10709, %v10709
    %v10712 = vmul.f32 %v10710, %v10710
    %v10713 = vsel %vm4820, %v10711, 0.0
    %10714 = vadd.xlane.f32.xlu0 %v10713
    %v10715 = vpop.xlane.xlu0 %10714
    %v10716 = vsel %vm4820, %v10712, 0.0
    %10717 = vadd.xlane.f32.xlu0 %v10716
    %v10718 = vpop.xlane.xlu0 %10717
    %v10719 = vmul.f32 %v10715, %v10706
    %v10720 = vmul.f32 %v10718, %v10706
    %v10721 = vadd.f32 %v10719, 1e-05
    %v10722 = vadd.f32 %v10720, 1e-05
    %v10723 = vrsqrt.pop %v10721
    %v10724 = vrsqrt.pop %v10722
    %v10725 = vmul.f32 %v10709, %v10723
    %v10726 = vmul.f32 %v10710, %v10724
    %v10727 = vlaneseq
    %v10728 = vshrl.u32 %v10727, 7
    %v10729 = vsub.s32 0, %v10728
    %v10730 = vrot.slane %v10698, %v10729
    %v10731 = vmul.f32 %v10725, %v10730
    %v10732 = vmul.f32 %v10726, %v10730
    %v10733 = vlaneseq
    %v10734 = vshrl.u32 %v10733, 7
    %v10735 = vsub.s32 0, %v10734
    %v10736 = vrot.slane %v10699, %v10735
    %v10737 = vadd.f32 %v10731, %v10736
    %v10738 = vadd.f32 %v10732, %v10736
    %v10739 = vld [vmem:[%s2 + $0x180] sm:$0xff]
    %v10740 = vld [vmem:[%s2 + $0x188] sm:$0xff]
    %v10741 = vld [vmem:[%s2 + $0x190] sm:$0xff]
    %v10742 = vld [vmem:[%s2 + $0x198] sm:$0xff]
    %v10743 = vpack.c.bf16 %v10738, %v10737
    %v10744 = vpack.c.bf16 %v10740, %v10739
    %v10745 = vpack.c.bf16 %v10742, %v10741
    %v10746 = vld [vmem:[%s2 + $0x1a0] sm:$0x1]
    %v10747 = vlaneseq
    %v10748 = vshrl.u32 %v10747, 7
    %v10749 = vsub.s32 0, %v10748
    %v10750 = vrot.slane %v10746, %v10749
    %v10752 = vsel %vm4820, %v10743, 0
    %10754 = vmatprep.subr.bf16.mxu0 0
    %10755 = vmatpush1.bf16.msra.mxu0 %v10744
    %10756 = vmatprep.subr.bf16.mxu0 0
    %10757 = vmatpush1.bf16.msra.mxu0 %v10745
    %10758 = vmatprep.subr.bf16.mxu0 0
    %10759 = vmatpush1.bf16.msra.mxu0 0
    %10760 = vmatprep.subr.bf16.mxu0 0
    %10761 = vmatpush1.bf16.msra.mxu0 0
    %10762 = vmatprep.subr.bf16.mxu0 0
    %10763 = vmatpush1.bf16.msra.mxu0 0
    %10764 = vmatprep.subr.bf16.mxu0 0
    %10765 = vmatpush1.bf16.msra.mxu0 0
    %10766 = vmatprep.subr.bf16.mxu0 0
    %10767 = vmatpush1.bf16.msra.mxu0 0
    %10768 = vmatprep.subr.bf16.mxu0 0
    %10769 = vmatpush1.bf16.msra.mxu0 0
    %10770 = vmatprep.subr.bf16.mxu0 0
    %10771 = vmatpush1.bf16.msra.mxu0 0
    %10772 = vmatprep.subr.bf16.mxu0 0
    %10773 = vmatpush1.bf16.msra.mxu0 0
    %10774 = vmatprep.subr.bf16.mxu0 0
    %10775 = vmatpush1.bf16.msra.mxu0 0
    %10776 = vmatprep.subr.bf16.mxu0 0
    %10777 = vmatpush1.bf16.msra.mxu0 0
    %10778 = vmatprep.subr.bf16.mxu0 0
    %10779 = vmatpush1.bf16.msra.mxu0 0
    %10780 = vmatprep.subr.bf16.mxu0 0
    %10781 = vmatpush1.bf16.msra.mxu0 0
    %10782 = vmatprep.subr.bf16.mxu0 0
    %10783 = vmatpush1.bf16.msra.mxu0 0
    %10784 = vmatprep.subr.bf16.mxu0 0
    %10785 = vmatpush1.bf16.msra.mxu0 0
    %10786 = vmatprep.mubr.bf16.mxu0 0
    %10787 = vmatmul.mubr.bf16.gmra.mrb[0].mxu0 %v10752
    %v10788 = vpop.f32.mrb[0].mxu0
    %v10789 = vadd.f32 %v10750, %v10788
    %v10790 = vpop.f32.mrb[0].mxu0
    %v10791 = vpop.f32.mrb[0].mxu0
    %v10792 = vadd.f32 %v10750, %v10791
    %v10793 = vpop.f32.mrb[0].mxu0
    %10794 = vdwg.mxu0
    %v10795 = vmax.f32 %v10789, 0.0
    %v10796 = vmax.f32 %v10792, 0.0
    %v10797 = vld [vmem:[%s2 + $0x1a8] sm:$0xff]
    %v10798 = vld [vmem:[%s2 + $0x1b0] sm:$0xff]
    %v10799 = vld [vmem:[%s2 + $0x1b8] sm:$0xff]
    %v10800 = vld [vmem:[%s2 + $0x1c0] sm:$0xff]
    %v10801 = vpack.c.bf16 %v10796, %v10795
    %v10802 = vpack.c.bf16 %v10798, %v10797
    %v10803 = vpack.c.bf16 %v10800, %v10799
    %v10804 = vld [vmem:[%s2 + $0x1c8] sm:$0x1]
    %v10805 = vlaneseq
    %v10806 = vshrl.u32 %v10805, 7
    %v10807 = vsub.s32 0, %v10806
    %v10808 = vrot.slane %v10804, %v10807
    %v10810 = vsel %vm4820, %v10801, 0
    %10812 = vmatprep.subr.bf16.mxu0 0
    %10813 = vmatpush1.bf16.msra.mxu0 %v10802
    %10814 = vmatprep.subr.bf16.mxu0 0
    %10815 = vmatpush1.bf16.msra.mxu0 %v10803
    %10816 = vmatprep.subr.bf16.mxu0 0
    %10817 = vmatpush1.bf16.msra.mxu0 0
    %10818 = vmatprep.subr.bf16.mxu0 0
    %10819 = vmatpush1.bf16.msra.mxu0 0
    %10820 = vmatprep.subr.bf16.mxu0 0
    %10821 = vmatpush1.bf16.msra.mxu0 0
    %10822 = vmatprep.subr.bf16.mxu0 0
    %10823 = vmatpush1.bf16.msra.mxu0 0
    %10824 = vmatprep.subr.bf16.mxu0 0
    %10825 = vmatpush1.bf16.msra.mxu0 0
    %10826 = vmatprep.subr.bf16.mxu0 0
    %10827 = vmatpush1.bf16.msra.mxu0 0
    %10828 = vmatprep.subr.bf16.mxu0 0
    %10829 = vmatpush1.bf16.msra.mxu0 0
    %10830 = vmatprep.subr.bf16.mxu0 0
    %10831 = vmatpush1.bf16.msra.mxu0 0
    %10832 = vmatprep.subr.bf16.mxu0 0
    %10833 = vmatpush1.bf16.msra.mxu0 0
    %10834 = vmatprep.subr.bf16.mxu0 0
    %10835 = vmatpush1.bf16.msra.mxu0 0
    %10836 = vmatprep.subr.bf16.mxu0 0
    %10837 = vmatpush1.bf16.msra.mxu0 0
    %10838 = vmatprep.subr.bf16.mxu0 0
    %10839 = vmatpush1.bf16.msra.mxu0 0
    %10840 = vmatprep.subr.bf16.mxu0 0
    %10841 = vmatpush1.bf16.msra.mxu0 0
    %10842 = vmatprep.subr.bf16.mxu0 0
    %10843 = vmatpush1.bf16.msra.mxu0 0
    %10844 = vmatprep.mubr.bf16.mxu0 0
    %10845 = vmatmul.mubr.bf16.gmra.mrb[0].mxu0 %v10810
    %v10846 = vpop.f32.mrb[0].mxu0
    %v10847 = vadd.f32 %v10808, %v10846
    %v10848 = vpop.f32.mrb[0].mxu0
    %v10849 = vpop.f32.mrb[0].mxu0
    %v10850 = vadd.f32 %v10808, %v10849
    %v10851 = vpop.f32.mrb[0].mxu0
    %10852 = vdwg.mxu0
    %v10853 = vadd.f32 %v10737, %v10847
    %v10854 = vadd.f32 %v10738, %v10850
    %v10855 = vld [vmem:[%s2 + $0x1d0] sm:$0x1]
    %v10856 = vld [vmem:[%s2 + $0x1d8] sm:$0x1]
    %v10857 = vsel %vm4820, %v10853, 0.0
    %10858 = vadd.xlane.f32.xlu0 %v10857
    %v10859 = vpop.xlane.xlu0 %10858
    %v10860 = vsel %vm4820, %v10854, 0.0
    %10861 = vadd.xlane.f32.xlu0 %v10860
    %v10862 = vpop.xlane.xlu0 %10861
    %v10863 = vmul.f32 %v10859, %v10706
    %v10864 = vmul.f32 %v10862, %v10706
    %v10865 = vsub.f32 %v10853, %v10863
    %v10866 = vsub.f32 %v10854, %v10864
    %v10867 = vmul.f32 %v10865, %v10865
    %v10868 = vmul.f32 %v10866, %v10866
    %v10869 = vsel %vm4820, %v10867, 0.0
    %10870 = vadd.xlane.f32.xlu0 %v10869
    %v10871 = vpop.xlane.xlu0 %10870
    %v10872 = vsel %vm4820, %v10868, 0.0
    %10873 = vadd.xlane.f32.xlu0 %v10872
    %v10874 = vpop.xlane.xlu0 %10873
    %v10875 = vmul.f32 %v10871, %v10706
    %v10876 = vmul.f32 %v10874, %v10706
    %v10877 = vadd.f32 %v10875, 1e-05
    %v10878 = vadd.f32 %v10876, 1e-05
    %v10879 = vrsqrt.pop %v10877
    %v10880 = vrsqrt.pop %v10878
    %v10881 = vmul.f32 %v10865, %v10879
    %v10882 = vmul.f32 %v10866, %v10880
    %v10883 = vlaneseq
    %v10884 = vshrl.u32 %v10883, 7
    %v10885 = vsub.s32 0, %v10884
    %v10886 = vrot.slane %v10855, %v10885
    %v10887 = vmul.f32 %v10881, %v10886
    %v10888 = vmul.f32 %v10882, %v10886
    %v10889 = vlaneseq
    %v10890 = vshrl.u32 %v10889, 7
    %v10891 = vsub.s32 0, %v10890
    %v10892 = vrot.slane %v10856, %v10891
    %v10893 = vadd.f32 %v10887, %v10892
    %v10894 = vadd.f32 %v10888, %v10892
    %v10895 = vld [vmem:[%s2 + $0x1e0] sm:$0xff]
    %v10896 = vld [vmem:[%s2 + $0x1e8] sm:$0xff]
    %v10897 = vld [vmem:[%s2 + $0x1f0] sm:$0xff]
    %v10898 = vld [vmem:[%s2 + $0x1f8] sm:$0xff]
    %v10899 = vpack.c.bf16 %v10893, %v10893
    %v10900 = vpack.c.bf16 %v10894, %v10894
    %v10901 = vpack.c.bf16 %v10896, %v10895
    %v10902 = vpack.c.bf16 %v10898, %v10897
    %v10903 = vld [vmem:[%s2 + $0x200] sm:$0x1]
    %v10904 = vlaneseq
    %v10905 = vshrl.u32 %v10904, 7
    %v10906 = vsub.s32 0, %v10905
    %v10907 = vrot.slane %v10903, %v10906
    %v10910 = vunpack.c.l.b16 %v10899
    %v10911 = vunpack.c.l.b16 %v10900
    %v10912 = vrot.slane %v10911, 7
    %v10913 = vsel %vm10046, %v10912, %v10910
    %v10914 = vpack.c.b16 %v10913, %v10913
    %v10916 = vsel %vm4820, %v10914, 0
    %10918 = vmatprep.subr.bf16.mxu0 0
    %10919 = vmatpush1.bf16.msra.mxu0 %v10901
    %10920 = vmatprep.subr.bf16.mxu0 0
    %10921 = vmatpush1.bf16.msra.mxu0 %v10902
    %10922 = vmatprep.subr.bf16.mxu0 0
    %10923 = vmatpush1.bf16.msra.mxu0 0
    %10924 = vmatprep.subr.bf16.mxu0 0
    %10925 = vmatpush1.bf16.msra.mxu0 0
    %10926 = vmatprep.subr.bf16.mxu0 0
    %10927 = vmatpush1.bf16.msra.mxu0 0
    %10928 = vmatprep.subr.bf16.mxu0 0
    %10929 = vmatpush1.bf16.msra.mxu0 0
    %10930 = vmatprep.subr.bf16.mxu0 0
    %10931 = vmatpush1.bf16.msra.mxu0 0
    %10932 = vmatprep.subr.bf16.mxu0 0
    %10933 = vmatpush1.bf16.msra.mxu0 0
    %10934 = vmatprep.subr.bf16.mxu0 0
    %10935 = vmatpush1.bf16.msra.mxu0 0
    %10936 = vmatprep.subr.bf16.mxu0 0
    %10937 = vmatpush1.bf16.msra.mxu0 0
    %10938 = vmatprep.subr.bf16.mxu0 0
    %10939 = vmatpush1.bf16.msra.mxu0 0
    %10940 = vmatprep.subr.bf16.mxu0 0
    %10941 = vmatpush1.bf16.msra.mxu0 0
    %10942 = vmatprep.subr.bf16.mxu0 0
    %10943 = vmatpush1.bf16.msra.mxu0 0
    %10944 = vmatprep.subr.bf16.mxu0 0
    %10945 = vmatpush1.bf16.msra.mxu0 0
    %10946 = vmatprep.subr.bf16.mxu0 0
    %10947 = vmatpush1.bf16.msra.mxu0 0
    %10948 = vmatprep.subr.bf16.mxu0 0
    %10949 = vmatpush1.bf16.msra.mxu0 0
    %10950 = vmatprep.mubr.bf16.mxu0 0
    %10951 = vmatmul.mubr.bf16.gmra.mrb[0].mxu0 %v10916
    %v10952 = vpop.f32.mrb[0].mxu0
    %v10953 = vadd.f32 %v10907, %v10952
    %v10954 = vpop.f32.mrb[0].mxu0
    %v10955 = vpop.f32.mrb[0].mxu0
    %v10956 = vpop.f32.mrb[0].mxu0
    %10957 = vdwg.mxu0
    %vm10958 = vcmask 25600
    %v10959 = vsel %vm10958, %v10953, -inf
    %10960 = vmax.xlane.f32.xlu0 %v10959
    %v10961 = vpop.xlane.xlu0 %10960
    %v10962 = vsub.f32 %v10953, %v10961
    %v10963 = vmul.f32 %v10962, 1.442695
    %v10964 = vpow.pop %v10963
    %v10965 = vsel %vm10958, %v10964, 0.0
    %10966 = vadd.xlane.f32.xlu0 %v10965
    %v10967 = vpop.xlane.xlu0 %10966
    %v10968 = vrcp.pop %v10967
    %v10969 = vmul.f32 %v10964, %v10968
    %10970 = vst.msk [vmem:[#allocation3] sm:$0x3] %vm10958, %v10969
    // Predicated region
    $region14: #{hit_simply_forward.1} parent=1 // pred_check
      _
    $region15: #{hit_simply_forward.1} parent=1 // pred_check_branch
      %10972 = sbr.rel (0) target = $region17
    $region16: #{hit_simply_forward.1} parent=1 // pred_region
      %s10974 = ssub.s32 32, 32
      %10975 = vsyncadd [#allocation4], %s10974
      %s10977 = sshll.u32 [#allocation3], 4
      %s10978 = int_to_ptr.vmem [resolvable:$true] %s10977
      %10980 = dma.vmem_to_hbm [thread:$0]  %s10978, 32, %s3, [#allocation4]
    $region17: #{hit_simply_forward.1} parent=1 // pred_fallthru
      _
    // Predicated region
    $region18: #{hit_simply_forward.1} parent=1 // pred_check
      _
    $region19: #{hit_simply_forward.1} parent=1 // pred_check_branch
      %10982 = sbr.rel (0) target = $region21
    $region20: #{hit_simply_forward.1} parent=1 // pred_region
      %10983 = dma.done [#allocation4], 32
    $region21: #{hit_simply_forward.1} parent=1 // pred_fallthru
      _
    %10984 = vsyncpa [#allocation4], 1

</llo_original>
